<compile_context>
chip_gen: v7x
topology: tpu7x:2x2x1
jax: 0.10.0
libtpu: 0.0.40
codegen_flags: <defaults>
</compile_context>

<pallas_src>
import functools
from typing import NamedTuple

import jax
import jax.numpy as jnp
from jax import lax
from jax.experimental import pallas as pl
from jax.experimental.pallas import tpu as pltpu


class Seq2seqConfig(NamedTuple):
    """Static (Python int) hyper-parameters, kept OUT of the jitted params."""
    vocab_enc: int = 32
    e_enc: int = 32        # encoder embedding size
    enc_h: int = 64        # encoder hidden per direction (decoder hidden = 2H = 128)
    n_class: int = 128     # decoder output vocab (lane-dense)
    e_dec: int = 32        # decoder embedding size
    max_decode_len: int = 8
    sos_id: int = 1


# ----------------------------------------------------------------------------
# fused encoder -> _cat_directions -> attention decoder kernel
# ----------------------------------------------------------------------------
def seq2seq_kernel(xcat_ref,                 # [T, B, 2E] bf16 : lanes [x_t | x_{T-1-t}]
                   enc_wih_ref,              # [2E, 3DH]  bf16 : gate-interleaved, dir-fused
                   enc_whh_ref,              # [DH, 3DH]  bf16 : block-diagonal per gate
                   enc_bih_ref, enc_bhh_ref, # [1, 3DH]   f32
                   dec_w_ref,                # [C+DH, 4DH] bf16 : [r | z | n_i | n_h]
                   dec_b_ref,                # [1, 4DH]   f32
                   att_w_ref, att_b_ref,     # [2DH, DH] bf16, [1, DH] f32
                   out_w_ref, out_b_ref,     # [DH, C]  bf16, [1, C]  f32
                   logp_ref, hout_ref,       # outs: [L,B,C] f32, [B,DH] f32
                   gi_scr, hcat_scr, enc_pad,   # VMEM scratch
                   *, T, B, E2, H, DH, C, L, SOS, S_PAD):
    f32 = jnp.float32
    bf16 = jnp.bfloat16

    # ----------------------- encoder: bidirectional GRU -----------------------
    # Hoisted input projections for BOTH directions in one matmul; the time
    # reversal of the backward direction is already folded into x_cat's lanes,
    # so row t of gi_scr is the full 384-lane pre-activation for loop step t.
    x2d = xcat_ref[...].reshape(T * B, E2)
    gi_all = jnp.dot(x2d, enc_wih_ref[...], preferred_element_type=f32)
    gi_scr[...] = (gi_all + enc_bih_ref[...]).reshape(T, B, 3 * DH)

    whh = enc_whh_ref[...]                                      # bf16 [DH, 3DH]
    bhh = jnp.broadcast_to(enc_bhh_ref[...], (B, 3 * DH))       # pre-broadcast once

    def enc_body(t, h):
        # h: [B, DH] f32, lanes [0:H] forward state at t, [H:DH] backward state
        # at timestep T-1-t.  One full-width matmul + full-128-lane gate math.
        gi = gi_scr[t]                                          # [B, 3DH]
        gh = jnp.dot(h.astype(bf16), whh, preferred_element_type=f32) + bhh
        r = jax.nn.sigmoid(gi[:, 0:DH] + gh[:, 0:DH])
        z = jax.nn.sigmoid(gi[:, DH:2 * DH] + gh[:, DH:2 * DH])
        n = jnp.tanh(gi[:, 2 * DH:3 * DH] + r * gh[:, 2 * DH:3 * DH])
        h = (1.0 - z) * n + z * h
        hcat_scr[t] = h                                         # lane-dense store
        return h

    h_fin = lax.fori_loop(0, T, enc_body, jnp.zeros((B, DH), f32), unroll=True)
    # _cat_directions (mode==1, gru->gru): decoder h0 = [h_fwd_final | h_bwd_final]
    # which is exactly h_fin (fwd lanes hold step T-1, bwd lanes hold timestep 0).

    # Un-interleave once: encoder output at time t = [h_f(t) | h_b(t)]; the bwd
    # half of hcat_scr[t] belongs to timestep T-1-t.  Written into a 128-row
    # padded, lane-dense attention buffer (padding rows zero).
    lane = lax.broadcasted_iota(jnp.int32, (B, DH), 1)
    bwd_lane = lane >= H
    enc_pad[...] = jnp.zeros((S_PAD, DH), f32)

    def uni_body(t, carry):
        row = jnp.where(bwd_lane, hcat_scr[T - 1 - t], hcat_scr[t])   # [B, DH]
        enc_pad[pl.ds(t * B, B), :] = row
        return carry

    lax.fori_loop(0, T, uni_body, 0, unroll=True)

    # -------------- decoder: GRU + dot attention + log_softmax ---------------
    enc_flat = enc_pad[...].astype(bf16)                        # [S_PAD, DH] bf16

    # Batch folded into masked columns: row b only keeps real columns t*B+b.
    col = lax.broadcasted_iota(jnp.int32, (B, S_PAD), 1)
    row = lax.broadcasted_iota(jnp.int32, (B, S_PAD), 0)
    att_mask = jnp.where((col % B == row) & (col < T * B), 0.0, -1e30).astype(f32)

    dec_w = dec_w_ref[...]                                      # bf16 [C+DH, 4DH]
    b_dec = jnp.broadcast_to(dec_b_ref[...], (B, 4 * DH))
    att_w = att_w_ref[...]                                      # bf16 [2DH, DH]
    att_b = jnp.broadcast_to(att_b_ref[...], (B, DH))
    out_w = out_w_ref[...]                                      # bf16 [DH, C]
    out_b = jnp.broadcast_to(out_b_ref[...], (B, C))

    iota_c = lax.broadcasted_iota(jnp.int32, (B, C), 1)
    tok0 = jnp.where(iota_c == SOS, 1.0, 0.0).astype(bf16)      # one-hot <sos>

    def dec_body(i, carry):
        h, tok = carry                                          # f32 [B,DH], bf16 [B,C]
        # fused GRU pre-activations: single MXU issue, K = C+DH = 256
        th = jnp.concatenate([tok, h.astype(bf16)], axis=-1)    # [B, C+DH]
        g = jnp.dot(th, dec_w, preferred_element_type=f32) + b_dec   # [B, 4DH]
        r = jax.nn.sigmoid(g[:, 0:DH])
        z = jax.nn.sigmoid(g[:, DH:2 * DH])
        n = jnp.tanh(g[:, 2 * DH:3 * DH] + r * g[:, 3 * DH:4 * DH])
        h = (1.0 - z) * n + z * h                               # [B, DH] f32

        # Luong dot attention on full 128-lane vregs (padded columns masked)
        hb = h.astype(bf16)
        s = lax.dot_general(hb, enc_flat, (((1,), (1,)), ((), ())),
                            preferred_element_type=f32) + att_mask    # [B, S_PAD]
        m = jnp.max(s, axis=-1, keepdims=True)
        e = jnp.exp(s - m)
        attn = e * pl.reciprocal(jnp.sum(e, axis=-1, keepdims=True), approx=True)
        context = jnp.dot(attn.astype(bf16), enc_flat,
                          preferred_element_type=f32)           # [B, DH]

        # combine: tanh(Linear(cat(h, context)))  (single matmul, K = 2DH)
        att_out = jnp.tanh(
            jnp.dot(jnp.concatenate([hb, context.astype(bf16)], axis=-1), att_w,
                    preferred_element_type=f32) + att_b)        # [B, DH]

        # output projection + log_softmax (decoder_function), exact f32
        logits = jnp.dot(att_out.astype(bf16), out_w,
                         preferred_element_type=f32) + out_b
        lm = jnp.max(logits, axis=-1, keepdims=True)
        lz = logits - lm
        logp = lz - jnp.log(jnp.sum(jnp.exp(lz), axis=-1, keepdims=True))
        logp_ref[i] = logp

        # greedy feedback token (first-max index, torch.topk(1) semantics);
        # symbols themselves are recomputed as argmax(logp) in the wrapper.
        lmax = jnp.max(logp, axis=-1, keepdims=True)
        cand = jnp.where(logp >= lmax, iota_c, jnp.int32(C))
        nxt = jnp.min(cand, axis=-1, keepdims=True)             # [B, 1]
        tok = jnp.where(iota_c == nxt, 1.0, 0.0).astype(bf16)
        return h, tok

    h_dec, _ = lax.fori_loop(0, L, dec_body, (h_fin, tok0), unroll=True)
    hout_ref[...] = h_dec


# ----------------------------------------------------------------------------
# wrapper / glue (weight fusion, lane layouts, pallas_call)
# ----------------------------------------------------------------------------
def run_seq2seq(x_emb, params, cfg):
    f32, bf16 = jnp.float32, jnp.bfloat16
    T, B, E = x_emb.shape
    H = cfg.enc_h
    DH = 2 * H
    C = cfg.n_class
    L = cfg.max_decode_len
    S_PAD = ((T * B + 127) // 128) * 128        # lane-dense attention rows

    def interleave(wf, wb):
        # per-gate column interleave: [.. r_f r_b .. z_f z_b .. n_f n_b ..]
        R = wf.shape[0]
        return jnp.concatenate([wf.reshape(R, 3, H), wb.reshape(R, 3, H)],
                               axis=-1).reshape(R, 3 * DH)

    zE = jnp.zeros((E, 3 * H), f32)
    zH = jnp.zeros((H, 3 * H), f32)
    # encoder: direction-fused input / block-diagonal hidden weights
    enc_wih_cat = jnp.concatenate(
        [interleave(params["enc_w_ih"][:, :3 * H], zE),
         interleave(zE, params["enc_w_ih"][:, 3 * H:])], axis=0)      # [2E, 3DH]
    enc_whh_cat = jnp.concatenate(
        [interleave(params["enc_w_hh_f"], zH),
         interleave(zH, params["enc_w_hh_b"])], axis=0)               # [DH, 3DH]
    enc_bih_cat = interleave(params["enc_b_ih"][:, :3 * H],
                             params["enc_b_ih"][:, 3 * H:])           # [1, 3DH]
    enc_bhh_cat = interleave(params["enc_b_hh_f"], params["enc_b_hh_b"])

    # decoder: embedding folded into the input projection, then the tok- and
    # h-driven pre-activations stacked into ONE [C+DH, 4DH] weight:
    # columns [r_fused | z_fused | n_input | n_hidden].
    emb_wih = params["dec_emb"] @ params["dec_w_ih"]                  # [C, 3DH]
    whh_d = params["dec_w_hh"]                                        # [DH, 3DH]
    dec_w = jnp.concatenate([
        jnp.concatenate([emb_wih[:, :2 * DH], emb_wih[:, 2 * DH:],
                         jnp.zeros((C, DH), f32)], axis=1),
        jnp.concatenate([whh_d[:, :2 * DH], jnp.zeros((DH, DH), f32),
                         whh_d[:, 2 * DH:]], axis=1)], axis=0)        # [C+DH, 4DH]
    dec_b = jnp.concatenate([
        params["dec_b_ih"][:, :2 * DH] + params["dec_b_hh"][:, :2 * DH],
        params["dec_b_ih"][:, 2 * DH:], params["dec_b_hh"][:, 2 * DH:]], axis=1)

    # fold the backward direction's time reversal into the input lanes:
    # x_cat[t] = [x_t | x_{T-1-t}]
    x_cat = jnp.concatenate([x_emb, x_emb[::-1]], axis=-1)            # [T, B, 2E]

    kernel = functools.partial(seq2seq_kernel, T=T, B=B, E2=2 * E, H=H, DH=DH,
                               C=C, L=L, SOS=cfg.sos_id, S_PAD=S_PAD)
    vmem = pl.BlockSpec(memory_space=pltpu.MemorySpace.VMEM)
    logp, h_fin = pl.pallas_call(
        kernel,
        out_shape=(
            jax.ShapeDtypeStruct((L, B, C), jnp.float32),
            jax.ShapeDtypeStruct((B, DH), jnp.float32),
        ),
        in_specs=[vmem] * 11,
        out_specs=(vmem, vmem),
        scratch_shapes=[
            pltpu.VMEM((T, B, 3 * DH), jnp.float32),   # hoisted encoder pre-activations
            pltpu.VMEM((T, B, DH), jnp.float32),       # interleaved recurrent states
            pltpu.VMEM((S_PAD, DH), jnp.float32),      # padded encoder outputs (attention)
        ],
    )(x_cat.astype(bf16),
      enc_wih_cat.astype(bf16), enc_whh_cat.astype(bf16), enc_bih_cat, enc_bhh_cat,
      dec_w.astype(bf16), dec_b,
      params["att_w"].astype(bf16), params["att_b"],
      params["out_w"].astype(bf16), params["out_b"])
    return logp, h_fin


def seq2seq_forward(params, input_variable, target_variable=None, *,
                    cfg, teacher_forcing_ratio=0, mode=1):
    # teacher_forcing_ratio == 0 and mode == 1 (gru -> gru) greedy path only.
    del target_variable, teacher_forcing_ratio, mode
    x_emb = params["enc_emb"][input_variable]        # embedding lookup (glue)  [B,T,E]
    x_emb = jnp.transpose(x_emb, (1, 0, 2))          # time-major [T, B, E]
    log_probs, dec_hidden = run_seq2seq(x_emb, params, cfg)
    symbols = jnp.argmax(log_probs, axis=-1)         # greedy decode (== in-kernel feedback)
    return log_probs, dec_hidden, symbols


# ----------------------------------------------------------------------------
# deterministic parameter construction (canonical per-direction layout)
# ----------------------------------------------------------------------------
def make_params(key, cfg):
    H, DH, C = cfg.enc_h, 2 * cfg.enc_h, cfg.n_class
    ks = jax.random.split(key, 16)
    s = 0.1

    def n(k, shape):
        return s * jax.random.normal(k, shape, jnp.float32)

    return {
        "enc_emb": n(ks[0], (cfg.vocab_enc, cfg.e_enc)),
        # bidirectional GRU input weights: [:, 0:3H] forward, [:, 3H:6H] backward
        "enc_w_ih": n(ks[1], (cfg.e_enc, 6 * H)),
        "enc_b_ih": n(ks[2], (1, 6 * H)),
        "enc_w_hh_f": n(ks[3], (H, 3 * H)),
        "enc_b_hh_f": n(ks[4], (1, 3 * H)),
        "enc_w_hh_b": n(ks[5], (H, 3 * H)),
        "enc_b_hh_b": n(ks[6], (1, 3 * H)),
        # decoder GRU (hidden = DH = 2H after _cat_directions)
        "dec_emb": n(ks[7], (C, cfg.e_dec)),
        "dec_w_ih": n(ks[8], (cfg.e_dec, 3 * DH)),
        "dec_b_ih": n(ks[9], (1, 3 * DH)),
        "dec_w_hh": n(ks[10], (DH, 3 * DH)),
        "dec_b_hh": n(ks[11], (1, 3 * DH)),
        # attention combine Linear on cat(h, context)
        "att_w": n(ks[12], (2 * DH, DH)),
        "att_b": n(ks[13], (1, DH)),
        "out_w": n(ks[14], (DH, C)),
        "out_b": n(ks[15], (1, C)),
    }


# ----------------------------------------------------------------------------
# pure-JAX f32 reference for the first decode step (correctness check of the
# fused/interleaved algebra; later steps can diverge token-wise under bf16)
# ----------------------------------------------------------------------------
def reference_first_step_logp(params, input_variable, cfg):
    H = cfg.enc_h
    x = jnp.transpose(params["enc_emb"][input_variable], (1, 0, 2))   # [T, B, E]
    T, B, _ = x.shape

    def gru(h, gi, whh, bhh):
        nh = h.shape[-1]
        gh = h @ whh + bhh
        r = jax.nn.sigmoid(gi[:, :nh] + gh[:, :nh])
        z = jax.nn.sigmoid(gi[:, nh:2 * nh] + gh[:, nh:2 * nh])
        n = jnp.tanh(gi[:, 2 * nh:] + r * gh[:, 2 * nh:])
        return (1.0 - z) * n + z * h

    wf, wb = params["enc_w_ih"][:, :3 * H], params["enc_w_ih"][:, 3 * H:]
    bf, bb = params["enc_b_ih"][:, :3 * H], params["enc_b_ih"][:, 3 * H:]
    h_f = h_b = jnp.zeros((B, H), jnp.float32)
    outs_f, outs_b = [], [None] * T
    for t in range(T):
        h_f = gru(h_f, x[t] @ wf + bf, params["enc_w_hh_f"], params["enc_b_hh_f"])
        outs_f.append(h_f)
    for t in range(T - 1, -1, -1):
        h_b = gru(h_b, x[t] @ wb + bb, params["enc_w_hh_b"], params["enc_b_hh_b"])
        outs_b[t] = h_b
    enc = jnp.stack([jnp.concatenate([outs_f[t], outs_b[t]], -1) for t in range(T)])
    h = jnp.concatenate([h_f, h_b], -1)                               # _cat_directions

    tok = jnp.full((B,), cfg.sos_id, jnp.int32)
    gi = params["dec_emb"][tok] @ params["dec_w_ih"] + params["dec_b_ih"]
    h = gru(h, gi, params["dec_w_hh"], params["dec_b_hh"])
    scores = jnp.einsum("bd,tbd->bt", h, enc)
    attn = jax.nn.softmax(scores, -1)
    ctx = jnp.einsum("bt,tbd->bd", attn, enc)
    att_out = jnp.tanh(jnp.concatenate([h, ctx], -1) @ params["att_w"]
                       + params["att_b"])
    logits = att_out @ params["out_w"] + params["out_b"]
    return jax.nn.log_softmax(logits, -1)


if __name__ == "__main__":
    cfg = Seq2seqConfig()
    B, T = 8, 8

    key = jax.random.PRNGKey(0)
    k_par, k_in, k_tgt = jax.random.split(key, 3)
    params = make_params(k_par, cfg)
    input_variable = jax.random.randint(k_in, (B, T), 0, cfg.vocab_enc,
                                        dtype=jnp.int32)
    target_variable = jax.random.randint(k_tgt, (B, cfg.max_decode_len), 0,
                                         cfg.n_class, dtype=jnp.int32)

    fwd = jax.jit(functools.partial(seq2seq_forward, cfg=cfg,
                                    teacher_forcing_ratio=0, mode=1))
    log_probs, dec_hidden, symbols = fwd(params, input_variable, target_variable)
    jax.block_until_ready((log_probs, dec_hidden, symbols))

    L = cfg.max_decode_len
    assert log_probs.shape == (L, B, cfg.n_class)
    assert dec_hidden.shape == (B, 2 * cfg.enc_h)
    assert symbols.shape == (L, B)
    assert bool(jnp.all(jnp.isfinite(log_probs)))
    # log_softmax rows must sum to ~1 in prob space
    assert bool(jnp.allclose(jnp.exp(log_probs).sum(-1), 1.0, atol=1e-4))
    # first-decode-step parity with the f32 pure-JAX reference (bf16 MXU
    # operands + approx softmax reciprocal => loose tolerance)
    ref_logp0 = reference_first_step_logp(params, input_variable, cfg)
    assert bool(jnp.allclose(log_probs[0], ref_logp0, atol=5e-2))
    print("KERNEL_OK")
</pallas_src>

<mosaic_0001>
module attributes {stable_mosaic.version = 11 : i64} {
  func.func @seq2seq_kernel(%arg0: memref<8x8x64xbf16, #tpu.memory_space<vmem>>, %arg1: memref<64x384xbf16, #tpu.memory_space<vmem>>, %arg2: memref<128x384xbf16, #tpu.memory_space<vmem>>, %arg3: memref<1x384xf32, #tpu.memory_space<vmem>>, %arg4: memref<1x384xf32, #tpu.memory_space<vmem>>, %arg5: memref<256x512xbf16, #tpu.memory_space<vmem>>, %arg6: memref<1x512xf32, #tpu.memory_space<vmem>>, %arg7: memref<256x128xbf16, #tpu.memory_space<vmem>>, %arg8: memref<1x128xf32, #tpu.memory_space<vmem>>, %arg9: memref<128x128xbf16, #tpu.memory_space<vmem>>, %arg10: memref<1x128xf32, #tpu.memory_space<vmem>>, %arg11: memref<8x8x128xf32, #tpu.memory_space<vmem>>, %arg12: memref<8x128xf32, #tpu.memory_space<vmem>>, %arg13: memref<8x8x384xf32, #tpu.memory_space<vmem>>, %arg14: memref<8x8x128xf32, #tpu.memory_space<vmem>>, %arg15: memref<128x128xf32, #tpu.memory_space<vmem>>) attributes {dimension_semantics = [], scalar_prefetch = 0 : i64, scratch_operands = 3 : i64, tpu.core_type = #tpu.core_type<tc>} {
    %c0 = arith.constant 0 : index
    %c0_0 = arith.constant 0 : index
    %c0_1 = arith.constant 0 : index
    %0 = vector.load %arg0[%c0, %c0_0, %c0_1] : memref<8x8x64xbf16, #tpu.memory_space<vmem>>, vector<8x8x64xbf16>
    %1 = vector.shape_cast %0 : vector<8x8x64xbf16> to vector<64x64xbf16>
    %c0_2 = arith.constant 0 : index
    %c0_3 = arith.constant 0 : index
    %2 = vector.load %arg1[%c0_2, %c0_3] : memref<64x384xbf16, #tpu.memory_space<vmem>>, vector<64x384xbf16>
    %cst = arith.constant dense<0.000000e+00> : vector<64x384xf32>
    %3 = tpu.matmul %1, %2, %cst {dimension_numbers = #tpu.dot_dimension_numbers<[1], [0], [0], [1], [0, 0, 1, 1], [], []>} : vector<64x64xbf16>, vector<64x384xbf16>, vector<64x384xf32> -> vector<64x384xf32>
    %c0_4 = arith.constant 0 : index
    %c0_5 = arith.constant 0 : index
    %4 = vector.load %arg3[%c0_4, %c0_5] : memref<1x384xf32, #tpu.memory_space<vmem>>, vector<1x384xf32>
    %5 = vector.broadcast %4 : vector<1x384xf32> to vector<64x384xf32>
    %6 = arith.addf %3, %5 : vector<64x384xf32>
    %7 = vector.shape_cast %6 : vector<64x384xf32> to vector<8x8x384xf32>
    %c0_6 = arith.constant 0 : index
    %c0_7 = arith.constant 0 : index
    %c0_8 = arith.constant 0 : index
    %8 = vector.load %arg13[%c0_6, %c0_7, %c0_8] : memref<8x8x384xf32, #tpu.memory_space<vmem>>, vector<8x8x384xf32>
    tpu.vector_store %arg13[%c0_6, %c0_7, %c0_8], %7 {strides = array<i32>} : memref<8x8x384xf32, #tpu.memory_space<vmem>>, vector<8x8x384xf32>,
    %c0_9 = arith.constant 0 : index
    %c0_10 = arith.constant 0 : index
    %9 = vector.load %arg2[%c0_9, %c0_10] : memref<128x384xbf16, #tpu.memory_space<vmem>>, vector<128x384xbf16>
    %c0_11 = arith.constant 0 : index
    %c0_12 = arith.constant 0 : index
    %10 = vector.load %arg4[%c0_11, %c0_12] : memref<1x384xf32, #tpu.memory_space<vmem>>, vector<1x384xf32>
    %11 = vector.shape_cast %10 : vector<1x384xf32> to vector<1x384xf32>
    %12 = vector.broadcast %11 : vector<1x384xf32> to vector<8x384xf32>
    %cst_13 = arith.constant 0.000000e+00 : f32
    %13 = vector.broadcast %cst_13 : f32 to vector<8x128xf32>
    %c0_i32 = arith.constant 0 : i32
    %14 = arith.index_cast %c0_i32 : i32 to index
    %c0_14 = arith.constant 0 : index
    %c0_15 = arith.constant 0 : index
    %15 = vector.load %arg13[%14, %c0_14, %c0_15] : memref<8x8x384xf32, #tpu.memory_space<vmem>>, vector<1x8x384xf32>
    %16 = vector.shape_cast %15 : vector<1x8x384xf32> to vector<8x384xf32>
    %17 = arith.truncf %13 : vector<8x128xf32> to vector<8x128xbf16>
    %cst_16 = arith.constant dense<0.000000e+00> : vector<8x384xf32>
    %18 = tpu.matmul %17, %9, %cst_16 {dimension_numbers = #tpu.dot_dimension_numbers<[1], [0], [0], [1], [0, 0, 1, 1], [], []>} : vector<8x128xbf16>, vector<128x384xbf16>, vector<8x384xf32> -> vector<8x384xf32>
    %19 = arith.addf %18, %12 : vector<8x384xf32>
    %20 = vector.extract_strided_slice %16 {offsets = [0, 0], sizes = [8, 128], strides = [1, 1]} : vector<8x384xf32> to vector<8x128xf32>
    %21 = vector.extract_strided_slice %19 {offsets = [0, 0], sizes = [8, 128], strides = [1, 1]} : vector<8x384xf32> to vector<8x128xf32>
    %22 = arith.addf %20, %21 : vector<8x128xf32>
    %23 = arith.negf %22 : vector<8x128xf32>
    %24 = math.exp %23 : vector<8x128xf32>
    %cst_17 = arith.constant 1.000000e+00 : f32
    %25 = vector.broadcast %cst_17 : f32 to vector<8x128xf32>
    %26 = arith.addf %25, %24 : vector<8x128xf32>
    %27 = arith.divf %25, %26 : vector<8x128xf32>
    %28 = vector.extract_strided_slice %16 {offsets = [0, 128], sizes = [8, 128], strides = [1, 1]} : vector<8x384xf32> to vector<8x128xf32>
    %29 = vector.extract_strided_slice %19 {offsets = [0, 128], sizes = [8, 128], strides = [1, 1]} : vector<8x384xf32> to vector<8x128xf32>
    %30 = arith.addf %28, %29 : vector<8x128xf32>
    %31 = arith.negf %30 : vector<8x128xf32>
    %32 = math.exp %31 : vector<8x128xf32>
    %cst_18 = arith.constant 1.000000e+00 : f32
    %33 = vector.broadcast %cst_18 : f32 to vector<8x128xf32>
    %34 = arith.addf %33, %32 : vector<8x128xf32>
    %35 = arith.divf %33, %34 : vector<8x128xf32>
    %36 = vector.extract_strided_slice %16 {offsets = [0, 256], sizes = [8, 128], strides = [1, 1]} : vector<8x384xf32> to vector<8x128xf32>
    %37 = vector.extract_strided_slice %19 {offsets = [0, 256], sizes = [8, 128], strides = [1, 1]} : vector<8x384xf32> to vector<8x128xf32>
    %38 = arith.mulf %27, %37 : vector<8x128xf32>
    %39 = arith.addf %36, %38 : vector<8x128xf32>
    %40 = math.tanh %39 : vector<8x128xf32>
    %cst_19 = arith.constant 1.000000e+00 : f32
    %41 = vector.broadcast %cst_19 : f32 to vector<8x128xf32>
    %42 = arith.subf %41, %35 : vector<8x128xf32>
    %43 = arith.mulf %42, %40 : vector<8x128xf32>
    %44 = arith.mulf %35, %13 : vector<8x128xf32>
    %45 = arith.addf %43, %44 : vector<8x128xf32>
    %46 = arith.index_cast %c0_i32 : i32 to index
    %c0_20 = arith.constant 0 : index
    %c0_21 = arith.constant 0 : index
    %47 = vector.load %arg14[%46, %c0_20, %c0_21] : memref<8x8x128xf32, #tpu.memory_space<vmem>>, vector<1x8x128xf32>
    %48 = vector.shape_cast %47 : vector<1x8x128xf32> to vector<8x128xf32>
    %49 = vector.shape_cast %45 : vector<8x128xf32> to vector<1x8x128xf32>
    tpu.vector_store %arg14[%46, %c0_20, %c0_21], %49 {strides = array<i32>} : memref<8x8x128xf32, #tpu.memory_space<vmem>>, vector<1x8x128xf32>,
    %c1_i32 = arith.constant 1 : i32
    %50 = arith.index_cast %c1_i32 : i32 to index
    %c0_22 = arith.constant 0 : index
    %c0_23 = arith.constant 0 : index
    %51 = vector.load %arg13[%50, %c0_22, %c0_23] : memref<8x8x384xf32, #tpu.memory_space<vmem>>, vector<1x8x384xf32>
    %52 = vector.shape_cast %51 : vector<1x8x384xf32> to vector<8x384xf32>
    %53 = arith.truncf %45 : vector<8x128xf32> to vector<8x128xbf16>
    %cst_24 = arith.constant dense<0.000000e+00> : vector<8x384xf32>
    %54 = tpu.matmul %53, %9, %cst_24 {dimension_numbers = #tpu.dot_dimension_numbers<[1], [0], [0], [1], [0, 0, 1, 1], [], []>} : vector<8x128xbf16>, vector<128x384xbf16>, vector<8x384xf32> -> vector<8x384xf32>
    %55 = arith.addf %54, %12 : vector<8x384xf32>
    %56 = vector.extract_strided_slice %52 {offsets = [0, 0], sizes = [8, 128], strides = [1, 1]} : vector<8x384xf32> to vector<8x128xf32>
    %57 = vector.extract_strided_slice %55 {offsets = [0, 0], sizes = [8, 128], strides = [1, 1]} : vector<8x384xf32> to vector<8x128xf32>
    %58 = arith.addf %56, %57 : vector<8x128xf32>
    %59 = arith.negf %58 : vector<8x128xf32>
    %60 = math.exp %59 : vector<8x128xf32>
    %cst_25 = arith.constant 1.000000e+00 : f32
    %61 = vector.broadcast %cst_25 : f32 to vector<8x128xf32>
    %62 = arith.addf %61, %60 : vector<8x128xf32>
    %63 = arith.divf %61, %62 : vector<8x128xf32>
    %64 = vector.extract_strided_slice %52 {offsets = [0, 128], sizes = [8, 128], strides = [1, 1]} : vector<8x384xf32> to vector<8x128xf32>
    %65 = vector.extract_strided_slice %55 {offsets = [0, 128], sizes = [8, 128], strides = [1, 1]} : vector<8x384xf32> to vector<8x128xf32>
    %66 = arith.addf %64, %65 : vector<8x128xf32>
    %67 = arith.negf %66 : vector<8x128xf32>
    %68 = math.exp %67 : vector<8x128xf32>
    %cst_26 = arith.constant 1.000000e+00 : f32
    %69 = vector.broadcast %cst_26 : f32 to vector<8x128xf32>
    %70 = arith.addf %69, %68 : vector<8x128xf32>
    %71 = arith.divf %69, %70 : vector<8x128xf32>
    %72 = vector.extract_strided_slice %52 {offsets = [0, 256], sizes = [8, 128], strides = [1, 1]} : vector<8x384xf32> to vector<8x128xf32>
    %73 = vector.extract_strided_slice %55 {offsets = [0, 256], sizes = [8, 128], strides = [1, 1]} : vector<8x384xf32> to vector<8x128xf32>
    %74 = arith.mulf %63, %73 : vector<8x128xf32>
    %75 = arith.addf %72, %74 : vector<8x128xf32>
    %76 = math.tanh %75 : vector<8x128xf32>
    %cst_27 = arith.constant 1.000000e+00 : f32
    %77 = vector.broadcast %cst_27 : f32 to vector<8x128xf32>
    %78 = arith.subf %77, %71 : vector<8x128xf32>
    %79 = arith.mulf %78, %76 : vector<8x128xf32>
    %80 = arith.mulf %71, %45 : vector<8x128xf32>
    %81 = arith.addf %79, %80 : vector<8x128xf32>
    %82 = arith.index_cast %c1_i32 : i32 to index
    %c0_28 = arith.constant 0 : index
    %c0_29 = arith.constant 0 : index
    %83 = vector.load %arg14[%82, %c0_28, %c0_29] : memref<8x8x128xf32, #tpu.memory_space<vmem>>, vector<1x8x128xf32>
    %84 = vector.shape_cast %83 : vector<1x8x128xf32> to vector<8x128xf32>
    %85 = vector.shape_cast %81 : vector<8x128xf32> to vector<1x8x128xf32>
    tpu.vector_store %arg14[%82, %c0_28, %c0_29], %85 {strides = array<i32>} : memref<8x8x128xf32, #tpu.memory_space<vmem>>, vector<1x8x128xf32>,
    %c2_i32 = arith.constant 2 : i32
    %86 = arith.index_cast %c2_i32 : i32 to index
    %c0_30 = arith.constant 0 : index
    %c0_31 = arith.constant 0 : index
    %87 = vector.load %arg13[%86, %c0_30, %c0_31] : memref<8x8x384xf32, #tpu.memory_space<vmem>>, vector<1x8x384xf32>
    %88 = vector.shape_cast %87 : vector<1x8x384xf32> to vector<8x384xf32>
    %89 = arith.truncf %81 : vector<8x128xf32> to vector<8x128xbf16>
    %cst_32 = arith.constant dense<0.000000e+00> : vector<8x384xf32>
    %90 = tpu.matmul %89, %9, %cst_32 {dimension_numbers = #tpu.dot_dimension_numbers<[1], [0], [0], [1], [0, 0, 1, 1], [], []>} : vector<8x128xbf16>, vector<128x384xbf16>, vector<8x384xf32> -> vector<8x384xf32>
    %91 = arith.addf %90, %12 : vector<8x384xf32>
    %92 = vector.extract_strided_slice %88 {offsets = [0, 0], sizes = [8, 128], strides = [1, 1]} : vector<8x384xf32> to vector<8x128xf32>
    %93 = vector.extract_strided_slice %91 {offsets = [0, 0], sizes = [8, 128], strides = [1, 1]} : vector<8x384xf32> to vector<8x128xf32>
    %94 = arith.addf %92, %93 : vector<8x128xf32>
    %95 = arith.negf %94 : vector<8x128xf32>
    %96 = math.exp %95 : vector<8x128xf32>
    %cst_33 = arith.constant 1.000000e+00 : f32
    %97 = vector.broadcast %cst_33 : f32 to vector<8x128xf32>
    %98 = arith.addf %97, %96 : vector<8x128xf32>
    %99 = arith.divf %97, %98 : vector<8x128xf32>
    %100 = vector.extract_strided_slice %88 {offsets = [0, 128], sizes = [8, 128], strides = [1, 1]} : vector<8x384xf32> to vector<8x128xf32>
    %101 = vector.extract_strided_slice %91 {offsets = [0, 128], sizes = [8, 128], strides = [1, 1]} : vector<8x384xf32> to vector<8x128xf32>
    %102 = arith.addf %100, %101 : vector<8x128xf32>
    %103 = arith.negf %102 : vector<8x128xf32>
    %104 = math.exp %103 : vector<8x128xf32>
    %cst_34 = arith.constant 1.000000e+00 : f32
    %105 = vector.broadcast %cst_34 : f32 to vector<8x128xf32>
    %106 = arith.addf %105, %104 : vector<8x128xf32>
    %107 = arith.divf %105, %106 : vector<8x128xf32>
    %108 = vector.extract_strided_slice %88 {offsets = [0, 256], sizes = [8, 128], strides = [1, 1]} : vector<8x384xf32> to vector<8x128xf32>
    %109 = vector.extract_strided_slice %91 {offsets = [0, 256], sizes = [8, 128], strides = [1, 1]} : vector<8x384xf32> to vector<8x128xf32>
    %110 = arith.mulf %99, %109 : vector<8x128xf32>
    %111 = arith.addf %108, %110 : vector<8x128xf32>
    %112 = math.tanh %111 : vector<8x128xf32>
    %cst_35 = arith.constant 1.000000e+00 : f32
    %113 = vector.broadcast %cst_35 : f32 to vector<8x128xf32>
    %114 = arith.subf %113, %107 : vector<8x128xf32>
    %115 = arith.mulf %114, %112 : vector<8x128xf32>
    %116 = arith.mulf %107, %81 : vector<8x128xf32>
    %117 = arith.addf %115, %116 : vector<8x128xf32>
    %118 = arith.index_cast %c2_i32 : i32 to index
    %c0_36 = arith.constant 0 : index
    %c0_37 = arith.constant 0 : index
    %119 = vector.load %arg14[%118, %c0_36, %c0_37] : memref<8x8x128xf32, #tpu.memory_space<vmem>>, vector<1x8x128xf32>
    %120 = vector.shape_cast %119 : vector<1x8x128xf32> to vector<8x128xf32>
    %121 = vector.shape_cast %117 : vector<8x128xf32> to vector<1x8x128xf32>
    tpu.vector_store %arg14[%118, %c0_36, %c0_37], %121 {strides = array<i32>} : memref<8x8x128xf32, #tpu.memory_space<vmem>>, vector<1x8x128xf32>,
    %c3_i32 = arith.constant 3 : i32
    %122 = arith.index_cast %c3_i32 : i32 to index
    %c0_38 = arith.constant 0 : index
    %c0_39 = arith.constant 0 : index
    %123 = vector.load %arg13[%122, %c0_38, %c0_39] : memref<8x8x384xf32, #tpu.memory_space<vmem>>, vector<1x8x384xf32>
    %124 = vector.shape_cast %123 : vector<1x8x384xf32> to vector<8x384xf32>
    %125 = arith.truncf %117 : vector<8x128xf32> to vector<8x128xbf16>
    %cst_40 = arith.constant dense<0.000000e+00> : vector<8x384xf32>
    %126 = tpu.matmul %125, %9, %cst_40 {dimension_numbers = #tpu.dot_dimension_numbers<[1], [0], [0], [1], [0, 0, 1, 1], [], []>} : vector<8x128xbf16>, vector<128x384xbf16>, vector<8x384xf32> -> vector<8x384xf32>
    %127 = arith.addf %126, %12 : vector<8x384xf32>
    %128 = vector.extract_strided_slice %124 {offsets = [0, 0], sizes = [8, 128], strides = [1, 1]} : vector<8x384xf32> to vector<8x128xf32>
    %129 = vector.extract_strided_slice %127 {offsets = [0, 0], sizes = [8, 128], strides = [1, 1]} : vector<8x384xf32> to vector<8x128xf32>
    %130 = arith.addf %128, %129 : vector<8x128xf32>
    %131 = arith.negf %130 : vector<8x128xf32>
    %132 = math.exp %131 : vector<8x128xf32>
    %cst_41 = arith.constant 1.000000e+00 : f32
    %133 = vector.broadcast %cst_41 : f32 to vector<8x128xf32>
    %134 = arith.addf %133, %132 : vector<8x128xf32>
    %135 = arith.divf %133, %134 : vector<8x128xf32>
    %136 = vector.extract_strided_slice %124 {offsets = [0, 128], sizes = [8, 128], strides = [1, 1]} : vector<8x384xf32> to vector<8x128xf32>
    %137 = vector.extract_strided_slice %127 {offsets = [0, 128], sizes = [8, 128], strides = [1, 1]} : vector<8x384xf32> to vector<8x128xf32>
    %138 = arith.addf %136, %137 : vector<8x128xf32>
    %139 = arith.negf %138 : vector<8x128xf32>
    %140 = math.exp %139 : vector<8x128xf32>
    %cst_42 = arith.constant 1.000000e+00 : f32
    %141 = vector.broadcast %cst_42 : f32 to vector<8x128xf32>
    %142 = arith.addf %141, %140 : vector<8x128xf32>
    %143 = arith.divf %141, %142 : vector<8x128xf32>
    %144 = vector.extract_strided_slice %124 {offsets = [0, 256], sizes = [8, 128], strides = [1, 1]} : vector<8x384xf32> to vector<8x128xf32>
    %145 = vector.extract_strided_slice %127 {offsets = [0, 256], sizes = [8, 128], strides = [1, 1]} : vector<8x384xf32> to vector<8x128xf32>
    %146 = arith.mulf %135, %145 : vector<8x128xf32>
    %147 = arith.addf %144, %146 : vector<8x128xf32>
    %148 = math.tanh %147 : vector<8x128xf32>
    %cst_43 = arith.constant 1.000000e+00 : f32
    %149 = vector.broadcast %cst_43 : f32 to vector<8x128xf32>
    %150 = arith.subf %149, %143 : vector<8x128xf32>
    %151 = arith.mulf %150, %148 : vector<8x128xf32>
    %152 = arith.mulf %143, %117 : vector<8x128xf32>
    %153 = arith.addf %151, %152 : vector<8x128xf32>
    %154 = arith.index_cast %c3_i32 : i32 to index
    %c0_44 = arith.constant 0 : index
    %c0_45 = arith.constant 0 : index
    %155 = vector.load %arg14[%154, %c0_44, %c0_45] : memref<8x8x128xf32, #tpu.memory_space<vmem>>, vector<1x8x128xf32>
    %156 = vector.shape_cast %155 : vector<1x8x128xf32> to vector<8x128xf32>
    %157 = vector.shape_cast %153 : vector<8x128xf32> to vector<1x8x128xf32>
    tpu.vector_store %arg14[%154, %c0_44, %c0_45], %157 {strides = array<i32>} : memref<8x8x128xf32, #tpu.memory_space<vmem>>, vector<1x8x128xf32>,
    %c4_i32 = arith.constant 4 : i32
    %158 = arith.index_cast %c4_i32 : i32 to index
    %c0_46 = arith.constant 0 : index
    %c0_47 = arith.constant 0 : index
    %159 = vector.load %arg13[%158, %c0_46, %c0_47] : memref<8x8x384xf32, #tpu.memory_space<vmem>>, vector<1x8x384xf32>
    %160 = vector.shape_cast %159 : vector<1x8x384xf32> to vector<8x384xf32>
    %161 = arith.truncf %153 : vector<8x128xf32> to vector<8x128xbf16>
    %cst_48 = arith.constant dense<0.000000e+00> : vector<8x384xf32>
    %162 = tpu.matmul %161, %9, %cst_48 {dimension_numbers = #tpu.dot_dimension_numbers<[1], [0], [0], [1], [0, 0, 1, 1], [], []>} : vector<8x128xbf16>, vector<128x384xbf16>, vector<8x384xf32> -> vector<8x384xf32>
    %163 = arith.addf %162, %12 : vector<8x384xf32>
    %164 = vector.extract_strided_slice %160 {offsets = [0, 0], sizes = [8, 128], strides = [1, 1]} : vector<8x384xf32> to vector<8x128xf32>
    %165 = vector.extract_strided_slice %163 {offsets = [0, 0], sizes = [8, 128], strides = [1, 1]} : vector<8x384xf32> to vector<8x128xf32>
    %166 = arith.addf %164, %165 : vector<8x128xf32>
    %167 = arith.negf %166 : vector<8x128xf32>
    %168 = math.exp %167 : vector<8x128xf32>
    %cst_49 = arith.constant 1.000000e+00 : f32
    %169 = vector.broadcast %cst_49 : f32 to vector<8x128xf32>
    %170 = arith.addf %169, %168 : vector<8x128xf32>
    %171 = arith.divf %169, %170 : vector<8x128xf32>
    %172 = vector.extract_strided_slice %160 {offsets = [0, 128], sizes = [8, 128], strides = [1, 1]} : vector<8x384xf32> to vector<8x128xf32>
    %173 = vector.extract_strided_slice %163 {offsets = [0, 128], sizes = [8, 128], strides = [1, 1]} : vector<8x384xf32> to vector<8x128xf32>
    %174 = arith.addf %172, %173 : vector<8x128xf32>
    %175 = arith.negf %174 : vector<8x128xf32>
    %176 = math.exp %175 : vector<8x128xf32>
    %cst_50 = arith.constant 1.000000e+00 : f32
    %177 = vector.broadcast %cst_50 : f32 to vector<8x128xf32>
    %178 = arith.addf %177, %176 : vector<8x128xf32>
    %179 = arith.divf %177, %178 : vector<8x128xf32>
    %180 = vector.extract_strided_slice %160 {offsets = [0, 256], sizes = [8, 128], strides = [1, 1]} : vector<8x384xf32> to vector<8x128xf32>
    %181 = vector.extract_strided_slice %163 {offsets = [0, 256], sizes = [8, 128], strides = [1, 1]} : vector<8x384xf32> to vector<8x128xf32>
    %182 = arith.mulf %171, %181 : vector<8x128xf32>
    %183 = arith.addf %180, %182 : vector<8x128xf32>
    %184 = math.tanh %183 : vector<8x128xf32>
    %cst_51 = arith.constant 1.000000e+00 : f32
    %185 = vector.broadcast %cst_51 : f32 to vector<8x128xf32>
    %186 = arith.subf %185, %179 : vector<8x128xf32>
    %187 = arith.mulf %186, %184 : vector<8x128xf32>
    %188 = arith.mulf %179, %153 : vector<8x128xf32>
    %189 = arith.addf %187, %188 : vector<8x128xf32>
    %190 = arith.index_cast %c4_i32 : i32 to index
    %c0_52 = arith.constant 0 : index
    %c0_53 = arith.constant 0 : index
    %191 = vector.load %arg14[%190, %c0_52, %c0_53] : memref<8x8x128xf32, #tpu.memory_space<vmem>>, vector<1x8x128xf32>
    %192 = vector.shape_cast %191 : vector<1x8x128xf32> to vector<8x128xf32>
    %193 = vector.shape_cast %189 : vector<8x128xf32> to vector<1x8x128xf32>
    tpu.vector_store %arg14[%190, %c0_52, %c0_53], %193 {strides = array<i32>} : memref<8x8x128xf32, #tpu.memory_space<vmem>>, vector<1x8x128xf32>,
    %c5_i32 = arith.constant 5 : i32
    %194 = arith.index_cast %c5_i32 : i32 to index
    %c0_54 = arith.constant 0 : index
    %c0_55 = arith.constant 0 : index
    %195 = vector.load %arg13[%194, %c0_54, %c0_55] : memref<8x8x384xf32, #tpu.memory_space<vmem>>, vector<1x8x384xf32>
    %196 = vector.shape_cast %195 : vector<1x8x384xf32> to vector<8x384xf32>
    %197 = arith.truncf %189 : vector<8x128xf32> to vector<8x128xbf16>
    %cst_56 = arith.constant dense<0.000000e+00> : vector<8x384xf32>
    %198 = tpu.matmul %197, %9, %cst_56 {dimension_numbers = #tpu.dot_dimension_numbers<[1], [0], [0], [1], [0, 0, 1, 1], [], []>} : vector<8x128xbf16>, vector<128x384xbf16>, vector<8x384xf32> -> vector<8x384xf32>
    %199 = arith.addf %198, %12 : vector<8x384xf32>
    %200 = vector.extract_strided_slice %196 {offsets = [0, 0], sizes = [8, 128], strides = [1, 1]} : vector<8x384xf32> to vector<8x128xf32>
    %201 = vector.extract_strided_slice %199 {offsets = [0, 0], sizes = [8, 128], strides = [1, 1]} : vector<8x384xf32> to vector<8x128xf32>
    %202 = arith.addf %200, %201 : vector<8x128xf32>
    %203 = arith.negf %202 : vector<8x128xf32>
    %204 = math.exp %203 : vector<8x128xf32>
    %cst_57 = arith.constant 1.000000e+00 : f32
    %205 = vector.broadcast %cst_57 : f32 to vector<8x128xf32>
    %206 = arith.addf %205, %204 : vector<8x128xf32>
    %207 = arith.divf %205, %206 : vector<8x128xf32>
    %208 = vector.extract_strided_slice %196 {offsets = [0, 128], sizes = [8, 128], strides = [1, 1]} : vector<8x384xf32> to vector<8x128xf32>
    %209 = vector.extract_strided_slice %199 {offsets = [0, 128], sizes = [8, 128], strides = [1, 1]} : vector<8x384xf32> to vector<8x128xf32>
    %210 = arith.addf %208, %209 : vector<8x128xf32>
    %211 = arith.negf %210 : vector<8x128xf32>
    %212 = math.exp %211 : vector<8x128xf32>
    %cst_58 = arith.constant 1.000000e+00 : f32
    %213 = vector.broadcast %cst_58 : f32 to vector<8x128xf32>
    %214 = arith.addf %213, %212 : vector<8x128xf32>
    %215 = arith.divf %213, %214 : vector<8x128xf32>
    %216 = vector.extract_strided_slice %196 {offsets = [0, 256], sizes = [8, 128], strides = [1, 1]} : vector<8x384xf32> to vector<8x128xf32>
    %217 = vector.extract_strided_slice %199 {offsets = [0, 256], sizes = [8, 128], strides = [1, 1]} : vector<8x384xf32> to vector<8x128xf32>
    %218 = arith.mulf %207, %217 : vector<8x128xf32>
    %219 = arith.addf %216, %218 : vector<8x128xf32>
    %220 = math.tanh %219 : vector<8x128xf32>
    %cst_59 = arith.constant 1.000000e+00 : f32
    %221 = vector.broadcast %cst_59 : f32 to vector<8x128xf32>
    %222 = arith.subf %221, %215 : vector<8x128xf32>
    %223 = arith.mulf %222, %220 : vector<8x128xf32>
    %224 = arith.mulf %215, %189 : vector<8x128xf32>
    %225 = arith.addf %223, %224 : vector<8x128xf32>
    %226 = arith.index_cast %c5_i32 : i32 to index
    %c0_60 = arith.constant 0 : index
    %c0_61 = arith.constant 0 : index
    %227 = vector.load %arg14[%226, %c0_60, %c0_61] : memref<8x8x128xf32, #tpu.memory_space<vmem>>, vector<1x8x128xf32>
    %228 = vector.shape_cast %227 : vector<1x8x128xf32> to vector<8x128xf32>
    %229 = vector.shape_cast %225 : vector<8x128xf32> to vector<1x8x128xf32>
    tpu.vector_store %arg14[%226, %c0_60, %c0_61], %229 {strides = array<i32>} : memref<8x8x128xf32, #tpu.memory_space<vmem>>, vector<1x8x128xf32>,
    %c6_i32 = arith.constant 6 : i32
    %230 = arith.index_cast %c6_i32 : i32 to index
    %c0_62 = arith.constant 0 : index
    %c0_63 = arith.constant 0 : index
    %231 = vector.load %arg13[%230, %c0_62, %c0_63] : memref<8x8x384xf32, #tpu.memory_space<vmem>>, vector<1x8x384xf32>
    %232 = vector.shape_cast %231 : vector<1x8x384xf32> to vector<8x384xf32>
    %233 = arith.truncf %225 : vector<8x128xf32> to vector<8x128xbf16>
    %cst_64 = arith.constant dense<0.000000e+00> : vector<8x384xf32>
    %234 = tpu.matmul %233, %9, %cst_64 {dimension_numbers = #tpu.dot_dimension_numbers<[1], [0], [0], [1], [0, 0, 1, 1], [], []>} : vector<8x128xbf16>, vector<128x384xbf16>, vector<8x384xf32> -> vector<8x384xf32>
    %235 = arith.addf %234, %12 : vector<8x384xf32>
    %236 = vector.extract_strided_slice %232 {offsets = [0, 0], sizes = [8, 128], strides = [1, 1]} : vector<8x384xf32> to vector<8x128xf32>
    %237 = vector.extract_strided_slice %235 {offsets = [0, 0], sizes = [8, 128], strides = [1, 1]} : vector<8x384xf32> to vector<8x128xf32>
    %238 = arith.addf %236, %237 : vector<8x128xf32>
    %239 = arith.negf %238 : vector<8x128xf32>
    %240 = math.exp %239 : vector<8x128xf32>
    %cst_65 = arith.constant 1.000000e+00 : f32
    %241 = vector.broadcast %cst_65 : f32 to vector<8x128xf32>
    %242 = arith.addf %241, %240 : vector<8x128xf32>
    %243 = arith.divf %241, %242 : vector<8x128xf32>
    %244 = vector.extract_strided_slice %232 {offsets = [0, 128], sizes = [8, 128], strides = [1, 1]} : vector<8x384xf32> to vector<8x128xf32>
    %245 = vector.extract_strided_slice %235 {offsets = [0, 128], sizes = [8, 128], strides = [1, 1]} : vector<8x384xf32> to vector<8x128xf32>
    %246 = arith.addf %244, %245 : vector<8x128xf32>
    %247 = arith.negf %246 : vector<8x128xf32>
    %248 = math.exp %247 : vector<8x128xf32>
    %cst_66 = arith.constant 1.000000e+00 : f32
    %249 = vector.broadcast %cst_66 : f32 to vector<8x128xf32>
    %250 = arith.addf %249, %248 : vector<8x128xf32>
    %251 = arith.divf %249, %250 : vector<8x128xf32>
    %252 = vector.extract_strided_slice %232 {offsets = [0, 256], sizes = [8, 128], strides = [1, 1]} : vector<8x384xf32> to vector<8x128xf32>
    %253 = vector.extract_strided_slice %235 {offsets = [0, 256], sizes = [8, 128], strides = [1, 1]} : vector<8x384xf32> to vector<8x128xf32>
    %254 = arith.mulf %243, %253 : vector<8x128xf32>
    %255 = arith.addf %252, %254 : vector<8x128xf32>
    %256 = math.tanh %255 : vector<8x128xf32>
    %cst_67 = arith.constant 1.000000e+00 : f32
    %257 = vector.broadcast %cst_67 : f32 to vector<8x128xf32>
    %258 = arith.subf %257, %251 : vector<8x128xf32>
    %259 = arith.mulf %258, %256 : vector<8x128xf32>
    %260 = arith.mulf %251, %225 : vector<8x128xf32>
    %261 = arith.addf %259, %260 : vector<8x128xf32>
    %262 = arith.index_cast %c6_i32 : i32 to index
    %c0_68 = arith.constant 0 : index
    %c0_69 = arith.constant 0 : index
    %263 = vector.load %arg14[%262, %c0_68, %c0_69] : memref<8x8x128xf32, #tpu.memory_space<vmem>>, vector<1x8x128xf32>
    %264 = vector.shape_cast %263 : vector<1x8x128xf32> to vector<8x128xf32>
    %265 = vector.shape_cast %261 : vector<8x128xf32> to vector<1x8x128xf32>
    tpu.vector_store %arg14[%262, %c0_68, %c0_69], %265 {strides = array<i32>} : memref<8x8x128xf32, #tpu.memory_space<vmem>>, vector<1x8x128xf32>,
    %c7_i32 = arith.constant 7 : i32
    %266 = arith.index_cast %c7_i32 : i32 to index
    %c0_70 = arith.constant 0 : index
    %c0_71 = arith.constant 0 : index
    %267 = vector.load %arg13[%266, %c0_70, %c0_71] : memref<8x8x384xf32, #tpu.memory_space<vmem>>, vector<1x8x384xf32>
    %268 = vector.shape_cast %267 : vector<1x8x384xf32> to vector<8x384xf32>
    %269 = arith.truncf %261 : vector<8x128xf32> to vector<8x128xbf16>
    %cst_72 = arith.constant dense<0.000000e+00> : vector<8x384xf32>
    %270 = tpu.matmul %269, %9, %cst_72 {dimension_numbers = #tpu.dot_dimension_numbers<[1], [0], [0], [1], [0, 0, 1, 1], [], []>} : vector<8x128xbf16>, vector<128x384xbf16>, vector<8x384xf32> -> vector<8x384xf32>
    %271 = arith.addf %270, %12 : vector<8x384xf32>
    %272 = vector.extract_strided_slice %268 {offsets = [0, 0], sizes = [8, 128], strides = [1, 1]} : vector<8x384xf32> to vector<8x128xf32>
    %273 = vector.extract_strided_slice %271 {offsets = [0, 0], sizes = [8, 128], strides = [1, 1]} : vector<8x384xf32> to vector<8x128xf32>
    %274 = arith.addf %272, %273 : vector<8x128xf32>
    %275 = arith.negf %274 : vector<8x128xf32>
    %276 = math.exp %275 : vector<8x128xf32>
    %cst_73 = arith.constant 1.000000e+00 : f32
    %277 = vector.broadcast %cst_73 : f32 to vector<8x128xf32>
    %278 = arith.addf %277, %276 : vector<8x128xf32>
    %279 = arith.divf %277, %278 : vector<8x128xf32>
    %280 = vector.extract_strided_slice %268 {offsets = [0, 128], sizes = [8, 128], strides = [1, 1]} : vector<8x384xf32> to vector<8x128xf32>
    %281 = vector.extract_strided_slice %271 {offsets = [0, 128], sizes = [8, 128], strides = [1, 1]} : vector<8x384xf32> to vector<8x128xf32>
    %282 = arith.addf %280, %281 : vector<8x128xf32>
    %283 = arith.negf %282 : vector<8x128xf32>
    %284 = math.exp %283 : vector<8x128xf32>
    %cst_74 = arith.constant 1.000000e+00 : f32
    %285 = vector.broadcast %cst_74 : f32 to vector<8x128xf32>
    %286 = arith.addf %285, %284 : vector<8x128xf32>
    %287 = arith.divf %285, %286 : vector<8x128xf32>
    %288 = vector.extract_strided_slice %268 {offsets = [0, 256], sizes = [8, 128], strides = [1, 1]} : vector<8x384xf32> to vector<8x128xf32>
    %289 = vector.extract_strided_slice %271 {offsets = [0, 256], sizes = [8, 128], strides = [1, 1]} : vector<8x384xf32> to vector<8x128xf32>
    %290 = arith.mulf %279, %289 : vector<8x128xf32>
    %291 = arith.addf %288, %290 : vector<8x128xf32>
    %292 = math.tanh %291 : vector<8x128xf32>
    %cst_75 = arith.constant 1.000000e+00 : f32
    %293 = vector.broadcast %cst_75 : f32 to vector<8x128xf32>
    %294 = arith.subf %293, %287 : vector<8x128xf32>
    %295 = arith.mulf %294, %292 : vector<8x128xf32>
    %296 = arith.mulf %287, %261 : vector<8x128xf32>
    %297 = arith.addf %295, %296 : vector<8x128xf32>
    %298 = arith.index_cast %c7_i32 : i32 to index
    %c0_76 = arith.constant 0 : index
    %c0_77 = arith.constant 0 : index
    %299 = vector.load %arg14[%298, %c0_76, %c0_77] : memref<8x8x128xf32, #tpu.memory_space<vmem>>, vector<1x8x128xf32>
    %300 = vector.shape_cast %299 : vector<1x8x128xf32> to vector<8x128xf32>
    %301 = vector.shape_cast %297 : vector<8x128xf32> to vector<1x8x128xf32>
    tpu.vector_store %arg14[%298, %c0_76, %c0_77], %301 {strides = array<i32>} : memref<8x8x128xf32, #tpu.memory_space<vmem>>, vector<1x8x128xf32>,
    %c8_i32 = arith.constant 8 : i32
    %302 = tpu.iota {dimensions = array<i32: 1>} : vector<8x128xi32>
    %c64_i32 = arith.constant 64 : i32
    %303 = vector.broadcast %c64_i32 : i32 to vector<8x128xi32>
    %304 = arith.cmpi sge, %302, %303 : vector<8x128xi32>
    %cst_78 = arith.constant 0.000000e+00 : f32
    %305 = vector.broadcast %cst_78 : f32 to vector<128x128xf32>
    %c0_79 = arith.constant 0 : index
    %c0_80 = arith.constant 0 : index
    %306 = vector.load %arg15[%c0_79, %c0_80] : memref<128x128xf32, #tpu.memory_space<vmem>>, vector<128x128xf32>
    tpu.vector_store %arg15[%c0_79, %c0_80], %305 {strides = array<i32>} : memref<128x128xf32, #tpu.memory_space<vmem>>, vector<128x128xf32>,
    %c0_i32_81 = arith.constant 0 : i32
    %c7_i32_82 = arith.constant 7 : i32
    %307 = arith.subi %c7_i32_82, %c0_i32_81 : i32
    %308 = arith.index_cast %307 : i32 to index
    %c0_83 = arith.constant 0 : index
    %c0_84 = arith.constant 0 : index
    %309 = vector.load %arg14[%308, %c0_83, %c0_84] : memref<8x8x128xf32, #tpu.memory_space<vmem>>, vector<1x8x128xf32>
    %310 = vector.shape_cast %309 : vector<1x8x128xf32> to vector<8x128xf32>
    %311 = arith.index_cast %c0_i32_81 : i32 to index
    %c0_85 = arith.constant 0 : index
    %c0_86 = arith.constant 0 : index
    %312 = vector.load %arg14[%311, %c0_85, %c0_86] : memref<8x8x128xf32, #tpu.memory_space<vmem>>, vector<1x8x128xf32>
    %313 = vector.shape_cast %312 : vector<1x8x128xf32> to vector<8x128xf32>
    %314 = arith.select %304, %310, %313 : vector<8x128xi1>, vector<8x128xf32>
    %c8_i32_87 = arith.constant 8 : i32
    %315 = arith.muli %c0_i32_81, %c8_i32_87 : i32
    %316 = arith.index_cast %315 : i32 to index
    %c0_88 = arith.constant 0 : index
    %317 = vector.load %arg15[%316, %c0_88] : memref<128x128xf32, #tpu.memory_space<vmem>>, vector<8x128xf32>
    tpu.vector_store %arg15[%316, %c0_88], %314 {strides = array<i32>} : memref<128x128xf32, #tpu.memory_space<vmem>>, vector<8x128xf32>,
    %c1_i32_89 = arith.constant 1 : i32
    %c7_i32_90 = arith.constant 7 : i32
    %318 = arith.subi %c7_i32_90, %c1_i32_89 : i32
    %319 = arith.index_cast %318 : i32 to index
    %c0_91 = arith.constant 0 : index
    %c0_92 = arith.constant 0 : index
    %320 = vector.load %arg14[%319, %c0_91, %c0_92] : memref<8x8x128xf32, #tpu.memory_space<vmem>>, vector<1x8x128xf32>
    %321 = vector.shape_cast %320 : vector<1x8x128xf32> to vector<8x128xf32>
    %322 = arith.index_cast %c1_i32_89 : i32 to index
    %c0_93 = arith.constant 0 : index
    %c0_94 = arith.constant 0 : index
    %323 = vector.load %arg14[%322, %c0_93, %c0_94] : memref<8x8x128xf32, #tpu.memory_space<vmem>>, vector<1x8x128xf32>
    %324 = vector.shape_cast %323 : vector<1x8x128xf32> to vector<8x128xf32>
    %325 = arith.select %304, %321, %324 : vector<8x128xi1>, vector<8x128xf32>
    %c8_i32_95 = arith.constant 8 : i32
    %326 = arith.muli %c1_i32_89, %c8_i32_95 : i32
    %327 = arith.index_cast %326 : i32 to index
    %c0_96 = arith.constant 0 : index
    %328 = vector.load %arg15[%327, %c0_96] : memref<128x128xf32, #tpu.memory_space<vmem>>, vector<8x128xf32>
    tpu.vector_store %arg15[%327, %c0_96], %325 {strides = array<i32>} : memref<128x128xf32, #tpu.memory_space<vmem>>, vector<8x128xf32>,
    %c2_i32_97 = arith.constant 2 : i32
    %c7_i32_98 = arith.constant 7 : i32
    %329 = arith.subi %c7_i32_98, %c2_i32_97 : i32
    %330 = arith.index_cast %329 : i32 to index
    %c0_99 = arith.constant 0 : index
    %c0_100 = arith.constant 0 : index
    %331 = vector.load %arg14[%330, %c0_99, %c0_100] : memref<8x8x128xf32, #tpu.memory_space<vmem>>, vector<1x8x128xf32>
    %332 = vector.shape_cast %331 : vector<1x8x128xf32> to vector<8x128xf32>
    %333 = arith.index_cast %c2_i32_97 : i32 to index
    %c0_101 = arith.constant 0 : index
    %c0_102 = arith.constant 0 : index
    %334 = vector.load %arg14[%333, %c0_101, %c0_102] : memref<8x8x128xf32, #tpu.memory_space<vmem>>, vector<1x8x128xf32>
    %335 = vector.shape_cast %334 : vector<1x8x128xf32> to vector<8x128xf32>
    %336 = arith.select %304, %332, %335 : vector<8x128xi1>, vector<8x128xf32>
    %c8_i32_103 = arith.constant 8 : i32
    %337 = arith.muli %c2_i32_97, %c8_i32_103 : i32
    %338 = arith.index_cast %337 : i32 to index
    %c0_104 = arith.constant 0 : index
    %339 = vector.load %arg15[%338, %c0_104] : memref<128x128xf32, #tpu.memory_space<vmem>>, vector<8x128xf32>
    tpu.vector_store %arg15[%338, %c0_104], %336 {strides = array<i32>} : memref<128x128xf32, #tpu.memory_space<vmem>>, vector<8x128xf32>,
    %c3_i32_105 = arith.constant 3 : i32
    %c7_i32_106 = arith.constant 7 : i32
    %340 = arith.subi %c7_i32_106, %c3_i32_105 : i32
    %341 = arith.index_cast %340 : i32 to index
    %c0_107 = arith.constant 0 : index
    %c0_108 = arith.constant 0 : index
    %342 = vector.load %arg14[%341, %c0_107, %c0_108] : memref<8x8x128xf32, #tpu.memory_space<vmem>>, vector<1x8x128xf32>
    %343 = vector.shape_cast %342 : vector<1x8x128xf32> to vector<8x128xf32>
    %344 = arith.index_cast %c3_i32_105 : i32 to index
    %c0_109 = arith.constant 0 : index
    %c0_110 = arith.constant 0 : index
    %345 = vector.load %arg14[%344, %c0_109, %c0_110] : memref<8x8x128xf32, #tpu.memory_space<vmem>>, vector<1x8x128xf32>
    %346 = vector.shape_cast %345 : vector<1x8x128xf32> to vector<8x128xf32>
    %347 = arith.select %304, %343, %346 : vector<8x128xi1>, vector<8x128xf32>
    %c8_i32_111 = arith.constant 8 : i32
    %348 = arith.muli %c3_i32_105, %c8_i32_111 : i32
    %349 = arith.index_cast %348 : i32 to index
    %c0_112 = arith.constant 0 : index
    %350 = vector.load %arg15[%349, %c0_112] : memref<128x128xf32, #tpu.memory_space<vmem>>, vector<8x128xf32>
    tpu.vector_store %arg15[%349, %c0_112], %347 {strides = array<i32>} : memref<128x128xf32, #tpu.memory_space<vmem>>, vector<8x128xf32>,
    %c4_i32_113 = arith.constant 4 : i32
    %c7_i32_114 = arith.constant 7 : i32
    %351 = arith.subi %c7_i32_114, %c4_i32_113 : i32
    %352 = arith.index_cast %351 : i32 to index
    %c0_115 = arith.constant 0 : index
    %c0_116 = arith.constant 0 : index
    %353 = vector.load %arg14[%352, %c0_115, %c0_116] : memref<8x8x128xf32, #tpu.memory_space<vmem>>, vector<1x8x128xf32>
    %354 = vector.shape_cast %353 : vector<1x8x128xf32> to vector<8x128xf32>
    %355 = arith.index_cast %c4_i32_113 : i32 to index
    %c0_117 = arith.constant 0 : index
    %c0_118 = arith.constant 0 : index
    %356 = vector.load %arg14[%355, %c0_117, %c0_118] : memref<8x8x128xf32, #tpu.memory_space<vmem>>, vector<1x8x128xf32>
    %357 = vector.shape_cast %356 : vector<1x8x128xf32> to vector<8x128xf32>
    %358 = arith.select %304, %354, %357 : vector<8x128xi1>, vector<8x128xf32>
    %c8_i32_119 = arith.constant 8 : i32
    %359 = arith.muli %c4_i32_113, %c8_i32_119 : i32
    %360 = arith.index_cast %359 : i32 to index
    %c0_120 = arith.constant 0 : index
    %361 = vector.load %arg15[%360, %c0_120] : memref<128x128xf32, #tpu.memory_space<vmem>>, vector<8x128xf32>
    tpu.vector_store %arg15[%360, %c0_120], %358 {strides = array<i32>} : memref<128x128xf32, #tpu.memory_space<vmem>>, vector<8x128xf32>,
    %c5_i32_121 = arith.constant 5 : i32
    %c7_i32_122 = arith.constant 7 : i32
    %362 = arith.subi %c7_i32_122, %c5_i32_121 : i32
    %363 = arith.index_cast %362 : i32 to index
    %c0_123 = arith.constant 0 : index
    %c0_124 = arith.constant 0 : index
    %364 = vector.load %arg14[%363, %c0_123, %c0_124] : memref<8x8x128xf32, #tpu.memory_space<vmem>>, vector<1x8x128xf32>
    %365 = vector.shape_cast %364 : vector<1x8x128xf32> to vector<8x128xf32>
    %366 = arith.index_cast %c5_i32_121 : i32 to index
    %c0_125 = arith.constant 0 : index
    %c0_126 = arith.constant 0 : index
    %367 = vector.load %arg14[%366, %c0_125, %c0_126] : memref<8x8x128xf32, #tpu.memory_space<vmem>>, vector<1x8x128xf32>
    %368 = vector.shape_cast %367 : vector<1x8x128xf32> to vector<8x128xf32>
    %369 = arith.select %304, %365, %368 : vector<8x128xi1>, vector<8x128xf32>
    %c8_i32_127 = arith.constant 8 : i32
    %370 = arith.muli %c5_i32_121, %c8_i32_127 : i32
    %371 = arith.index_cast %370 : i32 to index
    %c0_128 = arith.constant 0 : index
    %372 = vector.load %arg15[%371, %c0_128] : memref<128x128xf32, #tpu.memory_space<vmem>>, vector<8x128xf32>
    tpu.vector_store %arg15[%371, %c0_128], %369 {strides = array<i32>} : memref<128x128xf32, #tpu.memory_space<vmem>>, vector<8x128xf32>,
    %c6_i32_129 = arith.constant 6 : i32
    %c7_i32_130 = arith.constant 7 : i32
    %373 = arith.subi %c7_i32_130, %c6_i32_129 : i32
    %374 = arith.index_cast %373 : i32 to index
    %c0_131 = arith.constant 0 : index
    %c0_132 = arith.constant 0 : index
    %375 = vector.load %arg14[%374, %c0_131, %c0_132] : memref<8x8x128xf32, #tpu.memory_space<vmem>>, vector<1x8x128xf32>
    %376 = vector.shape_cast %375 : vector<1x8x128xf32> to vector<8x128xf32>
    %377 = arith.index_cast %c6_i32_129 : i32 to index
    %c0_133 = arith.constant 0 : index
    %c0_134 = arith.constant 0 : index
    %378 = vector.load %arg14[%377, %c0_133, %c0_134] : memref<8x8x128xf32, #tpu.memory_space<vmem>>, vector<1x8x128xf32>
    %379 = vector.shape_cast %378 : vector<1x8x128xf32> to vector<8x128xf32>
    %380 = arith.select %304, %376, %379 : vector<8x128xi1>, vector<8x128xf32>
    %c8_i32_135 = arith.constant 8 : i32
    %381 = arith.muli %c6_i32_129, %c8_i32_135 : i32
    %382 = arith.index_cast %381 : i32 to index
    %c0_136 = arith.constant 0 : index
    %383 = vector.load %arg15[%382, %c0_136] : memref<128x128xf32, #tpu.memory_space<vmem>>, vector<8x128xf32>
    tpu.vector_store %arg15[%382, %c0_136], %380 {strides = array<i32>} : memref<128x128xf32, #tpu.memory_space<vmem>>, vector<8x128xf32>,
    %c7_i32_137 = arith.constant 7 : i32
    %c7_i32_138 = arith.constant 7 : i32
    %384 = arith.subi %c7_i32_138, %c7_i32_137 : i32
    %385 = arith.index_cast %384 : i32 to index
    %c0_139 = arith.constant 0 : index
    %c0_140 = arith.constant 0 : index
    %386 = vector.load %arg14[%385, %c0_139, %c0_140] : memref<8x8x128xf32, #tpu.memory_space<vmem>>, vector<1x8x128xf32>
    %387 = vector.shape_cast %386 : vector<1x8x128xf32> to vector<8x128xf32>
    %388 = arith.index_cast %c7_i32_137 : i32 to index
    %c0_141 = arith.constant 0 : index
    %c0_142 = arith.constant 0 : index
    %389 = vector.load %arg14[%388, %c0_141, %c0_142] : memref<8x8x128xf32, #tpu.memory_space<vmem>>, vector<1x8x128xf32>
    %390 = vector.shape_cast %389 : vector<1x8x128xf32> to vector<8x128xf32>
    %391 = arith.select %304, %387, %390 : vector<8x128xi1>, vector<8x128xf32>
    %c8_i32_143 = arith.constant 8 : i32
    %392 = arith.muli %c7_i32_137, %c8_i32_143 : i32
    %393 = arith.index_cast %392 : i32 to index
    %c0_144 = arith.constant 0 : index
    %394 = vector.load %arg15[%393, %c0_144] : memref<128x128xf32, #tpu.memory_space<vmem>>, vector<8x128xf32>
    tpu.vector_store %arg15[%393, %c0_144], %391 {strides = array<i32>} : memref<128x128xf32, #tpu.memory_space<vmem>>, vector<8x128xf32>,
    %c8_i32_145 = arith.constant 8 : i32
    %c0_146 = arith.constant 0 : index
    %c0_147 = arith.constant 0 : index
    %395 = vector.load %arg15[%c0_146, %c0_147] : memref<128x128xf32, #tpu.memory_space<vmem>>, vector<128x128xf32>
    %396 = arith.truncf %395 : vector<128x128xf32> to vector<128x128xbf16>
    %397 = tpu.iota {dimensions = array<i32: 1>} : vector<8x128xi32>
    %398 = tpu.iota {dimensions = array<i32: 0>} : vector<8x128xi32>
    %c8_i32_148 = arith.constant 8 : i32
    %c0_i32_149 = arith.constant 0 : i32
    %399 = arith.cmpi eq, %c8_i32_148, %c0_i32_149 : i32
    %c1_i32_150 = arith.constant 1 : i32
    %400 = arith.select %399, %c1_i32_150, %c8_i32_148 : i32
    %401 = vector.broadcast %400 : i32 to vector<8x128xi32>
    %402 = arith.remsi %397, %401 : vector<8x128xi32>
    %c0_i32_151 = arith.constant 0 : i32
    %403 = vector.broadcast %c0_i32_151 : i32 to vector<8x128xi32>
    %404 = arith.cmpi ne, %402, %403 : vector<8x128xi32>
    %c0_i32_152 = arith.constant 0 : i32
    %405 = vector.broadcast %c0_i32_152 : i32 to vector<8x128xi32>
    %406 = arith.cmpi slt, %402, %405 : vector<8x128xi32>
    %c0_i32_153 = arith.constant 0 : i32
    %407 = arith.cmpi slt, %400, %c0_i32_153 : i32
    %408 = vector.broadcast %407 : i1 to vector<8x128xi1>
    %409 = vector.broadcast %408 : vector<8x128xi1> to vector<8x128xi1>
    %410 = arith.xori %406, %409 : vector<8x128xi1>
    %411 = arith.andi %410, %404 : vector<8x128xi1>
    %412 = vector.broadcast %400 : i32 to vector<8x128xi32>
    %413 = arith.addi %402, %412 : vector<8x128xi32>
    %414 = arith.select %411, %413, %402 : vector<8x128xi1>, vector<8x128xi32>
    %415 = arith.cmpi eq, %414, %398 : vector<8x128xi32>
    %c64_i32_154 = arith.constant 64 : i32
    %416 = vector.broadcast %c64_i32_154 : i32 to vector<8x128xi32>
    %417 = arith.cmpi slt, %397, %416 : vector<8x128xi32>
    %418 = arith.andi %415, %417 : vector<8x128xi1>
    %cst_155 = arith.constant 0.000000e+00 : f32
    %cst_156 = arith.constant -1.000000e+30 : f32
    %419 = vector.broadcast %cst_155 : f32 to vector<8x128xf32>
    %420 = vector.broadcast %cst_156 : f32 to vector<8x128xf32>
    %421 = arith.select %418, %419, %420 : vector<8x128xi1>, vector<8x128xf32>
    %c0_157 = arith.constant 0 : index
    %c0_158 = arith.constant 0 : index
    %422 = vector.load %arg5[%c0_157, %c0_158] : memref<256x512xbf16, #tpu.memory_space<vmem>>, vector<256x512xbf16>
    %c0_159 = arith.constant 0 : index
    %c0_160 = arith.constant 0 : index
    %423 = vector.load %arg6[%c0_159, %c0_160] : memref<1x512xf32, #tpu.memory_space<vmem>>, vector<1x512xf32>
    %424 = vector.shape_cast %423 : vector<1x512xf32> to vector<1x512xf32>
    %425 = vector.broadcast %424 : vector<1x512xf32> to vector<8x512xf32>
    %c0_161 = arith.constant 0 : index
    %c0_162 = arith.constant 0 : index
    %426 = vector.load %arg7[%c0_161, %c0_162] : memref<256x128xbf16, #tpu.memory_space<vmem>>, vector<256x128xbf16>
    %c0_163 = arith.constant 0 : index
    %c0_164 = arith.constant 0 : index
    %427 = vector.load %arg8[%c0_163, %c0_164] : memref<1x128xf32, #tpu.memory_space<vmem>>, vector<1x128xf32>
    %428 = vector.shape_cast %427 : vector<1x128xf32> to vector<1x128xf32>
    %429 = vector.broadcast %428 : vector<1x128xf32> to vector<8x128xf32>
    %c0_165 = arith.constant 0 : index
    %c0_166 = arith.constant 0 : index
    %430 = vector.load %arg9[%c0_165, %c0_166] : memref<128x128xbf16, #tpu.memory_space<vmem>>, vector<128x128xbf16>
    %c0_167 = arith.constant 0 : index
    %c0_168 = arith.constant 0 : index
    %431 = vector.load %arg10[%c0_167, %c0_168] : memref<1x128xf32, #tpu.memory_space<vmem>>, vector<1x128xf32>
    %432 = vector.shape_cast %431 : vector<1x128xf32> to vector<1x128xf32>
    %433 = vector.broadcast %432 : vector<1x128xf32> to vector<8x128xf32>
    %434 = tpu.iota {dimensions = array<i32: 1>} : vector<8x128xi32>
    %c1_i32_169 = arith.constant 1 : i32
    %435 = vector.broadcast %c1_i32_169 : i32 to vector<8x128xi32>
    %436 = arith.cmpi eq, %434, %435 : vector<8x128xi32>
    %cst_170 = arith.constant 1.000000e+00 : f32
    %cst_171 = arith.constant 0.000000e+00 : f32
    %437 = vector.broadcast %cst_170 : f32 to vector<8x128xf32>
    %438 = vector.broadcast %cst_171 : f32 to vector<8x128xf32>
    %439 = arith.select %436, %437, %438 : vector<8x128xi1>, vector<8x128xf32>
    %440 = arith.truncf %439 : vector<8x128xf32> to vector<8x128xbf16>
    %c0_i32_172 = arith.constant 0 : i32
    %441 = arith.truncf %297 : vector<8x128xf32> to vector<8x128xbf16>
    %442 = tpu.concatenate %440, %441 in 1 : vector<8x128xbf16>, vector<8x128xbf16> -> vector<8x256xbf16>
    %cst_173 = arith.constant dense<0.000000e+00> : vector<8x512xf32>
    %443 = tpu.matmul %442, %422, %cst_173 {dimension_numbers = #tpu.dot_dimension_numbers<[1], [0], [0], [1], [0, 0, 1, 1], [], []>} : vector<8x256xbf16>, vector<256x512xbf16>, vector<8x512xf32> -> vector<8x512xf32>
    %444 = arith.addf %443, %425 : vector<8x512xf32>
    %445 = vector.extract_strided_slice %444 {offsets = [0, 0], sizes = [8, 128], strides = [1, 1]} : vector<8x512xf32> to vector<8x128xf32>
    %446 = arith.negf %445 : vector<8x128xf32>
    %447 = math.exp %446 : vector<8x128xf32>
    %cst_174 = arith.constant 1.000000e+00 : f32
    %448 = vector.broadcast %cst_174 : f32 to vector<8x128xf32>
    %449 = arith.addf %448, %447 : vector<8x128xf32>
    %450 = arith.divf %448, %449 : vector<8x128xf32>
    %451 = vector.extract_strided_slice %444 {offsets = [0, 128], sizes = [8, 128], strides = [1, 1]} : vector<8x512xf32> to vector<8x128xf32>
    %452 = arith.negf %451 : vector<8x128xf32>
    %453 = math.exp %452 : vector<8x128xf32>
    %cst_175 = arith.constant 1.000000e+00 : f32
    %454 = vector.broadcast %cst_175 : f32 to vector<8x128xf32>
    %455 = arith.addf %454, %453 : vector<8x128xf32>
    %456 = arith.divf %454, %455 : vector<8x128xf32>
    %457 = vector.extract_strided_slice %444 {offsets = [0, 256], sizes = [8, 128], strides = [1, 1]} : vector<8x512xf32> to vector<8x128xf32>
    %458 = vector.extract_strided_slice %444 {offsets = [0, 384], sizes = [8, 128], strides = [1, 1]} : vector<8x512xf32> to vector<8x128xf32>
    %459 = arith.mulf %450, %458 : vector<8x128xf32>
    %460 = arith.addf %457, %459 : vector<8x128xf32>
    %461 = math.tanh %460 : vector<8x128xf32>
    %cst_176 = arith.constant 1.000000e+00 : f32
    %462 = vector.broadcast %cst_176 : f32 to vector<8x128xf32>
    %463 = arith.subf %462, %456 : vector<8x128xf32>
    %464 = arith.mulf %463, %461 : vector<8x128xf32>
    %465 = arith.mulf %456, %297 : vector<8x128xf32>
    %466 = arith.addf %464, %465 : vector<8x128xf32>
    %467 = arith.truncf %466 : vector<8x128xf32> to vector<8x128xbf16>
    %cst_177 = arith.constant dense<0.000000e+00> : vector<8x128xf32>
    %468 = tpu.matmul %467, %396, %cst_177 {dimension_numbers = #tpu.dot_dimension_numbers<[1], [1], [0], [0], [0, 0, 1, 0], [], []>} : vector<8x128xbf16>, vector<128x128xbf16>, vector<8x128xf32> -> vector<8x128xf32>
    %469 = arith.addf %468, %421 : vector<8x128xf32>
    %cst_178 = arith.constant dense<0xFF800000> : vector<8xf32>
    %470 = vector.multi_reduction <maximumf>, %469, %cst_178 [1] : vector<8x128xf32> to vector<8xf32>
    %471 = vector.shape_cast %470 : vector<8xf32> to vector<8x1xf32>
    %472 = vector.broadcast %471 : vector<8x1xf32> to vector<8x128xf32>
    %473 = arith.subf %469, %472 : vector<8x128xf32>
    %474 = math.exp %473 : vector<8x128xf32>
    %cst_179 = arith.constant dense<0.000000e+00> : vector<8xf32>
    %475 = vector.multi_reduction <add>, %474, %cst_179 [1] : vector<8x128xf32> to vector<8xf32>
    %476 = vector.shape_cast %475 : vector<8xf32> to vector<8x1xf32>
    %477 = tpu.reciprocal %476 {approx = true} : vector<8x1xf32> -> vector<8x1xf32>
    %478 = vector.broadcast %477 : vector<8x1xf32> to vector<8x128xf32>
    %479 = arith.mulf %474, %478 : vector<8x128xf32>
    %480 = arith.truncf %479 : vector<8x128xf32> to vector<8x128xbf16>
    %cst_180 = arith.constant dense<0.000000e+00> : vector<8x128xf32>
    %481 = tpu.matmul %480, %396, %cst_180 {dimension_numbers = #tpu.dot_dimension_numbers<[1], [0], [0], [1], [0, 0, 1, 1], [], []>} : vector<8x128xbf16>, vector<128x128xbf16>, vector<8x128xf32> -> vector<8x128xf32>
    %482 = arith.truncf %481 : vector<8x128xf32> to vector<8x128xbf16>
    %483 = tpu.concatenate %467, %482 in 1 : vector<8x128xbf16>, vector<8x128xbf16> -> vector<8x256xbf16>
    %cst_181 = arith.constant dense<0.000000e+00> : vector<8x128xf32>
    %484 = tpu.matmul %483, %426, %cst_181 {dimension_numbers = #tpu.dot_dimension_numbers<[1], [0], [0], [1], [0, 0, 1, 1], [], []>} : vector<8x256xbf16>, vector<256x128xbf16>, vector<8x128xf32> -> vector<8x128xf32>
    %485 = arith.addf %484, %429 : vector<8x128xf32>
    %486 = math.tanh %485 : vector<8x128xf32>
    %487 = arith.truncf %486 : vector<8x128xf32> to vector<8x128xbf16>
    %cst_182 = arith.constant dense<0.000000e+00> : vector<8x128xf32>
    %488 = tpu.matmul %487, %430, %cst_182 {dimension_numbers = #tpu.dot_dimension_numbers<[1], [0], [0], [1], [0, 0, 1, 1], [], []>} : vector<8x128xbf16>, vector<128x128xbf16>, vector<8x128xf32> -> vector<8x128xf32>
    %489 = arith.addf %488, %433 : vector<8x128xf32>
    %cst_183 = arith.constant dense<0xFF800000> : vector<8xf32>
    %490 = vector.multi_reduction <maximumf>, %489, %cst_183 [1] : vector<8x128xf32> to vector<8xf32>
    %491 = vector.shape_cast %490 : vector<8xf32> to vector<8x1xf32>
    %492 = vector.broadcast %491 : vector<8x1xf32> to vector<8x128xf32>
    %493 = arith.subf %489, %492 : vector<8x128xf32>
    %494 = math.exp %493 : vector<8x128xf32>
    %cst_184 = arith.constant dense<0.000000e+00> : vector<8xf32>
    %495 = vector.multi_reduction <add>, %494, %cst_184 [1] : vector<8x128xf32> to vector<8xf32>
    %496 = vector.shape_cast %495 : vector<8xf32> to vector<8x1xf32>
    %497 = math.log %496 : vector<8x1xf32>
    %498 = vector.broadcast %497 : vector<8x1xf32> to vector<8x128xf32>
    %499 = arith.subf %493, %498 : vector<8x128xf32>
    %500 = arith.index_cast %c0_i32_172 : i32 to index
    %c0_185 = arith.constant 0 : index
    %c0_186 = arith.constant 0 : index
    %501 = vector.load %arg11[%500, %c0_185, %c0_186] : memref<8x8x128xf32, #tpu.memory_space<vmem>>, vector<1x8x128xf32>
    %502 = vector.shape_cast %501 : vector<1x8x128xf32> to vector<8x128xf32>
    %503 = vector.shape_cast %499 : vector<8x128xf32> to vector<1x8x128xf32>
    tpu.vector_store %arg11[%500, %c0_185, %c0_186], %503 {strides = array<i32>} : memref<8x8x128xf32, #tpu.memory_space<vmem>>, vector<1x8x128xf32>,
    %cst_187 = arith.constant dense<0xFF800000> : vector<8xf32>
    %504 = vector.multi_reduction <maximumf>, %499, %cst_187 [1] : vector<8x128xf32> to vector<8xf32>
    %505 = vector.shape_cast %504 : vector<8xf32> to vector<8x1xf32>
    %506 = vector.broadcast %505 : vector<8x1xf32> to vector<8x128xf32>
    %507 = arith.cmpf oge, %499, %506 : vector<8x128xf32>
    %c128_i32 = arith.constant 128 : i32
    %508 = vector.broadcast %c128_i32 : i32 to vector<8x128xi32>
    %509 = arith.select %507, %434, %508 : vector<8x128xi1>, vector<8x128xi32>
    %cst_188 = arith.constant dense<2147483647> : vector<8xi32>
    %510 = vector.multi_reduction <minsi>, %509, %cst_188 [1] : vector<8x128xi32> to vector<8xi32>
    %511 = vector.shape_cast %510 : vector<8xi32> to vector<8x1xi32>
    %512 = vector.broadcast %511 : vector<8x1xi32> to vector<8x128xi32>
    %513 = arith.cmpi eq, %434, %512 : vector<8x128xi32>
    %cst_189 = arith.constant 1.000000e+00 : f32
    %cst_190 = arith.constant 0.000000e+00 : f32
    %514 = vector.broadcast %cst_189 : f32 to vector<8x128xf32>
    %515 = vector.broadcast %cst_190 : f32 to vector<8x128xf32>
    %516 = arith.select %513, %514, %515 : vector<8x128xi1>, vector<8x128xf32>
    %517 = arith.truncf %516 : vector<8x128xf32> to vector<8x128xbf16>
    %c1_i32_191 = arith.constant 1 : i32
    %518 = arith.truncf %466 : vector<8x128xf32> to vector<8x128xbf16>
    %519 = tpu.concatenate %517, %518 in 1 : vector<8x128xbf16>, vector<8x128xbf16> -> vector<8x256xbf16>
    %cst_192 = arith.constant dense<0.000000e+00> : vector<8x512xf32>
    %520 = tpu.matmul %519, %422, %cst_192 {dimension_numbers = #tpu.dot_dimension_numbers<[1], [0], [0], [1], [0, 0, 1, 1], [], []>} : vector<8x256xbf16>, vector<256x512xbf16>, vector<8x512xf32> -> vector<8x512xf32>
    %521 = arith.addf %520, %425 : vector<8x512xf32>
    %522 = vector.extract_strided_slice %521 {offsets = [0, 0], sizes = [8, 128], strides = [1, 1]} : vector<8x512xf32> to vector<8x128xf32>
    %523 = arith.negf %522 : vector<8x128xf32>
    %524 = math.exp %523 : vector<8x128xf32>
    %cst_193 = arith.constant 1.000000e+00 : f32
    %525 = vector.broadcast %cst_193 : f32 to vector<8x128xf32>
    %526 = arith.addf %525, %524 : vector<8x128xf32>
    %527 = arith.divf %525, %526 : vector<8x128xf32>
    %528 = vector.extract_strided_slice %521 {offsets = [0, 128], sizes = [8, 128], strides = [1, 1]} : vector<8x512xf32> to vector<8x128xf32>
    %529 = arith.negf %528 : vector<8x128xf32>
    %530 = math.exp %529 : vector<8x128xf32>
    %cst_194 = arith.constant 1.000000e+00 : f32
    %531 = vector.broadcast %cst_194 : f32 to vector<8x128xf32>
    %532 = arith.addf %531, %530 : vector<8x128xf32>
    %533 = arith.divf %531, %532 : vector<8x128xf32>
    %534 = vector.extract_strided_slice %521 {offsets = [0, 256], sizes = [8, 128], strides = [1, 1]} : vector<8x512xf32> to vector<8x128xf32>
    %535 = vector.extract_strided_slice %521 {offsets = [0, 384], sizes = [8, 128], strides = [1, 1]} : vector<8x512xf32> to vector<8x128xf32>
    %536 = arith.mulf %527, %535 : vector<8x128xf32>
    %537 = arith.addf %534, %536 : vector<8x128xf32>
    %538 = math.tanh %537 : vector<8x128xf32>
    %cst_195 = arith.constant 1.000000e+00 : f32
    %539 = vector.broadcast %cst_195 : f32 to vector<8x128xf32>
    %540 = arith.subf %539, %533 : vector<8x128xf32>
    %541 = arith.mulf %540, %538 : vector<8x128xf32>
    %542 = arith.mulf %533, %466 : vector<8x128xf32>
    %543 = arith.addf %541, %542 : vector<8x128xf32>
    %544 = arith.truncf %543 : vector<8x128xf32> to vector<8x128xbf16>
    %cst_196 = arith.constant dense<0.000000e+00> : vector<8x128xf32>
    %545 = tpu.matmul %544, %396, %cst_196 {dimension_numbers = #tpu.dot_dimension_numbers<[1], [1], [0], [0], [0, 0, 1, 0], [], []>} : vector<8x128xbf16>, vector<128x128xbf16>, vector<8x128xf32> -> vector<8x128xf32>
    %546 = arith.addf %545, %421 : vector<8x128xf32>
    %cst_197 = arith.constant dense<0xFF800000> : vector<8xf32>
    %547 = vector.multi_reduction <maximumf>, %546, %cst_197 [1] : vector<8x128xf32> to vector<8xf32>
    %548 = vector.shape_cast %547 : vector<8xf32> to vector<8x1xf32>
    %549 = vector.broadcast %548 : vector<8x1xf32> to vector<8x128xf32>
    %550 = arith.subf %546, %549 : vector<8x128xf32>
    %551 = math.exp %550 : vector<8x128xf32>
    %cst_198 = arith.constant dense<0.000000e+00> : vector<8xf32>
    %552 = vector.multi_reduction <add>, %551, %cst_198 [1] : vector<8x128xf32> to vector<8xf32>
    %553 = vector.shape_cast %552 : vector<8xf32> to vector<8x1xf32>
    %554 = tpu.reciprocal %553 {approx = true} : vector<8x1xf32> -> vector<8x1xf32>
    %555 = vector.broadcast %554 : vector<8x1xf32> to vector<8x128xf32>
    %556 = arith.mulf %551, %555 : vector<8x128xf32>
    %557 = arith.truncf %556 : vector<8x128xf32> to vector<8x128xbf16>
    %cst_199 = arith.constant dense<0.000000e+00> : vector<8x128xf32>
    %558 = tpu.matmul %557, %396, %cst_199 {dimension_numbers = #tpu.dot_dimension_numbers<[1], [0], [0], [1], [0, 0, 1, 1], [], []>} : vector<8x128xbf16>, vector<128x128xbf16>, vector<8x128xf32> -> vector<8x128xf32>
    %559 = arith.truncf %558 : vector<8x128xf32> to vector<8x128xbf16>
    %560 = tpu.concatenate %544, %559 in 1 : vector<8x128xbf16>, vector<8x128xbf16> -> vector<8x256xbf16>
    %cst_200 = arith.constant dense<0.000000e+00> : vector<8x128xf32>
    %561 = tpu.matmul %560, %426, %cst_200 {dimension_numbers = #tpu.dot_dimension_numbers<[1], [0], [0], [1], [0, 0, 1, 1], [], []>} : vector<8x256xbf16>, vector<256x128xbf16>, vector<8x128xf32> -> vector<8x128xf32>
    %562 = arith.addf %561, %429 : vector<8x128xf32>
    %563 = math.tanh %562 : vector<8x128xf32>
    %564 = arith.truncf %563 : vector<8x128xf32> to vector<8x128xbf16>
    %cst_201 = arith.constant dense<0.000000e+00> : vector<8x128xf32>
    %565 = tpu.matmul %564, %430, %cst_201 {dimension_numbers = #tpu.dot_dimension_numbers<[1], [0], [0], [1], [0, 0, 1, 1], [], []>} : vector<8x128xbf16>, vector<128x128xbf16>, vector<8x128xf32> -> vector<8x128xf32>
    %566 = arith.addf %565, %433 : vector<8x128xf32>
    %cst_202 = arith.constant dense<0xFF800000> : vector<8xf32>
    %567 = vector.multi_reduction <maximumf>, %566, %cst_202 [1] : vector<8x128xf32> to vector<8xf32>
    %568 = vector.shape_cast %567 : vector<8xf32> to vector<8x1xf32>
    %569 = vector.broadcast %568 : vector<8x1xf32> to vector<8x128xf32>
    %570 = arith.subf %566, %569 : vector<8x128xf32>
    %571 = math.exp %570 : vector<8x128xf32>
    %cst_203 = arith.constant dense<0.000000e+00> : vector<8xf32>
    %572 = vector.multi_reduction <add>, %571, %cst_203 [1] : vector<8x128xf32> to vector<8xf32>
    %573 = vector.shape_cast %572 : vector<8xf32> to vector<8x1xf32>
    %574 = math.log %573 : vector<8x1xf32>
    %575 = vector.broadcast %574 : vector<8x1xf32> to vector<8x128xf32>
    %576 = arith.subf %570, %575 : vector<8x128xf32>
    %577 = arith.index_cast %c1_i32_191 : i32 to index
    %c0_204 = arith.constant 0 : index
    %c0_205 = arith.constant 0 : index
    %578 = vector.load %arg11[%577, %c0_204, %c0_205] : memref<8x8x128xf32, #tpu.memory_space<vmem>>, vector<1x8x128xf32>
    %579 = vector.shape_cast %578 : vector<1x8x128xf32> to vector<8x128xf32>
    %580 = vector.shape_cast %576 : vector<8x128xf32> to vector<1x8x128xf32>
    tpu.vector_store %arg11[%577, %c0_204, %c0_205], %580 {strides = array<i32>} : memref<8x8x128xf32, #tpu.memory_space<vmem>>, vector<1x8x128xf32>,
    %cst_206 = arith.constant dense<0xFF800000> : vector<8xf32>
    %581 = vector.multi_reduction <maximumf>, %576, %cst_206 [1] : vector<8x128xf32> to vector<8xf32>
    %582 = vector.shape_cast %581 : vector<8xf32> to vector<8x1xf32>
    %583 = vector.broadcast %582 : vector<8x1xf32> to vector<8x128xf32>
    %584 = arith.cmpf oge, %576, %583 : vector<8x128xf32>
    %c128_i32_207 = arith.constant 128 : i32
    %585 = vector.broadcast %c128_i32_207 : i32 to vector<8x128xi32>
    %586 = arith.select %584, %434, %585 : vector<8x128xi1>, vector<8x128xi32>
    %cst_208 = arith.constant dense<2147483647> : vector<8xi32>
    %587 = vector.multi_reduction <minsi>, %586, %cst_208 [1] : vector<8x128xi32> to vector<8xi32>
    %588 = vector.shape_cast %587 : vector<8xi32> to vector<8x1xi32>
    %589 = vector.broadcast %588 : vector<8x1xi32> to vector<8x128xi32>
    %590 = arith.cmpi eq, %434, %589 : vector<8x128xi32>
    %cst_209 = arith.constant 1.000000e+00 : f32
    %cst_210 = arith.constant 0.000000e+00 : f32
    %591 = vector.broadcast %cst_209 : f32 to vector<8x128xf32>
    %592 = vector.broadcast %cst_210 : f32 to vector<8x128xf32>
    %593 = arith.select %590, %591, %592 : vector<8x128xi1>, vector<8x128xf32>
    %594 = arith.truncf %593 : vector<8x128xf32> to vector<8x128xbf16>
    %c2_i32_211 = arith.constant 2 : i32
    %595 = arith.truncf %543 : vector<8x128xf32> to vector<8x128xbf16>
    %596 = tpu.concatenate %594, %595 in 1 : vector<8x128xbf16>, vector<8x128xbf16> -> vector<8x256xbf16>
    %cst_212 = arith.constant dense<0.000000e+00> : vector<8x512xf32>
    %597 = tpu.matmul %596, %422, %cst_212 {dimension_numbers = #tpu.dot_dimension_numbers<[1], [0], [0], [1], [0, 0, 1, 1], [], []>} : vector<8x256xbf16>, vector<256x512xbf16>, vector<8x512xf32> -> vector<8x512xf32>
    %598 = arith.addf %597, %425 : vector<8x512xf32>
    %599 = vector.extract_strided_slice %598 {offsets = [0, 0], sizes = [8, 128], strides = [1, 1]} : vector<8x512xf32> to vector<8x128xf32>
    %600 = arith.negf %599 : vector<8x128xf32>
    %601 = math.exp %600 : vector<8x128xf32>
    %cst_213 = arith.constant 1.000000e+00 : f32
    %602 = vector.broadcast %cst_213 : f32 to vector<8x128xf32>
    %603 = arith.addf %602, %601 : vector<8x128xf32>
    %604 = arith.divf %602, %603 : vector<8x128xf32>
    %605 = vector.extract_strided_slice %598 {offsets = [0, 128], sizes = [8, 128], strides = [1, 1]} : vector<8x512xf32> to vector<8x128xf32>
    %606 = arith.negf %605 : vector<8x128xf32>
    %607 = math.exp %606 : vector<8x128xf32>
    %cst_214 = arith.constant 1.000000e+00 : f32
    %608 = vector.broadcast %cst_214 : f32 to vector<8x128xf32>
    %609 = arith.addf %608, %607 : vector<8x128xf32>
    %610 = arith.divf %608, %609 : vector<8x128xf32>
    %611 = vector.extract_strided_slice %598 {offsets = [0, 256], sizes = [8, 128], strides = [1, 1]} : vector<8x512xf32> to vector<8x128xf32>
    %612 = vector.extract_strided_slice %598 {offsets = [0, 384], sizes = [8, 128], strides = [1, 1]} : vector<8x512xf32> to vector<8x128xf32>
    %613 = arith.mulf %604, %612 : vector<8x128xf32>
    %614 = arith.addf %611, %613 : vector<8x128xf32>
    %615 = math.tanh %614 : vector<8x128xf32>
    %cst_215 = arith.constant 1.000000e+00 : f32
    %616 = vector.broadcast %cst_215 : f32 to vector<8x128xf32>
    %617 = arith.subf %616, %610 : vector<8x128xf32>
    %618 = arith.mulf %617, %615 : vector<8x128xf32>
    %619 = arith.mulf %610, %543 : vector<8x128xf32>
    %620 = arith.addf %618, %619 : vector<8x128xf32>
    %621 = arith.truncf %620 : vector<8x128xf32> to vector<8x128xbf16>
    %cst_216 = arith.constant dense<0.000000e+00> : vector<8x128xf32>
    %622 = tpu.matmul %621, %396, %cst_216 {dimension_numbers = #tpu.dot_dimension_numbers<[1], [1], [0], [0], [0, 0, 1, 0], [], []>} : vector<8x128xbf16>, vector<128x128xbf16>, vector<8x128xf32> -> vector<8x128xf32>
    %623 = arith.addf %622, %421 : vector<8x128xf32>
    %cst_217 = arith.constant dense<0xFF800000> : vector<8xf32>
    %624 = vector.multi_reduction <maximumf>, %623, %cst_217 [1] : vector<8x128xf32> to vector<8xf32>
    %625 = vector.shape_cast %624 : vector<8xf32> to vector<8x1xf32>
    %626 = vector.broadcast %625 : vector<8x1xf32> to vector<8x128xf32>
    %627 = arith.subf %623, %626 : vector<8x128xf32>
    %628 = math.exp %627 : vector<8x128xf32>
    %cst_218 = arith.constant dense<0.000000e+00> : vector<8xf32>
    %629 = vector.multi_reduction <add>, %628, %cst_218 [1] : vector<8x128xf32> to vector<8xf32>
    %630 = vector.shape_cast %629 : vector<8xf32> to vector<8x1xf32>
    %631 = tpu.reciprocal %630 {approx = true} : vector<8x1xf32> -> vector<8x1xf32>
    %632 = vector.broadcast %631 : vector<8x1xf32> to vector<8x128xf32>
    %633 = arith.mulf %628, %632 : vector<8x128xf32>
    %634 = arith.truncf %633 : vector<8x128xf32> to vector<8x128xbf16>
    %cst_219 = arith.constant dense<0.000000e+00> : vector<8x128xf32>
    %635 = tpu.matmul %634, %396, %cst_219 {dimension_numbers = #tpu.dot_dimension_numbers<[1], [0], [0], [1], [0, 0, 1, 1], [], []>} : vector<8x128xbf16>, vector<128x128xbf16>, vector<8x128xf32> -> vector<8x128xf32>
    %636 = arith.truncf %635 : vector<8x128xf32> to vector<8x128xbf16>
    %637 = tpu.concatenate %621, %636 in 1 : vector<8x128xbf16>, vector<8x128xbf16> -> vector<8x256xbf16>
    %cst_220 = arith.constant dense<0.000000e+00> : vector<8x128xf32>
    %638 = tpu.matmul %637, %426, %cst_220 {dimension_numbers = #tpu.dot_dimension_numbers<[1], [0], [0], [1], [0, 0, 1, 1], [], []>} : vector<8x256xbf16>, vector<256x128xbf16>, vector<8x128xf32> -> vector<8x128xf32>
    %639 = arith.addf %638, %429 : vector<8x128xf32>
    %640 = math.tanh %639 : vector<8x128xf32>
    %641 = arith.truncf %640 : vector<8x128xf32> to vector<8x128xbf16>
    %cst_221 = arith.constant dense<0.000000e+00> : vector<8x128xf32>
    %642 = tpu.matmul %641, %430, %cst_221 {dimension_numbers = #tpu.dot_dimension_numbers<[1], [0], [0], [1], [0, 0, 1, 1], [], []>} : vector<8x128xbf16>, vector<128x128xbf16>, vector<8x128xf32> -> vector<8x128xf32>
    %643 = arith.addf %642, %433 : vector<8x128xf32>
    %cst_222 = arith.constant dense<0xFF800000> : vector<8xf32>
    %644 = vector.multi_reduction <maximumf>, %643, %cst_222 [1] : vector<8x128xf32> to vector<8xf32>
    %645 = vector.shape_cast %644 : vector<8xf32> to vector<8x1xf32>
    %646 = vector.broadcast %645 : vector<8x1xf32> to vector<8x128xf32>
    %647 = arith.subf %643, %646 : vector<8x128xf32>
    %648 = math.exp %647 : vector<8x128xf32>
    %cst_223 = arith.constant dense<0.000000e+00> : vector<8xf32>
    %649 = vector.multi_reduction <add>, %648, %cst_223 [1] : vector<8x128xf32> to vector<8xf32>
    %650 = vector.shape_cast %649 : vector<8xf32> to vector<8x1xf32>
    %651 = math.log %650 : vector<8x1xf32>
    %652 = vector.broadcast %651 : vector<8x1xf32> to vector<8x128xf32>
    %653 = arith.subf %647, %652 : vector<8x128xf32>
    %654 = arith.index_cast %c2_i32_211 : i32 to index
    %c0_224 = arith.constant 0 : index
    %c0_225 = arith.constant 0 : index
    %655 = vector.load %arg11[%654, %c0_224, %c0_225] : memref<8x8x128xf32, #tpu.memory_space<vmem>>, vector<1x8x128xf32>
    %656 = vector.shape_cast %655 : vector<1x8x128xf32> to vector<8x128xf32>
    %657 = vector.shape_cast %653 : vector<8x128xf32> to vector<1x8x128xf32>
    tpu.vector_store %arg11[%654, %c0_224, %c0_225], %657 {strides = array<i32>} : memref<8x8x128xf32, #tpu.memory_space<vmem>>, vector<1x8x128xf32>,
    %cst_226 = arith.constant dense<0xFF800000> : vector<8xf32>
    %658 = vector.multi_reduction <maximumf>, %653, %cst_226 [1] : vector<8x128xf32> to vector<8xf32>
    %659 = vector.shape_cast %658 : vector<8xf32> to vector<8x1xf32>
    %660 = vector.broadcast %659 : vector<8x1xf32> to vector<8x128xf32>
    %661 = arith.cmpf oge, %653, %660 : vector<8x128xf32>
    %c128_i32_227 = arith.constant 128 : i32
    %662 = vector.broadcast %c128_i32_227 : i32 to vector<8x128xi32>
    %663 = arith.select %661, %434, %662 : vector<8x128xi1>, vector<8x128xi32>
    %cst_228 = arith.constant dense<2147483647> : vector<8xi32>
    %664 = vector.multi_reduction <minsi>, %663, %cst_228 [1] : vector<8x128xi32> to vector<8xi32>
    %665 = vector.shape_cast %664 : vector<8xi32> to vector<8x1xi32>
    %666 = vector.broadcast %665 : vector<8x1xi32> to vector<8x128xi32>
    %667 = arith.cmpi eq, %434, %666 : vector<8x128xi32>
    %cst_229 = arith.constant 1.000000e+00 : f32
    %cst_230 = arith.constant 0.000000e+00 : f32
    %668 = vector.broadcast %cst_229 : f32 to vector<8x128xf32>
    %669 = vector.broadcast %cst_230 : f32 to vector<8x128xf32>
    %670 = arith.select %667, %668, %669 : vector<8x128xi1>, vector<8x128xf32>
    %671 = arith.truncf %670 : vector<8x128xf32> to vector<8x128xbf16>
    %c3_i32_231 = arith.constant 3 : i32
    %672 = arith.truncf %620 : vector<8x128xf32> to vector<8x128xbf16>
    %673 = tpu.concatenate %671, %672 in 1 : vector<8x128xbf16>, vector<8x128xbf16> -> vector<8x256xbf16>
    %cst_232 = arith.constant dense<0.000000e+00> : vector<8x512xf32>
    %674 = tpu.matmul %673, %422, %cst_232 {dimension_numbers = #tpu.dot_dimension_numbers<[1], [0], [0], [1], [0, 0, 1, 1], [], []>} : vector<8x256xbf16>, vector<256x512xbf16>, vector<8x512xf32> -> vector<8x512xf32>
    %675 = arith.addf %674, %425 : vector<8x512xf32>
    %676 = vector.extract_strided_slice %675 {offsets = [0, 0], sizes = [8, 128], strides = [1, 1]} : vector<8x512xf32> to vector<8x128xf32>
    %677 = arith.negf %676 : vector<8x128xf32>
    %678 = math.exp %677 : vector<8x128xf32>
    %cst_233 = arith.constant 1.000000e+00 : f32
    %679 = vector.broadcast %cst_233 : f32 to vector<8x128xf32>
    %680 = arith.addf %679, %678 : vector<8x128xf32>
    %681 = arith.divf %679, %680 : vector<8x128xf32>
    %682 = vector.extract_strided_slice %675 {offsets = [0, 128], sizes = [8, 128], strides = [1, 1]} : vector<8x512xf32> to vector<8x128xf32>
    %683 = arith.negf %682 : vector<8x128xf32>
    %684 = math.exp %683 : vector<8x128xf32>
    %cst_234 = arith.constant 1.000000e+00 : f32
    %685 = vector.broadcast %cst_234 : f32 to vector<8x128xf32>
    %686 = arith.addf %685, %684 : vector<8x128xf32>
    %687 = arith.divf %685, %686 : vector<8x128xf32>
    %688 = vector.extract_strided_slice %675 {offsets = [0, 256], sizes = [8, 128], strides = [1, 1]} : vector<8x512xf32> to vector<8x128xf32>
    %689 = vector.extract_strided_slice %675 {offsets = [0, 384], sizes = [8, 128], strides = [1, 1]} : vector<8x512xf32> to vector<8x128xf32>
    %690 = arith.mulf %681, %689 : vector<8x128xf32>
    %691 = arith.addf %688, %690 : vector<8x128xf32>
    %692 = math.tanh %691 : vector<8x128xf32>
    %cst_235 = arith.constant 1.000000e+00 : f32
    %693 = vector.broadcast %cst_235 : f32 to vector<8x128xf32>
    %694 = arith.subf %693, %687 : vector<8x128xf32>
    %695 = arith.mulf %694, %692 : vector<8x128xf32>
    %696 = arith.mulf %687, %620 : vector<8x128xf32>
    %697 = arith.addf %695, %696 : vector<8x128xf32>
    %698 = arith.truncf %697 : vector<8x128xf32> to vector<8x128xbf16>
    %cst_236 = arith.constant dense<0.000000e+00> : vector<8x128xf32>
    %699 = tpu.matmul %698, %396, %cst_236 {dimension_numbers = #tpu.dot_dimension_numbers<[1], [1], [0], [0], [0, 0, 1, 0], [], []>} : vector<8x128xbf16>, vector<128x128xbf16>, vector<8x128xf32> -> vector<8x128xf32>
    %700 = arith.addf %699, %421 : vector<8x128xf32>
    %cst_237 = arith.constant dense<0xFF800000> : vector<8xf32>
    %701 = vector.multi_reduction <maximumf>, %700, %cst_237 [1] : vector<8x128xf32> to vector<8xf32>
    %702 = vector.shape_cast %701 : vector<8xf32> to vector<8x1xf32>
    %703 = vector.broadcast %702 : vector<8x1xf32> to vector<8x128xf32>
    %704 = arith.subf %700, %703 : vector<8x128xf32>
    %705 = math.exp %704 : vector<8x128xf32>
    %cst_238 = arith.constant dense<0.000000e+00> : vector<8xf32>
    %706 = vector.multi_reduction <add>, %705, %cst_238 [1] : vector<8x128xf32> to vector<8xf32>
    %707 = vector.shape_cast %706 : vector<8xf32> to vector<8x1xf32>
    %708 = tpu.reciprocal %707 {approx = true} : vector<8x1xf32> -> vector<8x1xf32>
    %709 = vector.broadcast %708 : vector<8x1xf32> to vector<8x128xf32>
    %710 = arith.mulf %705, %709 : vector<8x128xf32>
    %711 = arith.truncf %710 : vector<8x128xf32> to vector<8x128xbf16>
    %cst_239 = arith.constant dense<0.000000e+00> : vector<8x128xf32>
    %712 = tpu.matmul %711, %396, %cst_239 {dimension_numbers = #tpu.dot_dimension_numbers<[1], [0], [0], [1], [0, 0, 1, 1], [], []>} : vector<8x128xbf16>, vector<128x128xbf16>, vector<8x128xf32> -> vector<8x128xf32>
    %713 = arith.truncf %712 : vector<8x128xf32> to vector<8x128xbf16>
    %714 = tpu.concatenate %698, %713 in 1 : vector<8x128xbf16>, vector<8x128xbf16> -> vector<8x256xbf16>
    %cst_240 = arith.constant dense<0.000000e+00> : vector<8x128xf32>
    %715 = tpu.matmul %714, %426, %cst_240 {dimension_numbers = #tpu.dot_dimension_numbers<[1], [0], [0], [1], [0, 0, 1, 1], [], []>} : vector<8x256xbf16>, vector<256x128xbf16>, vector<8x128xf32> -> vector<8x128xf32>
    %716 = arith.addf %715, %429 : vector<8x128xf32>
    %717 = math.tanh %716 : vector<8x128xf32>
    %718 = arith.truncf %717 : vector<8x128xf32> to vector<8x128xbf16>
    %cst_241 = arith.constant dense<0.000000e+00> : vector<8x128xf32>
    %719 = tpu.matmul %718, %430, %cst_241 {dimension_numbers = #tpu.dot_dimension_numbers<[1], [0], [0], [1], [0, 0, 1, 1], [], []>} : vector<8x128xbf16>, vector<128x128xbf16>, vector<8x128xf32> -> vector<8x128xf32>
    %720 = arith.addf %719, %433 : vector<8x128xf32>
    %cst_242 = arith.constant dense<0xFF800000> : vector<8xf32>
    %721 = vector.multi_reduction <maximumf>, %720, %cst_242 [1] : vector<8x128xf32> to vector<8xf32>
    %722 = vector.shape_cast %721 : vector<8xf32> to vector<8x1xf32>
    %723 = vector.broadcast %722 : vector<8x1xf32> to vector<8x128xf32>
    %724 = arith.subf %720, %723 : vector<8x128xf32>
    %725 = math.exp %724 : vector<8x128xf32>
    %cst_243 = arith.constant dense<0.000000e+00> : vector<8xf32>
    %726 = vector.multi_reduction <add>, %725, %cst_243 [1] : vector<8x128xf32> to vector<8xf32>
    %727 = vector.shape_cast %726 : vector<8xf32> to vector<8x1xf32>
    %728 = math.log %727 : vector<8x1xf32>
    %729 = vector.broadcast %728 : vector<8x1xf32> to vector<8x128xf32>
    %730 = arith.subf %724, %729 : vector<8x128xf32>
    %731 = arith.index_cast %c3_i32_231 : i32 to index
    %c0_244 = arith.constant 0 : index
    %c0_245 = arith.constant 0 : index
    %732 = vector.load %arg11[%731, %c0_244, %c0_245] : memref<8x8x128xf32, #tpu.memory_space<vmem>>, vector<1x8x128xf32>
    %733 = vector.shape_cast %732 : vector<1x8x128xf32> to vector<8x128xf32>
    %734 = vector.shape_cast %730 : vector<8x128xf32> to vector<1x8x128xf32>
    tpu.vector_store %arg11[%731, %c0_244, %c0_245], %734 {strides = array<i32>} : memref<8x8x128xf32, #tpu.memory_space<vmem>>, vector<1x8x128xf32>,
    %cst_246 = arith.constant dense<0xFF800000> : vector<8xf32>
    %735 = vector.multi_reduction <maximumf>, %730, %cst_246 [1] : vector<8x128xf32> to vector<8xf32>
    %736 = vector.shape_cast %735 : vector<8xf32> to vector<8x1xf32>
    %737 = vector.broadcast %736 : vector<8x1xf32> to vector<8x128xf32>
    %738 = arith.cmpf oge, %730, %737 : vector<8x128xf32>
    %c128_i32_247 = arith.constant 128 : i32
    %739 = vector.broadcast %c128_i32_247 : i32 to vector<8x128xi32>
    %740 = arith.select %738, %434, %739 : vector<8x128xi1>, vector<8x128xi32>
    %cst_248 = arith.constant dense<2147483647> : vector<8xi32>
    %741 = vector.multi_reduction <minsi>, %740, %cst_248 [1] : vector<8x128xi32> to vector<8xi32>
    %742 = vector.shape_cast %741 : vector<8xi32> to vector<8x1xi32>
    %743 = vector.broadcast %742 : vector<8x1xi32> to vector<8x128xi32>
    %744 = arith.cmpi eq, %434, %743 : vector<8x128xi32>
    %cst_249 = arith.constant 1.000000e+00 : f32
    %cst_250 = arith.constant 0.000000e+00 : f32
    %745 = vector.broadcast %cst_249 : f32 to vector<8x128xf32>
    %746 = vector.broadcast %cst_250 : f32 to vector<8x128xf32>
    %747 = arith.select %744, %745, %746 : vector<8x128xi1>, vector<8x128xf32>
    %748 = arith.truncf %747 : vector<8x128xf32> to vector<8x128xbf16>
    %c4_i32_251 = arith.constant 4 : i32
    %749 = arith.truncf %697 : vector<8x128xf32> to vector<8x128xbf16>
    %750 = tpu.concatenate %748, %749 in 1 : vector<8x128xbf16>, vector<8x128xbf16> -> vector<8x256xbf16>
    %cst_252 = arith.constant dense<0.000000e+00> : vector<8x512xf32>
    %751 = tpu.matmul %750, %422, %cst_252 {dimension_numbers = #tpu.dot_dimension_numbers<[1], [0], [0], [1], [0, 0, 1, 1], [], []>} : vector<8x256xbf16>, vector<256x512xbf16>, vector<8x512xf32> -> vector<8x512xf32>
    %752 = arith.addf %751, %425 : vector<8x512xf32>
    %753 = vector.extract_strided_slice %752 {offsets = [0, 0], sizes = [8, 128], strides = [1, 1]} : vector<8x512xf32> to vector<8x128xf32>
    %754 = arith.negf %753 : vector<8x128xf32>
    %755 = math.exp %754 : vector<8x128xf32>
    %cst_253 = arith.constant 1.000000e+00 : f32
    %756 = vector.broadcast %cst_253 : f32 to vector<8x128xf32>
    %757 = arith.addf %756, %755 : vector<8x128xf32>
    %758 = arith.divf %756, %757 : vector<8x128xf32>
    %759 = vector.extract_strided_slice %752 {offsets = [0, 128], sizes = [8, 128], strides = [1, 1]} : vector<8x512xf32> to vector<8x128xf32>
    %760 = arith.negf %759 : vector<8x128xf32>
    %761 = math.exp %760 : vector<8x128xf32>
    %cst_254 = arith.constant 1.000000e+00 : f32
    %762 = vector.broadcast %cst_254 : f32 to vector<8x128xf32>
    %763 = arith.addf %762, %761 : vector<8x128xf32>
    %764 = arith.divf %762, %763 : vector<8x128xf32>
    %765 = vector.extract_strided_slice %752 {offsets = [0, 256], sizes = [8, 128], strides = [1, 1]} : vector<8x512xf32> to vector<8x128xf32>
    %766 = vector.extract_strided_slice %752 {offsets = [0, 384], sizes = [8, 128], strides = [1, 1]} : vector<8x512xf32> to vector<8x128xf32>
    %767 = arith.mulf %758, %766 : vector<8x128xf32>
    %768 = arith.addf %765, %767 : vector<8x128xf32>
    %769 = math.tanh %768 : vector<8x128xf32>
    %cst_255 = arith.constant 1.000000e+00 : f32
    %770 = vector.broadcast %cst_255 : f32 to vector<8x128xf32>
    %771 = arith.subf %770, %764 : vector<8x128xf32>
    %772 = arith.mulf %771, %769 : vector<8x128xf32>
    %773 = arith.mulf %764, %697 : vector<8x128xf32>
    %774 = arith.addf %772, %773 : vector<8x128xf32>
    %775 = arith.truncf %774 : vector<8x128xf32> to vector<8x128xbf16>
    %cst_256 = arith.constant dense<0.000000e+00> : vector<8x128xf32>
    %776 = tpu.matmul %775, %396, %cst_256 {dimension_numbers = #tpu.dot_dimension_numbers<[1], [1], [0], [0], [0, 0, 1, 0], [], []>} : vector<8x128xbf16>, vector<128x128xbf16>, vector<8x128xf32> -> vector<8x128xf32>
    %777 = arith.addf %776, %421 : vector<8x128xf32>
    %cst_257 = arith.constant dense<0xFF800000> : vector<8xf32>
    %778 = vector.multi_reduction <maximumf>, %777, %cst_257 [1] : vector<8x128xf32> to vector<8xf32>
    %779 = vector.shape_cast %778 : vector<8xf32> to vector<8x1xf32>
    %780 = vector.broadcast %779 : vector<8x1xf32> to vector<8x128xf32>
    %781 = arith.subf %777, %780 : vector<8x128xf32>
    %782 = math.exp %781 : vector<8x128xf32>
    %cst_258 = arith.constant dense<0.000000e+00> : vector<8xf32>
    %783 = vector.multi_reduction <add>, %782, %cst_258 [1] : vector<8x128xf32> to vector<8xf32>
    %784 = vector.shape_cast %783 : vector<8xf32> to vector<8x1xf32>
    %785 = tpu.reciprocal %784 {approx = true} : vector<8x1xf32> -> vector<8x1xf32>
    %786 = vector.broadcast %785 : vector<8x1xf32> to vector<8x128xf32>
    %787 = arith.mulf %782, %786 : vector<8x128xf32>
    %788 = arith.truncf %787 : vector<8x128xf32> to vector<8x128xbf16>
    %cst_259 = arith.constant dense<0.000000e+00> : vector<8x128xf32>
    %789 = tpu.matmul %788, %396, %cst_259 {dimension_numbers = #tpu.dot_dimension_numbers<[1], [0], [0], [1], [0, 0, 1, 1], [], []>} : vector<8x128xbf16>, vector<128x128xbf16>, vector<8x128xf32> -> vector<8x128xf32>
    %790 = arith.truncf %789 : vector<8x128xf32> to vector<8x128xbf16>
    %791 = tpu.concatenate %775, %790 in 1 : vector<8x128xbf16>, vector<8x128xbf16> -> vector<8x256xbf16>
    %cst_260 = arith.constant dense<0.000000e+00> : vector<8x128xf32>
    %792 = tpu.matmul %791, %426, %cst_260 {dimension_numbers = #tpu.dot_dimension_numbers<[1], [0], [0], [1], [0, 0, 1, 1], [], []>} : vector<8x256xbf16>, vector<256x128xbf16>, vector<8x128xf32> -> vector<8x128xf32>
    %793 = arith.addf %792, %429 : vector<8x128xf32>
    %794 = math.tanh %793 : vector<8x128xf32>
    %795 = arith.truncf %794 : vector<8x128xf32> to vector<8x128xbf16>
    %cst_261 = arith.constant dense<0.000000e+00> : vector<8x128xf32>
    %796 = tpu.matmul %795, %430, %cst_261 {dimension_numbers = #tpu.dot_dimension_numbers<[1], [0], [0], [1], [0, 0, 1, 1], [], []>} : vector<8x128xbf16>, vector<128x128xbf16>, vector<8x128xf32> -> vector<8x128xf32>
    %797 = arith.addf %796, %433 : vector<8x128xf32>
    %cst_262 = arith.constant dense<0xFF800000> : vector<8xf32>
    %798 = vector.multi_reduction <maximumf>, %797, %cst_262 [1] : vector<8x128xf32> to vector<8xf32>
    %799 = vector.shape_cast %798 : vector<8xf32> to vector<8x1xf32>
    %800 = vector.broadcast %799 : vector<8x1xf32> to vector<8x128xf32>
    %801 = arith.subf %797, %800 : vector<8x128xf32>
    %802 = math.exp %801 : vector<8x128xf32>
    %cst_263 = arith.constant dense<0.000000e+00> : vector<8xf32>
    %803 = vector.multi_reduction <add>, %802, %cst_263 [1] : vector<8x128xf32> to vector<8xf32>
    %804 = vector.shape_cast %803 : vector<8xf32> to vector<8x1xf32>
    %805 = math.log %804 : vector<8x1xf32>
    %806 = vector.broadcast %805 : vector<8x1xf32> to vector<8x128xf32>
    %807 = arith.subf %801, %806 : vector<8x128xf32>
    %808 = arith.index_cast %c4_i32_251 : i32 to index
    %c0_264 = arith.constant 0 : index
    %c0_265 = arith.constant 0 : index
    %809 = vector.load %arg11[%808, %c0_264, %c0_265] : memref<8x8x128xf32, #tpu.memory_space<vmem>>, vector<1x8x128xf32>
    %810 = vector.shape_cast %809 : vector<1x8x128xf32> to vector<8x128xf32>
    %811 = vector.shape_cast %807 : vector<8x128xf32> to vector<1x8x128xf32>
    tpu.vector_store %arg11[%808, %c0_264, %c0_265], %811 {strides = array<i32>} : memref<8x8x128xf32, #tpu.memory_space<vmem>>, vector<1x8x128xf32>,
    %cst_266 = arith.constant dense<0xFF800000> : vector<8xf32>
    %812 = vector.multi_reduction <maximumf>, %807, %cst_266 [1] : vector<8x128xf32> to vector<8xf32>
    %813 = vector.shape_cast %812 : vector<8xf32> to vector<8x1xf32>
    %814 = vector.broadcast %813 : vector<8x1xf32> to vector<8x128xf32>
    %815 = arith.cmpf oge, %807, %814 : vector<8x128xf32>
    %c128_i32_267 = arith.constant 128 : i32
    %816 = vector.broadcast %c128_i32_267 : i32 to vector<8x128xi32>
    %817 = arith.select %815, %434, %816 : vector<8x128xi1>, vector<8x128xi32>
    %cst_268 = arith.constant dense<2147483647> : vector<8xi32>
    %818 = vector.multi_reduction <minsi>, %817, %cst_268 [1] : vector<8x128xi32> to vector<8xi32>
    %819 = vector.shape_cast %818 : vector<8xi32> to vector<8x1xi32>
    %820 = vector.broadcast %819 : vector<8x1xi32> to vector<8x128xi32>
    %821 = arith.cmpi eq, %434, %820 : vector<8x128xi32>
    %cst_269 = arith.constant 1.000000e+00 : f32
    %cst_270 = arith.constant 0.000000e+00 : f32
    %822 = vector.broadcast %cst_269 : f32 to vector<8x128xf32>
    %823 = vector.broadcast %cst_270 : f32 to vector<8x128xf32>
    %824 = arith.select %821, %822, %823 : vector<8x128xi1>, vector<8x128xf32>
    %825 = arith.truncf %824 : vector<8x128xf32> to vector<8x128xbf16>
    %c5_i32_271 = arith.constant 5 : i32
    %826 = arith.truncf %774 : vector<8x128xf32> to vector<8x128xbf16>
    %827 = tpu.concatenate %825, %826 in 1 : vector<8x128xbf16>, vector<8x128xbf16> -> vector<8x256xbf16>
    %cst_272 = arith.constant dense<0.000000e+00> : vector<8x512xf32>
    %828 = tpu.matmul %827, %422, %cst_272 {dimension_numbers = #tpu.dot_dimension_numbers<[1], [0], [0], [1], [0, 0, 1, 1], [], []>} : vector<8x256xbf16>, vector<256x512xbf16>, vector<8x512xf32> -> vector<8x512xf32>
    %829 = arith.addf %828, %425 : vector<8x512xf32>
    %830 = vector.extract_strided_slice %829 {offsets = [0, 0], sizes = [8, 128], strides = [1, 1]} : vector<8x512xf32> to vector<8x128xf32>
    %831 = arith.negf %830 : vector<8x128xf32>
    %832 = math.exp %831 : vector<8x128xf32>
    %cst_273 = arith.constant 1.000000e+00 : f32
    %833 = vector.broadcast %cst_273 : f32 to vector<8x128xf32>
    %834 = arith.addf %833, %832 : vector<8x128xf32>
    %835 = arith.divf %833, %834 : vector<8x128xf32>
    %836 = vector.extract_strided_slice %829 {offsets = [0, 128], sizes = [8, 128], strides = [1, 1]} : vector<8x512xf32> to vector<8x128xf32>
    %837 = arith.negf %836 : vector<8x128xf32>
    %838 = math.exp %837 : vector<8x128xf32>
    %cst_274 = arith.constant 1.000000e+00 : f32
    %839 = vector.broadcast %cst_274 : f32 to vector<8x128xf32>
    %840 = arith.addf %839, %838 : vector<8x128xf32>
    %841 = arith.divf %839, %840 : vector<8x128xf32>
    %842 = vector.extract_strided_slice %829 {offsets = [0, 256], sizes = [8, 128], strides = [1, 1]} : vector<8x512xf32> to vector<8x128xf32>
    %843 = vector.extract_strided_slice %829 {offsets = [0, 384], sizes = [8, 128], strides = [1, 1]} : vector<8x512xf32> to vector<8x128xf32>
    %844 = arith.mulf %835, %843 : vector<8x128xf32>
    %845 = arith.addf %842, %844 : vector<8x128xf32>
    %846 = math.tanh %845 : vector<8x128xf32>
    %cst_275 = arith.constant 1.000000e+00 : f32
    %847 = vector.broadcast %cst_275 : f32 to vector<8x128xf32>
    %848 = arith.subf %847, %841 : vector<8x128xf32>
    %849 = arith.mulf %848, %846 : vector<8x128xf32>
    %850 = arith.mulf %841, %774 : vector<8x128xf32>
    %851 = arith.addf %849, %850 : vector<8x128xf32>
    %852 = arith.truncf %851 : vector<8x128xf32> to vector<8x128xbf16>
    %cst_276 = arith.constant dense<0.000000e+00> : vector<8x128xf32>
    %853 = tpu.matmul %852, %396, %cst_276 {dimension_numbers = #tpu.dot_dimension_numbers<[1], [1], [0], [0], [0, 0, 1, 0], [], []>} : vector<8x128xbf16>, vector<128x128xbf16>, vector<8x128xf32> -> vector<8x128xf32>
    %854 = arith.addf %853, %421 : vector<8x128xf32>
    %cst_277 = arith.constant dense<0xFF800000> : vector<8xf32>
    %855 = vector.multi_reduction <maximumf>, %854, %cst_277 [1] : vector<8x128xf32> to vector<8xf32>
    %856 = vector.shape_cast %855 : vector<8xf32> to vector<8x1xf32>
    %857 = vector.broadcast %856 : vector<8x1xf32> to vector<8x128xf32>
    %858 = arith.subf %854, %857 : vector<8x128xf32>
    %859 = math.exp %858 : vector<8x128xf32>
    %cst_278 = arith.constant dense<0.000000e+00> : vector<8xf32>
    %860 = vector.multi_reduction <add>, %859, %cst_278 [1] : vector<8x128xf32> to vector<8xf32>
    %861 = vector.shape_cast %860 : vector<8xf32> to vector<8x1xf32>
    %862 = tpu.reciprocal %861 {approx = true} : vector<8x1xf32> -> vector<8x1xf32>
    %863 = vector.broadcast %862 : vector<8x1xf32> to vector<8x128xf32>
    %864 = arith.mulf %859, %863 : vector<8x128xf32>
    %865 = arith.truncf %864 : vector<8x128xf32> to vector<8x128xbf16>
    %cst_279 = arith.constant dense<0.000000e+00> : vector<8x128xf32>
    %866 = tpu.matmul %865, %396, %cst_279 {dimension_numbers = #tpu.dot_dimension_numbers<[1], [0], [0], [1], [0, 0, 1, 1], [], []>} : vector<8x128xbf16>, vector<128x128xbf16>, vector<8x128xf32> -> vector<8x128xf32>
    %867 = arith.truncf %866 : vector<8x128xf32> to vector<8x128xbf16>
    %868 = tpu.concatenate %852, %867 in 1 : vector<8x128xbf16>, vector<8x128xbf16> -> vector<8x256xbf16>
    %cst_280 = arith.constant dense<0.000000e+00> : vector<8x128xf32>
    %869 = tpu.matmul %868, %426, %cst_280 {dimension_numbers = #tpu.dot_dimension_numbers<[1], [0], [0], [1], [0, 0, 1, 1], [], []>} : vector<8x256xbf16>, vector<256x128xbf16>, vector<8x128xf32> -> vector<8x128xf32>
    %870 = arith.addf %869, %429 : vector<8x128xf32>
    %871 = math.tanh %870 : vector<8x128xf32>
    %872 = arith.truncf %871 : vector<8x128xf32> to vector<8x128xbf16>
    %cst_281 = arith.constant dense<0.000000e+00> : vector<8x128xf32>
    %873 = tpu.matmul %872, %430, %cst_281 {dimension_numbers = #tpu.dot_dimension_numbers<[1], [0], [0], [1], [0, 0, 1, 1], [], []>} : vector<8x128xbf16>, vector<128x128xbf16>, vector<8x128xf32> -> vector<8x128xf32>
    %874 = arith.addf %873, %433 : vector<8x128xf32>
    %cst_282 = arith.constant dense<0xFF800000> : vector<8xf32>
    %875 = vector.multi_reduction <maximumf>, %874, %cst_282 [1] : vector<8x128xf32> to vector<8xf32>
    %876 = vector.shape_cast %875 : vector<8xf32> to vector<8x1xf32>
    %877 = vector.broadcast %876 : vector<8x1xf32> to vector<8x128xf32>
    %878 = arith.subf %874, %877 : vector<8x128xf32>
    %879 = math.exp %878 : vector<8x128xf32>
    %cst_283 = arith.constant dense<0.000000e+00> : vector<8xf32>
    %880 = vector.multi_reduction <add>, %879, %cst_283 [1] : vector<8x128xf32> to vector<8xf32>
    %881 = vector.shape_cast %880 : vector<8xf32> to vector<8x1xf32>
    %882 = math.log %881 : vector<8x1xf32>
    %883 = vector.broadcast %882 : vector<8x1xf32> to vector<8x128xf32>
    %884 = arith.subf %878, %883 : vector<8x128xf32>
    %885 = arith.index_cast %c5_i32_271 : i32 to index
    %c0_284 = arith.constant 0 : index
    %c0_285 = arith.constant 0 : index
    %886 = vector.load %arg11[%885, %c0_284, %c0_285] : memref<8x8x128xf32, #tpu.memory_space<vmem>>, vector<1x8x128xf32>
    %887 = vector.shape_cast %886 : vector<1x8x128xf32> to vector<8x128xf32>
    %888 = vector.shape_cast %884 : vector<8x128xf32> to vector<1x8x128xf32>
    tpu.vector_store %arg11[%885, %c0_284, %c0_285], %888 {strides = array<i32>} : memref<8x8x128xf32, #tpu.memory_space<vmem>>, vector<1x8x128xf32>,
    %cst_286 = arith.constant dense<0xFF800000> : vector<8xf32>
    %889 = vector.multi_reduction <maximumf>, %884, %cst_286 [1] : vector<8x128xf32> to vector<8xf32>
    %890 = vector.shape_cast %889 : vector<8xf32> to vector<8x1xf32>
    %891 = vector.broadcast %890 : vector<8x1xf32> to vector<8x128xf32>
    %892 = arith.cmpf oge, %884, %891 : vector<8x128xf32>
    %c128_i32_287 = arith.constant 128 : i32
    %893 = vector.broadcast %c128_i32_287 : i32 to vector<8x128xi32>
    %894 = arith.select %892, %434, %893 : vector<8x128xi1>, vector<8x128xi32>
    %cst_288 = arith.constant dense<2147483647> : vector<8xi32>
    %895 = vector.multi_reduction <minsi>, %894, %cst_288 [1] : vector<8x128xi32> to vector<8xi32>
    %896 = vector.shape_cast %895 : vector<8xi32> to vector<8x1xi32>
    %897 = vector.broadcast %896 : vector<8x1xi32> to vector<8x128xi32>
    %898 = arith.cmpi eq, %434, %897 : vector<8x128xi32>
    %cst_289 = arith.constant 1.000000e+00 : f32
    %cst_290 = arith.constant 0.000000e+00 : f32
    %899 = vector.broadcast %cst_289 : f32 to vector<8x128xf32>
    %900 = vector.broadcast %cst_290 : f32 to vector<8x128xf32>
    %901 = arith.select %898, %899, %900 : vector<8x128xi1>, vector<8x128xf32>
    %902 = arith.truncf %901 : vector<8x128xf32> to vector<8x128xbf16>
    %c6_i32_291 = arith.constant 6 : i32
    %903 = arith.truncf %851 : vector<8x128xf32> to vector<8x128xbf16>
    %904 = tpu.concatenate %902, %903 in 1 : vector<8x128xbf16>, vector<8x128xbf16> -> vector<8x256xbf16>
    %cst_292 = arith.constant dense<0.000000e+00> : vector<8x512xf32>
    %905 = tpu.matmul %904, %422, %cst_292 {dimension_numbers = #tpu.dot_dimension_numbers<[1], [0], [0], [1], [0, 0, 1, 1], [], []>} : vector<8x256xbf16>, vector<256x512xbf16>, vector<8x512xf32> -> vector<8x512xf32>
    %906 = arith.addf %905, %425 : vector<8x512xf32>
    %907 = vector.extract_strided_slice %906 {offsets = [0, 0], sizes = [8, 128], strides = [1, 1]} : vector<8x512xf32> to vector<8x128xf32>
    %908 = arith.negf %907 : vector<8x128xf32>
    %909 = math.exp %908 : vector<8x128xf32>
    %cst_293 = arith.constant 1.000000e+00 : f32
    %910 = vector.broadcast %cst_293 : f32 to vector<8x128xf32>
    %911 = arith.addf %910, %909 : vector<8x128xf32>
    %912 = arith.divf %910, %911 : vector<8x128xf32>
    %913 = vector.extract_strided_slice %906 {offsets = [0, 128], sizes = [8, 128], strides = [1, 1]} : vector<8x512xf32> to vector<8x128xf32>
    %914 = arith.negf %913 : vector<8x128xf32>
    %915 = math.exp %914 : vector<8x128xf32>
    %cst_294 = arith.constant 1.000000e+00 : f32
    %916 = vector.broadcast %cst_294 : f32 to vector<8x128xf32>
    %917 = arith.addf %916, %915 : vector<8x128xf32>
    %918 = arith.divf %916, %917 : vector<8x128xf32>
    %919 = vector.extract_strided_slice %906 {offsets = [0, 256], sizes = [8, 128], strides = [1, 1]} : vector<8x512xf32> to vector<8x128xf32>
    %920 = vector.extract_strided_slice %906 {offsets = [0, 384], sizes = [8, 128], strides = [1, 1]} : vector<8x512xf32> to vector<8x128xf32>
    %921 = arith.mulf %912, %920 : vector<8x128xf32>
    %922 = arith.addf %919, %921 : vector<8x128xf32>
    %923 = math.tanh %922 : vector<8x128xf32>
    %cst_295 = arith.constant 1.000000e+00 : f32
    %924 = vector.broadcast %cst_295 : f32 to vector<8x128xf32>
    %925 = arith.subf %924, %918 : vector<8x128xf32>
    %926 = arith.mulf %925, %923 : vector<8x128xf32>
    %927 = arith.mulf %918, %851 : vector<8x128xf32>
    %928 = arith.addf %926, %927 : vector<8x128xf32>
    %929 = arith.truncf %928 : vector<8x128xf32> to vector<8x128xbf16>
    %cst_296 = arith.constant dense<0.000000e+00> : vector<8x128xf32>
    %930 = tpu.matmul %929, %396, %cst_296 {dimension_numbers = #tpu.dot_dimension_numbers<[1], [1], [0], [0], [0, 0, 1, 0], [], []>} : vector<8x128xbf16>, vector<128x128xbf16>, vector<8x128xf32> -> vector<8x128xf32>
    %931 = arith.addf %930, %421 : vector<8x128xf32>
    %cst_297 = arith.constant dense<0xFF800000> : vector<8xf32>
    %932 = vector.multi_reduction <maximumf>, %931, %cst_297 [1] : vector<8x128xf32> to vector<8xf32>
    %933 = vector.shape_cast %932 : vector<8xf32> to vector<8x1xf32>
    %934 = vector.broadcast %933 : vector<8x1xf32> to vector<8x128xf32>
    %935 = arith.subf %931, %934 : vector<8x128xf32>
    %936 = math.exp %935 : vector<8x128xf32>
    %cst_298 = arith.constant dense<0.000000e+00> : vector<8xf32>
    %937 = vector.multi_reduction <add>, %936, %cst_298 [1] : vector<8x128xf32> to vector<8xf32>
    %938 = vector.shape_cast %937 : vector<8xf32> to vector<8x1xf32>
    %939 = tpu.reciprocal %938 {approx = true} : vector<8x1xf32> -> vector<8x1xf32>
    %940 = vector.broadcast %939 : vector<8x1xf32> to vector<8x128xf32>
    %941 = arith.mulf %936, %940 : vector<8x128xf32>
    %942 = arith.truncf %941 : vector<8x128xf32> to vector<8x128xbf16>
    %cst_299 = arith.constant dense<0.000000e+00> : vector<8x128xf32>
    %943 = tpu.matmul %942, %396, %cst_299 {dimension_numbers = #tpu.dot_dimension_numbers<[1], [0], [0], [1], [0, 0, 1, 1], [], []>} : vector<8x128xbf16>, vector<128x128xbf16>, vector<8x128xf32> -> vector<8x128xf32>
    %944 = arith.truncf %943 : vector<8x128xf32> to vector<8x128xbf16>
    %945 = tpu.concatenate %929, %944 in 1 : vector<8x128xbf16>, vector<8x128xbf16> -> vector<8x256xbf16>
    %cst_300 = arith.constant dense<0.000000e+00> : vector<8x128xf32>
    %946 = tpu.matmul %945, %426, %cst_300 {dimension_numbers = #tpu.dot_dimension_numbers<[1], [0], [0], [1], [0, 0, 1, 1], [], []>} : vector<8x256xbf16>, vector<256x128xbf16>, vector<8x128xf32> -> vector<8x128xf32>
    %947 = arith.addf %946, %429 : vector<8x128xf32>
    %948 = math.tanh %947 : vector<8x128xf32>
    %949 = arith.truncf %948 : vector<8x128xf32> to vector<8x128xbf16>
    %cst_301 = arith.constant dense<0.000000e+00> : vector<8x128xf32>
    %950 = tpu.matmul %949, %430, %cst_301 {dimension_numbers = #tpu.dot_dimension_numbers<[1], [0], [0], [1], [0, 0, 1, 1], [], []>} : vector<8x128xbf16>, vector<128x128xbf16>, vector<8x128xf32> -> vector<8x128xf32>
    %951 = arith.addf %950, %433 : vector<8x128xf32>
    %cst_302 = arith.constant dense<0xFF800000> : vector<8xf32>
    %952 = vector.multi_reduction <maximumf>, %951, %cst_302 [1] : vector<8x128xf32> to vector<8xf32>
    %953 = vector.shape_cast %952 : vector<8xf32> to vector<8x1xf32>
    %954 = vector.broadcast %953 : vector<8x1xf32> to vector<8x128xf32>
    %955 = arith.subf %951, %954 : vector<8x128xf32>
    %956 = math.exp %955 : vector<8x128xf32>
    %cst_303 = arith.constant dense<0.000000e+00> : vector<8xf32>
    %957 = vector.multi_reduction <add>, %956, %cst_303 [1] : vector<8x128xf32> to vector<8xf32>
    %958 = vector.shape_cast %957 : vector<8xf32> to vector<8x1xf32>
    %959 = math.log %958 : vector<8x1xf32>
    %960 = vector.broadcast %959 : vector<8x1xf32> to vector<8x128xf32>
    %961 = arith.subf %955, %960 : vector<8x128xf32>
    %962 = arith.index_cast %c6_i32_291 : i32 to index
    %c0_304 = arith.constant 0 : index
    %c0_305 = arith.constant 0 : index
    %963 = vector.load %arg11[%962, %c0_304, %c0_305] : memref<8x8x128xf32, #tpu.memory_space<vmem>>, vector<1x8x128xf32>
    %964 = vector.shape_cast %963 : vector<1x8x128xf32> to vector<8x128xf32>
    %965 = vector.shape_cast %961 : vector<8x128xf32> to vector<1x8x128xf32>
    tpu.vector_store %arg11[%962, %c0_304, %c0_305], %965 {strides = array<i32>} : memref<8x8x128xf32, #tpu.memory_space<vmem>>, vector<1x8x128xf32>,
    %cst_306 = arith.constant dense<0xFF800000> : vector<8xf32>
    %966 = vector.multi_reduction <maximumf>, %961, %cst_306 [1] : vector<8x128xf32> to vector<8xf32>
    %967 = vector.shape_cast %966 : vector<8xf32> to vector<8x1xf32>
    %968 = vector.broadcast %967 : vector<8x1xf32> to vector<8x128xf32>
    %969 = arith.cmpf oge, %961, %968 : vector<8x128xf32>
    %c128_i32_307 = arith.constant 128 : i32
    %970 = vector.broadcast %c128_i32_307 : i32 to vector<8x128xi32>
    %971 = arith.select %969, %434, %970 : vector<8x128xi1>, vector<8x128xi32>
    %cst_308 = arith.constant dense<2147483647> : vector<8xi32>
    %972 = vector.multi_reduction <minsi>, %971, %cst_308 [1] : vector<8x128xi32> to vector<8xi32>
    %973 = vector.shape_cast %972 : vector<8xi32> to vector<8x1xi32>
    %974 = vector.broadcast %973 : vector<8x1xi32> to vector<8x128xi32>
    %975 = arith.cmpi eq, %434, %974 : vector<8x128xi32>
    %cst_309 = arith.constant 1.000000e+00 : f32
    %cst_310 = arith.constant 0.000000e+00 : f32
    %976 = vector.broadcast %cst_309 : f32 to vector<8x128xf32>
    %977 = vector.broadcast %cst_310 : f32 to vector<8x128xf32>
    %978 = arith.select %975, %976, %977 : vector<8x128xi1>, vector<8x128xf32>
    %979 = arith.truncf %978 : vector<8x128xf32> to vector<8x128xbf16>
    %c7_i32_311 = arith.constant 7 : i32
    %980 = arith.truncf %928 : vector<8x128xf32> to vector<8x128xbf16>
    %981 = tpu.concatenate %979, %980 in 1 : vector<8x128xbf16>, vector<8x128xbf16> -> vector<8x256xbf16>
    %cst_312 = arith.constant dense<0.000000e+00> : vector<8x512xf32>
    %982 = tpu.matmul %981, %422, %cst_312 {dimension_numbers = #tpu.dot_dimension_numbers<[1], [0], [0], [1], [0, 0, 1, 1], [], []>} : vector<8x256xbf16>, vector<256x512xbf16>, vector<8x512xf32> -> vector<8x512xf32>
    %983 = arith.addf %982, %425 : vector<8x512xf32>
    %984 = vector.extract_strided_slice %983 {offsets = [0, 0], sizes = [8, 128], strides = [1, 1]} : vector<8x512xf32> to vector<8x128xf32>
    %985 = arith.negf %984 : vector<8x128xf32>
    %986 = math.exp %985 : vector<8x128xf32>
    %cst_313 = arith.constant 1.000000e+00 : f32
    %987 = vector.broadcast %cst_313 : f32 to vector<8x128xf32>
    %988 = arith.addf %987, %986 : vector<8x128xf32>
    %989 = arith.divf %987, %988 : vector<8x128xf32>
    %990 = vector.extract_strided_slice %983 {offsets = [0, 128], sizes = [8, 128], strides = [1, 1]} : vector<8x512xf32> to vector<8x128xf32>
    %991 = arith.negf %990 : vector<8x128xf32>
    %992 = math.exp %991 : vector<8x128xf32>
    %cst_314 = arith.constant 1.000000e+00 : f32
    %993 = vector.broadcast %cst_314 : f32 to vector<8x128xf32>
    %994 = arith.addf %993, %992 : vector<8x128xf32>
    %995 = arith.divf %993, %994 : vector<8x128xf32>
    %996 = vector.extract_strided_slice %983 {offsets = [0, 256], sizes = [8, 128], strides = [1, 1]} : vector<8x512xf32> to vector<8x128xf32>
    %997 = vector.extract_strided_slice %983 {offsets = [0, 384], sizes = [8, 128], strides = [1, 1]} : vector<8x512xf32> to vector<8x128xf32>
    %998 = arith.mulf %989, %997 : vector<8x128xf32>
    %999 = arith.addf %996, %998 : vector<8x128xf32>
    %1000 = math.tanh %999 : vector<8x128xf32>
    %cst_315 = arith.constant 1.000000e+00 : f32
    %1001 = vector.broadcast %cst_315 : f32 to vector<8x128xf32>
    %1002 = arith.subf %1001, %995 : vector<8x128xf32>
    %1003 = arith.mulf %1002, %1000 : vector<8x128xf32>
    %1004 = arith.mulf %995, %928 : vector<8x128xf32>
    %1005 = arith.addf %1003, %1004 : vector<8x128xf32>
    %1006 = arith.truncf %1005 : vector<8x128xf32> to vector<8x128xbf16>
    %cst_316 = arith.constant dense<0.000000e+00> : vector<8x128xf32>
    %1007 = tpu.matmul %1006, %396, %cst_316 {dimension_numbers = #tpu.dot_dimension_numbers<[1], [1], [0], [0], [0, 0, 1, 0], [], []>} : vector<8x128xbf16>, vector<128x128xbf16>, vector<8x128xf32> -> vector<8x128xf32>
    %1008 = arith.addf %1007, %421 : vector<8x128xf32>
    %cst_317 = arith.constant dense<0xFF800000> : vector<8xf32>
    %1009 = vector.multi_reduction <maximumf>, %1008, %cst_317 [1] : vector<8x128xf32> to vector<8xf32>
    %1010 = vector.shape_cast %1009 : vector<8xf32> to vector<8x1xf32>
    %1011 = vector.broadcast %1010 : vector<8x1xf32> to vector<8x128xf32>
    %1012 = arith.subf %1008, %1011 : vector<8x128xf32>
    %1013 = math.exp %1012 : vector<8x128xf32>
    %cst_318 = arith.constant dense<0.000000e+00> : vector<8xf32>
    %1014 = vector.multi_reduction <add>, %1013, %cst_318 [1] : vector<8x128xf32> to vector<8xf32>
    %1015 = vector.shape_cast %1014 : vector<8xf32> to vector<8x1xf32>
    %1016 = tpu.reciprocal %1015 {approx = true} : vector<8x1xf32> -> vector<8x1xf32>
    %1017 = vector.broadcast %1016 : vector<8x1xf32> to vector<8x128xf32>
    %1018 = arith.mulf %1013, %1017 : vector<8x128xf32>
    %1019 = arith.truncf %1018 : vector<8x128xf32> to vector<8x128xbf16>
    %cst_319 = arith.constant dense<0.000000e+00> : vector<8x128xf32>
    %1020 = tpu.matmul %1019, %396, %cst_319 {dimension_numbers = #tpu.dot_dimension_numbers<[1], [0], [0], [1], [0, 0, 1, 1], [], []>} : vector<8x128xbf16>, vector<128x128xbf16>, vector<8x128xf32> -> vector<8x128xf32>
    %1021 = arith.truncf %1020 : vector<8x128xf32> to vector<8x128xbf16>
    %1022 = tpu.concatenate %1006, %1021 in 1 : vector<8x128xbf16>, vector<8x128xbf16> -> vector<8x256xbf16>
    %cst_320 = arith.constant dense<0.000000e+00> : vector<8x128xf32>
    %1023 = tpu.matmul %1022, %426, %cst_320 {dimension_numbers = #tpu.dot_dimension_numbers<[1], [0], [0], [1], [0, 0, 1, 1], [], []>} : vector<8x256xbf16>, vector<256x128xbf16>, vector<8x128xf32> -> vector<8x128xf32>
    %1024 = arith.addf %1023, %429 : vector<8x128xf32>
    %1025 = math.tanh %1024 : vector<8x128xf32>
    %1026 = arith.truncf %1025 : vector<8x128xf32> to vector<8x128xbf16>
    %cst_321 = arith.constant dense<0.000000e+00> : vector<8x128xf32>
    %1027 = tpu.matmul %1026, %430, %cst_321 {dimension_numbers = #tpu.dot_dimension_numbers<[1], [0], [0], [1], [0, 0, 1, 1], [], []>} : vector<8x128xbf16>, vector<128x128xbf16>, vector<8x128xf32> -> vector<8x128xf32>
    %1028 = arith.addf %1027, %433 : vector<8x128xf32>
    %cst_322 = arith.constant dense<0xFF800000> : vector<8xf32>
    %1029 = vector.multi_reduction <maximumf>, %1028, %cst_322 [1] : vector<8x128xf32> to vector<8xf32>
    %1030 = vector.shape_cast %1029 : vector<8xf32> to vector<8x1xf32>
    %1031 = vector.broadcast %1030 : vector<8x1xf32> to vector<8x128xf32>
    %1032 = arith.subf %1028, %1031 : vector<8x128xf32>
    %1033 = math.exp %1032 : vector<8x128xf32>
    %cst_323 = arith.constant dense<0.000000e+00> : vector<8xf32>
    %1034 = vector.multi_reduction <add>, %1033, %cst_323 [1] : vector<8x128xf32> to vector<8xf32>
    %1035 = vector.shape_cast %1034 : vector<8xf32> to vector<8x1xf32>
    %1036 = math.log %1035 : vector<8x1xf32>
    %1037 = vector.broadcast %1036 : vector<8x1xf32> to vector<8x128xf32>
    %1038 = arith.subf %1032, %1037 : vector<8x128xf32>
    %1039 = arith.index_cast %c7_i32_311 : i32 to index
    %c0_324 = arith.constant 0 : index
    %c0_325 = arith.constant 0 : index
    %1040 = vector.load %arg11[%1039, %c0_324, %c0_325] : memref<8x8x128xf32, #tpu.memory_space<vmem>>, vector<1x8x128xf32>
    %1041 = vector.shape_cast %1040 : vector<1x8x128xf32> to vector<8x128xf32>
    %1042 = vector.shape_cast %1038 : vector<8x128xf32> to vector<1x8x128xf32>
    tpu.vector_store %arg11[%1039, %c0_324, %c0_325], %1042 {strides = array<i32>} : memref<8x8x128xf32, #tpu.memory_space<vmem>>, vector<1x8x128xf32>,
    %cst_326 = arith.constant dense<0xFF800000> : vector<8xf32>
    %1043 = vector.multi_reduction <maximumf>, %1038, %cst_326 [1] : vector<8x128xf32> to vector<8xf32>
    %1044 = vector.shape_cast %1043 : vector<8xf32> to vector<8x1xf32>
    %1045 = vector.broadcast %1044 : vector<8x1xf32> to vector<8x128xf32>
    %1046 = arith.cmpf oge, %1038, %1045 : vector<8x128xf32>
    %c128_i32_327 = arith.constant 128 : i32
    %1047 = vector.broadcast %c128_i32_327 : i32 to vector<8x128xi32>
    %1048 = arith.select %1046, %434, %1047 : vector<8x128xi1>, vector<8x128xi32>
    %cst_328 = arith.constant dense<2147483647> : vector<8xi32>
    %1049 = vector.multi_reduction <minsi>, %1048, %cst_328 [1] : vector<8x128xi32> to vector<8xi32>
    %1050 = vector.shape_cast %1049 : vector<8xi32> to vector<8x1xi32>
    %1051 = vector.broadcast %1050 : vector<8x1xi32> to vector<8x128xi32>
    %1052 = arith.cmpi eq, %434, %1051 : vector<8x128xi32>
    %cst_329 = arith.constant 1.000000e+00 : f32
    %cst_330 = arith.constant 0.000000e+00 : f32
    %1053 = vector.broadcast %cst_329 : f32 to vector<8x128xf32>
    %1054 = vector.broadcast %cst_330 : f32 to vector<8x128xf32>
    %1055 = arith.select %1052, %1053, %1054 : vector<8x128xi1>, vector<8x128xf32>
    %1056 = arith.truncf %1055 : vector<8x128xf32> to vector<8x128xbf16>
    %c8_i32_331 = arith.constant 8 : i32
    %c0_332 = arith.constant 0 : index
    %c0_333 = arith.constant 0 : index
    %1057 = vector.load %arg12[%c0_332, %c0_333] : memref<8x128xf32, #tpu.memory_space<vmem>>, vector<8x128xf32>
    tpu.vector_store %arg12[%c0_332, %c0_333], %1005 {strides = array<i32>} : memref<8x128xf32, #tpu.memory_space<vmem>>, vector<8x128xf32>,
    return
  }
}

</mosaic_0001>

<llo_original>
// kernel: seq2seq_forward.1
$region0: #{seq2seq_forward.1}
  #allocation0 [shape = 'u32[]', space=smem, size = 0x4, offset = 0x4, fixed_abs, tag = 'smem constant byte address 0x4 - core index']
  #allocation1 [shape = 'u32[144,128]{1,0:T(1,128)}', space=vmem, size = 0x12000, scoped, tag = 'internal scratch']
  #allocation2 [shape = 'f32[8,8,384]{2,1,0:T(8,128)}', space=vmem, size = 0x18000, scoped, tag = 'scratch operand']
  #allocation3 [shape = 'f32[8,8,128]{2,1,0:T(8,128)}', space=vmem, size = 0x8000, scoped, tag = 'scratch operand']
  #allocation4 [shape = 'f32[128,128]{1,0:T(8,128)}', space=vmem, size = 0x10000, scoped, tag = 'scratch operand']
  %s0 = inlined_call_operand.vmem [shape: bf16[8,8,64], index: 0, kind: input, shape index: {}]
  %s1 = inlined_call_operand.vmem [shape: bf16[64,384], index: 1, kind: input, shape index: {}]
  %s2 = inlined_call_operand.vmem [shape: bf16[128,384], index: 2, kind: input, shape index: {}]
  %s3 = inlined_call_operand.vmem [shape: f32[1,384], index: 3, kind: input, shape index: {}]
  %s4 = inlined_call_operand.vmem [shape: f32[1,384], index: 4, kind: input, shape index: {}]
  %s5 = inlined_call_operand.vmem [shape: bf16[256,512], index: 5, kind: input, shape index: {}]
  %s6 = inlined_call_operand.vmem [shape: f32[1,512], index: 6, kind: input, shape index: {}]
  %s7 = inlined_call_operand.vmem [shape: bf16[256,128], index: 7, kind: input, shape index: {}]
  %s8 = inlined_call_operand.vmem [shape: f32[1,128], index: 8, kind: input, shape index: {}]
  %s9 = inlined_call_operand.vmem [shape: bf16[128,128], index: 9, kind: input, shape index: {}]
  %s10 = inlined_call_operand.vmem [shape: f32[1,128], index: 10, kind: input, shape index: {}]
  %s11 = inlined_call_operand.vmem [shape: f32[8,8,128], index: 11, kind: output, shape index: {0}]
  %s12 = inlined_call_operand.hbm [shape: f32[8,128], index: 12, kind: output, shape index: {1}]
  %13 = xla_tuple %s11, %s12
  %s14 = sld [smem:[#allocation0]]
  $region62: #{seq2seq_forward.1} parent=0
    _
  %s16 = ssub.s32 1, %s14
  %s17 = scalar_select 0, %s16, %s14
  $region1: #{seq2seq_forward.1} parent=0
    #allocation5 [shape = 'u8[4096]{0}', space=vmem, size = 0x1000, scoped, tag = 'output window, operand 1, single buffered']
    #allocation6 [shape = 's32[1]{0}', space=sflag, size = 0x4, scoped, tag = 'scoped memory for seq2seq_forward.1']
    %18 = vsyncpa [#allocation6], 0
    // Predicated region
    $region2: #{seq2seq_forward.1} parent=1 // pred_check
      _
    $region3: #{seq2seq_forward.1} parent=1 // pred_check_branch
      %20 = sbr.rel (0) target = $region5
    $region4: #{seq2seq_forward.1} parent=1 // pred_region
      _
    $region5: #{seq2seq_forward.1} parent=1 // pred_fallthru
      _
    // Predicated region
    $region6: #{seq2seq_forward.1} parent=1 // pred_check
      _
    $region7: #{seq2seq_forward.1} parent=1 // pred_check_branch
      %22 = sbr.rel (0) target = $region9
    $region8: #{seq2seq_forward.1} parent=1 // pred_region
      _
    $region9: #{seq2seq_forward.1} parent=1 // pred_fallthru
      _
    // Predicated region
    $region10: #{seq2seq_forward.1} parent=1 // pred_check
      _
    $region11: #{seq2seq_forward.1} parent=1 // pred_check_branch
      %24 = sbr.rel (0) target = $region13
    $region12: #{seq2seq_forward.1} parent=1 // pred_region
      _
    $region13: #{seq2seq_forward.1} parent=1 // pred_fallthru
      _
    // Predicated region
    $region14: #{seq2seq_forward.1} parent=1 // pred_check
      _
    $region15: #{seq2seq_forward.1} parent=1 // pred_check_branch
      %26 = sbr.rel (0) target = $region17
    $region16: #{seq2seq_forward.1} parent=1 // pred_region
      _
    $region17: #{seq2seq_forward.1} parent=1 // pred_fallthru
      _
    // Predicated region
    $region18: #{seq2seq_forward.1} parent=1 // pred_check
      _
    $region19: #{seq2seq_forward.1} parent=1 // pred_check_branch
      %28 = sbr.rel (0) target = $region21
    $region20: #{seq2seq_forward.1} parent=1 // pred_region
      _
    $region21: #{seq2seq_forward.1} parent=1 // pred_fallthru
      _
    // Predicated region
    $region22: #{seq2seq_forward.1} parent=1 // pred_check
      _
    $region23: #{seq2seq_forward.1} parent=1 // pred_check_branch
      %30 = sbr.rel (0) target = $region25
    $region24: #{seq2seq_forward.1} parent=1 // pred_region
      _
    $region25: #{seq2seq_forward.1} parent=1 // pred_fallthru
      _
    // Predicated region
    $region26: #{seq2seq_forward.1} parent=1 // pred_check
      _
    $region27: #{seq2seq_forward.1} parent=1 // pred_check_branch
      %32 = sbr.rel (0) target = $region29
    $region28: #{seq2seq_forward.1} parent=1 // pred_region
      _
    $region29: #{seq2seq_forward.1} parent=1 // pred_fallthru
      _
    // Predicated region
    $region30: #{seq2seq_forward.1} parent=1 // pred_check
      _
    $region31: #{seq2seq_forward.1} parent=1 // pred_check_branch
      %34 = sbr.rel (0) target = $region33
    $region32: #{seq2seq_forward.1} parent=1 // pred_region
      _
    $region33: #{seq2seq_forward.1} parent=1 // pred_fallthru
      _
    // Predicated region
    $region34: #{seq2seq_forward.1} parent=1 // pred_check
      _
    $region35: #{seq2seq_forward.1} parent=1 // pred_check_branch
      %36 = sbr.rel (0) target = $region37
    $region36: #{seq2seq_forward.1} parent=1 // pred_region
      _
    $region37: #{seq2seq_forward.1} parent=1 // pred_fallthru
      _
    // Predicated region
    $region38: #{seq2seq_forward.1} parent=1 // pred_check
      _
    $region39: #{seq2seq_forward.1} parent=1 // pred_check_branch
      %38 = sbr.rel (0) target = $region41
    $region40: #{seq2seq_forward.1} parent=1 // pred_region
      _
    $region41: #{seq2seq_forward.1} parent=1 // pred_fallthru
      _
    // Predicated region
    $region42: #{seq2seq_forward.1} parent=1 // pred_check
      _
    $region43: #{seq2seq_forward.1} parent=1 // pred_check_branch
      %40 = sbr.rel (0) target = $region45
    $region44: #{seq2seq_forward.1} parent=1 // pred_region
      _
    $region45: #{seq2seq_forward.1} parent=1 // pred_fallthru
      _
    %v42 = vld [vmem:[%s0] sm:$0xf]
    %v43 = vld [vmem:[%s0 + $0x4] sm:$0xf]
    %v44 = vld [vmem:[%s0 + $0x8] sm:$0xf]
    %v45 = vld [vmem:[%s0 + $0xc] sm:$0xf]
    %v46 = vld [vmem:[%s0 + $0x10] sm:$0xf]
    %v47 = vld [vmem:[%s0 + $0x14] sm:$0xf]
    %v48 = vld [vmem:[%s0 + $0x18] sm:$0xf]
    %v49 = vld [vmem:[%s0 + $0x1c] sm:$0xf]
    %v50 = vld [vmem:[%s1] sm:$0xff]
    %v51 = vld [vmem:[%s1 + $0x8] sm:$0xf]
    %v52 = vld [vmem:[%s1 + $0xc] sm:$0xff]
    %v53 = vld [vmem:[%s1 + $0x14] sm:$0xf]
    %v54 = vld [vmem:[%s1 + $0x18] sm:$0xff]
    %v55 = vld [vmem:[%s1 + $0x20] sm:$0xf]
    %v56 = vld [vmem:[%s1 + $0x24] sm:$0xff]
    %v57 = vld [vmem:[%s1 + $0x2c] sm:$0xf]
    %v58 = vld [vmem:[%s1 + $0x30] sm:$0xff]
    %v59 = vld [vmem:[%s1 + $0x38] sm:$0xf]
    %v60 = vld [vmem:[%s1 + $0x3c] sm:$0xff]
    %v61 = vld [vmem:[%s1 + $0x44] sm:$0xf]
    %v62 = vld [vmem:[%s1 + $0x48] sm:$0xff]
    %v63 = vld [vmem:[%s1 + $0x50] sm:$0xf]
    %v64 = vld [vmem:[%s1 + $0x54] sm:$0xff]
    %v65 = vld [vmem:[%s1 + $0x5c] sm:$0xf]
    %v66 = vld [vmem:[%s3] sm:$0x7]
    %v68 = vlaneseq
    %v69 = vshrl.u32 %v68, 7
    %v70 = vsub.s32 0, %v69
    %v71 = vrot.slane %v66, %v70
    %v72 = vlaneseq
    %v73 = vshrl.u32 %v72, 7
    %v74 = vsub.s32 1, %v73
    %v75 = vrot.slane %v66, %v74
    %v76 = vlaneseq
    %v77 = vshrl.u32 %v76, 7
    %v78 = vsub.s32 2, %v77
    %v79 = vrot.slane %v66, %v78
    %v91 = vunpack.c.l.b16 %v42
    %v92 = vunpack.c.l.b16 %v43
    %v93 = vunpack.c.l.b16 %v44
    %v94 = vunpack.c.l.b16 %v45
    %v95 = vunpack.c.l.b16 %v46
    %v96 = vunpack.c.l.b16 %v47
    %v97 = vunpack.c.l.b16 %v48
    %v98 = vunpack.c.l.b16 %v49
    %v99 = vpack.c.b16 %v92, %v91
    %v100 = vpack.c.b16 %v94, %v93
    %v101 = vpack.c.b16 %v96, %v95
    %v102 = vpack.c.b16 %v98, %v97
    %v119 = vunpack.c.l.b16 %v50
    %v120 = vunpack.c.h.b16 %v50
    %v121 = vunpack.c.l.b16 %v51
    %v122 = vunpack.c.l.b16 %v52
    %v123 = vunpack.c.h.b16 %v52
    %v124 = vunpack.c.l.b16 %v53
    %v125 = vunpack.c.l.b16 %v54
    %v126 = vunpack.c.h.b16 %v54
    %v127 = vunpack.c.l.b16 %v55
    %v128 = vunpack.c.l.b16 %v56
    %v129 = vunpack.c.h.b16 %v56
    %v130 = vunpack.c.l.b16 %v57
    %v131 = vunpack.c.l.b16 %v58
    %v132 = vunpack.c.h.b16 %v58
    %v133 = vunpack.c.l.b16 %v59
    %v134 = vunpack.c.l.b16 %v60
    %v135 = vunpack.c.h.b16 %v60
    %v136 = vunpack.c.l.b16 %v61
    %v137 = vunpack.c.l.b16 %v62
    %v138 = vunpack.c.h.b16 %v62
    %v139 = vunpack.c.l.b16 %v63
    %v140 = vunpack.c.l.b16 %v64
    %v141 = vunpack.c.h.b16 %v64
    %v142 = vunpack.c.l.b16 %v65
    %v143 = vpack.c.b16 %v122, %v119
    %v144 = vpack.c.b16 %v123, %v120
    %v145 = vpack.c.b16 %v124, %v121
    %v146 = vpack.c.b16 %v128, %v125
    %v147 = vpack.c.b16 %v129, %v126
    %v148 = vpack.c.b16 %v130, %v127
    %v149 = vpack.c.b16 %v134, %v131
    %v150 = vpack.c.b16 %v135, %v132
    %v151 = vpack.c.b16 %v136, %v133
    %v152 = vpack.c.b16 %v140, %v137
    %v153 = vpack.c.b16 %v141, %v138
    %v154 = vpack.c.b16 %v142, %v139
    %vm167 = vcmask 523264
    %v169 = vsel %vm167, %v99, 0
    %v172 = vsel %vm167, %v100, 0
    %v175 = vsel %vm167, %v101, 0
    %v178 = vsel %vm167, %v102, 0
    %180 = vmatprep.subr.bf16.mxu0 %v144
    %181 = vmatpush1.bf16.msra.mxu0 %v143
    %182 = vmatprep.subr.bf16.mxu0 %v147
    %183 = vmatpush1.bf16.msra.mxu0 %v146
    %184 = vmatprep.subr.bf16.mxu0 %v150
    %185 = vmatpush1.bf16.msra.mxu0 %v149
    %186 = vmatprep.subr.bf16.mxu0 %v153
    %187 = vmatpush1.bf16.msra.mxu0 %v152
    %188 = vmatprep.subr.bf16.mxu0 0
    %189 = vmatpush1.bf16.msra.mxu0 0
    %190 = vmatprep.subr.bf16.mxu0 0
    %191 = vmatpush1.bf16.msra.mxu0 0
    %192 = vmatprep.subr.bf16.mxu0 0
    %193 = vmatpush1.bf16.msra.mxu0 0
    %194 = vmatprep.subr.bf16.mxu0 0
    %195 = vmatpush1.bf16.msra.mxu0 0
    %196 = vmatprep.subr.bf16.mxu0 0
    %197 = vmatpush1.bf16.msra.mxu0 0
    %198 = vmatprep.subr.bf16.mxu0 0
    %199 = vmatpush1.bf16.msra.mxu0 0
    %200 = vmatprep.subr.bf16.mxu0 0
    %201 = vmatpush1.bf16.msra.mxu0 0
    %202 = vmatprep.subr.bf16.mxu0 0
    %203 = vmatpush1.bf16.msra.mxu0 0
    %204 = vmatprep.subr.bf16.mxu0 0
    %205 = vmatpush1.bf16.msra.mxu0 0
    %206 = vmatprep.subr.bf16.mxu0 0
    %207 = vmatpush1.bf16.msra.mxu0 0
    %208 = vmatprep.subr.bf16.mxu0 0
    %209 = vmatpush1.bf16.msra.mxu0 0
    %210 = vmatprep.subr.bf16.mxu0 0
    %211 = vmatpush1.bf16.msra.mxu0 0
    %212 = vmatprep.mubr.bf16.mxu0 0
    %213 = vmatmul.mubr.bf16.gmra.mrb[0].mxu0 %v169
    %v214 = vpop.f32.mrb[0].mxu0
    %v215 = vadd.f32 %v71, %v214
    %v216 = vpop.f32.mrb[0].mxu0
    %v217 = vadd.f32 %v75, %v216
    %v218 = vpop.f32.mrb[0].mxu0
    %v219 = vadd.f32 %v71, %v218
    %v220 = vpop.f32.mrb[0].mxu0
    %v221 = vadd.f32 %v75, %v220
    %222 = vmatprep.mubr.bf16.mxu0 0
    %223 = vmatmul.mubr.bf16.gmra.mrb[0].mxu0 %v172
    %v224 = vpop.f32.mrb[0].mxu0
    %v225 = vadd.f32 %v71, %v224
    %v226 = vpop.f32.mrb[0].mxu0
    %v227 = vadd.f32 %v75, %v226
    %v228 = vpop.f32.mrb[0].mxu0
    %v229 = vadd.f32 %v71, %v228
    %v230 = vpop.f32.mrb[0].mxu0
    %v231 = vadd.f32 %v75, %v230
    %232 = vmatprep.mubr.bf16.mxu0 0
    %233 = vmatmul.mubr.bf16.gmra.mrb[0].mxu0 %v175
    %v234 = vpop.f32.mrb[0].mxu0
    %v235 = vadd.f32 %v71, %v234
    %v236 = vpop.f32.mrb[0].mxu0
    %v237 = vadd.f32 %v75, %v236
    %v238 = vpop.f32.mrb[0].mxu0
    %v239 = vadd.f32 %v71, %v238
    %v240 = vpop.f32.mrb[0].mxu0
    %v241 = vadd.f32 %v75, %v240
    %242 = vmatprep.mubr.bf16.mxu0 0
    %243 = vmatmul.mubr.bf16.gmra.mrb[0].mxu0 %v178
    %v244 = vpop.f32.mrb[0].mxu0
    %v245 = vadd.f32 %v71, %v244
    %v246 = vpop.f32.mrb[0].mxu0
    %v247 = vadd.f32 %v75, %v246
    %v248 = vpop.f32.mrb[0].mxu0
    %v249 = vadd.f32 %v71, %v248
    %v250 = vpop.f32.mrb[0].mxu0
    %v251 = vadd.f32 %v75, %v250
    %252 = vdwg.mxu0
    %253 = vmatprep.subr.bf16.mxu0 0
    %254 = vmatpush1.bf16.msra.mxu0 %v145
    %255 = vmatprep.subr.bf16.mxu0 0
    %256 = vmatpush1.bf16.msra.mxu0 %v148
    %257 = vmatprep.subr.bf16.mxu0 0
    %258 = vmatpush1.bf16.msra.mxu0 %v151
    %259 = vmatprep.subr.bf16.mxu0 0
    %260 = vmatpush1.bf16.msra.mxu0 %v154
    %261 = vmatprep.subr.bf16.mxu0 0
    %262 = vmatpush1.bf16.msra.mxu0 0
    %263 = vmatprep.subr.bf16.mxu0 0
    %264 = vmatpush1.bf16.msra.mxu0 0
    %265 = vmatprep.subr.bf16.mxu0 0
    %266 = vmatpush1.bf16.msra.mxu0 0
    %267 = vmatprep.subr.bf16.mxu0 0
    %268 = vmatpush1.bf16.msra.mxu0 0
    %269 = vmatprep.subr.bf16.mxu0 0
    %270 = vmatpush1.bf16.msra.mxu0 0
    %271 = vmatprep.subr.bf16.mxu0 0
    %272 = vmatpush1.bf16.msra.mxu0 0
    %273 = vmatprep.subr.bf16.mxu0 0
    %274 = vmatpush1.bf16.msra.mxu0 0
    %275 = vmatprep.subr.bf16.mxu0 0
    %276 = vmatpush1.bf16.msra.mxu0 0
    %277 = vmatprep.subr.bf16.mxu0 0
    %278 = vmatpush1.bf16.msra.mxu0 0
    %279 = vmatprep.subr.bf16.mxu0 0
    %280 = vmatpush1.bf16.msra.mxu0 0
    %281 = vmatprep.subr.bf16.mxu0 0
    %282 = vmatpush1.bf16.msra.mxu0 0
    %283 = vmatprep.subr.bf16.mxu0 0
    %284 = vmatpush1.bf16.msra.mxu0 0
    %285 = vmatprep.mubr.bf16.mxu0 0
    %286 = vmatmul.mubr.bf16.gmra.mrb[0].mxu0 %v169
    %v287 = vpop.f32.mrb[0].mxu0
    %v288 = vadd.f32 %v79, %v287
    %v289 = vpop.f32.mrb[0].mxu0
    %v290 = vpop.f32.mrb[0].mxu0
    %v291 = vadd.f32 %v79, %v290
    %v292 = vpop.f32.mrb[0].mxu0
    %293 = vmatprep.mubr.bf16.mxu0 0
    %294 = vmatmul.mubr.bf16.gmra.mrb[0].mxu0 %v172
    %v295 = vpop.f32.mrb[0].mxu0
    %v296 = vadd.f32 %v79, %v295
    %v297 = vpop.f32.mrb[0].mxu0
    %v298 = vpop.f32.mrb[0].mxu0
    %v299 = vadd.f32 %v79, %v298
    %v300 = vpop.f32.mrb[0].mxu0
    %301 = vmatprep.mubr.bf16.mxu0 0
    %302 = vmatmul.mubr.bf16.gmra.mrb[0].mxu0 %v175
    %v303 = vpop.f32.mrb[0].mxu0
    %v304 = vadd.f32 %v79, %v303
    %v305 = vpop.f32.mrb[0].mxu0
    %v306 = vpop.f32.mrb[0].mxu0
    %v307 = vadd.f32 %v79, %v306
    %v308 = vpop.f32.mrb[0].mxu0
    %309 = vmatprep.mubr.bf16.mxu0 0
    %310 = vmatmul.mubr.bf16.gmra.mrb[0].mxu0 %v178
    %v311 = vpop.f32.mrb[0].mxu0
    %v312 = vadd.f32 %v79, %v311
    %v313 = vpop.f32.mrb[0].mxu0
    %v314 = vpop.f32.mrb[0].mxu0
    %v315 = vadd.f32 %v79, %v314
    %v316 = vpop.f32.mrb[0].mxu0
    %317 = vdwg.mxu0
    %318 = vst [vmem:[#allocation2] sm:$0xff] %v215
    %319 = vst [vmem:[#allocation2 + $0x8] sm:$0xff] %v217
    %320 = vst [vmem:[#allocation2 + $0x10] sm:$0xff] %v288
    %321 = vst [vmem:[#allocation2 + $0x18] sm:$0xff] %v219
    %322 = vst [vmem:[#allocation2 + $0x20] sm:$0xff] %v221
    %323 = vst [vmem:[#allocation2 + $0x28] sm:$0xff] %v291
    %324 = vst [vmem:[#allocation2 + $0x30] sm:$0xff] %v225
    %325 = vst [vmem:[#allocation2 + $0x38] sm:$0xff] %v227
    %326 = vst [vmem:[#allocation2 + $0x40] sm:$0xff] %v296
    %327 = vst [vmem:[#allocation2 + $0x48] sm:$0xff] %v229
    %328 = vst [vmem:[#allocation2 + $0x50] sm:$0xff] %v231
    %329 = vst [vmem:[#allocation2 + $0x58] sm:$0xff] %v299
    %330 = vst [vmem:[#allocation2 + $0x60] sm:$0xff] %v235
    %331 = vst [vmem:[#allocation2 + $0x68] sm:$0xff] %v237
    %332 = vst [vmem:[#allocation2 + $0x70] sm:$0xff] %v304
    %333 = vst [vmem:[#allocation2 + $0x78] sm:$0xff] %v239
    %334 = vst [vmem:[#allocation2 + $0x80] sm:$0xff] %v241
    %335 = vst [vmem:[#allocation2 + $0x88] sm:$0xff] %v307
    %336 = vst [vmem:[#allocation2 + $0x90] sm:$0xff] %v245
    %337 = vst [vmem:[#allocation2 + $0x98] sm:$0xff] %v247
    %338 = vst [vmem:[#allocation2 + $0xa0] sm:$0xff] %v312
    %339 = vst [vmem:[#allocation2 + $0xa8] sm:$0xff] %v249
    %340 = vst [vmem:[#allocation2 + $0xb0] sm:$0xff] %v251
    %341 = vst [vmem:[#allocation2 + $0xb8] sm:$0xff] %v315
    %v342 = vld [vmem:[%s2] sm:$0xff]
    %v343 = vld [vmem:[%s2 + $0x8] sm:$0xf]
    %v344 = vld [vmem:[%s2 + $0xc] sm:$0xff]
    %v345 = vld [vmem:[%s2 + $0x14] sm:$0xf]
    %v346 = vld [vmem:[%s2 + $0x18] sm:$0xff]
    %v347 = vld [vmem:[%s2 + $0x20] sm:$0xf]
    %v348 = vld [vmem:[%s2 + $0x24] sm:$0xff]
    %v349 = vld [vmem:[%s2 + $0x2c] sm:$0xf]
    %v350 = vld [vmem:[%s2 + $0x30] sm:$0xff]
    %v351 = vld [vmem:[%s2 + $0x38] sm:$0xf]
    %v352 = vld [vmem:[%s2 + $0x3c] sm:$0xff]
    %v353 = vld [vmem:[%s2 + $0x44] sm:$0xf]
    %v354 = vld [vmem:[%s2 + $0x48] sm:$0xff]
    %v355 = vld [vmem:[%s2 + $0x50] sm:$0xf]
    %v356 = vld [vmem:[%s2 + $0x54] sm:$0xff]
    %v357 = vld [vmem:[%s2 + $0x5c] sm:$0xf]
    %v358 = vld [vmem:[%s2 + $0x60] sm:$0xff]
    %v359 = vld [vmem:[%s2 + $0x68] sm:$0xf]
    %v360 = vld [vmem:[%s2 + $0x6c] sm:$0xff]
    %v361 = vld [vmem:[%s2 + $0x74] sm:$0xf]
    %v362 = vld [vmem:[%s2 + $0x78] sm:$0xff]
    %v363 = vld [vmem:[%s2 + $0x80] sm:$0xf]
    %v364 = vld [vmem:[%s2 + $0x84] sm:$0xff]
    %v365 = vld [vmem:[%s2 + $0x8c] sm:$0xf]
    %v366 = vld [vmem:[%s2 + $0x90] sm:$0xff]
    %v367 = vld [vmem:[%s2 + $0x98] sm:$0xf]
    %v368 = vld [vmem:[%s2 + $0x9c] sm:$0xff]
    %v369 = vld [vmem:[%s2 + $0xa4] sm:$0xf]
    %v370 = vld [vmem:[%s2 + $0xa8] sm:$0xff]
    %v371 = vld [vmem:[%s2 + $0xb0] sm:$0xf]
    %v372 = vld [vmem:[%s2 + $0xb4] sm:$0xff]
    %v373 = vld [vmem:[%s2 + $0xbc] sm:$0xf]
    %v374 = vld [vmem:[%s4] sm:$0x7]
    %v376 = vlaneseq
    %v377 = vshrl.u32 %v376, 7
    %v378 = vsub.s32 0, %v377
    %v379 = vrot.slane %v374, %v378
    %v380 = vlaneseq
    %v381 = vshrl.u32 %v380, 7
    %v382 = vsub.s32 1, %v381
    %v383 = vrot.slane %v374, %v382
    %v384 = vlaneseq
    %v385 = vshrl.u32 %v384, 7
    %v386 = vsub.s32 2, %v385
    %v387 = vrot.slane %v374, %v386
    %v391 = vld [vmem:[#allocation2] sm:$0xff]
    %v392 = vld [vmem:[#allocation2 + $0x8] sm:$0xff]
    %v393 = vld [vmem:[#allocation2 + $0x10] sm:$0xff]
    %v426 = vunpack.c.l.b16 %v342
    %v427 = vunpack.c.h.b16 %v342
    %v428 = vunpack.c.l.b16 %v343
    %v429 = vunpack.c.l.b16 %v344
    %v430 = vunpack.c.h.b16 %v344
    %v431 = vunpack.c.l.b16 %v345
    %v432 = vunpack.c.l.b16 %v346
    %v433 = vunpack.c.h.b16 %v346
    %v434 = vunpack.c.l.b16 %v347
    %v435 = vunpack.c.l.b16 %v348
    %v436 = vunpack.c.h.b16 %v348
    %v437 = vunpack.c.l.b16 %v349
    %v438 = vunpack.c.l.b16 %v350
    %v439 = vunpack.c.h.b16 %v350
    %v440 = vunpack.c.l.b16 %v351
    %v441 = vunpack.c.l.b16 %v352
    %v442 = vunpack.c.h.b16 %v352
    %v443 = vunpack.c.l.b16 %v353
    %v444 = vunpack.c.l.b16 %v354
    %v445 = vunpack.c.h.b16 %v354
    %v446 = vunpack.c.l.b16 %v355
    %v447 = vunpack.c.l.b16 %v356
    %v448 = vunpack.c.h.b16 %v356
    %v449 = vunpack.c.l.b16 %v357
    %v450 = vunpack.c.l.b16 %v358
    %v451 = vunpack.c.h.b16 %v358
    %v452 = vunpack.c.l.b16 %v359
    %v453 = vunpack.c.l.b16 %v360
    %v454 = vunpack.c.h.b16 %v360
    %v455 = vunpack.c.l.b16 %v361
    %v456 = vunpack.c.l.b16 %v362
    %v457 = vunpack.c.h.b16 %v362
    %v458 = vunpack.c.l.b16 %v363
    %v459 = vunpack.c.l.b16 %v364
    %v460 = vunpack.c.h.b16 %v364
    %v461 = vunpack.c.l.b16 %v365
    %v462 = vunpack.c.l.b16 %v366
    %v463 = vunpack.c.h.b16 %v366
    %v464 = vunpack.c.l.b16 %v367
    %v465 = vunpack.c.l.b16 %v368
    %v466 = vunpack.c.h.b16 %v368
    %v467 = vunpack.c.l.b16 %v369
    %v468 = vunpack.c.l.b16 %v370
    %v469 = vunpack.c.h.b16 %v370
    %v470 = vunpack.c.l.b16 %v371
    %v471 = vunpack.c.l.b16 %v372
    %v472 = vunpack.c.h.b16 %v372
    %v473 = vunpack.c.l.b16 %v373
    %v474 = vpack.c.b16 %v429, %v426
    %v475 = vpack.c.b16 %v430, %v427
    %v476 = vpack.c.b16 %v431, %v428
    %v477 = vpack.c.b16 %v435, %v432
    %v478 = vpack.c.b16 %v436, %v433
    %v479 = vpack.c.b16 %v437, %v434
    %v480 = vpack.c.b16 %v441, %v438
    %v481 = vpack.c.b16 %v442, %v439
    %v482 = vpack.c.b16 %v443, %v440
    %v483 = vpack.c.b16 %v447, %v444
    %v484 = vpack.c.b16 %v448, %v445
    %v485 = vpack.c.b16 %v449, %v446
    %v486 = vpack.c.b16 %v453, %v450
    %v487 = vpack.c.b16 %v454, %v451
    %v488 = vpack.c.b16 %v455, %v452
    %v489 = vpack.c.b16 %v459, %v456
    %v490 = vpack.c.b16 %v460, %v457
    %v491 = vpack.c.b16 %v461, %v458
    %v492 = vpack.c.b16 %v465, %v462
    %v493 = vpack.c.b16 %v466, %v463
    %v494 = vpack.c.b16 %v467, %v464
    %v495 = vpack.c.b16 %v471, %v468
    %v496 = vpack.c.b16 %v472, %v469
    %v497 = vpack.c.b16 %v473, %v470
    %522 = vmatprep.subr.bf16.mxu0 %v475
    %523 = vmatpush1.bf16.msra.mxu0 %v474
    %524 = vmatprep.subr.bf16.mxu0 %v478
    %525 = vmatpush1.bf16.msra.mxu0 %v477
    %526 = vmatprep.subr.bf16.mxu0 %v481
    %527 = vmatpush1.bf16.msra.mxu0 %v480
    %528 = vmatprep.subr.bf16.mxu0 %v484
    %529 = vmatpush1.bf16.msra.mxu0 %v483
    %530 = vmatprep.subr.bf16.mxu0 %v487
    %531 = vmatpush1.bf16.msra.mxu0 %v486
    %532 = vmatprep.subr.bf16.mxu0 %v490
    %533 = vmatpush1.bf16.msra.mxu0 %v489
    %534 = vmatprep.subr.bf16.mxu0 %v493
    %535 = vmatpush1.bf16.msra.mxu0 %v492
    %536 = vmatprep.subr.bf16.mxu0 %v496
    %537 = vmatpush1.bf16.msra.mxu0 %v495
    %538 = vmatprep.subr.bf16.mxu0 0
    %539 = vmatpush1.bf16.msra.mxu0 0
    %540 = vmatprep.subr.bf16.mxu0 0
    %541 = vmatpush1.bf16.msra.mxu0 0
    %542 = vmatprep.subr.bf16.mxu0 0
    %543 = vmatpush1.bf16.msra.mxu0 0
    %544 = vmatprep.subr.bf16.mxu0 0
    %545 = vmatpush1.bf16.msra.mxu0 0
    %546 = vmatprep.subr.bf16.mxu0 0
    %547 = vmatpush1.bf16.msra.mxu0 0
    %548 = vmatprep.subr.bf16.mxu0 0
    %549 = vmatpush1.bf16.msra.mxu0 0
    %550 = vmatprep.subr.bf16.mxu0 0
    %551 = vmatpush1.bf16.msra.mxu0 0
    %552 = vmatprep.subr.bf16.mxu0 0
    %553 = vmatpush1.bf16.msra.mxu0 0
    %554 = vmatprep.mubr.bf16.mxu0 0
    %555 = vmatmul.mubr.bf16.gmra.mrb[0].mxu0 0
    %v556 = vpop.f32.mrb[0].mxu0
    %v557 = vadd.f32 %v379, %v556
    %v558 = vpop.f32.mrb[0].mxu0
    %v559 = vadd.f32 %v383, %v558
    %v560 = vpop.f32.mrb[0].mxu0
    %v561 = vpop.f32.mrb[0].mxu0
    %562 = vdwg.mxu0
    %563 = vmatprep.subr.bf16.mxu0 0
    %564 = vmatpush1.bf16.msra.mxu0 %v476
    %565 = vmatprep.subr.bf16.mxu0 0
    %566 = vmatpush1.bf16.msra.mxu0 %v479
    %567 = vmatprep.subr.bf16.mxu0 0
    %568 = vmatpush1.bf16.msra.mxu0 %v482
    %569 = vmatprep.subr.bf16.mxu0 0
    %570 = vmatpush1.bf16.msra.mxu0 %v485
    %571 = vmatprep.subr.bf16.mxu0 0
    %572 = vmatpush1.bf16.msra.mxu0 %v488
    %573 = vmatprep.subr.bf16.mxu0 0
    %574 = vmatpush1.bf16.msra.mxu0 %v491
    %575 = vmatprep.subr.bf16.mxu0 0
    %576 = vmatpush1.bf16.msra.mxu0 %v494
    %577 = vmatprep.subr.bf16.mxu0 0
    %578 = vmatpush1.bf16.msra.mxu0 %v497
    %579 = vmatprep.subr.bf16.mxu0 0
    %580 = vmatpush1.bf16.msra.mxu0 0
    %581 = vmatprep.subr.bf16.mxu0 0
    %582 = vmatpush1.bf16.msra.mxu0 0
    %583 = vmatprep.subr.bf16.mxu0 0
    %584 = vmatpush1.bf16.msra.mxu0 0
    %585 = vmatprep.subr.bf16.mxu0 0
    %586 = vmatpush1.bf16.msra.mxu0 0
    %587 = vmatprep.subr.bf16.mxu0 0
    %588 = vmatpush1.bf16.msra.mxu0 0
    %589 = vmatprep.subr.bf16.mxu0 0
    %590 = vmatpush1.bf16.msra.mxu0 0
    %591 = vmatprep.subr.bf16.mxu0 0
    %592 = vmatpush1.bf16.msra.mxu0 0
    %593 = vmatprep.subr.bf16.mxu0 0
    %594 = vmatpush1.bf16.msra.mxu0 0
    %595 = vmatprep.mubr.bf16.mxu0 0
    %596 = vmatmul.mubr.bf16.gmra.mrb[0].mxu0 0
    %v597 = vpop.f32.mrb[0].mxu0
    %v598 = vadd.f32 %v387, %v597
    %v599 = vpop.f32.mrb[0].mxu0
    %v600 = vpop.f32.mrb[0].mxu0
    %v601 = vpop.f32.mrb[0].mxu0
    %602 = vdwg.mxu0
    %v603 = vadd.f32 %v391, %v557
    %v604 = vxor.u32 %v603, 2147483648
    %v605 = vmul.f32 %v604, 1.442695
    %v606 = vpow.pop %v605
    %v607 = vadd.f32 %v606, 1.0
    %v608 = vrcp.pop %v607
    %v609 = vmul.f32 1.0, %v608
    %v610 = vadd.f32 %v392, %v559
    %v611 = vxor.u32 %v610, 2147483648
    %v612 = vmul.f32 %v611, 1.442695
    %v613 = vpow.pop %v612
    %v614 = vadd.f32 %v613, 1.0
    %v615 = vrcp.pop %v614
    %v616 = vmul.f32 1.0, %v615
    %v617 = vmul.f32 %v609, %v598
    %v618 = vadd.f32 %v393, %v617
    %v619 = vtanh.pop %v618
    %v620 = vsub.f32 1.0, %v616
    %v621 = vmul.f32 %v620, %v619
    %v622 = vmul.f32 %v616, 0.0
    %v623 = vadd.f32 %v621, %v622
    %624 = vst [vmem:[#allocation3] sm:$0xff] %v623
    %s625 = scalar_lea.vmem [#allocation2], 24
    %v626 = vld [vmem:[%s625] sm:$0xff]
    %v627 = vld [vmem:[%s625 + $0x8] sm:$0xff]
    %v628 = vld [vmem:[%s625 + $0x10] sm:$0xff]
    %v629 = vpack.c.bf16 %v623, %v623
    %630 = vmatprep.subr.bf16.mxu0 %v475
    %631 = vmatpush1.bf16.msra.mxu0 %v474
    %632 = vmatprep.subr.bf16.mxu0 %v478
    %633 = vmatpush1.bf16.msra.mxu0 %v477
    %634 = vmatprep.subr.bf16.mxu0 %v481
    %635 = vmatpush1.bf16.msra.mxu0 %v480
    %636 = vmatprep.subr.bf16.mxu0 %v484
    %637 = vmatpush1.bf16.msra.mxu0 %v483
    %638 = vmatprep.subr.bf16.mxu0 %v487
    %639 = vmatpush1.bf16.msra.mxu0 %v486
    %640 = vmatprep.subr.bf16.mxu0 %v490
    %641 = vmatpush1.bf16.msra.mxu0 %v489
    %642 = vmatprep.subr.bf16.mxu0 %v493
    %643 = vmatpush1.bf16.msra.mxu0 %v492
    %644 = vmatprep.subr.bf16.mxu0 %v496
    %645 = vmatpush1.bf16.msra.mxu0 %v495
    %646 = vmatprep.subr.bf16.mxu0 0
    %647 = vmatpush1.bf16.msra.mxu0 0
    %648 = vmatprep.subr.bf16.mxu0 0
    %649 = vmatpush1.bf16.msra.mxu0 0
    %650 = vmatprep.subr.bf16.mxu0 0
    %651 = vmatpush1.bf16.msra.mxu0 0
    %652 = vmatprep.subr.bf16.mxu0 0
    %653 = vmatpush1.bf16.msra.mxu0 0
    %654 = vmatprep.subr.bf16.mxu0 0
    %655 = vmatpush1.bf16.msra.mxu0 0
    %656 = vmatprep.subr.bf16.mxu0 0
    %657 = vmatpush1.bf16.msra.mxu0 0
    %658 = vmatprep.subr.bf16.mxu0 0
    %659 = vmatpush1.bf16.msra.mxu0 0
    %660 = vmatprep.subr.bf16.mxu0 0
    %661 = vmatpush1.bf16.msra.mxu0 0
    %662 = vmatprep.mubr.bf16.mxu0 0
    %663 = vmatmul.mubr.bf16.gmra.mrb[0].mxu0 %v629
    %v664 = vpop.f32.mrb[0].mxu0
    %v665 = vadd.f32 %v379, %v664
    %v666 = vpop.f32.mrb[0].mxu0
    %v667 = vadd.f32 %v383, %v666
    %v668 = vpop.f32.mrb[0].mxu0
    %v669 = vpop.f32.mrb[0].mxu0
    %670 = vdwg.mxu0
    %671 = vmatprep.subr.bf16.mxu0 0
    %672 = vmatpush1.bf16.msra.mxu0 %v476
    %673 = vmatprep.subr.bf16.mxu0 0
    %674 = vmatpush1.bf16.msra.mxu0 %v479
    %675 = vmatprep.subr.bf16.mxu0 0
    %676 = vmatpush1.bf16.msra.mxu0 %v482
    %677 = vmatprep.subr.bf16.mxu0 0
    %678 = vmatpush1.bf16.msra.mxu0 %v485
    %679 = vmatprep.subr.bf16.mxu0 0
    %680 = vmatpush1.bf16.msra.mxu0 %v488
    %681 = vmatprep.subr.bf16.mxu0 0
    %682 = vmatpush1.bf16.msra.mxu0 %v491
    %683 = vmatprep.subr.bf16.mxu0 0
    %684 = vmatpush1.bf16.msra.mxu0 %v494
    %685 = vmatprep.subr.bf16.mxu0 0
    %686 = vmatpush1.bf16.msra.mxu0 %v497
    %687 = vmatprep.subr.bf16.mxu0 0
    %688 = vmatpush1.bf16.msra.mxu0 0
    %689 = vmatprep.subr.bf16.mxu0 0
    %690 = vmatpush1.bf16.msra.mxu0 0
    %691 = vmatprep.subr.bf16.mxu0 0
    %692 = vmatpush1.bf16.msra.mxu0 0
    %693 = vmatprep.subr.bf16.mxu0 0
    %694 = vmatpush1.bf16.msra.mxu0 0
    %695 = vmatprep.subr.bf16.mxu0 0
    %696 = vmatpush1.bf16.msra.mxu0 0
    %697 = vmatprep.subr.bf16.mxu0 0
    %698 = vmatpush1.bf16.msra.mxu0 0
    %699 = vmatprep.subr.bf16.mxu0 0
    %700 = vmatpush1.bf16.msra.mxu0 0
    %701 = vmatprep.subr.bf16.mxu0 0
    %702 = vmatpush1.bf16.msra.mxu0 0
    %703 = vmatprep.mubr.bf16.mxu0 0
    %704 = vmatmul.mubr.bf16.gmra.mrb[0].mxu0 %v629
    %v705 = vpop.f32.mrb[0].mxu0
    %v706 = vadd.f32 %v387, %v705
    %v707 = vpop.f32.mrb[0].mxu0
    %v708 = vpop.f32.mrb[0].mxu0
    %v709 = vpop.f32.mrb[0].mxu0
    %710 = vdwg.mxu0
    %v711 = vadd.f32 %v626, %v665
    %v712 = vxor.u32 %v711, 2147483648
    %v713 = vmul.f32 %v712, 1.442695
    %v714 = vpow.pop %v713
    %v715 = vadd.f32 %v714, 1.0
    %v716 = vrcp.pop %v715
    %v717 = vmul.f32 1.0, %v716
    %v718 = vadd.f32 %v627, %v667
    %v719 = vxor.u32 %v718, 2147483648
    %v720 = vmul.f32 %v719, 1.442695
    %v721 = vpow.pop %v720
    %v722 = vadd.f32 %v721, 1.0
    %v723 = vrcp.pop %v722
    %v724 = vmul.f32 1.0, %v723
    %v725 = vmul.f32 %v717, %v706
    %v726 = vadd.f32 %v628, %v725
    %v727 = vtanh.pop %v726
    %v728 = vsub.f32 1.0, %v724
    %v729 = vmul.f32 %v728, %v727
    %v730 = vmul.f32 %v724, %v623
    %v731 = vadd.f32 %v729, %v730
    %s732 = scalar_lea.vmem [#allocation3], 8
    %733 = vst [vmem:[%s732] sm:$0xff] %v731
    %s734 = scalar_lea.vmem [#allocation2], 48
    %v735 = vld [vmem:[%s734] sm:$0xff]
    %v736 = vld [vmem:[%s734 + $0x8] sm:$0xff]
    %v737 = vld [vmem:[%s734 + $0x10] sm:$0xff]
    %v738 = vpack.c.bf16 %v731, %v731
    %739 = vmatprep.subr.bf16.mxu0 %v475
    %740 = vmatpush1.bf16.msra.mxu0 %v474
    %741 = vmatprep.subr.bf16.mxu0 %v478
    %742 = vmatpush1.bf16.msra.mxu0 %v477
    %743 = vmatprep.subr.bf16.mxu0 %v481
    %744 = vmatpush1.bf16.msra.mxu0 %v480
    %745 = vmatprep.subr.bf16.mxu0 %v484
    %746 = vmatpush1.bf16.msra.mxu0 %v483
    %747 = vmatprep.subr.bf16.mxu0 %v487
    %748 = vmatpush1.bf16.msra.mxu0 %v486
    %749 = vmatprep.subr.bf16.mxu0 %v490
    %750 = vmatpush1.bf16.msra.mxu0 %v489
    %751 = vmatprep.subr.bf16.mxu0 %v493
    %752 = vmatpush1.bf16.msra.mxu0 %v492
    %753 = vmatprep.subr.bf16.mxu0 %v496
    %754 = vmatpush1.bf16.msra.mxu0 %v495
    %755 = vmatprep.subr.bf16.mxu0 0
    %756 = vmatpush1.bf16.msra.mxu0 0
    %757 = vmatprep.subr.bf16.mxu0 0
    %758 = vmatpush1.bf16.msra.mxu0 0
    %759 = vmatprep.subr.bf16.mxu0 0
    %760 = vmatpush1.bf16.msra.mxu0 0
    %761 = vmatprep.subr.bf16.mxu0 0
    %762 = vmatpush1.bf16.msra.mxu0 0
    %763 = vmatprep.subr.bf16.mxu0 0
    %764 = vmatpush1.bf16.msra.mxu0 0
    %765 = vmatprep.subr.bf16.mxu0 0
    %766 = vmatpush1.bf16.msra.mxu0 0
    %767 = vmatprep.subr.bf16.mxu0 0
    %768 = vmatpush1.bf16.msra.mxu0 0
    %769 = vmatprep.subr.bf16.mxu0 0
    %770 = vmatpush1.bf16.msra.mxu0 0
    %771 = vmatprep.mubr.bf16.mxu0 0
    %772 = vmatmul.mubr.bf16.gmra.mrb[0].mxu0 %v738
    %v773 = vpop.f32.mrb[0].mxu0
    %v774 = vadd.f32 %v379, %v773
    %v775 = vpop.f32.mrb[0].mxu0
    %v776 = vadd.f32 %v383, %v775
    %v777 = vpop.f32.mrb[0].mxu0
    %v778 = vpop.f32.mrb[0].mxu0
    %779 = vdwg.mxu0
    %780 = vmatprep.subr.bf16.mxu0 0
    %781 = vmatpush1.bf16.msra.mxu0 %v476
    %782 = vmatprep.subr.bf16.mxu0 0
    %783 = vmatpush1.bf16.msra.mxu0 %v479
    %784 = vmatprep.subr.bf16.mxu0 0
    %785 = vmatpush1.bf16.msra.mxu0 %v482
    %786 = vmatprep.subr.bf16.mxu0 0
    %787 = vmatpush1.bf16.msra.mxu0 %v485
    %788 = vmatprep.subr.bf16.mxu0 0
    %789 = vmatpush1.bf16.msra.mxu0 %v488
    %790 = vmatprep.subr.bf16.mxu0 0
    %791 = vmatpush1.bf16.msra.mxu0 %v491
    %792 = vmatprep.subr.bf16.mxu0 0
    %793 = vmatpush1.bf16.msra.mxu0 %v494
    %794 = vmatprep.subr.bf16.mxu0 0
    %795 = vmatpush1.bf16.msra.mxu0 %v497
    %796 = vmatprep.subr.bf16.mxu0 0
    %797 = vmatpush1.bf16.msra.mxu0 0
    %798 = vmatprep.subr.bf16.mxu0 0
    %799 = vmatpush1.bf16.msra.mxu0 0
    %800 = vmatprep.subr.bf16.mxu0 0
    %801 = vmatpush1.bf16.msra.mxu0 0
    %802 = vmatprep.subr.bf16.mxu0 0
    %803 = vmatpush1.bf16.msra.mxu0 0
    %804 = vmatprep.subr.bf16.mxu0 0
    %805 = vmatpush1.bf16.msra.mxu0 0
    %806 = vmatprep.subr.bf16.mxu0 0
    %807 = vmatpush1.bf16.msra.mxu0 0
    %808 = vmatprep.subr.bf16.mxu0 0
    %809 = vmatpush1.bf16.msra.mxu0 0
    %810 = vmatprep.subr.bf16.mxu0 0
    %811 = vmatpush1.bf16.msra.mxu0 0
    %812 = vmatprep.mubr.bf16.mxu0 0
    %813 = vmatmul.mubr.bf16.gmra.mrb[0].mxu0 %v738
    %v814 = vpop.f32.mrb[0].mxu0
    %v815 = vadd.f32 %v387, %v814
    %v816 = vpop.f32.mrb[0].mxu0
    %v817 = vpop.f32.mrb[0].mxu0
    %v818 = vpop.f32.mrb[0].mxu0
    %819 = vdwg.mxu0
    %v820 = vadd.f32 %v735, %v774
    %v821 = vxor.u32 %v820, 2147483648
    %v822 = vmul.f32 %v821, 1.442695
    %v823 = vpow.pop %v822
    %v824 = vadd.f32 %v823, 1.0
    %v825 = vrcp.pop %v824
    %v826 = vmul.f32 1.0, %v825
    %v827 = vadd.f32 %v736, %v776
    %v828 = vxor.u32 %v827, 2147483648
    %v829 = vmul.f32 %v828, 1.442695
    %v830 = vpow.pop %v829
    %v831 = vadd.f32 %v830, 1.0
    %v832 = vrcp.pop %v831
    %v833 = vmul.f32 1.0, %v832
    %v834 = vmul.f32 %v826, %v815
    %v835 = vadd.f32 %v737, %v834
    %v836 = vtanh.pop %v835
    %v837 = vsub.f32 1.0, %v833
    %v838 = vmul.f32 %v837, %v836
    %v839 = vmul.f32 %v833, %v731
    %v840 = vadd.f32 %v838, %v839
    %s841 = scalar_lea.vmem [#allocation3], 16
    %842 = vst [vmem:[%s841] sm:$0xff] %v840
    %s843 = scalar_lea.vmem [#allocation2], 72
    %v844 = vld [vmem:[%s843] sm:$0xff]
    %v845 = vld [vmem:[%s843 + $0x8] sm:$0xff]
    %v846 = vld [vmem:[%s843 + $0x10] sm:$0xff]
    %v847 = vpack.c.bf16 %v840, %v840
    %848 = vmatprep.subr.bf16.mxu0 %v475
    %849 = vmatpush1.bf16.msra.mxu0 %v474
    %850 = vmatprep.subr.bf16.mxu0 %v478
    %851 = vmatpush1.bf16.msra.mxu0 %v477
    %852 = vmatprep.subr.bf16.mxu0 %v481
    %853 = vmatpush1.bf16.msra.mxu0 %v480
    %854 = vmatprep.subr.bf16.mxu0 %v484
    %855 = vmatpush1.bf16.msra.mxu0 %v483
    %856 = vmatprep.subr.bf16.mxu0 %v487
    %857 = vmatpush1.bf16.msra.mxu0 %v486
    %858 = vmatprep.subr.bf16.mxu0 %v490
    %859 = vmatpush1.bf16.msra.mxu0 %v489
    %860 = vmatprep.subr.bf16.mxu0 %v493
    %861 = vmatpush1.bf16.msra.mxu0 %v492
    %862 = vmatprep.subr.bf16.mxu0 %v496
    %863 = vmatpush1.bf16.msra.mxu0 %v495
    %864 = vmatprep.subr.bf16.mxu0 0
    %865 = vmatpush1.bf16.msra.mxu0 0
    %866 = vmatprep.subr.bf16.mxu0 0
    %867 = vmatpush1.bf16.msra.mxu0 0
    %868 = vmatprep.subr.bf16.mxu0 0
    %869 = vmatpush1.bf16.msra.mxu0 0
    %870 = vmatprep.subr.bf16.mxu0 0
    %871 = vmatpush1.bf16.msra.mxu0 0
    %872 = vmatprep.subr.bf16.mxu0 0
    %873 = vmatpush1.bf16.msra.mxu0 0
    %874 = vmatprep.subr.bf16.mxu0 0
    %875 = vmatpush1.bf16.msra.mxu0 0
    %876 = vmatprep.subr.bf16.mxu0 0
    %877 = vmatpush1.bf16.msra.mxu0 0
    %878 = vmatprep.subr.bf16.mxu0 0
    %879 = vmatpush1.bf16.msra.mxu0 0
    %880 = vmatprep.mubr.bf16.mxu0 0
    %881 = vmatmul.mubr.bf16.gmra.mrb[0].mxu0 %v847
    %v882 = vpop.f32.mrb[0].mxu0
    %v883 = vadd.f32 %v379, %v882
    %v884 = vpop.f32.mrb[0].mxu0
    %v885 = vadd.f32 %v383, %v884
    %v886 = vpop.f32.mrb[0].mxu0
    %v887 = vpop.f32.mrb[0].mxu0
    %888 = vdwg.mxu0
    %889 = vmatprep.subr.bf16.mxu0 0
    %890 = vmatpush1.bf16.msra.mxu0 %v476
    %891 = vmatprep.subr.bf16.mxu0 0
    %892 = vmatpush1.bf16.msra.mxu0 %v479
    %893 = vmatprep.subr.bf16.mxu0 0
    %894 = vmatpush1.bf16.msra.mxu0 %v482
    %895 = vmatprep.subr.bf16.mxu0 0
    %896 = vmatpush1.bf16.msra.mxu0 %v485
    %897 = vmatprep.subr.bf16.mxu0 0
    %898 = vmatpush1.bf16.msra.mxu0 %v488
    %899 = vmatprep.subr.bf16.mxu0 0
    %900 = vmatpush1.bf16.msra.mxu0 %v491
    %901 = vmatprep.subr.bf16.mxu0 0
    %902 = vmatpush1.bf16.msra.mxu0 %v494
    %903 = vmatprep.subr.bf16.mxu0 0
    %904 = vmatpush1.bf16.msra.mxu0 %v497
    %905 = vmatprep.subr.bf16.mxu0 0
    %906 = vmatpush1.bf16.msra.mxu0 0
    %907 = vmatprep.subr.bf16.mxu0 0
    %908 = vmatpush1.bf16.msra.mxu0 0
    %909 = vmatprep.subr.bf16.mxu0 0
    %910 = vmatpush1.bf16.msra.mxu0 0
    %911 = vmatprep.subr.bf16.mxu0 0
    %912 = vmatpush1.bf16.msra.mxu0 0
    %913 = vmatprep.subr.bf16.mxu0 0
    %914 = vmatpush1.bf16.msra.mxu0 0
    %915 = vmatprep.subr.bf16.mxu0 0
    %916 = vmatpush1.bf16.msra.mxu0 0
    %917 = vmatprep.subr.bf16.mxu0 0
    %918 = vmatpush1.bf16.msra.mxu0 0
    %919 = vmatprep.subr.bf16.mxu0 0
    %920 = vmatpush1.bf16.msra.mxu0 0
    %921 = vmatprep.mubr.bf16.mxu0 0
    %922 = vmatmul.mubr.bf16.gmra.mrb[0].mxu0 %v847
    %v923 = vpop.f32.mrb[0].mxu0
    %v924 = vadd.f32 %v387, %v923
    %v925 = vpop.f32.mrb[0].mxu0
    %v926 = vpop.f32.mrb[0].mxu0
    %v927 = vpop.f32.mrb[0].mxu0
    %928 = vdwg.mxu0
    %v929 = vadd.f32 %v844, %v883
    %v930 = vxor.u32 %v929, 2147483648
    %v931 = vmul.f32 %v930, 1.442695
    %v932 = vpow.pop %v931
    %v933 = vadd.f32 %v932, 1.0
    %v934 = vrcp.pop %v933
    %v935 = vmul.f32 1.0, %v934
    %v936 = vadd.f32 %v845, %v885
    %v937 = vxor.u32 %v936, 2147483648
    %v938 = vmul.f32 %v937, 1.442695
    %v939 = vpow.pop %v938
    %v940 = vadd.f32 %v939, 1.0
    %v941 = vrcp.pop %v940
    %v942 = vmul.f32 1.0, %v941
    %v943 = vmul.f32 %v935, %v924
    %v944 = vadd.f32 %v846, %v943
    %v945 = vtanh.pop %v944
    %v946 = vsub.f32 1.0, %v942
    %v947 = vmul.f32 %v946, %v945
    %v948 = vmul.f32 %v942, %v840
    %v949 = vadd.f32 %v947, %v948
    %s950 = scalar_lea.vmem [#allocation3], 24
    %951 = vst [vmem:[%s950] sm:$0xff] %v949
    %s952 = scalar_lea.vmem [#allocation2], 96
    %v953 = vld [vmem:[%s952] sm:$0xff]
    %v954 = vld [vmem:[%s952 + $0x8] sm:$0xff]
    %v955 = vld [vmem:[%s952 + $0x10] sm:$0xff]
    %v956 = vpack.c.bf16 %v949, %v949
    %957 = vmatprep.subr.bf16.mxu0 %v475
    %958 = vmatpush1.bf16.msra.mxu0 %v474
    %959 = vmatprep.subr.bf16.mxu0 %v478
    %960 = vmatpush1.bf16.msra.mxu0 %v477
    %961 = vmatprep.subr.bf16.mxu0 %v481
    %962 = vmatpush1.bf16.msra.mxu0 %v480
    %963 = vmatprep.subr.bf16.mxu0 %v484
    %964 = vmatpush1.bf16.msra.mxu0 %v483
    %965 = vmatprep.subr.bf16.mxu0 %v487
    %966 = vmatpush1.bf16.msra.mxu0 %v486
    %967 = vmatprep.subr.bf16.mxu0 %v490
    %968 = vmatpush1.bf16.msra.mxu0 %v489
    %969 = vmatprep.subr.bf16.mxu0 %v493
    %970 = vmatpush1.bf16.msra.mxu0 %v492
    %971 = vmatprep.subr.bf16.mxu0 %v496
    %972 = vmatpush1.bf16.msra.mxu0 %v495
    %973 = vmatprep.subr.bf16.mxu0 0
    %974 = vmatpush1.bf16.msra.mxu0 0
    %975 = vmatprep.subr.bf16.mxu0 0
    %976 = vmatpush1.bf16.msra.mxu0 0
    %977 = vmatprep.subr.bf16.mxu0 0
    %978 = vmatpush1.bf16.msra.mxu0 0
    %979 = vmatprep.subr.bf16.mxu0 0
    %980 = vmatpush1.bf16.msra.mxu0 0
    %981 = vmatprep.subr.bf16.mxu0 0
    %982 = vmatpush1.bf16.msra.mxu0 0
    %983 = vmatprep.subr.bf16.mxu0 0
    %984 = vmatpush1.bf16.msra.mxu0 0
    %985 = vmatprep.subr.bf16.mxu0 0
    %986 = vmatpush1.bf16.msra.mxu0 0
    %987 = vmatprep.subr.bf16.mxu0 0
    %988 = vmatpush1.bf16.msra.mxu0 0
    %989 = vmatprep.mubr.bf16.mxu0 0
    %990 = vmatmul.mubr.bf16.gmra.mrb[0].mxu0 %v956
    %v991 = vpop.f32.mrb[0].mxu0
    %v992 = vadd.f32 %v379, %v991
    %v993 = vpop.f32.mrb[0].mxu0
    %v994 = vadd.f32 %v383, %v993
    %v995 = vpop.f32.mrb[0].mxu0
    %v996 = vpop.f32.mrb[0].mxu0
    %997 = vdwg.mxu0
    %998 = vmatprep.subr.bf16.mxu0 0
    %999 = vmatpush1.bf16.msra.mxu0 %v476
    %1000 = vmatprep.subr.bf16.mxu0 0
    %1001 = vmatpush1.bf16.msra.mxu0 %v479
    %1002 = vmatprep.subr.bf16.mxu0 0
    %1003 = vmatpush1.bf16.msra.mxu0 %v482
    %1004 = vmatprep.subr.bf16.mxu0 0
    %1005 = vmatpush1.bf16.msra.mxu0 %v485
    %1006 = vmatprep.subr.bf16.mxu0 0
    %1007 = vmatpush1.bf16.msra.mxu0 %v488
    %1008 = vmatprep.subr.bf16.mxu0 0
    %1009 = vmatpush1.bf16.msra.mxu0 %v491
    %1010 = vmatprep.subr.bf16.mxu0 0
    %1011 = vmatpush1.bf16.msra.mxu0 %v494
    %1012 = vmatprep.subr.bf16.mxu0 0
    %1013 = vmatpush1.bf16.msra.mxu0 %v497
    %1014 = vmatprep.subr.bf16.mxu0 0
    %1015 = vmatpush1.bf16.msra.mxu0 0
    %1016 = vmatprep.subr.bf16.mxu0 0
    %1017 = vmatpush1.bf16.msra.mxu0 0
    %1018 = vmatprep.subr.bf16.mxu0 0
    %1019 = vmatpush1.bf16.msra.mxu0 0
    %1020 = vmatprep.subr.bf16.mxu0 0
    %1021 = vmatpush1.bf16.msra.mxu0 0
    %1022 = vmatprep.subr.bf16.mxu0 0
    %1023 = vmatpush1.bf16.msra.mxu0 0
    %1024 = vmatprep.subr.bf16.mxu0 0
    %1025 = vmatpush1.bf16.msra.mxu0 0
    %1026 = vmatprep.subr.bf16.mxu0 0
    %1027 = vmatpush1.bf16.msra.mxu0 0
    %1028 = vmatprep.subr.bf16.mxu0 0
    %1029 = vmatpush1.bf16.msra.mxu0 0
    %1030 = vmatprep.mubr.bf16.mxu0 0
    %1031 = vmatmul.mubr.bf16.gmra.mrb[0].mxu0 %v956
    %v1032 = vpop.f32.mrb[0].mxu0
    %v1033 = vadd.f32 %v387, %v1032
    %v1034 = vpop.f32.mrb[0].mxu0
    %v1035 = vpop.f32.mrb[0].mxu0
    %v1036 = vpop.f32.mrb[0].mxu0
    %1037 = vdwg.mxu0
    %v1038 = vadd.f32 %v953, %v992
    %v1039 = vxor.u32 %v1038, 2147483648
    %v1040 = vmul.f32 %v1039, 1.442695
    %v1041 = vpow.pop %v1040
    %v1042 = vadd.f32 %v1041, 1.0
    %v1043 = vrcp.pop %v1042
    %v1044 = vmul.f32 1.0, %v1043
    %v1045 = vadd.f32 %v954, %v994
    %v1046 = vxor.u32 %v1045, 2147483648
    %v1047 = vmul.f32 %v1046, 1.442695
    %v1048 = vpow.pop %v1047
    %v1049 = vadd.f32 %v1048, 1.0
    %v1050 = vrcp.pop %v1049
    %v1051 = vmul.f32 1.0, %v1050
    %v1052 = vmul.f32 %v1044, %v1033
    %v1053 = vadd.f32 %v955, %v1052
    %v1054 = vtanh.pop %v1053
    %v1055 = vsub.f32 1.0, %v1051
    %v1056 = vmul.f32 %v1055, %v1054
    %v1057 = vmul.f32 %v1051, %v949
    %v1058 = vadd.f32 %v1056, %v1057
    %s1059 = scalar_lea.vmem [#allocation3], 32
    %1060 = vst [vmem:[%s1059] sm:$0xff] %v1058
    %s1061 = scalar_lea.vmem [#allocation2], 120
    %v1062 = vld [vmem:[%s1061] sm:$0xff]
    %v1063 = vld [vmem:[%s1061 + $0x8] sm:$0xff]
    %v1064 = vld [vmem:[%s1061 + $0x10] sm:$0xff]
    %v1065 = vpack.c.bf16 %v1058, %v1058
    %1066 = vmatprep.subr.bf16.mxu0 %v475
    %1067 = vmatpush1.bf16.msra.mxu0 %v474
    %1068 = vmatprep.subr.bf16.mxu0 %v478
    %1069 = vmatpush1.bf16.msra.mxu0 %v477
    %1070 = vmatprep.subr.bf16.mxu0 %v481
    %1071 = vmatpush1.bf16.msra.mxu0 %v480
    %1072 = vmatprep.subr.bf16.mxu0 %v484
    %1073 = vmatpush1.bf16.msra.mxu0 %v483
    %1074 = vmatprep.subr.bf16.mxu0 %v487
    %1075 = vmatpush1.bf16.msra.mxu0 %v486
    %1076 = vmatprep.subr.bf16.mxu0 %v490
    %1077 = vmatpush1.bf16.msra.mxu0 %v489
    %1078 = vmatprep.subr.bf16.mxu0 %v493
    %1079 = vmatpush1.bf16.msra.mxu0 %v492
    %1080 = vmatprep.subr.bf16.mxu0 %v496
    %1081 = vmatpush1.bf16.msra.mxu0 %v495
    %1082 = vmatprep.subr.bf16.mxu0 0
    %1083 = vmatpush1.bf16.msra.mxu0 0
    %1084 = vmatprep.subr.bf16.mxu0 0
    %1085 = vmatpush1.bf16.msra.mxu0 0
    %1086 = vmatprep.subr.bf16.mxu0 0
    %1087 = vmatpush1.bf16.msra.mxu0 0
    %1088 = vmatprep.subr.bf16.mxu0 0
    %1089 = vmatpush1.bf16.msra.mxu0 0
    %1090 = vmatprep.subr.bf16.mxu0 0
    %1091 = vmatpush1.bf16.msra.mxu0 0
    %1092 = vmatprep.subr.bf16.mxu0 0
    %1093 = vmatpush1.bf16.msra.mxu0 0
    %1094 = vmatprep.subr.bf16.mxu0 0
    %1095 = vmatpush1.bf16.msra.mxu0 0
    %1096 = vmatprep.subr.bf16.mxu0 0
    %1097 = vmatpush1.bf16.msra.mxu0 0
    %1098 = vmatprep.mubr.bf16.mxu0 0
    %1099 = vmatmul.mubr.bf16.gmra.mrb[0].mxu0 %v1065
    %v1100 = vpop.f32.mrb[0].mxu0
    %v1101 = vadd.f32 %v379, %v1100
    %v1102 = vpop.f32.mrb[0].mxu0
    %v1103 = vadd.f32 %v383, %v1102
    %v1104 = vpop.f32.mrb[0].mxu0
    %v1105 = vpop.f32.mrb[0].mxu0
    %1106 = vdwg.mxu0
    %1107 = vmatprep.subr.bf16.mxu0 0
    %1108 = vmatpush1.bf16.msra.mxu0 %v476
    %1109 = vmatprep.subr.bf16.mxu0 0
    %1110 = vmatpush1.bf16.msra.mxu0 %v479
    %1111 = vmatprep.subr.bf16.mxu0 0
    %1112 = vmatpush1.bf16.msra.mxu0 %v482
    %1113 = vmatprep.subr.bf16.mxu0 0
    %1114 = vmatpush1.bf16.msra.mxu0 %v485
    %1115 = vmatprep.subr.bf16.mxu0 0
    %1116 = vmatpush1.bf16.msra.mxu0 %v488
    %1117 = vmatprep.subr.bf16.mxu0 0
    %1118 = vmatpush1.bf16.msra.mxu0 %v491
    %1119 = vmatprep.subr.bf16.mxu0 0
    %1120 = vmatpush1.bf16.msra.mxu0 %v494
    %1121 = vmatprep.subr.bf16.mxu0 0
    %1122 = vmatpush1.bf16.msra.mxu0 %v497
    %1123 = vmatprep.subr.bf16.mxu0 0
    %1124 = vmatpush1.bf16.msra.mxu0 0
    %1125 = vmatprep.subr.bf16.mxu0 0
    %1126 = vmatpush1.bf16.msra.mxu0 0
    %1127 = vmatprep.subr.bf16.mxu0 0
    %1128 = vmatpush1.bf16.msra.mxu0 0
    %1129 = vmatprep.subr.bf16.mxu0 0
    %1130 = vmatpush1.bf16.msra.mxu0 0
    %1131 = vmatprep.subr.bf16.mxu0 0
    %1132 = vmatpush1.bf16.msra.mxu0 0
    %1133 = vmatprep.subr.bf16.mxu0 0
    %1134 = vmatpush1.bf16.msra.mxu0 0
    %1135 = vmatprep.subr.bf16.mxu0 0
    %1136 = vmatpush1.bf16.msra.mxu0 0
    %1137 = vmatprep.subr.bf16.mxu0 0
    %1138 = vmatpush1.bf16.msra.mxu0 0
    %1139 = vmatprep.mubr.bf16.mxu0 0
    %1140 = vmatmul.mubr.bf16.gmra.mrb[0].mxu0 %v1065
    %v1141 = vpop.f32.mrb[0].mxu0
    %v1142 = vadd.f32 %v387, %v1141
    %v1143 = vpop.f32.mrb[0].mxu0
    %v1144 = vpop.f32.mrb[0].mxu0
    %v1145 = vpop.f32.mrb[0].mxu0
    %1146 = vdwg.mxu0
    %v1147 = vadd.f32 %v1062, %v1101
    %v1148 = vxor.u32 %v1147, 2147483648
    %v1149 = vmul.f32 %v1148, 1.442695
    %v1150 = vpow.pop %v1149
    %v1151 = vadd.f32 %v1150, 1.0
    %v1152 = vrcp.pop %v1151
    %v1153 = vmul.f32 1.0, %v1152
    %v1154 = vadd.f32 %v1063, %v1103
    %v1155 = vxor.u32 %v1154, 2147483648
    %v1156 = vmul.f32 %v1155, 1.442695
    %v1157 = vpow.pop %v1156
    %v1158 = vadd.f32 %v1157, 1.0
    %v1159 = vrcp.pop %v1158
    %v1160 = vmul.f32 1.0, %v1159
    %v1161 = vmul.f32 %v1153, %v1142
    %v1162 = vadd.f32 %v1064, %v1161
    %v1163 = vtanh.pop %v1162
    %v1164 = vsub.f32 1.0, %v1160
    %v1165 = vmul.f32 %v1164, %v1163
    %v1166 = vmul.f32 %v1160, %v1058
    %v1167 = vadd.f32 %v1165, %v1166
    %s1168 = scalar_lea.vmem [#allocation3], 40
    %1169 = vst [vmem:[%s1168] sm:$0xff] %v1167
    %s1170 = scalar_lea.vmem [#allocation2], 144
    %v1171 = vld [vmem:[%s1170] sm:$0xff]
    %v1172 = vld [vmem:[%s1170 + $0x8] sm:$0xff]
    %v1173 = vld [vmem:[%s1170 + $0x10] sm:$0xff]
    %v1174 = vpack.c.bf16 %v1167, %v1167
    %1175 = vmatprep.subr.bf16.mxu0 %v475
    %1176 = vmatpush1.bf16.msra.mxu0 %v474
    %1177 = vmatprep.subr.bf16.mxu0 %v478
    %1178 = vmatpush1.bf16.msra.mxu0 %v477
    %1179 = vmatprep.subr.bf16.mxu0 %v481
    %1180 = vmatpush1.bf16.msra.mxu0 %v480
    %1181 = vmatprep.subr.bf16.mxu0 %v484
    %1182 = vmatpush1.bf16.msra.mxu0 %v483
    %1183 = vmatprep.subr.bf16.mxu0 %v487
    %1184 = vmatpush1.bf16.msra.mxu0 %v486
    %1185 = vmatprep.subr.bf16.mxu0 %v490
    %1186 = vmatpush1.bf16.msra.mxu0 %v489
    %1187 = vmatprep.subr.bf16.mxu0 %v493
    %1188 = vmatpush1.bf16.msra.mxu0 %v492
    %1189 = vmatprep.subr.bf16.mxu0 %v496
    %1190 = vmatpush1.bf16.msra.mxu0 %v495
    %1191 = vmatprep.subr.bf16.mxu0 0
    %1192 = vmatpush1.bf16.msra.mxu0 0
    %1193 = vmatprep.subr.bf16.mxu0 0
    %1194 = vmatpush1.bf16.msra.mxu0 0
    %1195 = vmatprep.subr.bf16.mxu0 0
    %1196 = vmatpush1.bf16.msra.mxu0 0
    %1197 = vmatprep.subr.bf16.mxu0 0
    %1198 = vmatpush1.bf16.msra.mxu0 0
    %1199 = vmatprep.subr.bf16.mxu0 0
    %1200 = vmatpush1.bf16.msra.mxu0 0
    %1201 = vmatprep.subr.bf16.mxu0 0
    %1202 = vmatpush1.bf16.msra.mxu0 0
    %1203 = vmatprep.subr.bf16.mxu0 0
    %1204 = vmatpush1.bf16.msra.mxu0 0
    %1205 = vmatprep.subr.bf16.mxu0 0
    %1206 = vmatpush1.bf16.msra.mxu0 0
    %1207 = vmatprep.mubr.bf16.mxu0 0
    %1208 = vmatmul.mubr.bf16.gmra.mrb[0].mxu0 %v1174
    %v1209 = vpop.f32.mrb[0].mxu0
    %v1210 = vadd.f32 %v379, %v1209
    %v1211 = vpop.f32.mrb[0].mxu0
    %v1212 = vadd.f32 %v383, %v1211
    %v1213 = vpop.f32.mrb[0].mxu0
    %v1214 = vpop.f32.mrb[0].mxu0
    %1215 = vdwg.mxu0
    %1216 = vmatprep.subr.bf16.mxu0 0
    %1217 = vmatpush1.bf16.msra.mxu0 %v476
    %1218 = vmatprep.subr.bf16.mxu0 0
    %1219 = vmatpush1.bf16.msra.mxu0 %v479
    %1220 = vmatprep.subr.bf16.mxu0 0
    %1221 = vmatpush1.bf16.msra.mxu0 %v482
    %1222 = vmatprep.subr.bf16.mxu0 0
    %1223 = vmatpush1.bf16.msra.mxu0 %v485
    %1224 = vmatprep.subr.bf16.mxu0 0
    %1225 = vmatpush1.bf16.msra.mxu0 %v488
    %1226 = vmatprep.subr.bf16.mxu0 0
    %1227 = vmatpush1.bf16.msra.mxu0 %v491
    %1228 = vmatprep.subr.bf16.mxu0 0
    %1229 = vmatpush1.bf16.msra.mxu0 %v494
    %1230 = vmatprep.subr.bf16.mxu0 0
    %1231 = vmatpush1.bf16.msra.mxu0 %v497
    %1232 = vmatprep.subr.bf16.mxu0 0
    %1233 = vmatpush1.bf16.msra.mxu0 0
    %1234 = vmatprep.subr.bf16.mxu0 0
    %1235 = vmatpush1.bf16.msra.mxu0 0
    %1236 = vmatprep.subr.bf16.mxu0 0
    %1237 = vmatpush1.bf16.msra.mxu0 0
    %1238 = vmatprep.subr.bf16.mxu0 0
    %1239 = vmatpush1.bf16.msra.mxu0 0
    %1240 = vmatprep.subr.bf16.mxu0 0
    %1241 = vmatpush1.bf16.msra.mxu0 0
    %1242 = vmatprep.subr.bf16.mxu0 0
    %1243 = vmatpush1.bf16.msra.mxu0 0
    %1244 = vmatprep.subr.bf16.mxu0 0
    %1245 = vmatpush1.bf16.msra.mxu0 0
    %1246 = vmatprep.subr.bf16.mxu0 0
    %1247 = vmatpush1.bf16.msra.mxu0 0
    %1248 = vmatprep.mubr.bf16.mxu0 0
    %1249 = vmatmul.mubr.bf16.gmra.mrb[0].mxu0 %v1174
    %v1250 = vpop.f32.mrb[0].mxu0
    %v1251 = vadd.f32 %v387, %v1250
    %v1252 = vpop.f32.mrb[0].mxu0
    %v1253 = vpop.f32.mrb[0].mxu0
    %v1254 = vpop.f32.mrb[0].mxu0
    %1255 = vdwg.mxu0
    %v1256 = vadd.f32 %v1171, %v1210
    %v1257 = vxor.u32 %v1256, 2147483648
    %v1258 = vmul.f32 %v1257, 1.442695
    %v1259 = vpow.pop %v1258
    %v1260 = vadd.f32 %v1259, 1.0
    %v1261 = vrcp.pop %v1260
    %v1262 = vmul.f32 1.0, %v1261
    %v1263 = vadd.f32 %v1172, %v1212
    %v1264 = vxor.u32 %v1263, 2147483648
    %v1265 = vmul.f32 %v1264, 1.442695
    %v1266 = vpow.pop %v1265
    %v1267 = vadd.f32 %v1266, 1.0
    %v1268 = vrcp.pop %v1267
    %v1269 = vmul.f32 1.0, %v1268
    %v1270 = vmul.f32 %v1262, %v1251
    %v1271 = vadd.f32 %v1173, %v1270
    %v1272 = vtanh.pop %v1271
    %v1273 = vsub.f32 1.0, %v1269
    %v1274 = vmul.f32 %v1273, %v1272
    %v1275 = vmul.f32 %v1269, %v1167
    %v1276 = vadd.f32 %v1274, %v1275
    %s1277 = scalar_lea.vmem [#allocation3], 48
    %1278 = vst [vmem:[%s1277] sm:$0xff] %v1276
    %s1279 = scalar_lea.vmem [#allocation2], 168
    %v1280 = vld [vmem:[%s1279] sm:$0xff]
    %v1281 = vld [vmem:[%s1279 + $0x8] sm:$0xff]
    %v1282 = vld [vmem:[%s1279 + $0x10] sm:$0xff]
    %v1283 = vpack.c.bf16 %v1276, %v1276
    %1284 = vmatprep.subr.bf16.mxu0 %v475
    %1285 = vmatpush1.bf16.msra.mxu0 %v474
    %1286 = vmatprep.subr.bf16.mxu0 %v478
    %1287 = vmatpush1.bf16.msra.mxu0 %v477
    %1288 = vmatprep.subr.bf16.mxu0 %v481
    %1289 = vmatpush1.bf16.msra.mxu0 %v480
    %1290 = vmatprep.subr.bf16.mxu0 %v484
    %1291 = vmatpush1.bf16.msra.mxu0 %v483
    %1292 = vmatprep.subr.bf16.mxu0 %v487
    %1293 = vmatpush1.bf16.msra.mxu0 %v486
    %1294 = vmatprep.subr.bf16.mxu0 %v490
    %1295 = vmatpush1.bf16.msra.mxu0 %v489
    %1296 = vmatprep.subr.bf16.mxu0 %v493
    %1297 = vmatpush1.bf16.msra.mxu0 %v492
    %1298 = vmatprep.subr.bf16.mxu0 %v496
    %1299 = vmatpush1.bf16.msra.mxu0 %v495
    %1300 = vmatprep.subr.bf16.mxu0 0
    %1301 = vmatpush1.bf16.msra.mxu0 0
    %1302 = vmatprep.subr.bf16.mxu0 0
    %1303 = vmatpush1.bf16.msra.mxu0 0
    %1304 = vmatprep.subr.bf16.mxu0 0
    %1305 = vmatpush1.bf16.msra.mxu0 0
    %1306 = vmatprep.subr.bf16.mxu0 0
    %1307 = vmatpush1.bf16.msra.mxu0 0
    %1308 = vmatprep.subr.bf16.mxu0 0
    %1309 = vmatpush1.bf16.msra.mxu0 0
    %1310 = vmatprep.subr.bf16.mxu0 0
    %1311 = vmatpush1.bf16.msra.mxu0 0
    %1312 = vmatprep.subr.bf16.mxu0 0
    %1313 = vmatpush1.bf16.msra.mxu0 0
    %1314 = vmatprep.subr.bf16.mxu0 0
    %1315 = vmatpush1.bf16.msra.mxu0 0
    %1316 = vmatprep.mubr.bf16.mxu0 0
    %1317 = vmatmul.mubr.bf16.gmra.mrb[0].mxu0 %v1283
    %v1318 = vpop.f32.mrb[0].mxu0
    %v1319 = vadd.f32 %v379, %v1318
    %v1320 = vpop.f32.mrb[0].mxu0
    %v1321 = vadd.f32 %v383, %v1320
    %v1322 = vpop.f32.mrb[0].mxu0
    %v1323 = vpop.f32.mrb[0].mxu0
    %1324 = vdwg.mxu0
    %1325 = vmatprep.subr.bf16.mxu0 0
    %1326 = vmatpush1.bf16.msra.mxu0 %v476
    %1327 = vmatprep.subr.bf16.mxu0 0
    %1328 = vmatpush1.bf16.msra.mxu0 %v479
    %1329 = vmatprep.subr.bf16.mxu0 0
    %1330 = vmatpush1.bf16.msra.mxu0 %v482
    %1331 = vmatprep.subr.bf16.mxu0 0
    %1332 = vmatpush1.bf16.msra.mxu0 %v485
    %1333 = vmatprep.subr.bf16.mxu0 0
    %1334 = vmatpush1.bf16.msra.mxu0 %v488
    %1335 = vmatprep.subr.bf16.mxu0 0
    %1336 = vmatpush1.bf16.msra.mxu0 %v491
    %1337 = vmatprep.subr.bf16.mxu0 0
    %1338 = vmatpush1.bf16.msra.mxu0 %v494
    %1339 = vmatprep.subr.bf16.mxu0 0
    %1340 = vmatpush1.bf16.msra.mxu0 %v497
    %1341 = vmatprep.subr.bf16.mxu0 0
    %1342 = vmatpush1.bf16.msra.mxu0 0
    %1343 = vmatprep.subr.bf16.mxu0 0
    %1344 = vmatpush1.bf16.msra.mxu0 0
    %1345 = vmatprep.subr.bf16.mxu0 0
    %1346 = vmatpush1.bf16.msra.mxu0 0
    %1347 = vmatprep.subr.bf16.mxu0 0
    %1348 = vmatpush1.bf16.msra.mxu0 0
    %1349 = vmatprep.subr.bf16.mxu0 0
    %1350 = vmatpush1.bf16.msra.mxu0 0
    %1351 = vmatprep.subr.bf16.mxu0 0
    %1352 = vmatpush1.bf16.msra.mxu0 0
    %1353 = vmatprep.subr.bf16.mxu0 0
    %1354 = vmatpush1.bf16.msra.mxu0 0
    %1355 = vmatprep.subr.bf16.mxu0 0
    %1356 = vmatpush1.bf16.msra.mxu0 0
    %1357 = vmatprep.mubr.bf16.mxu0 0
    %1358 = vmatmul.mubr.bf16.gmra.mrb[0].mxu0 %v1283
    %v1359 = vpop.f32.mrb[0].mxu0
    %v1360 = vadd.f32 %v387, %v1359
    %v1361 = vpop.f32.mrb[0].mxu0
    %v1362 = vpop.f32.mrb[0].mxu0
    %v1363 = vpop.f32.mrb[0].mxu0
    %1364 = vdwg.mxu0
    %v1365 = vadd.f32 %v1280, %v1319
    %v1366 = vxor.u32 %v1365, 2147483648
    %v1367 = vmul.f32 %v1366, 1.442695
    %v1368 = vpow.pop %v1367
    %v1369 = vadd.f32 %v1368, 1.0
    %v1370 = vrcp.pop %v1369
    %v1371 = vmul.f32 1.0, %v1370
    %v1372 = vadd.f32 %v1281, %v1321
    %v1373 = vxor.u32 %v1372, 2147483648
    %v1374 = vmul.f32 %v1373, 1.442695
    %v1375 = vpow.pop %v1374
    %v1376 = vadd.f32 %v1375, 1.0
    %v1377 = vrcp.pop %v1376
    %v1378 = vmul.f32 1.0, %v1377
    %v1379 = vmul.f32 %v1371, %v1360
    %v1380 = vadd.f32 %v1282, %v1379
    %v1381 = vtanh.pop %v1380
    %v1382 = vsub.f32 1.0, %v1378
    %v1383 = vmul.f32 %v1382, %v1381
    %v1384 = vmul.f32 %v1378, %v1276
    %v1385 = vadd.f32 %v1383, %v1384
    %s1386 = scalar_lea.vmem [#allocation3], 56
    %1387 = vst [vmem:[%s1386] sm:$0xff] %v1385
    %v1388 = vlaneseq
    %v1389 = vand.u32 %v1388, 127
    %vm1390 = vcmp.ge.s32.totalorder %v1389, 64
    %1391 = vst [vmem:[#allocation4] sm:$0xff] 0.0
    %1392 = vst [vmem:[#allocation4 + $0x8] sm:$0xff] 0.0
    %1393 = vst [vmem:[#allocation4 + $0x10] sm:$0xff] 0.0
    %1394 = vst [vmem:[#allocation4 + $0x18] sm:$0xff] 0.0
    %1395 = vst [vmem:[#allocation4 + $0x20] sm:$0xff] 0.0
    %1396 = vst [vmem:[#allocation4 + $0x28] sm:$0xff] 0.0
    %1397 = vst [vmem:[#allocation4 + $0x30] sm:$0xff] 0.0
    %1398 = vst [vmem:[#allocation4 + $0x38] sm:$0xff] 0.0
    %1399 = vst [vmem:[#allocation4 + $0x40] sm:$0xff] 0.0
    %1400 = vst [vmem:[#allocation4 + $0x48] sm:$0xff] 0.0
    %1401 = vst [vmem:[#allocation4 + $0x50] sm:$0xff] 0.0
    %1402 = vst [vmem:[#allocation4 + $0x58] sm:$0xff] 0.0
    %1403 = vst [vmem:[#allocation4 + $0x60] sm:$0xff] 0.0
    %1404 = vst [vmem:[#allocation4 + $0x68] sm:$0xff] 0.0
    %1405 = vst [vmem:[#allocation4 + $0x70] sm:$0xff] 0.0
    %1406 = vst [vmem:[#allocation4 + $0x78] sm:$0xff] 0.0
    %v1407 = vld [vmem:[%s1386] sm:$0xff]
    %v1408 = vld [vmem:[#allocation3] sm:$0xff]
    %v1409 = vsel %vm1390, %v1407, %v1408
    %1410 = vst [vmem:[#allocation4] sm:$0xff] %v1409
    %v1411 = vld [vmem:[%s1277] sm:$0xff]
    %v1412 = vld [vmem:[%s732] sm:$0xff]
    %v1413 = vsel %vm1390, %v1411, %v1412
    %1414 = vst [vmem:[#allocation4 + $0x8] sm:$0xff] %v1413
    %v1415 = vld [vmem:[%s1168] sm:$0xff]
    %v1416 = vld [vmem:[%s841] sm:$0xff]
    %v1417 = vsel %vm1390, %v1415, %v1416
    %1418 = vst [vmem:[#allocation4 + $0x10] sm:$0xff] %v1417
    %v1419 = vld [vmem:[%s1059] sm:$0xff]
    %v1420 = vld [vmem:[%s950] sm:$0xff]
    %v1421 = vsel %vm1390, %v1419, %v1420
    %1422 = vst [vmem:[#allocation4 + $0x18] sm:$0xff] %v1421
    %v1423 = vld [vmem:[%s950] sm:$0xff]
    %v1424 = vld [vmem:[%s1059] sm:$0xff]
    %v1425 = vsel %vm1390, %v1423, %v1424
    %1426 = vst [vmem:[#allocation4 + $0x20] sm:$0xff] %v1425
    %v1427 = vld [vmem:[%s841] sm:$0xff]
    %v1428 = vld [vmem:[%s1168] sm:$0xff]
    %v1429 = vsel %vm1390, %v1427, %v1428
    %1430 = vst [vmem:[#allocation4 + $0x28] sm:$0xff] %v1429
    %v1431 = vld [vmem:[%s732] sm:$0xff]
    %v1432 = vld [vmem:[%s1277] sm:$0xff]
    %v1433 = vsel %vm1390, %v1431, %v1432
    %1434 = vst [vmem:[#allocation4 + $0x30] sm:$0xff] %v1433
    %v1435 = vld [vmem:[#allocation3] sm:$0xff]
    %v1436 = vld [vmem:[%s1386] sm:$0xff]
    %v1437 = vsel %vm1390, %v1435, %v1436
    %1438 = vst [vmem:[#allocation4 + $0x38] sm:$0xff] %v1437
    %v1439 = vld [vmem:[#allocation4] sm:$0xff]
    %v1440 = vld [vmem:[#allocation4 + $0x8] sm:$0xff]
    %v1441 = vld [vmem:[#allocation4 + $0x10] sm:$0xff]
    %v1442 = vld [vmem:[#allocation4 + $0x18] sm:$0xff]
    %v1443 = vld [vmem:[#allocation4 + $0x20] sm:$0xff]
    %v1444 = vld [vmem:[#allocation4 + $0x28] sm:$0xff]
    %v1445 = vld [vmem:[#allocation4 + $0x30] sm:$0xff]
    %v1446 = vld [vmem:[#allocation4 + $0x38] sm:$0xff]
    %v1447 = vld [vmem:[#allocation4 + $0x40] sm:$0xff]
    %v1448 = vld [vmem:[#allocation4 + $0x48] sm:$0xff]
    %v1449 = vld [vmem:[#allocation4 + $0x50] sm:$0xff]
    %v1450 = vld [vmem:[#allocation4 + $0x58] sm:$0xff]
    %v1451 = vld [vmem:[#allocation4 + $0x60] sm:$0xff]
    %v1452 = vld [vmem:[#allocation4 + $0x68] sm:$0xff]
    %v1453 = vld [vmem:[#allocation4 + $0x70] sm:$0xff]
    %v1454 = vld [vmem:[#allocation4 + $0x78] sm:$0xff]
    %v1455 = vpack.c.bf16 %v1440, %v1439
    %v1456 = vpack.c.bf16 %v1442, %v1441
    %v1457 = vpack.c.bf16 %v1444, %v1443
    %v1458 = vpack.c.bf16 %v1446, %v1445
    %v1459 = vpack.c.bf16 %v1448, %v1447
    %v1460 = vpack.c.bf16 %v1450, %v1449
    %v1461 = vpack.c.bf16 %v1452, %v1451
    %v1462 = vpack.c.bf16 %v1454, %v1453
    %v1463 = vlaneseq
    %v1464 = vshrl.u32 %v1463, 7
    %vm1465 = vcmp.lt.s32.totalorder %v1389, 0
    %v1466 = vsub.s32 0, %v1389
    %v1467 = vsel %vm1465, %v1466, %v1389
    %v1468 = vshrl.u32 %v1467, 3
    %v1469 = vand.u32 %v1467, 7
    %v1470 = vsub.s32 0, %v1469
    %v1471 = vsel %vm1465, %v1470, %v1469
    %vm1472 = vcmp.ne.s32.totalorder %v1471, 0
    %vm1473 = vcmp.lt.s32.totalorder %v1471, 0
    %vm1474 = vmand %vm1473, %vm1472
    %v1475 = vadd.s32 %v1471, 8
    %v1476 = vsel %vm1474, %v1475, %v1471
    %vm1477 = vcmp.eq.s32.totalorder %v1476, %v1464
    %vm1478 = vcmp.lt.s32.totalorder %v1389, 64
    %vm1479 = vmand %vm1477, %vm1478
    %v1480 = vsel %vm1479, 0.0, -1e+30
    %v1481 = vld [vmem:[%s5] sm:$0xff]
    %v1482 = vld [vmem:[%s5 + $0x8] sm:$0xff]
    %v1483 = vld [vmem:[%s5 + $0x10] sm:$0xff]
    %v1484 = vld [vmem:[%s5 + $0x18] sm:$0xff]
    %v1485 = vld [vmem:[%s5 + $0x20] sm:$0xff]
    %v1486 = vld [vmem:[%s5 + $0x28] sm:$0xff]
    %v1487 = vld [vmem:[%s5 + $0x30] sm:$0xff]
    %v1488 = vld [vmem:[%s5 + $0x38] sm:$0xff]
    %v1489 = vld [vmem:[%s5 + $0x40] sm:$0xff]
    %v1490 = vld [vmem:[%s5 + $0x48] sm:$0xff]
    %v1491 = vld [vmem:[%s5 + $0x50] sm:$0xff]
    %v1492 = vld [vmem:[%s5 + $0x58] sm:$0xff]
    %v1493 = vld [vmem:[%s5 + $0x60] sm:$0xff]
    %v1494 = vld [vmem:[%s5 + $0x68] sm:$0xff]
    %v1495 = vld [vmem:[%s5 + $0x70] sm:$0xff]
    %v1496 = vld [vmem:[%s5 + $0x78] sm:$0xff]
    %v1497 = vld [vmem:[%s5 + $0x80] sm:$0xff]
    %v1498 = vld [vmem:[%s5 + $0x88] sm:$0xff]
    %v1499 = vld [vmem:[%s5 + $0x90] sm:$0xff]
    %v1500 = vld [vmem:[%s5 + $0x98] sm:$0xff]
    %v1501 = vld [vmem:[%s5 + $0xa0] sm:$0xff]
    %v1502 = vld [vmem:[%s5 + $0xa8] sm:$0xff]
    %v1503 = vld [vmem:[%s5 + $0xb0] sm:$0xff]
    %v1504 = vld [vmem:[%s5 + $0xb8] sm:$0xff]
    %v1505 = vld [vmem:[%s5 + $0xc0] sm:$0xff]
    %v1506 = vld [vmem:[%s5 + $0xc8] sm:$0xff]
    %v1507 = vld [vmem:[%s5 + $0xd0] sm:$0xff]
    %v1508 = vld [vmem:[%s5 + $0xd8] sm:$0xff]
    %v1509 = vld [vmem:[%s5 + $0xe0] sm:$0xff]
    %v1510 = vld [vmem:[%s5 + $0xe8] sm:$0xff]
    %v1511 = vld [vmem:[%s5 + $0xf0] sm:$0xff]
    %v1512 = vld [vmem:[%s5 + $0xf8] sm:$0xff]
    %v1513 = vld [vmem:[%s5 + $0x100] sm:$0xff]
    %v1514 = vld [vmem:[%s5 + $0x108] sm:$0xff]
    %v1515 = vld [vmem:[%s5 + $0x110] sm:$0xff]
    %v1516 = vld [vmem:[%s5 + $0x118] sm:$0xff]
    %v1517 = vld [vmem:[%s5 + $0x120] sm:$0xff]
    %v1518 = vld [vmem:[%s5 + $0x128] sm:$0xff]
    %v1519 = vld [vmem:[%s5 + $0x130] sm:$0xff]
    %v1520 = vld [vmem:[%s5 + $0x138] sm:$0xff]
    %v1521 = vld [vmem:[%s5 + $0x140] sm:$0xff]
    %v1522 = vld [vmem:[%s5 + $0x148] sm:$0xff]
    %v1523 = vld [vmem:[%s5 + $0x150] sm:$0xff]
    %v1524 = vld [vmem:[%s5 + $0x158] sm:$0xff]
    %v1525 = vld [vmem:[%s5 + $0x160] sm:$0xff]
    %v1526 = vld [vmem:[%s5 + $0x168] sm:$0xff]
    %v1527 = vld [vmem:[%s5 + $0x170] sm:$0xff]
    %v1528 = vld [vmem:[%s5 + $0x178] sm:$0xff]
    %v1529 = vld [vmem:[%s5 + $0x180] sm:$0xff]
    %v1530 = vld [vmem:[%s5 + $0x188] sm:$0xff]
    %v1531 = vld [vmem:[%s5 + $0x190] sm:$0xff]
    %v1532 = vld [vmem:[%s5 + $0x198] sm:$0xff]
    %v1533 = vld [vmem:[%s5 + $0x1a0] sm:$0xff]
    %v1534 = vld [vmem:[%s5 + $0x1a8] sm:$0xff]
    %v1535 = vld [vmem:[%s5 + $0x1b0] sm:$0xff]
    %v1536 = vld [vmem:[%s5 + $0x1b8] sm:$0xff]
    %v1537 = vld [vmem:[%s5 + $0x1c0] sm:$0xff]
    %v1538 = vld [vmem:[%s5 + $0x1c8] sm:$0xff]
    %v1539 = vld [vmem:[%s5 + $0x1d0] sm:$0xff]
    %v1540 = vld [vmem:[%s5 + $0x1d8] sm:$0xff]
    %v1541 = vld [vmem:[%s5 + $0x1e0] sm:$0xff]
    %v1542 = vld [vmem:[%s5 + $0x1e8] sm:$0xff]
    %v1543 = vld [vmem:[%s5 + $0x1f0] sm:$0xff]
    %v1544 = vld [vmem:[%s5 + $0x1f8] sm:$0xff]
    %v1545 = vld [vmem:[%s6] sm:$0xf]
    %v1547 = vlaneseq
    %v1548 = vshrl.u32 %v1547, 7
    %v1549 = vsub.s32 0, %v1548
    %v1550 = vrot.slane %v1545, %v1549
    %v1551 = vlaneseq
    %v1552 = vshrl.u32 %v1551, 7
    %v1553 = vsub.s32 1, %v1552
    %v1554 = vrot.slane %v1545, %v1553
    %v1555 = vlaneseq
    %v1556 = vshrl.u32 %v1555, 7
    %v1557 = vsub.s32 2, %v1556
    %v1558 = vrot.slane %v1545, %v1557
    %v1559 = vlaneseq
    %v1560 = vshrl.u32 %v1559, 7
    %v1561 = vsub.s32 3, %v1560
    %v1562 = vrot.slane %v1545, %v1561
    %v1567 = vld [vmem:[%s7] sm:$0xf]
    %v1568 = vld [vmem:[%s7 + $0x4] sm:$0xf]
    %v1569 = vld [vmem:[%s7 + $0x8] sm:$0xf]
    %v1570 = vld [vmem:[%s7 + $0xc] sm:$0xf]
    %v1571 = vld [vmem:[%s7 + $0x10] sm:$0xf]
    %v1572 = vld [vmem:[%s7 + $0x14] sm:$0xf]
    %v1573 = vld [vmem:[%s7 + $0x18] sm:$0xf]
    %v1574 = vld [vmem:[%s7 + $0x1c] sm:$0xf]
    %v1575 = vld [vmem:[%s7 + $0x20] sm:$0xf]
    %v1576 = vld [vmem:[%s7 + $0x24] sm:$0xf]
    %v1577 = vld [vmem:[%s7 + $0x28] sm:$0xf]
    %v1578 = vld [vmem:[%s7 + $0x2c] sm:$0xf]
    %v1579 = vld [vmem:[%s7 + $0x30] sm:$0xf]
    %v1580 = vld [vmem:[%s7 + $0x34] sm:$0xf]
    %v1581 = vld [vmem:[%s7 + $0x38] sm:$0xf]
    %v1582 = vld [vmem:[%s7 + $0x3c] sm:$0xf]
    %v1583 = vld [vmem:[%s7 + $0x40] sm:$0xf]
    %v1584 = vld [vmem:[%s7 + $0x44] sm:$0xf]
    %v1585 = vld [vmem:[%s7 + $0x48] sm:$0xf]
    %v1586 = vld [vmem:[%s7 + $0x4c] sm:$0xf]
    %v1587 = vld [vmem:[%s7 + $0x50] sm:$0xf]
    %v1588 = vld [vmem:[%s7 + $0x54] sm:$0xf]
    %v1589 = vld [vmem:[%s7 + $0x58] sm:$0xf]
    %v1590 = vld [vmem:[%s7 + $0x5c] sm:$0xf]
    %v1591 = vld [vmem:[%s7 + $0x60] sm:$0xf]
    %v1592 = vld [vmem:[%s7 + $0x64] sm:$0xf]
    %v1593 = vld [vmem:[%s7 + $0x68] sm:$0xf]
    %v1594 = vld [vmem:[%s7 + $0x6c] sm:$0xf]
    %v1595 = vld [vmem:[%s7 + $0x70] sm:$0xf]
    %v1596 = vld [vmem:[%s7 + $0x74] sm:$0xf]
    %v1597 = vld [vmem:[%s7 + $0x78] sm:$0xf]
    %v1598 = vld [vmem:[%s7 + $0x7c] sm:$0xf]
    %v1599 = vld [vmem:[%s8] sm:$0x1]
    %v1601 = vlaneseq
    %v1602 = vshrl.u32 %v1601, 7
    %v1603 = vsub.s32 0, %v1602
    %v1604 = vrot.slane %v1599, %v1603
    %v1606 = vld [vmem:[%s9] sm:$0xf]
    %v1607 = vld [vmem:[%s9 + $0x4] sm:$0xf]
    %v1608 = vld [vmem:[%s9 + $0x8] sm:$0xf]
    %v1609 = vld [vmem:[%s9 + $0xc] sm:$0xf]
    %v1610 = vld [vmem:[%s9 + $0x10] sm:$0xf]
    %v1611 = vld [vmem:[%s9 + $0x14] sm:$0xf]
    %v1612 = vld [vmem:[%s9 + $0x18] sm:$0xf]
    %v1613 = vld [vmem:[%s9 + $0x1c] sm:$0xf]
    %v1614 = vld [vmem:[%s9 + $0x20] sm:$0xf]
    %v1615 = vld [vmem:[%s9 + $0x24] sm:$0xf]
    %v1616 = vld [vmem:[%s9 + $0x28] sm:$0xf]
    %v1617 = vld [vmem:[%s9 + $0x2c] sm:$0xf]
    %v1618 = vld [vmem:[%s9 + $0x30] sm:$0xf]
    %v1619 = vld [vmem:[%s9 + $0x34] sm:$0xf]
    %v1620 = vld [vmem:[%s9 + $0x38] sm:$0xf]
    %v1621 = vld [vmem:[%s9 + $0x3c] sm:$0xf]
    %v1622 = vld [vmem:[%s10] sm:$0x1]
    %v1624 = vlaneseq
    %v1625 = vshrl.u32 %v1624, 7
    %v1626 = vsub.s32 0, %v1625
    %v1627 = vrot.slane %v1622, %v1626
    %vm1629 = vcmp.eq.s32.totalorder %v1389, 1
    %v1630 = vsel %vm1629, 1.0, 0.0
    %v1631 = vpack.c.bf16 %v1630, %v1630
    %v1632 = vpack.c.bf16 %v1385, %v1385
    %v1697 = vunpack.c.l.b16 %v1481
    %v1698 = vunpack.c.h.b16 %v1481
    %v1699 = vunpack.c.l.b16 %v1482
    %v1700 = vunpack.c.h.b16 %v1482
    %v1701 = vunpack.c.l.b16 %v1483
    %v1702 = vunpack.c.h.b16 %v1483
    %v1703 = vunpack.c.l.b16 %v1484
    %v1704 = vunpack.c.h.b16 %v1484
    %v1705 = vunpack.c.l.b16 %v1485
    %v1706 = vunpack.c.h.b16 %v1485
    %v1707 = vunpack.c.l.b16 %v1486
    %v1708 = vunpack.c.h.b16 %v1486
    %v1709 = vunpack.c.l.b16 %v1487
    %v1710 = vunpack.c.h.b16 %v1487
    %v1711 = vunpack.c.l.b16 %v1488
    %v1712 = vunpack.c.h.b16 %v1488
    %v1713 = vunpack.c.l.b16 %v1489
    %v1714 = vunpack.c.h.b16 %v1489
    %v1715 = vunpack.c.l.b16 %v1490
    %v1716 = vunpack.c.h.b16 %v1490
    %v1717 = vunpack.c.l.b16 %v1491
    %v1718 = vunpack.c.h.b16 %v1491
    %v1719 = vunpack.c.l.b16 %v1492
    %v1720 = vunpack.c.h.b16 %v1492
    %v1721 = vunpack.c.l.b16 %v1493
    %v1722 = vunpack.c.h.b16 %v1493
    %v1723 = vunpack.c.l.b16 %v1494
    %v1724 = vunpack.c.h.b16 %v1494
    %v1725 = vunpack.c.l.b16 %v1495
    %v1726 = vunpack.c.h.b16 %v1495
    %v1727 = vunpack.c.l.b16 %v1496
    %v1728 = vunpack.c.h.b16 %v1496
    %v1729 = vunpack.c.l.b16 %v1497
    %v1730 = vunpack.c.h.b16 %v1497
    %v1731 = vunpack.c.l.b16 %v1498
    %v1732 = vunpack.c.h.b16 %v1498
    %v1733 = vunpack.c.l.b16 %v1499
    %v1734 = vunpack.c.h.b16 %v1499
    %v1735 = vunpack.c.l.b16 %v1500
    %v1736 = vunpack.c.h.b16 %v1500
    %v1737 = vunpack.c.l.b16 %v1501
    %v1738 = vunpack.c.h.b16 %v1501
    %v1739 = vunpack.c.l.b16 %v1502
    %v1740 = vunpack.c.h.b16 %v1502
    %v1741 = vunpack.c.l.b16 %v1503
    %v1742 = vunpack.c.h.b16 %v1503
    %v1743 = vunpack.c.l.b16 %v1504
    %v1744 = vunpack.c.h.b16 %v1504
    %v1745 = vunpack.c.l.b16 %v1505
    %v1746 = vunpack.c.h.b16 %v1505
    %v1747 = vunpack.c.l.b16 %v1506
    %v1748 = vunpack.c.h.b16 %v1506
    %v1749 = vunpack.c.l.b16 %v1507
    %v1750 = vunpack.c.h.b16 %v1507
    %v1751 = vunpack.c.l.b16 %v1508
    %v1752 = vunpack.c.h.b16 %v1508
    %v1753 = vunpack.c.l.b16 %v1509
    %v1754 = vunpack.c.h.b16 %v1509
    %v1755 = vunpack.c.l.b16 %v1510
    %v1756 = vunpack.c.h.b16 %v1510
    %v1757 = vunpack.c.l.b16 %v1511
    %v1758 = vunpack.c.h.b16 %v1511
    %v1759 = vunpack.c.l.b16 %v1512
    %v1760 = vunpack.c.h.b16 %v1512
    %v1761 = vunpack.c.l.b16 %v1513
    %v1762 = vunpack.c.h.b16 %v1513
    %v1763 = vunpack.c.l.b16 %v1514
    %v1764 = vunpack.c.h.b16 %v1514
    %v1765 = vunpack.c.l.b16 %v1515
    %v1766 = vunpack.c.h.b16 %v1515
    %v1767 = vunpack.c.l.b16 %v1516
    %v1768 = vunpack.c.h.b16 %v1516
    %v1769 = vunpack.c.l.b16 %v1517
    %v1770 = vunpack.c.h.b16 %v1517
    %v1771 = vunpack.c.l.b16 %v1518
    %v1772 = vunpack.c.h.b16 %v1518
    %v1773 = vunpack.c.l.b16 %v1519
    %v1774 = vunpack.c.h.b16 %v1519
    %v1775 = vunpack.c.l.b16 %v1520
    %v1776 = vunpack.c.h.b16 %v1520
    %v1777 = vunpack.c.l.b16 %v1521
    %v1778 = vunpack.c.h.b16 %v1521
    %v1779 = vunpack.c.l.b16 %v1522
    %v1780 = vunpack.c.h.b16 %v1522
    %v1781 = vunpack.c.l.b16 %v1523
    %v1782 = vunpack.c.h.b16 %v1523
    %v1783 = vunpack.c.l.b16 %v1524
    %v1784 = vunpack.c.h.b16 %v1524
    %v1785 = vunpack.c.l.b16 %v1525
    %v1786 = vunpack.c.h.b16 %v1525
    %v1787 = vunpack.c.l.b16 %v1526
    %v1788 = vunpack.c.h.b16 %v1526
    %v1789 = vunpack.c.l.b16 %v1527
    %v1790 = vunpack.c.h.b16 %v1527
    %v1791 = vunpack.c.l.b16 %v1528
    %v1792 = vunpack.c.h.b16 %v1528
    %v1793 = vunpack.c.l.b16 %v1529
    %v1794 = vunpack.c.h.b16 %v1529
    %v1795 = vunpack.c.l.b16 %v1530
    %v1796 = vunpack.c.h.b16 %v1530
    %v1797 = vunpack.c.l.b16 %v1531
    %v1798 = vunpack.c.h.b16 %v1531
    %v1799 = vunpack.c.l.b16 %v1532
    %v1800 = vunpack.c.h.b16 %v1532
    %v1801 = vunpack.c.l.b16 %v1533
    %v1802 = vunpack.c.h.b16 %v1533
    %v1803 = vunpack.c.l.b16 %v1534
    %v1804 = vunpack.c.h.b16 %v1534
    %v1805 = vunpack.c.l.b16 %v1535
    %v1806 = vunpack.c.h.b16 %v1535
    %v1807 = vunpack.c.l.b16 %v1536
    %v1808 = vunpack.c.h.b16 %v1536
    %v1809 = vunpack.c.l.b16 %v1537
    %v1810 = vunpack.c.h.b16 %v1537
    %v1811 = vunpack.c.l.b16 %v1538
    %v1812 = vunpack.c.h.b16 %v1538
    %v1813 = vunpack.c.l.b16 %v1539
    %v1814 = vunpack.c.h.b16 %v1539
    %v1815 = vunpack.c.l.b16 %v1540
    %v1816 = vunpack.c.h.b16 %v1540
    %v1817 = vunpack.c.l.b16 %v1541
    %v1818 = vunpack.c.h.b16 %v1541
    %v1819 = vunpack.c.l.b16 %v1542
    %v1820 = vunpack.c.h.b16 %v1542
    %v1821 = vunpack.c.l.b16 %v1543
    %v1822 = vunpack.c.h.b16 %v1543
    %v1823 = vunpack.c.l.b16 %v1544
    %v1824 = vunpack.c.h.b16 %v1544
    %v1825 = vpack.c.b16 %v1701, %v1697
    %v1826 = vpack.c.b16 %v1702, %v1698
    %v1827 = vpack.c.b16 %v1703, %v1699
    %v1828 = vpack.c.b16 %v1704, %v1700
    %v1829 = vpack.c.b16 %v1709, %v1705
    %v1830 = vpack.c.b16 %v1710, %v1706
    %v1831 = vpack.c.b16 %v1711, %v1707
    %v1832 = vpack.c.b16 %v1712, %v1708
    %v1833 = vpack.c.b16 %v1717, %v1713
    %v1834 = vpack.c.b16 %v1718, %v1714
    %v1835 = vpack.c.b16 %v1719, %v1715
    %v1836 = vpack.c.b16 %v1720, %v1716
    %v1837 = vpack.c.b16 %v1725, %v1721
    %v1838 = vpack.c.b16 %v1726, %v1722
    %v1839 = vpack.c.b16 %v1727, %v1723
    %v1840 = vpack.c.b16 %v1728, %v1724
    %v1841 = vpack.c.b16 %v1733, %v1729
    %v1842 = vpack.c.b16 %v1734, %v1730
    %v1843 = vpack.c.b16 %v1735, %v1731
    %v1844 = vpack.c.b16 %v1736, %v1732
    %v1845 = vpack.c.b16 %v1741, %v1737
    %v1846 = vpack.c.b16 %v1742, %v1738
    %v1847 = vpack.c.b16 %v1743, %v1739
    %v1848 = vpack.c.b16 %v1744, %v1740
    %v1849 = vpack.c.b16 %v1749, %v1745
    %v1850 = vpack.c.b16 %v1750, %v1746
    %v1851 = vpack.c.b16 %v1751, %v1747
    %v1852 = vpack.c.b16 %v1752, %v1748
    %v1853 = vpack.c.b16 %v1757, %v1753
    %v1854 = vpack.c.b16 %v1758, %v1754
    %v1855 = vpack.c.b16 %v1759, %v1755
    %v1856 = vpack.c.b16 %v1760, %v1756
    %v1857 = vpack.c.b16 %v1765, %v1761
    %v1858 = vpack.c.b16 %v1766, %v1762
    %v1859 = vpack.c.b16 %v1767, %v1763
    %v1860 = vpack.c.b16 %v1768, %v1764
    %v1861 = vpack.c.b16 %v1773, %v1769
    %v1862 = vpack.c.b16 %v1774, %v1770
    %v1863 = vpack.c.b16 %v1775, %v1771
    %v1864 = vpack.c.b16 %v1776, %v1772
    %v1865 = vpack.c.b16 %v1781, %v1777
    %v1866 = vpack.c.b16 %v1782, %v1778
    %v1867 = vpack.c.b16 %v1783, %v1779
    %v1868 = vpack.c.b16 %v1784, %v1780
    %v1869 = vpack.c.b16 %v1789, %v1785
    %v1870 = vpack.c.b16 %v1790, %v1786
    %v1871 = vpack.c.b16 %v1791, %v1787
    %v1872 = vpack.c.b16 %v1792, %v1788
    %v1873 = vpack.c.b16 %v1797, %v1793
    %v1874 = vpack.c.b16 %v1798, %v1794
    %v1875 = vpack.c.b16 %v1799, %v1795
    %v1876 = vpack.c.b16 %v1800, %v1796
    %v1877 = vpack.c.b16 %v1805, %v1801
    %v1878 = vpack.c.b16 %v1806, %v1802
    %v1879 = vpack.c.b16 %v1807, %v1803
    %v1880 = vpack.c.b16 %v1808, %v1804
    %v1881 = vpack.c.b16 %v1813, %v1809
    %v1882 = vpack.c.b16 %v1814, %v1810
    %v1883 = vpack.c.b16 %v1815, %v1811
    %v1884 = vpack.c.b16 %v1816, %v1812
    %v1885 = vpack.c.b16 %v1821, %v1817
    %v1886 = vpack.c.b16 %v1822, %v1818
    %v1887 = vpack.c.b16 %v1823, %v1819
    %v1888 = vpack.c.b16 %v1824, %v1820
    %1953 = vmatprep.subr.bf16.mxu0 %v1826
    %1954 = vmatpush1.bf16.msra.mxu0 %v1825
    %1955 = vmatprep.subr.bf16.mxu0 %v1830
    %1956 = vmatpush1.bf16.msra.mxu0 %v1829
    %1957 = vmatprep.subr.bf16.mxu0 %v1834
    %1958 = vmatpush1.bf16.msra.mxu0 %v1833
    %1959 = vmatprep.subr.bf16.mxu0 %v1838
    %1960 = vmatpush1.bf16.msra.mxu0 %v1837
    %1961 = vmatprep.subr.bf16.mxu0 %v1842
    %1962 = vmatpush1.bf16.msra.mxu0 %v1841
    %1963 = vmatprep.subr.bf16.mxu0 %v1846
    %1964 = vmatpush1.bf16.msra.mxu0 %v1845
    %1965 = vmatprep.subr.bf16.mxu0 %v1850
    %1966 = vmatpush1.bf16.msra.mxu0 %v1849
    %1967 = vmatprep.subr.bf16.mxu0 %v1854
    %1968 = vmatpush1.bf16.msra.mxu0 %v1853
    %1969 = vmatprep.subr.bf16.mxu0 %v1858
    %1970 = vmatpush1.bf16.msra.mxu0 %v1857
    %1971 = vmatprep.subr.bf16.mxu0 %v1862
    %1972 = vmatpush1.bf16.msra.mxu0 %v1861
    %1973 = vmatprep.subr.bf16.mxu0 %v1866
    %1974 = vmatpush1.bf16.msra.mxu0 %v1865
    %1975 = vmatprep.subr.bf16.mxu0 %v1870
    %1976 = vmatpush1.bf16.msra.mxu0 %v1869
    %1977 = vmatprep.subr.bf16.mxu0 %v1874
    %1978 = vmatpush1.bf16.msra.mxu0 %v1873
    %1979 = vmatprep.subr.bf16.mxu0 %v1878
    %1980 = vmatpush1.bf16.msra.mxu0 %v1877
    %1981 = vmatprep.subr.bf16.mxu0 %v1882
    %1982 = vmatpush1.bf16.msra.mxu0 %v1881
    %1983 = vmatprep.subr.bf16.mxu0 %v1886
    %1984 = vmatpush1.bf16.msra.mxu0 %v1885
    %1985 = vmatprep.mubr.bf16.mxu0 %v1632
    %1986 = vmatmul.mubr.bf16.gmra.mrb[0].mxu0 %v1631
    %v1987 = vpop.f32.mrb[0].mxu0
    %v1988 = vadd.f32 %v1550, %v1987
    %v1989 = vpop.f32.mrb[0].mxu0
    %v1990 = vadd.f32 %v1554, %v1989
    %v1991 = vpop.f32.mrb[0].mxu0
    %v1992 = vpop.f32.mrb[0].mxu0
    %1993 = vdwg.mxu0
    %1994 = vmatprep.subr.bf16.mxu0 %v1828
    %1995 = vmatpush1.bf16.msra.mxu0 %v1827
    %1996 = vmatprep.subr.bf16.mxu0 %v1832
    %1997 = vmatpush1.bf16.msra.mxu0 %v1831
    %1998 = vmatprep.subr.bf16.mxu0 %v1836
    %1999 = vmatpush1.bf16.msra.mxu0 %v1835
    %2000 = vmatprep.subr.bf16.mxu0 %v1840
    %2001 = vmatpush1.bf16.msra.mxu0 %v1839
    %2002 = vmatprep.subr.bf16.mxu0 %v1844
    %2003 = vmatpush1.bf16.msra.mxu0 %v1843
    %2004 = vmatprep.subr.bf16.mxu0 %v1848
    %2005 = vmatpush1.bf16.msra.mxu0 %v1847
    %2006 = vmatprep.subr.bf16.mxu0 %v1852
    %2007 = vmatpush1.bf16.msra.mxu0 %v1851
    %2008 = vmatprep.subr.bf16.mxu0 %v1856
    %2009 = vmatpush1.bf16.msra.mxu0 %v1855
    %2010 = vmatprep.subr.bf16.mxu0 %v1860
    %2011 = vmatpush1.bf16.msra.mxu0 %v1859
    %2012 = vmatprep.subr.bf16.mxu0 %v1864
    %2013 = vmatpush1.bf16.msra.mxu0 %v1863
    %2014 = vmatprep.subr.bf16.mxu0 %v1868
    %2015 = vmatpush1.bf16.msra.mxu0 %v1867
    %2016 = vmatprep.subr.bf16.mxu0 %v1872
    %2017 = vmatpush1.bf16.msra.mxu0 %v1871
    %2018 = vmatprep.subr.bf16.mxu0 %v1876
    %2019 = vmatpush1.bf16.msra.mxu0 %v1875
    %2020 = vmatprep.subr.bf16.mxu0 %v1880
    %2021 = vmatpush1.bf16.msra.mxu0 %v1879
    %2022 = vmatprep.subr.bf16.mxu0 %v1884
    %2023 = vmatpush1.bf16.msra.mxu0 %v1883
    %2024 = vmatprep.subr.bf16.mxu0 %v1888
    %2025 = vmatpush1.bf16.msra.mxu0 %v1887
    %2026 = vmatprep.mubr.bf16.mxu0 %v1632
    %2027 = vmatmul.mubr.bf16.gmra.mrb[0].mxu0 %v1631
    %v2028 = vpop.f32.mrb[0].mxu0
    %v2029 = vadd.f32 %v1558, %v2028
    %v2030 = vpop.f32.mrb[0].mxu0
    %v2031 = vadd.f32 %v1562, %v2030
    %v2032 = vpop.f32.mrb[0].mxu0
    %v2033 = vpop.f32.mrb[0].mxu0
    %2034 = vdwg.mxu0
    %v2035 = vxor.u32 %v1988, 2147483648
    %v2036 = vmul.f32 %v2035, 1.442695
    %v2037 = vpow.pop %v2036
    %v2038 = vadd.f32 %v2037, 1.0
    %v2039 = vrcp.pop %v2038
    %v2040 = vmul.f32 1.0, %v2039
    %v2041 = vxor.u32 %v1990, 2147483648
    %v2042 = vmul.f32 %v2041, 1.442695
    %v2043 = vpow.pop %v2042
    %v2044 = vadd.f32 %v2043, 1.0
    %v2045 = vrcp.pop %v2044
    %v2046 = vmul.f32 1.0, %v2045
    %v2047 = vmul.f32 %v2040, %v2031
    %v2048 = vadd.f32 %v2029, %v2047
    %v2049 = vtanh.pop %v2048
    %v2050 = vsub.f32 1.0, %v2046
    %v2051 = vmul.f32 %v2050, %v2049
    %v2052 = vmul.f32 %v2046, %v1385
    %v2053 = vadd.f32 %v2051, %v2052
    %v2054 = vpack.c.bf16 %v2053, %v2053
    %2055 = vmatprep.subr.bf16.mxu0 0
    %2056 = vmatpush1.bf16.xpose.msra.mxu0 %v1455
    %2057 = vmatprep.subr.bf16.mxu0 0
    %2058 = vmatpush1.bf16.xpose.msra.mxu0 %v1456
    %2059 = vmatprep.subr.bf16.mxu0 0
    %2060 = vmatpush1.bf16.xpose.msra.mxu0 %v1457
    %2061 = vmatprep.subr.bf16.mxu0 0
    %2062 = vmatpush1.bf16.xpose.msra.mxu0 %v1458
    %2063 = vmatprep.subr.bf16.mxu0 0
    %2064 = vmatpush1.bf16.xpose.msra.mxu0 %v1459
    %2065 = vmatprep.subr.bf16.mxu0 0
    %2066 = vmatpush1.bf16.xpose.msra.mxu0 %v1460
    %2067 = vmatprep.subr.bf16.mxu0 0
    %2068 = vmatpush1.bf16.xpose.msra.mxu0 %v1461
    %2069 = vmatprep.subr.bf16.mxu0 0
    %2070 = vmatpush1.bf16.xpose.msra.mxu0 %v1462
    %2071 = vmatprep.subr.bf16.mxu0 0
    %2072 = vmatpush1.bf16.xpose.msra.mxu0 0
    %2073 = vmatprep.subr.bf16.mxu0 0
    %2074 = vmatpush1.bf16.xpose.msra.mxu0 0
    %2075 = vmatprep.subr.bf16.mxu0 0
    %2076 = vmatpush1.bf16.xpose.msra.mxu0 0
    %2077 = vmatprep.subr.bf16.mxu0 0
    %2078 = vmatpush1.bf16.xpose.msra.mxu0 0
    %2079 = vmatprep.subr.bf16.mxu0 0
    %2080 = vmatpush1.bf16.xpose.msra.mxu0 0
    %2081 = vmatprep.subr.bf16.mxu0 0
    %2082 = vmatpush1.bf16.xpose.msra.mxu0 0
    %2083 = vmatprep.subr.bf16.mxu0 0
    %2084 = vmatpush1.bf16.xpose.msra.mxu0 0
    %2085 = vmatprep.subr.bf16.mxu0 0
    %2086 = vmatpush1.bf16.xpose.msra.mxu0 0
    %2087 = vmatprep.mubr.bf16.mxu0 0
    %2088 = vmatmul.mubr.bf16.gmra.mrb[0].mxu0 %v2054
    %v2089 = vpop.f32.mrb[0].mxu0
    %v2090 = vadd.f32 %v1480, %v2089
    %v2091 = vpop.f32.mrb[0].mxu0
    %v2092 = vpop.f32.mrb[0].mxu0
    %v2093 = vpop.f32.mrb[0].mxu0
    %2094 = vdwg.mxu0
    %2095 = vmax.xlane.f32.xlu0 %v2090
    %v2096 = vpop.xlane.xlu0 %2095
    %v2097 = vsub.f32 %v2090, %v2096
    %v2098 = vmul.f32 %v2097, 1.442695
    %v2099 = vpow.pop %v2098
    %2100 = vadd.xlane.f32.xlu0 %v2099
    %v2101 = vpop.xlane.xlu0 %2100
    %v2102 = vrcp.pop %v2101
    %v2103 = vmul.f32 %v2099, %v2102
    %v2104 = vpack.c.bf16 %v2103, %v2103
    %2105 = vmatprep.subr.bf16.mxu0 0
    %2106 = vmatpush1.bf16.msra.mxu0 %v1455
    %2107 = vmatprep.subr.bf16.mxu0 0
    %2108 = vmatpush1.bf16.msra.mxu0 %v1456
    %2109 = vmatprep.subr.bf16.mxu0 0
    %2110 = vmatpush1.bf16.msra.mxu0 %v1457
    %2111 = vmatprep.subr.bf16.mxu0 0
    %2112 = vmatpush1.bf16.msra.mxu0 %v1458
    %2113 = vmatprep.subr.bf16.mxu0 0
    %2114 = vmatpush1.bf16.msra.mxu0 %v1459
    %2115 = vmatprep.subr.bf16.mxu0 0
    %2116 = vmatpush1.bf16.msra.mxu0 %v1460
    %2117 = vmatprep.subr.bf16.mxu0 0
    %2118 = vmatpush1.bf16.msra.mxu0 %v1461
    %2119 = vmatprep.subr.bf16.mxu0 0
    %2120 = vmatpush1.bf16.msra.mxu0 %v1462
    %2121 = vmatprep.subr.bf16.mxu0 0
    %2122 = vmatpush1.bf16.msra.mxu0 0
    %2123 = vmatprep.subr.bf16.mxu0 0
    %2124 = vmatpush1.bf16.msra.mxu0 0
    %2125 = vmatprep.subr.bf16.mxu0 0
    %2126 = vmatpush1.bf16.msra.mxu0 0
    %2127 = vmatprep.subr.bf16.mxu0 0
    %2128 = vmatpush1.bf16.msra.mxu0 0
    %2129 = vmatprep.subr.bf16.mxu0 0
    %2130 = vmatpush1.bf16.msra.mxu0 0
    %2131 = vmatprep.subr.bf16.mxu0 0
    %2132 = vmatpush1.bf16.msra.mxu0 0
    %2133 = vmatprep.subr.bf16.mxu0 0
    %2134 = vmatpush1.bf16.msra.mxu0 0
    %2135 = vmatprep.subr.bf16.mxu0 0
    %2136 = vmatpush1.bf16.msra.mxu0 0
    %2137 = vmatprep.mubr.bf16.mxu0 0
    %2138 = vmatmul.mubr.bf16.gmra.mrb[0].mxu0 %v2104
    %v2139 = vpop.f32.mrb[0].mxu0
    %v2140 = vadd.f32 0.0, %v2139
    %v2141 = vpop.f32.mrb[0].mxu0
    %v2142 = vpop.f32.mrb[0].mxu0
    %v2143 = vpop.f32.mrb[0].mxu0
    %2144 = vdwg.mxu0
    %v2145 = vpack.c.bf16 %v2140, %v2140
    %v2178 = vunpack.c.l.b16 %v1567
    %v2179 = vunpack.c.l.b16 %v1568
    %v2180 = vunpack.c.l.b16 %v1569
    %v2181 = vunpack.c.l.b16 %v1570
    %v2182 = vunpack.c.l.b16 %v1571
    %v2183 = vunpack.c.l.b16 %v1572
    %v2184 = vunpack.c.l.b16 %v1573
    %v2185 = vunpack.c.l.b16 %v1574
    %v2186 = vunpack.c.l.b16 %v1575
    %v2187 = vunpack.c.l.b16 %v1576
    %v2188 = vunpack.c.l.b16 %v1577
    %v2189 = vunpack.c.l.b16 %v1578
    %v2190 = vunpack.c.l.b16 %v1579
    %v2191 = vunpack.c.l.b16 %v1580
    %v2192 = vunpack.c.l.b16 %v1581
    %v2193 = vunpack.c.l.b16 %v1582
    %v2194 = vunpack.c.l.b16 %v1583
    %v2195 = vunpack.c.l.b16 %v1584
    %v2196 = vunpack.c.l.b16 %v1585
    %v2197 = vunpack.c.l.b16 %v1586
    %v2198 = vunpack.c.l.b16 %v1587
    %v2199 = vunpack.c.l.b16 %v1588
    %v2200 = vunpack.c.l.b16 %v1589
    %v2201 = vunpack.c.l.b16 %v1590
    %v2202 = vunpack.c.l.b16 %v1591
    %v2203 = vunpack.c.l.b16 %v1592
    %v2204 = vunpack.c.l.b16 %v1593
    %v2205 = vunpack.c.l.b16 %v1594
    %v2206 = vunpack.c.l.b16 %v1595
    %v2207 = vunpack.c.l.b16 %v1596
    %v2208 = vunpack.c.l.b16 %v1597
    %v2209 = vunpack.c.l.b16 %v1598
    %v2210 = vpack.c.b16 %v2179, %v2178
    %v2211 = vpack.c.b16 %v2181, %v2180
    %v2212 = vpack.c.b16 %v2183, %v2182
    %v2213 = vpack.c.b16 %v2185, %v2184
    %v2214 = vpack.c.b16 %v2187, %v2186
    %v2215 = vpack.c.b16 %v2189, %v2188
    %v2216 = vpack.c.b16 %v2191, %v2190
    %v2217 = vpack.c.b16 %v2193, %v2192
    %v2218 = vpack.c.b16 %v2195, %v2194
    %v2219 = vpack.c.b16 %v2197, %v2196
    %v2220 = vpack.c.b16 %v2199, %v2198
    %v2221 = vpack.c.b16 %v2201, %v2200
    %v2222 = vpack.c.b16 %v2203, %v2202
    %v2223 = vpack.c.b16 %v2205, %v2204
    %v2224 = vpack.c.b16 %v2207, %v2206
    %v2225 = vpack.c.b16 %v2209, %v2208
    %2242 = vmatprep.subr.bf16.mxu0 0
    %2243 = vmatpush1.bf16.msra.mxu0 %v2210
    %2244 = vmatprep.subr.bf16.mxu0 0
    %2245 = vmatpush1.bf16.msra.mxu0 %v2211
    %2246 = vmatprep.subr.bf16.mxu0 0
    %2247 = vmatpush1.bf16.msra.mxu0 %v2212
    %2248 = vmatprep.subr.bf16.mxu0 0
    %2249 = vmatpush1.bf16.msra.mxu0 %v2213
    %2250 = vmatprep.subr.bf16.mxu0 0
    %2251 = vmatpush1.bf16.msra.mxu0 %v2214
    %2252 = vmatprep.subr.bf16.mxu0 0
    %2253 = vmatpush1.bf16.msra.mxu0 %v2215
    %2254 = vmatprep.subr.bf16.mxu0 0
    %2255 = vmatpush1.bf16.msra.mxu0 %v2216
    %2256 = vmatprep.subr.bf16.mxu0 0
    %2257 = vmatpush1.bf16.msra.mxu0 %v2217
    %2258 = vmatprep.subr.bf16.mxu0 0
    %2259 = vmatpush1.bf16.msra.mxu0 %v2218
    %2260 = vmatprep.subr.bf16.mxu0 0
    %2261 = vmatpush1.bf16.msra.mxu0 %v2219
    %2262 = vmatprep.subr.bf16.mxu0 0
    %2263 = vmatpush1.bf16.msra.mxu0 %v2220
    %2264 = vmatprep.subr.bf16.mxu0 0
    %2265 = vmatpush1.bf16.msra.mxu0 %v2221
    %2266 = vmatprep.subr.bf16.mxu0 0
    %2267 = vmatpush1.bf16.msra.mxu0 %v2222
    %2268 = vmatprep.subr.bf16.mxu0 0
    %2269 = vmatpush1.bf16.msra.mxu0 %v2223
    %2270 = vmatprep.subr.bf16.mxu0 0
    %2271 = vmatpush1.bf16.msra.mxu0 %v2224
    %2272 = vmatprep.subr.bf16.mxu0 0
    %2273 = vmatpush1.bf16.msra.mxu0 %v2225
    %2274 = vmatprep.mubr.bf16.mxu0 %v2145
    %2275 = vmatmul.mubr.bf16.gmra.mrb[0].mxu0 %v2054
    %v2276 = vpop.f32.mrb[0].mxu0
    %v2277 = vadd.f32 %v1604, %v2276
    %v2278 = vpop.f32.mrb[0].mxu0
    %v2279 = vpop.f32.mrb[0].mxu0
    %v2280 = vpop.f32.mrb[0].mxu0
    %2281 = vdwg.mxu0
    %v2282 = vtanh.pop %v2277
    %v2283 = vpack.c.bf16 %v2282, %v2282
    %v2300 = vunpack.c.l.b16 %v1606
    %v2301 = vunpack.c.l.b16 %v1607
    %v2302 = vunpack.c.l.b16 %v1608
    %v2303 = vunpack.c.l.b16 %v1609
    %v2304 = vunpack.c.l.b16 %v1610
    %v2305 = vunpack.c.l.b16 %v1611
    %v2306 = vunpack.c.l.b16 %v1612
    %v2307 = vunpack.c.l.b16 %v1613
    %v2308 = vunpack.c.l.b16 %v1614
    %v2309 = vunpack.c.l.b16 %v1615
    %v2310 = vunpack.c.l.b16 %v1616
    %v2311 = vunpack.c.l.b16 %v1617
    %v2312 = vunpack.c.l.b16 %v1618
    %v2313 = vunpack.c.l.b16 %v1619
    %v2314 = vunpack.c.l.b16 %v1620
    %v2315 = vunpack.c.l.b16 %v1621
    %v2316 = vpack.c.b16 %v2301, %v2300
    %v2317 = vpack.c.b16 %v2303, %v2302
    %v2318 = vpack.c.b16 %v2305, %v2304
    %v2319 = vpack.c.b16 %v2307, %v2306
    %v2320 = vpack.c.b16 %v2309, %v2308
    %v2321 = vpack.c.b16 %v2311, %v2310
    %v2322 = vpack.c.b16 %v2313, %v2312
    %v2323 = vpack.c.b16 %v2315, %v2314
    %2332 = vmatprep.subr.bf16.mxu0 0
    %2333 = vmatpush1.bf16.msra.mxu0 %v2316
    %2334 = vmatprep.subr.bf16.mxu0 0
    %2335 = vmatpush1.bf16.msra.mxu0 %v2317
    %2336 = vmatprep.subr.bf16.mxu0 0
    %2337 = vmatpush1.bf16.msra.mxu0 %v2318
    %2338 = vmatprep.subr.bf16.mxu0 0
    %2339 = vmatpush1.bf16.msra.mxu0 %v2319
    %2340 = vmatprep.subr.bf16.mxu0 0
    %2341 = vmatpush1.bf16.msra.mxu0 %v2320
    %2342 = vmatprep.subr.bf16.mxu0 0
    %2343 = vmatpush1.bf16.msra.mxu0 %v2321
    %2344 = vmatprep.subr.bf16.mxu0 0
    %2345 = vmatpush1.bf16.msra.mxu0 %v2322
    %2346 = vmatprep.subr.bf16.mxu0 0
    %2347 = vmatpush1.bf16.msra.mxu0 %v2323
    %2348 = vmatprep.subr.bf16.mxu0 0
    %2349 = vmatpush1.bf16.msra.mxu0 0
    %2350 = vmatprep.subr.bf16.mxu0 0
    %2351 = vmatpush1.bf16.msra.mxu0 0
    %2352 = vmatprep.subr.bf16.mxu0 0
    %2353 = vmatpush1.bf16.msra.mxu0 0
    %2354 = vmatprep.subr.bf16.mxu0 0
    %2355 = vmatpush1.bf16.msra.mxu0 0
    %2356 = vmatprep.subr.bf16.mxu0 0
    %2357 = vmatpush1.bf16.msra.mxu0 0
    %2358 = vmatprep.subr.bf16.mxu0 0
    %2359 = vmatpush1.bf16.msra.mxu0 0
    %2360 = vmatprep.subr.bf16.mxu0 0
    %2361 = vmatpush1.bf16.msra.mxu0 0
    %2362 = vmatprep.subr.bf16.mxu0 0
    %2363 = vmatpush1.bf16.msra.mxu0 0
    %2364 = vmatprep.mubr.bf16.mxu0 0
    %2365 = vmatmul.mubr.bf16.gmra.mrb[0].mxu0 %v2283
    %v2366 = vpop.f32.mrb[0].mxu0
    %v2367 = vadd.f32 %v1627, %v2366
    %v2368 = vpop.f32.mrb[0].mxu0
    %v2369 = vpop.f32.mrb[0].mxu0
    %v2370 = vpop.f32.mrb[0].mxu0
    %2371 = vdwg.mxu0
    %2372 = vmax.xlane.f32.xlu0 %v2367
    %v2373 = vpop.xlane.xlu0 %2372
    %v2374 = vsub.f32 %v2367, %v2373
    %v2375 = vmul.f32 %v2374, 1.442695
    %v2376 = vpow.pop %v2375
    %2377 = vadd.xlane.f32.xlu0 %v2376
    %v2378 = vpop.xlane.xlu0 %2377
    %v2379 = vlog2.pop %v2378
    %v2380 = vmul.f32 %v2379, 0.6931472
    %v2381 = vsub.f32 %v2374, %v2380
    %2382 = vst [vmem:[%s11] sm:$0xff] %v2381
    %2383 = vmax.xlane.f32.xlu0 %v2381
    %v2384 = vpop.xlane.xlu0 %2383
    %vm2385 = vcmp.ge.f32.partialorder %v2381, %v2384
    %v2386 = vsel %vm2385, %v1389, 128
    %v2387 = vand.u32 %v2386, 65535
    %v2388 = vshra.s32 %v2386, 16
    %v2389 = vcvt.s32.f32 %v2387
    %v2390 = vcvt.s32.f32 %v2388
    %2391 = vmin.xlane.f32.xlu0 %v2390
    %v2392 = vpop.xlane.xlu0 %2391
    %vm2393 = vcmp.eq.f32.partialorder %v2390, %v2392
    %v2394 = vsel %vm2393, %v2389, inf
    %2395 = vmin.xlane.f32.xlu0 %v2394
    %v2396 = vpop.xlane.xlu0 %2395
    %v2397 = vcvt.f32.s32 %v2396
    %v2398 = vcvt.f32.s32 %v2392
    %v2399 = vshll.u32 %v2398, 16
    %v2400 = vadd.s32 %v2399, %v2397
    %vm2401 = vcmp.eq.s32.totalorder %v1389, %v2400
    %v2402 = vsel %vm2401, 1.0, 0.0
    %v2403 = vpack.c.bf16 %v2402, %v2402
    %2404 = vmatprep.subr.bf16.mxu0 %v1826
    %2405 = vmatpush1.bf16.msra.mxu0 %v1825
    %2406 = vmatprep.subr.bf16.mxu0 %v1830
    %2407 = vmatpush1.bf16.msra.mxu0 %v1829
    %2408 = vmatprep.subr.bf16.mxu0 %v1834
    %2409 = vmatpush1.bf16.msra.mxu0 %v1833
    %2410 = vmatprep.subr.bf16.mxu0 %v1838
    %2411 = vmatpush1.bf16.msra.mxu0 %v1837
    %2412 = vmatprep.subr.bf16.mxu0 %v1842
    %2413 = vmatpush1.bf16.msra.mxu0 %v1841
    %2414 = vmatprep.subr.bf16.mxu0 %v1846
    %2415 = vmatpush1.bf16.msra.mxu0 %v1845
    %2416 = vmatprep.subr.bf16.mxu0 %v1850
    %2417 = vmatpush1.bf16.msra.mxu0 %v1849
    %2418 = vmatprep.subr.bf16.mxu0 %v1854
    %2419 = vmatpush1.bf16.msra.mxu0 %v1853
    %2420 = vmatprep.subr.bf16.mxu0 %v1858
    %2421 = vmatpush1.bf16.msra.mxu0 %v1857
    %2422 = vmatprep.subr.bf16.mxu0 %v1862
    %2423 = vmatpush1.bf16.msra.mxu0 %v1861
    %2424 = vmatprep.subr.bf16.mxu0 %v1866
    %2425 = vmatpush1.bf16.msra.mxu0 %v1865
    %2426 = vmatprep.subr.bf16.mxu0 %v1870
    %2427 = vmatpush1.bf16.msra.mxu0 %v1869
    %2428 = vmatprep.subr.bf16.mxu0 %v1874
    %2429 = vmatpush1.bf16.msra.mxu0 %v1873
    %2430 = vmatprep.subr.bf16.mxu0 %v1878
    %2431 = vmatpush1.bf16.msra.mxu0 %v1877
    %2432 = vmatprep.subr.bf16.mxu0 %v1882
    %2433 = vmatpush1.bf16.msra.mxu0 %v1881
    %2434 = vmatprep.subr.bf16.mxu0 %v1886
    %2435 = vmatpush1.bf16.msra.mxu0 %v1885
    %2436 = vmatprep.mubr.bf16.mxu0 %v2054
    %2437 = vmatmul.mubr.bf16.gmra.mrb[0].mxu0 %v2403
    %v2438 = vpop.f32.mrb[0].mxu0
    %v2439 = vadd.f32 %v1550, %v2438
    %v2440 = vpop.f32.mrb[0].mxu0
    %v2441 = vadd.f32 %v1554, %v2440
    %v2442 = vpop.f32.mrb[0].mxu0
    %v2443 = vpop.f32.mrb[0].mxu0
    %2444 = vdwg.mxu0
    %2445 = vmatprep.subr.bf16.mxu0 %v1828
    %2446 = vmatpush1.bf16.msra.mxu0 %v1827
    %2447 = vmatprep.subr.bf16.mxu0 %v1832
    %2448 = vmatpush1.bf16.msra.mxu0 %v1831
    %2449 = vmatprep.subr.bf16.mxu0 %v1836
    %2450 = vmatpush1.bf16.msra.mxu0 %v1835
    %2451 = vmatprep.subr.bf16.mxu0 %v1840
    %2452 = vmatpush1.bf16.msra.mxu0 %v1839
    %2453 = vmatprep.subr.bf16.mxu0 %v1844
    %2454 = vmatpush1.bf16.msra.mxu0 %v1843
    %2455 = vmatprep.subr.bf16.mxu0 %v1848
    %2456 = vmatpush1.bf16.msra.mxu0 %v1847
    %2457 = vmatprep.subr.bf16.mxu0 %v1852
    %2458 = vmatpush1.bf16.msra.mxu0 %v1851
    %2459 = vmatprep.subr.bf16.mxu0 %v1856
    %2460 = vmatpush1.bf16.msra.mxu0 %v1855
    %2461 = vmatprep.subr.bf16.mxu0 %v1860
    %2462 = vmatpush1.bf16.msra.mxu0 %v1859
    %2463 = vmatprep.subr.bf16.mxu0 %v1864
    %2464 = vmatpush1.bf16.msra.mxu0 %v1863
    %2465 = vmatprep.subr.bf16.mxu0 %v1868
    %2466 = vmatpush1.bf16.msra.mxu0 %v1867
    %2467 = vmatprep.subr.bf16.mxu0 %v1872
    %2468 = vmatpush1.bf16.msra.mxu0 %v1871
    %2469 = vmatprep.subr.bf16.mxu0 %v1876
    %2470 = vmatpush1.bf16.msra.mxu0 %v1875
    %2471 = vmatprep.subr.bf16.mxu0 %v1880
    %2472 = vmatpush1.bf16.msra.mxu0 %v1879
    %2473 = vmatprep.subr.bf16.mxu0 %v1884
    %2474 = vmatpush1.bf16.msra.mxu0 %v1883
    %2475 = vmatprep.subr.bf16.mxu0 %v1888
    %2476 = vmatpush1.bf16.msra.mxu0 %v1887
    %2477 = vmatprep.mubr.bf16.mxu0 %v2054
    %2478 = vmatmul.mubr.bf16.gmra.mrb[0].mxu0 %v2403
    %v2479 = vpop.f32.mrb[0].mxu0
    %v2480 = vadd.f32 %v1558, %v2479
    %v2481 = vpop.f32.mrb[0].mxu0
    %v2482 = vadd.f32 %v1562, %v2481
    %v2483 = vpop.f32.mrb[0].mxu0
    %v2484 = vpop.f32.mrb[0].mxu0
    %2485 = vdwg.mxu0
    %v2486 = vxor.u32 %v2439, 2147483648
    %v2487 = vmul.f32 %v2486, 1.442695
    %v2488 = vpow.pop %v2487
    %v2489 = vadd.f32 %v2488, 1.0
    %v2490 = vrcp.pop %v2489
    %v2491 = vmul.f32 1.0, %v2490
    %v2492 = vxor.u32 %v2441, 2147483648
    %v2493 = vmul.f32 %v2492, 1.442695
    %v2494 = vpow.pop %v2493
    %v2495 = vadd.f32 %v2494, 1.0
    %v2496 = vrcp.pop %v2495
    %v2497 = vmul.f32 1.0, %v2496
    %v2498 = vmul.f32 %v2491, %v2482
    %v2499 = vadd.f32 %v2480, %v2498
    %v2500 = vtanh.pop %v2499
    %v2501 = vsub.f32 1.0, %v2497
    %v2502 = vmul.f32 %v2501, %v2500
    %v2503 = vmul.f32 %v2497, %v2053
    %v2504 = vadd.f32 %v2502, %v2503
    %v2505 = vpack.c.bf16 %v2504, %v2504
    %2506 = vmatprep.subr.bf16.mxu0 0
    %2507 = vmatpush1.bf16.xpose.msra.mxu0 %v1455
    %2508 = vmatprep.subr.bf16.mxu0 0
    %2509 = vmatpush1.bf16.xpose.msra.mxu0 %v1456
    %2510 = vmatprep.subr.bf16.mxu0 0
    %2511 = vmatpush1.bf16.xpose.msra.mxu0 %v1457
    %2512 = vmatprep.subr.bf16.mxu0 0
    %2513 = vmatpush1.bf16.xpose.msra.mxu0 %v1458
    %2514 = vmatprep.subr.bf16.mxu0 0
    %2515 = vmatpush1.bf16.xpose.msra.mxu0 %v1459
    %2516 = vmatprep.subr.bf16.mxu0 0
    %2517 = vmatpush1.bf16.xpose.msra.mxu0 %v1460
    %2518 = vmatprep.subr.bf16.mxu0 0
    %2519 = vmatpush1.bf16.xpose.msra.mxu0 %v1461
    %2520 = vmatprep.subr.bf16.mxu0 0
    %2521 = vmatpush1.bf16.xpose.msra.mxu0 %v1462
    %2522 = vmatprep.subr.bf16.mxu0 0
    %2523 = vmatpush1.bf16.xpose.msra.mxu0 0
    %2524 = vmatprep.subr.bf16.mxu0 0
    %2525 = vmatpush1.bf16.xpose.msra.mxu0 0
    %2526 = vmatprep.subr.bf16.mxu0 0
    %2527 = vmatpush1.bf16.xpose.msra.mxu0 0
    %2528 = vmatprep.subr.bf16.mxu0 0
    %2529 = vmatpush1.bf16.xpose.msra.mxu0 0
    %2530 = vmatprep.subr.bf16.mxu0 0
    %2531 = vmatpush1.bf16.xpose.msra.mxu0 0
    %2532 = vmatprep.subr.bf16.mxu0 0
    %2533 = vmatpush1.bf16.xpose.msra.mxu0 0
    %2534 = vmatprep.subr.bf16.mxu0 0
    %2535 = vmatpush1.bf16.xpose.msra.mxu0 0
    %2536 = vmatprep.subr.bf16.mxu0 0
    %2537 = vmatpush1.bf16.xpose.msra.mxu0 0
    %2538 = vmatprep.mubr.bf16.mxu0 0
    %2539 = vmatmul.mubr.bf16.gmra.mrb[0].mxu0 %v2505
    %v2540 = vpop.f32.mrb[0].mxu0
    %v2541 = vadd.f32 %v1480, %v2540
    %v2542 = vpop.f32.mrb[0].mxu0
    %v2543 = vpop.f32.mrb[0].mxu0
    %v2544 = vpop.f32.mrb[0].mxu0
    %2545 = vdwg.mxu0
    %2546 = vmax.xlane.f32.xlu0 %v2541
    %v2547 = vpop.xlane.xlu0 %2546
    %v2548 = vsub.f32 %v2541, %v2547
    %v2549 = vmul.f32 %v2548, 1.442695
    %v2550 = vpow.pop %v2549
    %2551 = vadd.xlane.f32.xlu0 %v2550
    %v2552 = vpop.xlane.xlu0 %2551
    %v2553 = vrcp.pop %v2552
    %v2554 = vmul.f32 %v2550, %v2553
    %v2555 = vpack.c.bf16 %v2554, %v2554
    %2556 = vmatprep.subr.bf16.mxu0 0
    %2557 = vmatpush1.bf16.msra.mxu0 %v1455
    %2558 = vmatprep.subr.bf16.mxu0 0
    %2559 = vmatpush1.bf16.msra.mxu0 %v1456
    %2560 = vmatprep.subr.bf16.mxu0 0
    %2561 = vmatpush1.bf16.msra.mxu0 %v1457
    %2562 = vmatprep.subr.bf16.mxu0 0
    %2563 = vmatpush1.bf16.msra.mxu0 %v1458
    %2564 = vmatprep.subr.bf16.mxu0 0
    %2565 = vmatpush1.bf16.msra.mxu0 %v1459
    %2566 = vmatprep.subr.bf16.mxu0 0
    %2567 = vmatpush1.bf16.msra.mxu0 %v1460
    %2568 = vmatprep.subr.bf16.mxu0 0
    %2569 = vmatpush1.bf16.msra.mxu0 %v1461
    %2570 = vmatprep.subr.bf16.mxu0 0
    %2571 = vmatpush1.bf16.msra.mxu0 %v1462
    %2572 = vmatprep.subr.bf16.mxu0 0
    %2573 = vmatpush1.bf16.msra.mxu0 0
    %2574 = vmatprep.subr.bf16.mxu0 0
    %2575 = vmatpush1.bf16.msra.mxu0 0
    %2576 = vmatprep.subr.bf16.mxu0 0
    %2577 = vmatpush1.bf16.msra.mxu0 0
    %2578 = vmatprep.subr.bf16.mxu0 0
    %2579 = vmatpush1.bf16.msra.mxu0 0
    %2580 = vmatprep.subr.bf16.mxu0 0
    %2581 = vmatpush1.bf16.msra.mxu0 0
    %2582 = vmatprep.subr.bf16.mxu0 0
    %2583 = vmatpush1.bf16.msra.mxu0 0
    %2584 = vmatprep.subr.bf16.mxu0 0
    %2585 = vmatpush1.bf16.msra.mxu0 0
    %2586 = vmatprep.subr.bf16.mxu0 0
    %2587 = vmatpush1.bf16.msra.mxu0 0
    %2588 = vmatprep.mubr.bf16.mxu0 0
    %2589 = vmatmul.mubr.bf16.gmra.mrb[0].mxu0 %v2555
    %v2590 = vpop.f32.mrb[0].mxu0
    %v2591 = vadd.f32 0.0, %v2590
    %v2592 = vpop.f32.mrb[0].mxu0
    %v2593 = vpop.f32.mrb[0].mxu0
    %v2594 = vpop.f32.mrb[0].mxu0
    %2595 = vdwg.mxu0
    %v2596 = vpack.c.bf16 %v2591, %v2591
    %2597 = vmatprep.subr.bf16.mxu0 0
    %2598 = vmatpush1.bf16.msra.mxu0 %v2210
    %2599 = vmatprep.subr.bf16.mxu0 0
    %2600 = vmatpush1.bf16.msra.mxu0 %v2211
    %2601 = vmatprep.subr.bf16.mxu0 0
    %2602 = vmatpush1.bf16.msra.mxu0 %v2212
    %2603 = vmatprep.subr.bf16.mxu0 0
    %2604 = vmatpush1.bf16.msra.mxu0 %v2213
    %2605 = vmatprep.subr.bf16.mxu0 0
    %2606 = vmatpush1.bf16.msra.mxu0 %v2214
    %2607 = vmatprep.subr.bf16.mxu0 0
    %2608 = vmatpush1.bf16.msra.mxu0 %v2215
    %2609 = vmatprep.subr.bf16.mxu0 0
    %2610 = vmatpush1.bf16.msra.mxu0 %v2216
    %2611 = vmatprep.subr.bf16.mxu0 0
    %2612 = vmatpush1.bf16.msra.mxu0 %v2217
    %2613 = vmatprep.subr.bf16.mxu0 0
    %2614 = vmatpush1.bf16.msra.mxu0 %v2218
    %2615 = vmatprep.subr.bf16.mxu0 0
    %2616 = vmatpush1.bf16.msra.mxu0 %v2219
    %2617 = vmatprep.subr.bf16.mxu0 0
    %2618 = vmatpush1.bf16.msra.mxu0 %v2220
    %2619 = vmatprep.subr.bf16.mxu0 0
    %2620 = vmatpush1.bf16.msra.mxu0 %v2221
    %2621 = vmatprep.subr.bf16.mxu0 0
    %2622 = vmatpush1.bf16.msra.mxu0 %v2222
    %2623 = vmatprep.subr.bf16.mxu0 0
    %2624 = vmatpush1.bf16.msra.mxu0 %v2223
    %2625 = vmatprep.subr.bf16.mxu0 0
    %2626 = vmatpush1.bf16.msra.mxu0 %v2224
    %2627 = vmatprep.subr.bf16.mxu0 0
    %2628 = vmatpush1.bf16.msra.mxu0 %v2225
    %2629 = vmatprep.mubr.bf16.mxu0 %v2596
    %2630 = vmatmul.mubr.bf16.gmra.mrb[0].mxu0 %v2505
    %v2631 = vpop.f32.mrb[0].mxu0
    %v2632 = vadd.f32 %v1604, %v2631
    %v2633 = vpop.f32.mrb[0].mxu0
    %v2634 = vpop.f32.mrb[0].mxu0
    %v2635 = vpop.f32.mrb[0].mxu0
    %2636 = vdwg.mxu0
    %v2637 = vtanh.pop %v2632
    %v2638 = vpack.c.bf16 %v2637, %v2637
    %2639 = vmatprep.subr.bf16.mxu0 0
    %2640 = vmatpush1.bf16.msra.mxu0 %v2316
    %2641 = vmatprep.subr.bf16.mxu0 0
    %2642 = vmatpush1.bf16.msra.mxu0 %v2317
    %2643 = vmatprep.subr.bf16.mxu0 0
    %2644 = vmatpush1.bf16.msra.mxu0 %v2318
    %2645 = vmatprep.subr.bf16.mxu0 0
    %2646 = vmatpush1.bf16.msra.mxu0 %v2319
    %2647 = vmatprep.subr.bf16.mxu0 0
    %2648 = vmatpush1.bf16.msra.mxu0 %v2320
    %2649 = vmatprep.subr.bf16.mxu0 0
    %2650 = vmatpush1.bf16.msra.mxu0 %v2321
    %2651 = vmatprep.subr.bf16.mxu0 0
    %2652 = vmatpush1.bf16.msra.mxu0 %v2322
    %2653 = vmatprep.subr.bf16.mxu0 0
    %2654 = vmatpush1.bf16.msra.mxu0 %v2323
    %2655 = vmatprep.subr.bf16.mxu0 0
    %2656 = vmatpush1.bf16.msra.mxu0 0
    %2657 = vmatprep.subr.bf16.mxu0 0
    %2658 = vmatpush1.bf16.msra.mxu0 0
    %2659 = vmatprep.subr.bf16.mxu0 0
    %2660 = vmatpush1.bf16.msra.mxu0 0
    %2661 = vmatprep.subr.bf16.mxu0 0
    %2662 = vmatpush1.bf16.msra.mxu0 0
    %2663 = vmatprep.subr.bf16.mxu0 0
    %2664 = vmatpush1.bf16.msra.mxu0 0
    %2665 = vmatprep.subr.bf16.mxu0 0
    %2666 = vmatpush1.bf16.msra.mxu0 0
    %2667 = vmatprep.subr.bf16.mxu0 0
    %2668 = vmatpush1.bf16.msra.mxu0 0
    %2669 = vmatprep.subr.bf16.mxu0 0
    %2670 = vmatpush1.bf16.msra.mxu0 0
    %2671 = vmatprep.mubr.bf16.mxu0 0
    %2672 = vmatmul.mubr.bf16.gmra.mrb[0].mxu0 %v2638
    %v2673 = vpop.f32.mrb[0].mxu0
    %v2674 = vadd.f32 %v1627, %v2673
    %v2675 = vpop.f32.mrb[0].mxu0
    %v2676 = vpop.f32.mrb[0].mxu0
    %v2677 = vpop.f32.mrb[0].mxu0
    %2678 = vdwg.mxu0
    %2679 = vmax.xlane.f32.xlu0 %v2674
    %v2680 = vpop.xlane.xlu0 %2679
    %v2681 = vsub.f32 %v2674, %v2680
    %v2682 = vmul.f32 %v2681, 1.442695
    %v2683 = vpow.pop %v2682
    %2684 = vadd.xlane.f32.xlu0 %v2683
    %v2685 = vpop.xlane.xlu0 %2684
    %v2686 = vlog2.pop %v2685
    %v2687 = vmul.f32 %v2686, 0.6931472
    %v2688 = vsub.f32 %v2681, %v2687
    %s2689 = scalar_lea.vmem %s11, 8
    %2690 = vst [vmem:[%s2689] sm:$0xff] %v2688
    %2691 = vmax.xlane.f32.xlu0 %v2688
    %v2692 = vpop.xlane.xlu0 %2691
    %vm2693 = vcmp.ge.f32.partialorder %v2688, %v2692
    %v2694 = vsel %vm2693, %v1389, 128
    %v2695 = vand.u32 %v2694, 65535
    %v2696 = vshra.s32 %v2694, 16
    %v2697 = vcvt.s32.f32 %v2695
    %v2698 = vcvt.s32.f32 %v2696
    %2699 = vmin.xlane.f32.xlu0 %v2698
    %v2700 = vpop.xlane.xlu0 %2699
    %vm2701 = vcmp.eq.f32.partialorder %v2698, %v2700
    %v2702 = vsel %vm2701, %v2697, inf
    %2703 = vmin.xlane.f32.xlu0 %v2702
    %v2704 = vpop.xlane.xlu0 %2703
    %v2705 = vcvt.f32.s32 %v2704
    %v2706 = vcvt.f32.s32 %v2700
    %v2707 = vshll.u32 %v2706, 16
    %v2708 = vadd.s32 %v2707, %v2705
    %vm2709 = vcmp.eq.s32.totalorder %v1389, %v2708
    %v2710 = vsel %vm2709, 1.0, 0.0
    %v2711 = vpack.c.bf16 %v2710, %v2710
    %2712 = vmatprep.subr.bf16.mxu0 %v1826
    %2713 = vmatpush1.bf16.msra.mxu0 %v1825
    %2714 = vmatprep.subr.bf16.mxu0 %v1830
    %2715 = vmatpush1.bf16.msra.mxu0 %v1829
    %2716 = vmatprep.subr.bf16.mxu0 %v1834
    %2717 = vmatpush1.bf16.msra.mxu0 %v1833
    %2718 = vmatprep.subr.bf16.mxu0 %v1838
    %2719 = vmatpush1.bf16.msra.mxu0 %v1837
    %2720 = vmatprep.subr.bf16.mxu0 %v1842
    %2721 = vmatpush1.bf16.msra.mxu0 %v1841
    %2722 = vmatprep.subr.bf16.mxu0 %v1846
    %2723 = vmatpush1.bf16.msra.mxu0 %v1845
    %2724 = vmatprep.subr.bf16.mxu0 %v1850
    %2725 = vmatpush1.bf16.msra.mxu0 %v1849
    %2726 = vmatprep.subr.bf16.mxu0 %v1854
    %2727 = vmatpush1.bf16.msra.mxu0 %v1853
    %2728 = vmatprep.subr.bf16.mxu0 %v1858
    %2729 = vmatpush1.bf16.msra.mxu0 %v1857
    %2730 = vmatprep.subr.bf16.mxu0 %v1862
    %2731 = vmatpush1.bf16.msra.mxu0 %v1861
    %2732 = vmatprep.subr.bf16.mxu0 %v1866
    %2733 = vmatpush1.bf16.msra.mxu0 %v1865
    %2734 = vmatprep.subr.bf16.mxu0 %v1870
    %2735 = vmatpush1.bf16.msra.mxu0 %v1869
    %2736 = vmatprep.subr.bf16.mxu0 %v1874
    %2737 = vmatpush1.bf16.msra.mxu0 %v1873
    %2738 = vmatprep.subr.bf16.mxu0 %v1878
    %2739 = vmatpush1.bf16.msra.mxu0 %v1877
    %2740 = vmatprep.subr.bf16.mxu0 %v1882
    %2741 = vmatpush1.bf16.msra.mxu0 %v1881
    %2742 = vmatprep.subr.bf16.mxu0 %v1886
    %2743 = vmatpush1.bf16.msra.mxu0 %v1885
    %2744 = vmatprep.mubr.bf16.mxu0 %v2505
    %2745 = vmatmul.mubr.bf16.gmra.mrb[0].mxu0 %v2711
    %v2746 = vpop.f32.mrb[0].mxu0
    %v2747 = vadd.f32 %v1550, %v2746
    %v2748 = vpop.f32.mrb[0].mxu0
    %v2749 = vadd.f32 %v1554, %v2748
    %v2750 = vpop.f32.mrb[0].mxu0
    %v2751 = vpop.f32.mrb[0].mxu0
    %2752 = vdwg.mxu0
    %2753 = vmatprep.subr.bf16.mxu0 %v1828
    %2754 = vmatpush1.bf16.msra.mxu0 %v1827
    %2755 = vmatprep.subr.bf16.mxu0 %v1832
    %2756 = vmatpush1.bf16.msra.mxu0 %v1831
    %2757 = vmatprep.subr.bf16.mxu0 %v1836
    %2758 = vmatpush1.bf16.msra.mxu0 %v1835
    %2759 = vmatprep.subr.bf16.mxu0 %v1840
    %2760 = vmatpush1.bf16.msra.mxu0 %v1839
    %2761 = vmatprep.subr.bf16.mxu0 %v1844
    %2762 = vmatpush1.bf16.msra.mxu0 %v1843
    %2763 = vmatprep.subr.bf16.mxu0 %v1848
    %2764 = vmatpush1.bf16.msra.mxu0 %v1847
    %2765 = vmatprep.subr.bf16.mxu0 %v1852
    %2766 = vmatpush1.bf16.msra.mxu0 %v1851
    %2767 = vmatprep.subr.bf16.mxu0 %v1856
    %2768 = vmatpush1.bf16.msra.mxu0 %v1855
    %2769 = vmatprep.subr.bf16.mxu0 %v1860
    %2770 = vmatpush1.bf16.msra.mxu0 %v1859
    %2771 = vmatprep.subr.bf16.mxu0 %v1864
    %2772 = vmatpush1.bf16.msra.mxu0 %v1863
    %2773 = vmatprep.subr.bf16.mxu0 %v1868
    %2774 = vmatpush1.bf16.msra.mxu0 %v1867
    %2775 = vmatprep.subr.bf16.mxu0 %v1872
    %2776 = vmatpush1.bf16.msra.mxu0 %v1871
    %2777 = vmatprep.subr.bf16.mxu0 %v1876
    %2778 = vmatpush1.bf16.msra.mxu0 %v1875
    %2779 = vmatprep.subr.bf16.mxu0 %v1880
    %2780 = vmatpush1.bf16.msra.mxu0 %v1879
    %2781 = vmatprep.subr.bf16.mxu0 %v1884
    %2782 = vmatpush1.bf16.msra.mxu0 %v1883
    %2783 = vmatprep.subr.bf16.mxu0 %v1888
    %2784 = vmatpush1.bf16.msra.mxu0 %v1887
    %2785 = vmatprep.mubr.bf16.mxu0 %v2505
    %2786 = vmatmul.mubr.bf16.gmra.mrb[0].mxu0 %v2711
    %v2787 = vpop.f32.mrb[0].mxu0
    %v2788 = vadd.f32 %v1558, %v2787
    %v2789 = vpop.f32.mrb[0].mxu0
    %v2790 = vadd.f32 %v1562, %v2789
    %v2791 = vpop.f32.mrb[0].mxu0
    %v2792 = vpop.f32.mrb[0].mxu0
    %2793 = vdwg.mxu0
    %v2794 = vxor.u32 %v2747, 2147483648
    %v2795 = vmul.f32 %v2794, 1.442695
    %v2796 = vpow.pop %v2795
    %v2797 = vadd.f32 %v2796, 1.0
    %v2798 = vrcp.pop %v2797
    %v2799 = vmul.f32 1.0, %v2798
    %v2800 = vxor.u32 %v2749, 2147483648
    %v2801 = vmul.f32 %v2800, 1.442695
    %v2802 = vpow.pop %v2801
    %v2803 = vadd.f32 %v2802, 1.0
    %v2804 = vrcp.pop %v2803
    %v2805 = vmul.f32 1.0, %v2804
    %v2806 = vmul.f32 %v2799, %v2790
    %v2807 = vadd.f32 %v2788, %v2806
    %v2808 = vtanh.pop %v2807
    %v2809 = vsub.f32 1.0, %v2805
    %v2810 = vmul.f32 %v2809, %v2808
    %v2811 = vmul.f32 %v2805, %v2504
    %v2812 = vadd.f32 %v2810, %v2811
    %v2813 = vpack.c.bf16 %v2812, %v2812
    %2814 = vmatprep.subr.bf16.mxu0 0
    %2815 = vmatpush1.bf16.xpose.msra.mxu0 %v1455
    %2816 = vmatprep.subr.bf16.mxu0 0
    %2817 = vmatpush1.bf16.xpose.msra.mxu0 %v1456
    %2818 = vmatprep.subr.bf16.mxu0 0
    %2819 = vmatpush1.bf16.xpose.msra.mxu0 %v1457
    %2820 = vmatprep.subr.bf16.mxu0 0
    %2821 = vmatpush1.bf16.xpose.msra.mxu0 %v1458
    %2822 = vmatprep.subr.bf16.mxu0 0
    %2823 = vmatpush1.bf16.xpose.msra.mxu0 %v1459
    %2824 = vmatprep.subr.bf16.mxu0 0
    %2825 = vmatpush1.bf16.xpose.msra.mxu0 %v1460
    %2826 = vmatprep.subr.bf16.mxu0 0
    %2827 = vmatpush1.bf16.xpose.msra.mxu0 %v1461
    %2828 = vmatprep.subr.bf16.mxu0 0
    %2829 = vmatpush1.bf16.xpose.msra.mxu0 %v1462
    %2830 = vmatprep.subr.bf16.mxu0 0
    %2831 = vmatpush1.bf16.xpose.msra.mxu0 0
    %2832 = vmatprep.subr.bf16.mxu0 0
    %2833 = vmatpush1.bf16.xpose.msra.mxu0 0
    %2834 = vmatprep.subr.bf16.mxu0 0
    %2835 = vmatpush1.bf16.xpose.msra.mxu0 0
    %2836 = vmatprep.subr.bf16.mxu0 0
    %2837 = vmatpush1.bf16.xpose.msra.mxu0 0
    %2838 = vmatprep.subr.bf16.mxu0 0
    %2839 = vmatpush1.bf16.xpose.msra.mxu0 0
    %2840 = vmatprep.subr.bf16.mxu0 0
    %2841 = vmatpush1.bf16.xpose.msra.mxu0 0
    %2842 = vmatprep.subr.bf16.mxu0 0
    %2843 = vmatpush1.bf16.xpose.msra.mxu0 0
    %2844 = vmatprep.subr.bf16.mxu0 0
    %2845 = vmatpush1.bf16.xpose.msra.mxu0 0
    %2846 = vmatprep.mubr.bf16.mxu0 0
    %2847 = vmatmul.mubr.bf16.gmra.mrb[0].mxu0 %v2813
    %v2848 = vpop.f32.mrb[0].mxu0
    %v2849 = vadd.f32 %v1480, %v2848
    %v2850 = vpop.f32.mrb[0].mxu0
    %v2851 = vpop.f32.mrb[0].mxu0
    %v2852 = vpop.f32.mrb[0].mxu0
    %2853 = vdwg.mxu0
    %2854 = vmax.xlane.f32.xlu0 %v2849
    %v2855 = vpop.xlane.xlu0 %2854
    %v2856 = vsub.f32 %v2849, %v2855
    %v2857 = vmul.f32 %v2856, 1.442695
    %v2858 = vpow.pop %v2857
    %2859 = vadd.xlane.f32.xlu0 %v2858
    %v2860 = vpop.xlane.xlu0 %2859
    %v2861 = vrcp.pop %v2860
    %v2862 = vmul.f32 %v2858, %v2861
    %v2863 = vpack.c.bf16 %v2862, %v2862
    %2864 = vmatprep.subr.bf16.mxu0 0
    %2865 = vmatpush1.bf16.msra.mxu0 %v1455
    %2866 = vmatprep.subr.bf16.mxu0 0
    %2867 = vmatpush1.bf16.msra.mxu0 %v1456
    %2868 = vmatprep.subr.bf16.mxu0 0
    %2869 = vmatpush1.bf16.msra.mxu0 %v1457
    %2870 = vmatprep.subr.bf16.mxu0 0
    %2871 = vmatpush1.bf16.msra.mxu0 %v1458
    %2872 = vmatprep.subr.bf16.mxu0 0
    %2873 = vmatpush1.bf16.msra.mxu0 %v1459
    %2874 = vmatprep.subr.bf16.mxu0 0
    %2875 = vmatpush1.bf16.msra.mxu0 %v1460
    %2876 = vmatprep.subr.bf16.mxu0 0
    %2877 = vmatpush1.bf16.msra.mxu0 %v1461
    %2878 = vmatprep.subr.bf16.mxu0 0
    %2879 = vmatpush1.bf16.msra.mxu0 %v1462
    %2880 = vmatprep.subr.bf16.mxu0 0
    %2881 = vmatpush1.bf16.msra.mxu0 0
    %2882 = vmatprep.subr.bf16.mxu0 0
    %2883 = vmatpush1.bf16.msra.mxu0 0
    %2884 = vmatprep.subr.bf16.mxu0 0
    %2885 = vmatpush1.bf16.msra.mxu0 0
    %2886 = vmatprep.subr.bf16.mxu0 0
    %2887 = vmatpush1.bf16.msra.mxu0 0
    %2888 = vmatprep.subr.bf16.mxu0 0
    %2889 = vmatpush1.bf16.msra.mxu0 0
    %2890 = vmatprep.subr.bf16.mxu0 0
    %2891 = vmatpush1.bf16.msra.mxu0 0
    %2892 = vmatprep.subr.bf16.mxu0 0
    %2893 = vmatpush1.bf16.msra.mxu0 0
    %2894 = vmatprep.subr.bf16.mxu0 0
    %2895 = vmatpush1.bf16.msra.mxu0 0
    %2896 = vmatprep.mubr.bf16.mxu0 0
    %2897 = vmatmul.mubr.bf16.gmra.mrb[0].mxu0 %v2863
    %v2898 = vpop.f32.mrb[0].mxu0
    %v2899 = vadd.f32 0.0, %v2898
    %v2900 = vpop.f32.mrb[0].mxu0
    %v2901 = vpop.f32.mrb[0].mxu0
    %v2902 = vpop.f32.mrb[0].mxu0
    %2903 = vdwg.mxu0
    %v2904 = vpack.c.bf16 %v2899, %v2899
    %2905 = vmatprep.subr.bf16.mxu0 0
    %2906 = vmatpush1.bf16.msra.mxu0 %v2210
    %2907 = vmatprep.subr.bf16.mxu0 0
    %2908 = vmatpush1.bf16.msra.mxu0 %v2211
    %2909 = vmatprep.subr.bf16.mxu0 0
    %2910 = vmatpush1.bf16.msra.mxu0 %v2212
    %2911 = vmatprep.subr.bf16.mxu0 0
    %2912 = vmatpush1.bf16.msra.mxu0 %v2213
    %2913 = vmatprep.subr.bf16.mxu0 0
    %2914 = vmatpush1.bf16.msra.mxu0 %v2214
    %2915 = vmatprep.subr.bf16.mxu0 0
    %2916 = vmatpush1.bf16.msra.mxu0 %v2215
    %2917 = vmatprep.subr.bf16.mxu0 0
    %2918 = vmatpush1.bf16.msra.mxu0 %v2216
    %2919 = vmatprep.subr.bf16.mxu0 0
    %2920 = vmatpush1.bf16.msra.mxu0 %v2217
    %2921 = vmatprep.subr.bf16.mxu0 0
    %2922 = vmatpush1.bf16.msra.mxu0 %v2218
    %2923 = vmatprep.subr.bf16.mxu0 0
    %2924 = vmatpush1.bf16.msra.mxu0 %v2219
    %2925 = vmatprep.subr.bf16.mxu0 0
    %2926 = vmatpush1.bf16.msra.mxu0 %v2220
    %2927 = vmatprep.subr.bf16.mxu0 0
    %2928 = vmatpush1.bf16.msra.mxu0 %v2221
    %2929 = vmatprep.subr.bf16.mxu0 0
    %2930 = vmatpush1.bf16.msra.mxu0 %v2222
    %2931 = vmatprep.subr.bf16.mxu0 0
    %2932 = vmatpush1.bf16.msra.mxu0 %v2223
    %2933 = vmatprep.subr.bf16.mxu0 0
    %2934 = vmatpush1.bf16.msra.mxu0 %v2224
    %2935 = vmatprep.subr.bf16.mxu0 0
    %2936 = vmatpush1.bf16.msra.mxu0 %v2225
    %2937 = vmatprep.mubr.bf16.mxu0 %v2904
    %2938 = vmatmul.mubr.bf16.gmra.mrb[0].mxu0 %v2813
    %v2939 = vpop.f32.mrb[0].mxu0
    %v2940 = vadd.f32 %v1604, %v2939
    %v2941 = vpop.f32.mrb[0].mxu0
    %v2942 = vpop.f32.mrb[0].mxu0
    %v2943 = vpop.f32.mrb[0].mxu0
    %2944 = vdwg.mxu0
    %v2945 = vtanh.pop %v2940
    %v2946 = vpack.c.bf16 %v2945, %v2945
    %2947 = vmatprep.subr.bf16.mxu0 0
    %2948 = vmatpush1.bf16.msra.mxu0 %v2316
    %2949 = vmatprep.subr.bf16.mxu0 0
    %2950 = vmatpush1.bf16.msra.mxu0 %v2317
    %2951 = vmatprep.subr.bf16.mxu0 0
    %2952 = vmatpush1.bf16.msra.mxu0 %v2318
    %2953 = vmatprep.subr.bf16.mxu0 0
    %2954 = vmatpush1.bf16.msra.mxu0 %v2319
    %2955 = vmatprep.subr.bf16.mxu0 0
    %2956 = vmatpush1.bf16.msra.mxu0 %v2320
    %2957 = vmatprep.subr.bf16.mxu0 0
    %2958 = vmatpush1.bf16.msra.mxu0 %v2321
    %2959 = vmatprep.subr.bf16.mxu0 0
    %2960 = vmatpush1.bf16.msra.mxu0 %v2322
    %2961 = vmatprep.subr.bf16.mxu0 0
    %2962 = vmatpush1.bf16.msra.mxu0 %v2323
    %2963 = vmatprep.subr.bf16.mxu0 0
    %2964 = vmatpush1.bf16.msra.mxu0 0
    %2965 = vmatprep.subr.bf16.mxu0 0
    %2966 = vmatpush1.bf16.msra.mxu0 0
    %2967 = vmatprep.subr.bf16.mxu0 0
    %2968 = vmatpush1.bf16.msra.mxu0 0
    %2969 = vmatprep.subr.bf16.mxu0 0
    %2970 = vmatpush1.bf16.msra.mxu0 0
    %2971 = vmatprep.subr.bf16.mxu0 0
    %2972 = vmatpush1.bf16.msra.mxu0 0
    %2973 = vmatprep.subr.bf16.mxu0 0
    %2974 = vmatpush1.bf16.msra.mxu0 0
    %2975 = vmatprep.subr.bf16.mxu0 0
    %2976 = vmatpush1.bf16.msra.mxu0 0
    %2977 = vmatprep.subr.bf16.mxu0 0
    %2978 = vmatpush1.bf16.msra.mxu0 0
    %2979 = vmatprep.mubr.bf16.mxu0 0
    %2980 = vmatmul.mubr.bf16.gmra.mrb[0].mxu0 %v2946
    %v2981 = vpop.f32.mrb[0].mxu0
    %v2982 = vadd.f32 %v1627, %v2981
    %v2983 = vpop.f32.mrb[0].mxu0
    %v2984 = vpop.f32.mrb[0].mxu0
    %v2985 = vpop.f32.mrb[0].mxu0
    %2986 = vdwg.mxu0
    %2987 = vmax.xlane.f32.xlu0 %v2982
    %v2988 = vpop.xlane.xlu0 %2987
    %v2989 = vsub.f32 %v2982, %v2988
    %v2990 = vmul.f32 %v2989, 1.442695
    %v2991 = vpow.pop %v2990
    %2992 = vadd.xlane.f32.xlu0 %v2991
    %v2993 = vpop.xlane.xlu0 %2992
    %v2994 = vlog2.pop %v2993
    %v2995 = vmul.f32 %v2994, 0.6931472
    %v2996 = vsub.f32 %v2989, %v2995
    %s2997 = scalar_lea.vmem %s11, 16
    %2998 = vst [vmem:[%s2997] sm:$0xff] %v2996
    %2999 = vmax.xlane.f32.xlu0 %v2996
    %v3000 = vpop.xlane.xlu0 %2999
    %vm3001 = vcmp.ge.f32.partialorder %v2996, %v3000
    %v3002 = vsel %vm3001, %v1389, 128
    %v3003 = vand.u32 %v3002, 65535
    %v3004 = vshra.s32 %v3002, 16
    %v3005 = vcvt.s32.f32 %v3003
    %v3006 = vcvt.s32.f32 %v3004
    %3007 = vmin.xlane.f32.xlu0 %v3006
    %v3008 = vpop.xlane.xlu0 %3007
    %vm3009 = vcmp.eq.f32.partialorder %v3006, %v3008
    %v3010 = vsel %vm3009, %v3005, inf
    %3011 = vmin.xlane.f32.xlu0 %v3010
    %v3012 = vpop.xlane.xlu0 %3011
    %v3013 = vcvt.f32.s32 %v3012
    %v3014 = vcvt.f32.s32 %v3008
    %v3015 = vshll.u32 %v3014, 16
    %v3016 = vadd.s32 %v3015, %v3013
    %vm3017 = vcmp.eq.s32.totalorder %v1389, %v3016
    %v3018 = vsel %vm3017, 1.0, 0.0
    %v3019 = vpack.c.bf16 %v3018, %v3018
    %3020 = vmatprep.subr.bf16.mxu0 %v1826
    %3021 = vmatpush1.bf16.msra.mxu0 %v1825
    %3022 = vmatprep.subr.bf16.mxu0 %v1830
    %3023 = vmatpush1.bf16.msra.mxu0 %v1829
    %3024 = vmatprep.subr.bf16.mxu0 %v1834
    %3025 = vmatpush1.bf16.msra.mxu0 %v1833
    %3026 = vmatprep.subr.bf16.mxu0 %v1838
    %3027 = vmatpush1.bf16.msra.mxu0 %v1837
    %3028 = vmatprep.subr.bf16.mxu0 %v1842
    %3029 = vmatpush1.bf16.msra.mxu0 %v1841
    %3030 = vmatprep.subr.bf16.mxu0 %v1846
    %3031 = vmatpush1.bf16.msra.mxu0 %v1845
    %3032 = vmatprep.subr.bf16.mxu0 %v1850
    %3033 = vmatpush1.bf16.msra.mxu0 %v1849
    %3034 = vmatprep.subr.bf16.mxu0 %v1854
    %3035 = vmatpush1.bf16.msra.mxu0 %v1853
    %3036 = vmatprep.subr.bf16.mxu0 %v1858
    %3037 = vmatpush1.bf16.msra.mxu0 %v1857
    %3038 = vmatprep.subr.bf16.mxu0 %v1862
    %3039 = vmatpush1.bf16.msra.mxu0 %v1861
    %3040 = vmatprep.subr.bf16.mxu0 %v1866
    %3041 = vmatpush1.bf16.msra.mxu0 %v1865
    %3042 = vmatprep.subr.bf16.mxu0 %v1870
    %3043 = vmatpush1.bf16.msra.mxu0 %v1869
    %3044 = vmatprep.subr.bf16.mxu0 %v1874
    %3045 = vmatpush1.bf16.msra.mxu0 %v1873
    %3046 = vmatprep.subr.bf16.mxu0 %v1878
    %3047 = vmatpush1.bf16.msra.mxu0 %v1877
    %3048 = vmatprep.subr.bf16.mxu0 %v1882
    %3049 = vmatpush1.bf16.msra.mxu0 %v1881
    %3050 = vmatprep.subr.bf16.mxu0 %v1886
    %3051 = vmatpush1.bf16.msra.mxu0 %v1885
    %3052 = vmatprep.mubr.bf16.mxu0 %v2813
    %3053 = vmatmul.mubr.bf16.gmra.mrb[0].mxu0 %v3019
    %v3054 = vpop.f32.mrb[0].mxu0
    %v3055 = vadd.f32 %v1550, %v3054
    %v3056 = vpop.f32.mrb[0].mxu0
    %v3057 = vadd.f32 %v1554, %v3056
    %v3058 = vpop.f32.mrb[0].mxu0
    %v3059 = vpop.f32.mrb[0].mxu0
    %3060 = vdwg.mxu0
    %3061 = vmatprep.subr.bf16.mxu0 %v1828
    %3062 = vmatpush1.bf16.msra.mxu0 %v1827
    %3063 = vmatprep.subr.bf16.mxu0 %v1832
    %3064 = vmatpush1.bf16.msra.mxu0 %v1831
    %3065 = vmatprep.subr.bf16.mxu0 %v1836
    %3066 = vmatpush1.bf16.msra.mxu0 %v1835
    %3067 = vmatprep.subr.bf16.mxu0 %v1840
    %3068 = vmatpush1.bf16.msra.mxu0 %v1839
    %3069 = vmatprep.subr.bf16.mxu0 %v1844
    %3070 = vmatpush1.bf16.msra.mxu0 %v1843
    %3071 = vmatprep.subr.bf16.mxu0 %v1848
    %3072 = vmatpush1.bf16.msra.mxu0 %v1847
    %3073 = vmatprep.subr.bf16.mxu0 %v1852
    %3074 = vmatpush1.bf16.msra.mxu0 %v1851
    %3075 = vmatprep.subr.bf16.mxu0 %v1856
    %3076 = vmatpush1.bf16.msra.mxu0 %v1855
    %3077 = vmatprep.subr.bf16.mxu0 %v1860
    %3078 = vmatpush1.bf16.msra.mxu0 %v1859
    %3079 = vmatprep.subr.bf16.mxu0 %v1864
    %3080 = vmatpush1.bf16.msra.mxu0 %v1863
    %3081 = vmatprep.subr.bf16.mxu0 %v1868
    %3082 = vmatpush1.bf16.msra.mxu0 %v1867
    %3083 = vmatprep.subr.bf16.mxu0 %v1872
    %3084 = vmatpush1.bf16.msra.mxu0 %v1871
    %3085 = vmatprep.subr.bf16.mxu0 %v1876
    %3086 = vmatpush1.bf16.msra.mxu0 %v1875
    %3087 = vmatprep.subr.bf16.mxu0 %v1880
    %3088 = vmatpush1.bf16.msra.mxu0 %v1879
    %3089 = vmatprep.subr.bf16.mxu0 %v1884
    %3090 = vmatpush1.bf16.msra.mxu0 %v1883
    %3091 = vmatprep.subr.bf16.mxu0 %v1888
    %3092 = vmatpush1.bf16.msra.mxu0 %v1887
    %3093 = vmatprep.mubr.bf16.mxu0 %v2813
    %3094 = vmatmul.mubr.bf16.gmra.mrb[0].mxu0 %v3019
    %v3095 = vpop.f32.mrb[0].mxu0
    %v3096 = vadd.f32 %v1558, %v3095
    %v3097 = vpop.f32.mrb[0].mxu0
    %v3098 = vadd.f32 %v1562, %v3097
    %v3099 = vpop.f32.mrb[0].mxu0
    %v3100 = vpop.f32.mrb[0].mxu0
    %3101 = vdwg.mxu0
    %v3102 = vxor.u32 %v3055, 2147483648
    %v3103 = vmul.f32 %v3102, 1.442695
    %v3104 = vpow.pop %v3103
    %v3105 = vadd.f32 %v3104, 1.0
    %v3106 = vrcp.pop %v3105
    %v3107 = vmul.f32 1.0, %v3106
    %v3108 = vxor.u32 %v3057, 2147483648
    %v3109 = vmul.f32 %v3108, 1.442695
    %v3110 = vpow.pop %v3109
    %v3111 = vadd.f32 %v3110, 1.0
    %v3112 = vrcp.pop %v3111
    %v3113 = vmul.f32 1.0, %v3112
    %v3114 = vmul.f32 %v3107, %v3098
    %v3115 = vadd.f32 %v3096, %v3114
    %v3116 = vtanh.pop %v3115
    %v3117 = vsub.f32 1.0, %v3113
    %v3118 = vmul.f32 %v3117, %v3116
    %v3119 = vmul.f32 %v3113, %v2812
    %v3120 = vadd.f32 %v3118, %v3119
    %v3121 = vpack.c.bf16 %v3120, %v3120
    %3122 = vmatprep.subr.bf16.mxu0 0
    %3123 = vmatpush1.bf16.xpose.msra.mxu0 %v1455
    %3124 = vmatprep.subr.bf16.mxu0 0
    %3125 = vmatpush1.bf16.xpose.msra.mxu0 %v1456
    %3126 = vmatprep.subr.bf16.mxu0 0
    %3127 = vmatpush1.bf16.xpose.msra.mxu0 %v1457
    %3128 = vmatprep.subr.bf16.mxu0 0
    %3129 = vmatpush1.bf16.xpose.msra.mxu0 %v1458
    %3130 = vmatprep.subr.bf16.mxu0 0
    %3131 = vmatpush1.bf16.xpose.msra.mxu0 %v1459
    %3132 = vmatprep.subr.bf16.mxu0 0
    %3133 = vmatpush1.bf16.xpose.msra.mxu0 %v1460
    %3134 = vmatprep.subr.bf16.mxu0 0
    %3135 = vmatpush1.bf16.xpose.msra.mxu0 %v1461
    %3136 = vmatprep.subr.bf16.mxu0 0
    %3137 = vmatpush1.bf16.xpose.msra.mxu0 %v1462
    %3138 = vmatprep.subr.bf16.mxu0 0
    %3139 = vmatpush1.bf16.xpose.msra.mxu0 0
    %3140 = vmatprep.subr.bf16.mxu0 0
    %3141 = vmatpush1.bf16.xpose.msra.mxu0 0
    %3142 = vmatprep.subr.bf16.mxu0 0
    %3143 = vmatpush1.bf16.xpose.msra.mxu0 0
    %3144 = vmatprep.subr.bf16.mxu0 0
    %3145 = vmatpush1.bf16.xpose.msra.mxu0 0
    %3146 = vmatprep.subr.bf16.mxu0 0
    %3147 = vmatpush1.bf16.xpose.msra.mxu0 0
    %3148 = vmatprep.subr.bf16.mxu0 0
    %3149 = vmatpush1.bf16.xpose.msra.mxu0 0
    %3150 = vmatprep.subr.bf16.mxu0 0
    %3151 = vmatpush1.bf16.xpose.msra.mxu0 0
    %3152 = vmatprep.subr.bf16.mxu0 0
    %3153 = vmatpush1.bf16.xpose.msra.mxu0 0
    %3154 = vmatprep.mubr.bf16.mxu0 0
    %3155 = vmatmul.mubr.bf16.gmra.mrb[0].mxu0 %v3121
    %v3156 = vpop.f32.mrb[0].mxu0
    %v3157 = vadd.f32 %v1480, %v3156
    %v3158 = vpop.f32.mrb[0].mxu0
    %v3159 = vpop.f32.mrb[0].mxu0
    %v3160 = vpop.f32.mrb[0].mxu0
    %3161 = vdwg.mxu0
    %3162 = vmax.xlane.f32.xlu0 %v3157
    %v3163 = vpop.xlane.xlu0 %3162
    %v3164 = vsub.f32 %v3157, %v3163
    %v3165 = vmul.f32 %v3164, 1.442695
    %v3166 = vpow.pop %v3165
    %3167 = vadd.xlane.f32.xlu0 %v3166
    %v3168 = vpop.xlane.xlu0 %3167
    %v3169 = vrcp.pop %v3168
    %v3170 = vmul.f32 %v3166, %v3169
    %v3171 = vpack.c.bf16 %v3170, %v3170
    %3172 = vmatprep.subr.bf16.mxu0 0
    %3173 = vmatpush1.bf16.msra.mxu0 %v1455
    %3174 = vmatprep.subr.bf16.mxu0 0
    %3175 = vmatpush1.bf16.msra.mxu0 %v1456
    %3176 = vmatprep.subr.bf16.mxu0 0
    %3177 = vmatpush1.bf16.msra.mxu0 %v1457
    %3178 = vmatprep.subr.bf16.mxu0 0
    %3179 = vmatpush1.bf16.msra.mxu0 %v1458
    %3180 = vmatprep.subr.bf16.mxu0 0
    %3181 = vmatpush1.bf16.msra.mxu0 %v1459
    %3182 = vmatprep.subr.bf16.mxu0 0
    %3183 = vmatpush1.bf16.msra.mxu0 %v1460
    %3184 = vmatprep.subr.bf16.mxu0 0
    %3185 = vmatpush1.bf16.msra.mxu0 %v1461
    %3186 = vmatprep.subr.bf16.mxu0 0
    %3187 = vmatpush1.bf16.msra.mxu0 %v1462
    %3188 = vmatprep.subr.bf16.mxu0 0
    %3189 = vmatpush1.bf16.msra.mxu0 0
    %3190 = vmatprep.subr.bf16.mxu0 0
    %3191 = vmatpush1.bf16.msra.mxu0 0
    %3192 = vmatprep.subr.bf16.mxu0 0
    %3193 = vmatpush1.bf16.msra.mxu0 0
    %3194 = vmatprep.subr.bf16.mxu0 0
    %3195 = vmatpush1.bf16.msra.mxu0 0
    %3196 = vmatprep.subr.bf16.mxu0 0
    %3197 = vmatpush1.bf16.msra.mxu0 0
    %3198 = vmatprep.subr.bf16.mxu0 0
    %3199 = vmatpush1.bf16.msra.mxu0 0
    %3200 = vmatprep.subr.bf16.mxu0 0
    %3201 = vmatpush1.bf16.msra.mxu0 0
    %3202 = vmatprep.subr.bf16.mxu0 0
    %3203 = vmatpush1.bf16.msra.mxu0 0
    %3204 = vmatprep.mubr.bf16.mxu0 0
    %3205 = vmatmul.mubr.bf16.gmra.mrb[0].mxu0 %v3171
    %v3206 = vpop.f32.mrb[0].mxu0
    %v3207 = vadd.f32 0.0, %v3206
    %v3208 = vpop.f32.mrb[0].mxu0
    %v3209 = vpop.f32.mrb[0].mxu0
    %v3210 = vpop.f32.mrb[0].mxu0
    %3211 = vdwg.mxu0
    %v3212 = vpack.c.bf16 %v3207, %v3207
    %3213 = vmatprep.subr.bf16.mxu0 0
    %3214 = vmatpush1.bf16.msra.mxu0 %v2210
    %3215 = vmatprep.subr.bf16.mxu0 0
    %3216 = vmatpush1.bf16.msra.mxu0 %v2211
    %3217 = vmatprep.subr.bf16.mxu0 0
    %3218 = vmatpush1.bf16.msra.mxu0 %v2212
    %3219 = vmatprep.subr.bf16.mxu0 0
    %3220 = vmatpush1.bf16.msra.mxu0 %v2213
    %3221 = vmatprep.subr.bf16.mxu0 0
    %3222 = vmatpush1.bf16.msra.mxu0 %v2214
    %3223 = vmatprep.subr.bf16.mxu0 0
    %3224 = vmatpush1.bf16.msra.mxu0 %v2215
    %3225 = vmatprep.subr.bf16.mxu0 0
    %3226 = vmatpush1.bf16.msra.mxu0 %v2216
    %3227 = vmatprep.subr.bf16.mxu0 0
    %3228 = vmatpush1.bf16.msra.mxu0 %v2217
    %3229 = vmatprep.subr.bf16.mxu0 0
    %3230 = vmatpush1.bf16.msra.mxu0 %v2218
    %3231 = vmatprep.subr.bf16.mxu0 0
    %3232 = vmatpush1.bf16.msra.mxu0 %v2219
    %3233 = vmatprep.subr.bf16.mxu0 0
    %3234 = vmatpush1.bf16.msra.mxu0 %v2220
    %3235 = vmatprep.subr.bf16.mxu0 0
    %3236 = vmatpush1.bf16.msra.mxu0 %v2221
    %3237 = vmatprep.subr.bf16.mxu0 0
    %3238 = vmatpush1.bf16.msra.mxu0 %v2222
    %3239 = vmatprep.subr.bf16.mxu0 0
    %3240 = vmatpush1.bf16.msra.mxu0 %v2223
    %3241 = vmatprep.subr.bf16.mxu0 0
    %3242 = vmatpush1.bf16.msra.mxu0 %v2224
    %3243 = vmatprep.subr.bf16.mxu0 0
    %3244 = vmatpush1.bf16.msra.mxu0 %v2225
    %3245 = vmatprep.mubr.bf16.mxu0 %v3212
    %3246 = vmatmul.mubr.bf16.gmra.mrb[0].mxu0 %v3121
    %v3247 = vpop.f32.mrb[0].mxu0
    %v3248 = vadd.f32 %v1604, %v3247
    %v3249 = vpop.f32.mrb[0].mxu0
    %v3250 = vpop.f32.mrb[0].mxu0
    %v3251 = vpop.f32.mrb[0].mxu0
    %3252 = vdwg.mxu0
    %v3253 = vtanh.pop %v3248
    %v3254 = vpack.c.bf16 %v3253, %v3253
    %3255 = vmatprep.subr.bf16.mxu0 0
    %3256 = vmatpush1.bf16.msra.mxu0 %v2316
    %3257 = vmatprep.subr.bf16.mxu0 0
    %3258 = vmatpush1.bf16.msra.mxu0 %v2317
    %3259 = vmatprep.subr.bf16.mxu0 0
    %3260 = vmatpush1.bf16.msra.mxu0 %v2318
    %3261 = vmatprep.subr.bf16.mxu0 0
    %3262 = vmatpush1.bf16.msra.mxu0 %v2319
    %3263 = vmatprep.subr.bf16.mxu0 0
    %3264 = vmatpush1.bf16.msra.mxu0 %v2320
    %3265 = vmatprep.subr.bf16.mxu0 0
    %3266 = vmatpush1.bf16.msra.mxu0 %v2321
    %3267 = vmatprep.subr.bf16.mxu0 0
    %3268 = vmatpush1.bf16.msra.mxu0 %v2322
    %3269 = vmatprep.subr.bf16.mxu0 0
    %3270 = vmatpush1.bf16.msra.mxu0 %v2323
    %3271 = vmatprep.subr.bf16.mxu0 0
    %3272 = vmatpush1.bf16.msra.mxu0 0
    %3273 = vmatprep.subr.bf16.mxu0 0
    %3274 = vmatpush1.bf16.msra.mxu0 0
    %3275 = vmatprep.subr.bf16.mxu0 0
    %3276 = vmatpush1.bf16.msra.mxu0 0
    %3277 = vmatprep.subr.bf16.mxu0 0
    %3278 = vmatpush1.bf16.msra.mxu0 0
    %3279 = vmatprep.subr.bf16.mxu0 0
    %3280 = vmatpush1.bf16.msra.mxu0 0
    %3281 = vmatprep.subr.bf16.mxu0 0
    %3282 = vmatpush1.bf16.msra.mxu0 0
    %3283 = vmatprep.subr.bf16.mxu0 0
    %3284 = vmatpush1.bf16.msra.mxu0 0
    %3285 = vmatprep.subr.bf16.mxu0 0
    %3286 = vmatpush1.bf16.msra.mxu0 0
    %3287 = vmatprep.mubr.bf16.mxu0 0
    %3288 = vmatmul.mubr.bf16.gmra.mrb[0].mxu0 %v3254
    %v3289 = vpop.f32.mrb[0].mxu0
    %v3290 = vadd.f32 %v1627, %v3289
    %v3291 = vpop.f32.mrb[0].mxu0
    %v3292 = vpop.f32.mrb[0].mxu0
    %v3293 = vpop.f32.mrb[0].mxu0
    %3294 = vdwg.mxu0
    %3295 = vmax.xlane.f32.xlu0 %v3290
    %v3296 = vpop.xlane.xlu0 %3295
    %v3297 = vsub.f32 %v3290, %v3296
    %v3298 = vmul.f32 %v3297, 1.442695
    %v3299 = vpow.pop %v3298
    %3300 = vadd.xlane.f32.xlu0 %v3299
    %v3301 = vpop.xlane.xlu0 %3300
    %v3302 = vlog2.pop %v3301
    %v3303 = vmul.f32 %v3302, 0.6931472
    %v3304 = vsub.f32 %v3297, %v3303
    %s3305 = scalar_lea.vmem %s11, 24
    %3306 = vst [vmem:[%s3305] sm:$0xff] %v3304
    %3307 = vmax.xlane.f32.xlu0 %v3304
    %v3308 = vpop.xlane.xlu0 %3307
    %vm3309 = vcmp.ge.f32.partialorder %v3304, %v3308
    %v3310 = vsel %vm3309, %v1389, 128
    %v3311 = vand.u32 %v3310, 65535
    %v3312 = vshra.s32 %v3310, 16
    %v3313 = vcvt.s32.f32 %v3311
    %v3314 = vcvt.s32.f32 %v3312
    %3315 = vmin.xlane.f32.xlu0 %v3314
    %v3316 = vpop.xlane.xlu0 %3315
    %vm3317 = vcmp.eq.f32.partialorder %v3314, %v3316
    %v3318 = vsel %vm3317, %v3313, inf
    %3319 = vmin.xlane.f32.xlu0 %v3318
    %v3320 = vpop.xlane.xlu0 %3319
    %v3321 = vcvt.f32.s32 %v3320
    %v3322 = vcvt.f32.s32 %v3316
    %v3323 = vshll.u32 %v3322, 16
    %v3324 = vadd.s32 %v3323, %v3321
    %vm3325 = vcmp.eq.s32.totalorder %v1389, %v3324
    %v3326 = vsel %vm3325, 1.0, 0.0
    %v3327 = vpack.c.bf16 %v3326, %v3326
    %3328 = vmatprep.subr.bf16.mxu0 %v1826
    %3329 = vmatpush1.bf16.msra.mxu0 %v1825
    %3330 = vmatprep.subr.bf16.mxu0 %v1830
    %3331 = vmatpush1.bf16.msra.mxu0 %v1829
    %3332 = vmatprep.subr.bf16.mxu0 %v1834
    %3333 = vmatpush1.bf16.msra.mxu0 %v1833
    %3334 = vmatprep.subr.bf16.mxu0 %v1838
    %3335 = vmatpush1.bf16.msra.mxu0 %v1837
    %3336 = vmatprep.subr.bf16.mxu0 %v1842
    %3337 = vmatpush1.bf16.msra.mxu0 %v1841
    %3338 = vmatprep.subr.bf16.mxu0 %v1846
    %3339 = vmatpush1.bf16.msra.mxu0 %v1845
    %3340 = vmatprep.subr.bf16.mxu0 %v1850
    %3341 = vmatpush1.bf16.msra.mxu0 %v1849
    %3342 = vmatprep.subr.bf16.mxu0 %v1854
    %3343 = vmatpush1.bf16.msra.mxu0 %v1853
    %3344 = vmatprep.subr.bf16.mxu0 %v1858
    %3345 = vmatpush1.bf16.msra.mxu0 %v1857
    %3346 = vmatprep.subr.bf16.mxu0 %v1862
    %3347 = vmatpush1.bf16.msra.mxu0 %v1861
    %3348 = vmatprep.subr.bf16.mxu0 %v1866
    %3349 = vmatpush1.bf16.msra.mxu0 %v1865
    %3350 = vmatprep.subr.bf16.mxu0 %v1870
    %3351 = vmatpush1.bf16.msra.mxu0 %v1869
    %3352 = vmatprep.subr.bf16.mxu0 %v1874
    %3353 = vmatpush1.bf16.msra.mxu0 %v1873
    %3354 = vmatprep.subr.bf16.mxu0 %v1878
    %3355 = vmatpush1.bf16.msra.mxu0 %v1877
    %3356 = vmatprep.subr.bf16.mxu0 %v1882
    %3357 = vmatpush1.bf16.msra.mxu0 %v1881
    %3358 = vmatprep.subr.bf16.mxu0 %v1886
    %3359 = vmatpush1.bf16.msra.mxu0 %v1885
    %3360 = vmatprep.mubr.bf16.mxu0 %v3121
    %3361 = vmatmul.mubr.bf16.gmra.mrb[0].mxu0 %v3327
    %v3362 = vpop.f32.mrb[0].mxu0
    %v3363 = vadd.f32 %v1550, %v3362
    %v3364 = vpop.f32.mrb[0].mxu0
    %v3365 = vadd.f32 %v1554, %v3364
    %v3366 = vpop.f32.mrb[0].mxu0
    %v3367 = vpop.f32.mrb[0].mxu0
    %3368 = vdwg.mxu0
    %3369 = vmatprep.subr.bf16.mxu0 %v1828
    %3370 = vmatpush1.bf16.msra.mxu0 %v1827
    %3371 = vmatprep.subr.bf16.mxu0 %v1832
    %3372 = vmatpush1.bf16.msra.mxu0 %v1831
    %3373 = vmatprep.subr.bf16.mxu0 %v1836
    %3374 = vmatpush1.bf16.msra.mxu0 %v1835
    %3375 = vmatprep.subr.bf16.mxu0 %v1840
    %3376 = vmatpush1.bf16.msra.mxu0 %v1839
    %3377 = vmatprep.subr.bf16.mxu0 %v1844
    %3378 = vmatpush1.bf16.msra.mxu0 %v1843
    %3379 = vmatprep.subr.bf16.mxu0 %v1848
    %3380 = vmatpush1.bf16.msra.mxu0 %v1847
    %3381 = vmatprep.subr.bf16.mxu0 %v1852
    %3382 = vmatpush1.bf16.msra.mxu0 %v1851
    %3383 = vmatprep.subr.bf16.mxu0 %v1856
    %3384 = vmatpush1.bf16.msra.mxu0 %v1855
    %3385 = vmatprep.subr.bf16.mxu0 %v1860
    %3386 = vmatpush1.bf16.msra.mxu0 %v1859
    %3387 = vmatprep.subr.bf16.mxu0 %v1864
    %3388 = vmatpush1.bf16.msra.mxu0 %v1863
    %3389 = vmatprep.subr.bf16.mxu0 %v1868
    %3390 = vmatpush1.bf16.msra.mxu0 %v1867
    %3391 = vmatprep.subr.bf16.mxu0 %v1872
    %3392 = vmatpush1.bf16.msra.mxu0 %v1871
    %3393 = vmatprep.subr.bf16.mxu0 %v1876
    %3394 = vmatpush1.bf16.msra.mxu0 %v1875
    %3395 = vmatprep.subr.bf16.mxu0 %v1880
    %3396 = vmatpush1.bf16.msra.mxu0 %v1879
    %3397 = vmatprep.subr.bf16.mxu0 %v1884
    %3398 = vmatpush1.bf16.msra.mxu0 %v1883
    %3399 = vmatprep.subr.bf16.mxu0 %v1888
    %3400 = vmatpush1.bf16.msra.mxu0 %v1887
    %3401 = vmatprep.mubr.bf16.mxu0 %v3121
    %3402 = vmatmul.mubr.bf16.gmra.mrb[0].mxu0 %v3327
    %v3403 = vpop.f32.mrb[0].mxu0
    %v3404 = vadd.f32 %v1558, %v3403
    %v3405 = vpop.f32.mrb[0].mxu0
    %v3406 = vadd.f32 %v1562, %v3405
    %v3407 = vpop.f32.mrb[0].mxu0
    %v3408 = vpop.f32.mrb[0].mxu0
    %3409 = vdwg.mxu0
    %v3410 = vxor.u32 %v3363, 2147483648
    %v3411 = vmul.f32 %v3410, 1.442695
    %v3412 = vpow.pop %v3411
    %v3413 = vadd.f32 %v3412, 1.0
    %v3414 = vrcp.pop %v3413
    %v3415 = vmul.f32 1.0, %v3414
    %v3416 = vxor.u32 %v3365, 2147483648
    %v3417 = vmul.f32 %v3416, 1.442695
    %v3418 = vpow.pop %v3417
    %v3419 = vadd.f32 %v3418, 1.0
    %v3420 = vrcp.pop %v3419
    %v3421 = vmul.f32 1.0, %v3420
    %v3422 = vmul.f32 %v3415, %v3406
    %v3423 = vadd.f32 %v3404, %v3422
    %v3424 = vtanh.pop %v3423
    %v3425 = vsub.f32 1.0, %v3421
    %v3426 = vmul.f32 %v3425, %v3424
    %v3427 = vmul.f32 %v3421, %v3120
    %v3428 = vadd.f32 %v3426, %v3427
    %v3429 = vpack.c.bf16 %v3428, %v3428
    %3430 = vmatprep.subr.bf16.mxu0 0
    %3431 = vmatpush1.bf16.xpose.msra.mxu0 %v1455
    %3432 = vmatprep.subr.bf16.mxu0 0
    %3433 = vmatpush1.bf16.xpose.msra.mxu0 %v1456
    %3434 = vmatprep.subr.bf16.mxu0 0
    %3435 = vmatpush1.bf16.xpose.msra.mxu0 %v1457
    %3436 = vmatprep.subr.bf16.mxu0 0
    %3437 = vmatpush1.bf16.xpose.msra.mxu0 %v1458
    %3438 = vmatprep.subr.bf16.mxu0 0
    %3439 = vmatpush1.bf16.xpose.msra.mxu0 %v1459
    %3440 = vmatprep.subr.bf16.mxu0 0
    %3441 = vmatpush1.bf16.xpose.msra.mxu0 %v1460
    %3442 = vmatprep.subr.bf16.mxu0 0
    %3443 = vmatpush1.bf16.xpose.msra.mxu0 %v1461
    %3444 = vmatprep.subr.bf16.mxu0 0
    %3445 = vmatpush1.bf16.xpose.msra.mxu0 %v1462
    %3446 = vmatprep.subr.bf16.mxu0 0
    %3447 = vmatpush1.bf16.xpose.msra.mxu0 0
    %3448 = vmatprep.subr.bf16.mxu0 0
    %3449 = vmatpush1.bf16.xpose.msra.mxu0 0
    %3450 = vmatprep.subr.bf16.mxu0 0
    %3451 = vmatpush1.bf16.xpose.msra.mxu0 0
    %3452 = vmatprep.subr.bf16.mxu0 0
    %3453 = vmatpush1.bf16.xpose.msra.mxu0 0
    %3454 = vmatprep.subr.bf16.mxu0 0
    %3455 = vmatpush1.bf16.xpose.msra.mxu0 0
    %3456 = vmatprep.subr.bf16.mxu0 0
    %3457 = vmatpush1.bf16.xpose.msra.mxu0 0
    %3458 = vmatprep.subr.bf16.mxu0 0
    %3459 = vmatpush1.bf16.xpose.msra.mxu0 0
    %3460 = vmatprep.subr.bf16.mxu0 0
    %3461 = vmatpush1.bf16.xpose.msra.mxu0 0
    %3462 = vmatprep.mubr.bf16.mxu0 0
    %3463 = vmatmul.mubr.bf16.gmra.mrb[0].mxu0 %v3429
    %v3464 = vpop.f32.mrb[0].mxu0
    %v3465 = vadd.f32 %v1480, %v3464
    %v3466 = vpop.f32.mrb[0].mxu0
    %v3467 = vpop.f32.mrb[0].mxu0
    %v3468 = vpop.f32.mrb[0].mxu0
    %3469 = vdwg.mxu0
    %3470 = vmax.xlane.f32.xlu0 %v3465
    %v3471 = vpop.xlane.xlu0 %3470
    %v3472 = vsub.f32 %v3465, %v3471
    %v3473 = vmul.f32 %v3472, 1.442695
    %v3474 = vpow.pop %v3473
    %3475 = vadd.xlane.f32.xlu0 %v3474
    %v3476 = vpop.xlane.xlu0 %3475
    %v3477 = vrcp.pop %v3476
    %v3478 = vmul.f32 %v3474, %v3477
    %v3479 = vpack.c.bf16 %v3478, %v3478
    %3480 = vmatprep.subr.bf16.mxu0 0
    %3481 = vmatpush1.bf16.msra.mxu0 %v1455
    %3482 = vmatprep.subr.bf16.mxu0 0
    %3483 = vmatpush1.bf16.msra.mxu0 %v1456
    %3484 = vmatprep.subr.bf16.mxu0 0
    %3485 = vmatpush1.bf16.msra.mxu0 %v1457
    %3486 = vmatprep.subr.bf16.mxu0 0
    %3487 = vmatpush1.bf16.msra.mxu0 %v1458
    %3488 = vmatprep.subr.bf16.mxu0 0
    %3489 = vmatpush1.bf16.msra.mxu0 %v1459
    %3490 = vmatprep.subr.bf16.mxu0 0
    %3491 = vmatpush1.bf16.msra.mxu0 %v1460
    %3492 = vmatprep.subr.bf16.mxu0 0
    %3493 = vmatpush1.bf16.msra.mxu0 %v1461
    %3494 = vmatprep.subr.bf16.mxu0 0
    %3495 = vmatpush1.bf16.msra.mxu0 %v1462
    %3496 = vmatprep.subr.bf16.mxu0 0
    %3497 = vmatpush1.bf16.msra.mxu0 0
    %3498 = vmatprep.subr.bf16.mxu0 0
    %3499 = vmatpush1.bf16.msra.mxu0 0
    %3500 = vmatprep.subr.bf16.mxu0 0
    %3501 = vmatpush1.bf16.msra.mxu0 0
    %3502 = vmatprep.subr.bf16.mxu0 0
    %3503 = vmatpush1.bf16.msra.mxu0 0
    %3504 = vmatprep.subr.bf16.mxu0 0
    %3505 = vmatpush1.bf16.msra.mxu0 0
    %3506 = vmatprep.subr.bf16.mxu0 0
    %3507 = vmatpush1.bf16.msra.mxu0 0
    %3508 = vmatprep.subr.bf16.mxu0 0
    %3509 = vmatpush1.bf16.msra.mxu0 0
    %3510 = vmatprep.subr.bf16.mxu0 0
    %3511 = vmatpush1.bf16.msra.mxu0 0
    %3512 = vmatprep.mubr.bf16.mxu0 0
    %3513 = vmatmul.mubr.bf16.gmra.mrb[0].mxu0 %v3479
    %v3514 = vpop.f32.mrb[0].mxu0
    %v3515 = vadd.f32 0.0, %v3514
    %v3516 = vpop.f32.mrb[0].mxu0
    %v3517 = vpop.f32.mrb[0].mxu0
    %v3518 = vpop.f32.mrb[0].mxu0
    %3519 = vdwg.mxu0
    %v3520 = vpack.c.bf16 %v3515, %v3515
    %3521 = vmatprep.subr.bf16.mxu0 0
    %3522 = vmatpush1.bf16.msra.mxu0 %v2210
    %3523 = vmatprep.subr.bf16.mxu0 0
    %3524 = vmatpush1.bf16.msra.mxu0 %v2211
    %3525 = vmatprep.subr.bf16.mxu0 0
    %3526 = vmatpush1.bf16.msra.mxu0 %v2212
    %3527 = vmatprep.subr.bf16.mxu0 0
    %3528 = vmatpush1.bf16.msra.mxu0 %v2213
    %3529 = vmatprep.subr.bf16.mxu0 0
    %3530 = vmatpush1.bf16.msra.mxu0 %v2214
    %3531 = vmatprep.subr.bf16.mxu0 0
    %3532 = vmatpush1.bf16.msra.mxu0 %v2215
    %3533 = vmatprep.subr.bf16.mxu0 0
    %3534 = vmatpush1.bf16.msra.mxu0 %v2216
    %3535 = vmatprep.subr.bf16.mxu0 0
    %3536 = vmatpush1.bf16.msra.mxu0 %v2217
    %3537 = vmatprep.subr.bf16.mxu0 0
    %3538 = vmatpush1.bf16.msra.mxu0 %v2218
    %3539 = vmatprep.subr.bf16.mxu0 0
    %3540 = vmatpush1.bf16.msra.mxu0 %v2219
    %3541 = vmatprep.subr.bf16.mxu0 0
    %3542 = vmatpush1.bf16.msra.mxu0 %v2220
    %3543 = vmatprep.subr.bf16.mxu0 0
    %3544 = vmatpush1.bf16.msra.mxu0 %v2221
    %3545 = vmatprep.subr.bf16.mxu0 0
    %3546 = vmatpush1.bf16.msra.mxu0 %v2222
    %3547 = vmatprep.subr.bf16.mxu0 0
    %3548 = vmatpush1.bf16.msra.mxu0 %v2223
    %3549 = vmatprep.subr.bf16.mxu0 0
    %3550 = vmatpush1.bf16.msra.mxu0 %v2224
    %3551 = vmatprep.subr.bf16.mxu0 0
    %3552 = vmatpush1.bf16.msra.mxu0 %v2225
    %3553 = vmatprep.mubr.bf16.mxu0 %v3520
    %3554 = vmatmul.mubr.bf16.gmra.mrb[0].mxu0 %v3429
    %v3555 = vpop.f32.mrb[0].mxu0
    %v3556 = vadd.f32 %v1604, %v3555
    %v3557 = vpop.f32.mrb[0].mxu0
    %v3558 = vpop.f32.mrb[0].mxu0
    %v3559 = vpop.f32.mrb[0].mxu0
    %3560 = vdwg.mxu0
    %v3561 = vtanh.pop %v3556
    %v3562 = vpack.c.bf16 %v3561, %v3561
    %3563 = vmatprep.subr.bf16.mxu0 0
    %3564 = vmatpush1.bf16.msra.mxu0 %v2316
    %3565 = vmatprep.subr.bf16.mxu0 0
    %3566 = vmatpush1.bf16.msra.mxu0 %v2317
    %3567 = vmatprep.subr.bf16.mxu0 0
    %3568 = vmatpush1.bf16.msra.mxu0 %v2318
    %3569 = vmatprep.subr.bf16.mxu0 0
    %3570 = vmatpush1.bf16.msra.mxu0 %v2319
    %3571 = vmatprep.subr.bf16.mxu0 0
    %3572 = vmatpush1.bf16.msra.mxu0 %v2320
    %3573 = vmatprep.subr.bf16.mxu0 0
    %3574 = vmatpush1.bf16.msra.mxu0 %v2321
    %3575 = vmatprep.subr.bf16.mxu0 0
    %3576 = vmatpush1.bf16.msra.mxu0 %v2322
    %3577 = vmatprep.subr.bf16.mxu0 0
    %3578 = vmatpush1.bf16.msra.mxu0 %v2323
    %3579 = vmatprep.subr.bf16.mxu0 0
    %3580 = vmatpush1.bf16.msra.mxu0 0
    %3581 = vmatprep.subr.bf16.mxu0 0
    %3582 = vmatpush1.bf16.msra.mxu0 0
    %3583 = vmatprep.subr.bf16.mxu0 0
    %3584 = vmatpush1.bf16.msra.mxu0 0
    %3585 = vmatprep.subr.bf16.mxu0 0
    %3586 = vmatpush1.bf16.msra.mxu0 0
    %3587 = vmatprep.subr.bf16.mxu0 0
    %3588 = vmatpush1.bf16.msra.mxu0 0
    %3589 = vmatprep.subr.bf16.mxu0 0
    %3590 = vmatpush1.bf16.msra.mxu0 0
    %3591 = vmatprep.subr.bf16.mxu0 0
    %3592 = vmatpush1.bf16.msra.mxu0 0
    %3593 = vmatprep.subr.bf16.mxu0 0
    %3594 = vmatpush1.bf16.msra.mxu0 0
    %3595 = vmatprep.mubr.bf16.mxu0 0
    %3596 = vmatmul.mubr.bf16.gmra.mrb[0].mxu0 %v3562
    %v3597 = vpop.f32.mrb[0].mxu0
    %v3598 = vadd.f32 %v1627, %v3597
    %v3599 = vpop.f32.mrb[0].mxu0
    %v3600 = vpop.f32.mrb[0].mxu0
    %v3601 = vpop.f32.mrb[0].mxu0
    %3602 = vdwg.mxu0
    %3603 = vmax.xlane.f32.xlu0 %v3598
    %v3604 = vpop.xlane.xlu0 %3603
    %v3605 = vsub.f32 %v3598, %v3604
    %v3606 = vmul.f32 %v3605, 1.442695
    %v3607 = vpow.pop %v3606
    %3608 = vadd.xlane.f32.xlu0 %v3607
    %v3609 = vpop.xlane.xlu0 %3608
    %v3610 = vlog2.pop %v3609
    %v3611 = vmul.f32 %v3610, 0.6931472
    %v3612 = vsub.f32 %v3605, %v3611
    %s3613 = scalar_lea.vmem %s11, 32
    %3614 = vst [vmem:[%s3613] sm:$0xff] %v3612
    %3615 = vmax.xlane.f32.xlu0 %v3612
    %v3616 = vpop.xlane.xlu0 %3615
    %vm3617 = vcmp.ge.f32.partialorder %v3612, %v3616
    %v3618 = vsel %vm3617, %v1389, 128
    %v3619 = vand.u32 %v3618, 65535
    %v3620 = vshra.s32 %v3618, 16
    %v3621 = vcvt.s32.f32 %v3619
    %v3622 = vcvt.s32.f32 %v3620
    %3623 = vmin.xlane.f32.xlu0 %v3622
    %v3624 = vpop.xlane.xlu0 %3623
    %vm3625 = vcmp.eq.f32.partialorder %v3622, %v3624
    %v3626 = vsel %vm3625, %v3621, inf
    %3627 = vmin.xlane.f32.xlu0 %v3626
    %v3628 = vpop.xlane.xlu0 %3627
    %v3629 = vcvt.f32.s32 %v3628
    %v3630 = vcvt.f32.s32 %v3624
    %v3631 = vshll.u32 %v3630, 16
    %v3632 = vadd.s32 %v3631, %v3629
    %vm3633 = vcmp.eq.s32.totalorder %v1389, %v3632
    %v3634 = vsel %vm3633, 1.0, 0.0
    %v3635 = vpack.c.bf16 %v3634, %v3634
    %3636 = vmatprep.subr.bf16.mxu0 %v1826
    %3637 = vmatpush1.bf16.msra.mxu0 %v1825
    %3638 = vmatprep.subr.bf16.mxu0 %v1830
    %3639 = vmatpush1.bf16.msra.mxu0 %v1829
    %3640 = vmatprep.subr.bf16.mxu0 %v1834
    %3641 = vmatpush1.bf16.msra.mxu0 %v1833
    %3642 = vmatprep.subr.bf16.mxu0 %v1838
    %3643 = vmatpush1.bf16.msra.mxu0 %v1837
    %3644 = vmatprep.subr.bf16.mxu0 %v1842
    %3645 = vmatpush1.bf16.msra.mxu0 %v1841
    %3646 = vmatprep.subr.bf16.mxu0 %v1846
    %3647 = vmatpush1.bf16.msra.mxu0 %v1845
    %3648 = vmatprep.subr.bf16.mxu0 %v1850
    %3649 = vmatpush1.bf16.msra.mxu0 %v1849
    %3650 = vmatprep.subr.bf16.mxu0 %v1854
    %3651 = vmatpush1.bf16.msra.mxu0 %v1853
    %3652 = vmatprep.subr.bf16.mxu0 %v1858
    %3653 = vmatpush1.bf16.msra.mxu0 %v1857
    %3654 = vmatprep.subr.bf16.mxu0 %v1862
    %3655 = vmatpush1.bf16.msra.mxu0 %v1861
    %3656 = vmatprep.subr.bf16.mxu0 %v1866
    %3657 = vmatpush1.bf16.msra.mxu0 %v1865
    %3658 = vmatprep.subr.bf16.mxu0 %v1870
    %3659 = vmatpush1.bf16.msra.mxu0 %v1869
    %3660 = vmatprep.subr.bf16.mxu0 %v1874
    %3661 = vmatpush1.bf16.msra.mxu0 %v1873
    %3662 = vmatprep.subr.bf16.mxu0 %v1878
    %3663 = vmatpush1.bf16.msra.mxu0 %v1877
    %3664 = vmatprep.subr.bf16.mxu0 %v1882
    %3665 = vmatpush1.bf16.msra.mxu0 %v1881
    %3666 = vmatprep.subr.bf16.mxu0 %v1886
    %3667 = vmatpush1.bf16.msra.mxu0 %v1885
    %3668 = vmatprep.mubr.bf16.mxu0 %v3429
    %3669 = vmatmul.mubr.bf16.gmra.mrb[0].mxu0 %v3635
    %v3670 = vpop.f32.mrb[0].mxu0
    %v3671 = vadd.f32 %v1550, %v3670
    %v3672 = vpop.f32.mrb[0].mxu0
    %v3673 = vadd.f32 %v1554, %v3672
    %v3674 = vpop.f32.mrb[0].mxu0
    %v3675 = vpop.f32.mrb[0].mxu0
    %3676 = vdwg.mxu0
    %3677 = vmatprep.subr.bf16.mxu0 %v1828
    %3678 = vmatpush1.bf16.msra.mxu0 %v1827
    %3679 = vmatprep.subr.bf16.mxu0 %v1832
    %3680 = vmatpush1.bf16.msra.mxu0 %v1831
    %3681 = vmatprep.subr.bf16.mxu0 %v1836
    %3682 = vmatpush1.bf16.msra.mxu0 %v1835
    %3683 = vmatprep.subr.bf16.mxu0 %v1840
    %3684 = vmatpush1.bf16.msra.mxu0 %v1839
    %3685 = vmatprep.subr.bf16.mxu0 %v1844
    %3686 = vmatpush1.bf16.msra.mxu0 %v1843
    %3687 = vmatprep.subr.bf16.mxu0 %v1848
    %3688 = vmatpush1.bf16.msra.mxu0 %v1847
    %3689 = vmatprep.subr.bf16.mxu0 %v1852
    %3690 = vmatpush1.bf16.msra.mxu0 %v1851
    %3691 = vmatprep.subr.bf16.mxu0 %v1856
    %3692 = vmatpush1.bf16.msra.mxu0 %v1855
    %3693 = vmatprep.subr.bf16.mxu0 %v1860
    %3694 = vmatpush1.bf16.msra.mxu0 %v1859
    %3695 = vmatprep.subr.bf16.mxu0 %v1864
    %3696 = vmatpush1.bf16.msra.mxu0 %v1863
    %3697 = vmatprep.subr.bf16.mxu0 %v1868
    %3698 = vmatpush1.bf16.msra.mxu0 %v1867
    %3699 = vmatprep.subr.bf16.mxu0 %v1872
    %3700 = vmatpush1.bf16.msra.mxu0 %v1871
    %3701 = vmatprep.subr.bf16.mxu0 %v1876
    %3702 = vmatpush1.bf16.msra.mxu0 %v1875
    %3703 = vmatprep.subr.bf16.mxu0 %v1880
    %3704 = vmatpush1.bf16.msra.mxu0 %v1879
    %3705 = vmatprep.subr.bf16.mxu0 %v1884
    %3706 = vmatpush1.bf16.msra.mxu0 %v1883
    %3707 = vmatprep.subr.bf16.mxu0 %v1888
    %3708 = vmatpush1.bf16.msra.mxu0 %v1887
    %3709 = vmatprep.mubr.bf16.mxu0 %v3429
    %3710 = vmatmul.mubr.bf16.gmra.mrb[0].mxu0 %v3635
    %v3711 = vpop.f32.mrb[0].mxu0
    %v3712 = vadd.f32 %v1558, %v3711
    %v3713 = vpop.f32.mrb[0].mxu0
    %v3714 = vadd.f32 %v1562, %v3713
    %v3715 = vpop.f32.mrb[0].mxu0
    %v3716 = vpop.f32.mrb[0].mxu0
    %3717 = vdwg.mxu0
    %v3718 = vxor.u32 %v3671, 2147483648
    %v3719 = vmul.f32 %v3718, 1.442695
    %v3720 = vpow.pop %v3719
    %v3721 = vadd.f32 %v3720, 1.0
    %v3722 = vrcp.pop %v3721
    %v3723 = vmul.f32 1.0, %v3722
    %v3724 = vxor.u32 %v3673, 2147483648
    %v3725 = vmul.f32 %v3724, 1.442695
    %v3726 = vpow.pop %v3725
    %v3727 = vadd.f32 %v3726, 1.0
    %v3728 = vrcp.pop %v3727
    %v3729 = vmul.f32 1.0, %v3728
    %v3730 = vmul.f32 %v3723, %v3714
    %v3731 = vadd.f32 %v3712, %v3730
    %v3732 = vtanh.pop %v3731
    %v3733 = vsub.f32 1.0, %v3729
    %v3734 = vmul.f32 %v3733, %v3732
    %v3735 = vmul.f32 %v3729, %v3428
    %v3736 = vadd.f32 %v3734, %v3735
    %v3737 = vpack.c.bf16 %v3736, %v3736
    %3738 = vmatprep.subr.bf16.mxu0 0
    %3739 = vmatpush1.bf16.xpose.msra.mxu0 %v1455
    %3740 = vmatprep.subr.bf16.mxu0 0
    %3741 = vmatpush1.bf16.xpose.msra.mxu0 %v1456
    %3742 = vmatprep.subr.bf16.mxu0 0
    %3743 = vmatpush1.bf16.xpose.msra.mxu0 %v1457
    %3744 = vmatprep.subr.bf16.mxu0 0
    %3745 = vmatpush1.bf16.xpose.msra.mxu0 %v1458
    %3746 = vmatprep.subr.bf16.mxu0 0
    %3747 = vmatpush1.bf16.xpose.msra.mxu0 %v1459
    %3748 = vmatprep.subr.bf16.mxu0 0
    %3749 = vmatpush1.bf16.xpose.msra.mxu0 %v1460
    %3750 = vmatprep.subr.bf16.mxu0 0
    %3751 = vmatpush1.bf16.xpose.msra.mxu0 %v1461
    %3752 = vmatprep.subr.bf16.mxu0 0
    %3753 = vmatpush1.bf16.xpose.msra.mxu0 %v1462
    %3754 = vmatprep.subr.bf16.mxu0 0
    %3755 = vmatpush1.bf16.xpose.msra.mxu0 0
    %3756 = vmatprep.subr.bf16.mxu0 0
    %3757 = vmatpush1.bf16.xpose.msra.mxu0 0
    %3758 = vmatprep.subr.bf16.mxu0 0
    %3759 = vmatpush1.bf16.xpose.msra.mxu0 0
    %3760 = vmatprep.subr.bf16.mxu0 0
    %3761 = vmatpush1.bf16.xpose.msra.mxu0 0
    %3762 = vmatprep.subr.bf16.mxu0 0
    %3763 = vmatpush1.bf16.xpose.msra.mxu0 0
    %3764 = vmatprep.subr.bf16.mxu0 0
    %3765 = vmatpush1.bf16.xpose.msra.mxu0 0
    %3766 = vmatprep.subr.bf16.mxu0 0
    %3767 = vmatpush1.bf16.xpose.msra.mxu0 0
    %3768 = vmatprep.subr.bf16.mxu0 0
    %3769 = vmatpush1.bf16.xpose.msra.mxu0 0
    %3770 = vmatprep.mubr.bf16.mxu0 0
    %3771 = vmatmul.mubr.bf16.gmra.mrb[0].mxu0 %v3737
    %v3772 = vpop.f32.mrb[0].mxu0
    %v3773 = vadd.f32 %v1480, %v3772
    %v3774 = vpop.f32.mrb[0].mxu0
    %v3775 = vpop.f32.mrb[0].mxu0
    %v3776 = vpop.f32.mrb[0].mxu0
    %3777 = vdwg.mxu0
    %3778 = vmax.xlane.f32.xlu0 %v3773
    %v3779 = vpop.xlane.xlu0 %3778
    %v3780 = vsub.f32 %v3773, %v3779
    %v3781 = vmul.f32 %v3780, 1.442695
    %v3782 = vpow.pop %v3781
    %3783 = vadd.xlane.f32.xlu0 %v3782
    %v3784 = vpop.xlane.xlu0 %3783
    %v3785 = vrcp.pop %v3784
    %v3786 = vmul.f32 %v3782, %v3785
    %v3787 = vpack.c.bf16 %v3786, %v3786
    %3788 = vmatprep.subr.bf16.mxu0 0
    %3789 = vmatpush1.bf16.msra.mxu0 %v1455
    %3790 = vmatprep.subr.bf16.mxu0 0
    %3791 = vmatpush1.bf16.msra.mxu0 %v1456
    %3792 = vmatprep.subr.bf16.mxu0 0
    %3793 = vmatpush1.bf16.msra.mxu0 %v1457
    %3794 = vmatprep.subr.bf16.mxu0 0
    %3795 = vmatpush1.bf16.msra.mxu0 %v1458
    %3796 = vmatprep.subr.bf16.mxu0 0
    %3797 = vmatpush1.bf16.msra.mxu0 %v1459
    %3798 = vmatprep.subr.bf16.mxu0 0
    %3799 = vmatpush1.bf16.msra.mxu0 %v1460
    %3800 = vmatprep.subr.bf16.mxu0 0
    %3801 = vmatpush1.bf16.msra.mxu0 %v1461
    %3802 = vmatprep.subr.bf16.mxu0 0
    %3803 = vmatpush1.bf16.msra.mxu0 %v1462
    %3804 = vmatprep.subr.bf16.mxu0 0
    %3805 = vmatpush1.bf16.msra.mxu0 0
    %3806 = vmatprep.subr.bf16.mxu0 0
    %3807 = vmatpush1.bf16.msra.mxu0 0
    %3808 = vmatprep.subr.bf16.mxu0 0
    %3809 = vmatpush1.bf16.msra.mxu0 0
    %3810 = vmatprep.subr.bf16.mxu0 0
    %3811 = vmatpush1.bf16.msra.mxu0 0
    %3812 = vmatprep.subr.bf16.mxu0 0
    %3813 = vmatpush1.bf16.msra.mxu0 0
    %3814 = vmatprep.subr.bf16.mxu0 0
    %3815 = vmatpush1.bf16.msra.mxu0 0
    %3816 = vmatprep.subr.bf16.mxu0 0
    %3817 = vmatpush1.bf16.msra.mxu0 0
    %3818 = vmatprep.subr.bf16.mxu0 0
    %3819 = vmatpush1.bf16.msra.mxu0 0
    %3820 = vmatprep.mubr.bf16.mxu0 0
    %3821 = vmatmul.mubr.bf16.gmra.mrb[0].mxu0 %v3787
    %v3822 = vpop.f32.mrb[0].mxu0
    %v3823 = vadd.f32 0.0, %v3822
    %v3824 = vpop.f32.mrb[0].mxu0
    %v3825 = vpop.f32.mrb[0].mxu0
    %v3826 = vpop.f32.mrb[0].mxu0
    %3827 = vdwg.mxu0
    %v3828 = vpack.c.bf16 %v3823, %v3823
    %3829 = vmatprep.subr.bf16.mxu0 0
    %3830 = vmatpush1.bf16.msra.mxu0 %v2210
    %3831 = vmatprep.subr.bf16.mxu0 0
    %3832 = vmatpush1.bf16.msra.mxu0 %v2211
    %3833 = vmatprep.subr.bf16.mxu0 0
    %3834 = vmatpush1.bf16.msra.mxu0 %v2212
    %3835 = vmatprep.subr.bf16.mxu0 0
    %3836 = vmatpush1.bf16.msra.mxu0 %v2213
    %3837 = vmatprep.subr.bf16.mxu0 0
    %3838 = vmatpush1.bf16.msra.mxu0 %v2214
    %3839 = vmatprep.subr.bf16.mxu0 0
    %3840 = vmatpush1.bf16.msra.mxu0 %v2215
    %3841 = vmatprep.subr.bf16.mxu0 0
    %3842 = vmatpush1.bf16.msra.mxu0 %v2216
    %3843 = vmatprep.subr.bf16.mxu0 0
    %3844 = vmatpush1.bf16.msra.mxu0 %v2217
    %3845 = vmatprep.subr.bf16.mxu0 0
    %3846 = vmatpush1.bf16.msra.mxu0 %v2218
    %3847 = vmatprep.subr.bf16.mxu0 0
    %3848 = vmatpush1.bf16.msra.mxu0 %v2219
    %3849 = vmatprep.subr.bf16.mxu0 0
    %3850 = vmatpush1.bf16.msra.mxu0 %v2220
    %3851 = vmatprep.subr.bf16.mxu0 0
    %3852 = vmatpush1.bf16.msra.mxu0 %v2221
    %3853 = vmatprep.subr.bf16.mxu0 0
    %3854 = vmatpush1.bf16.msra.mxu0 %v2222
    %3855 = vmatprep.subr.bf16.mxu0 0
    %3856 = vmatpush1.bf16.msra.mxu0 %v2223
    %3857 = vmatprep.subr.bf16.mxu0 0
    %3858 = vmatpush1.bf16.msra.mxu0 %v2224
    %3859 = vmatprep.subr.bf16.mxu0 0
    %3860 = vmatpush1.bf16.msra.mxu0 %v2225
    %3861 = vmatprep.mubr.bf16.mxu0 %v3828
    %3862 = vmatmul.mubr.bf16.gmra.mrb[0].mxu0 %v3737
    %v3863 = vpop.f32.mrb[0].mxu0
    %v3864 = vadd.f32 %v1604, %v3863
    %v3865 = vpop.f32.mrb[0].mxu0
    %v3866 = vpop.f32.mrb[0].mxu0
    %v3867 = vpop.f32.mrb[0].mxu0
    %3868 = vdwg.mxu0
    %v3869 = vtanh.pop %v3864
    %v3870 = vpack.c.bf16 %v3869, %v3869
    %3871 = vmatprep.subr.bf16.mxu0 0
    %3872 = vmatpush1.bf16.msra.mxu0 %v2316
    %3873 = vmatprep.subr.bf16.mxu0 0
    %3874 = vmatpush1.bf16.msra.mxu0 %v2317
    %3875 = vmatprep.subr.bf16.mxu0 0
    %3876 = vmatpush1.bf16.msra.mxu0 %v2318
    %3877 = vmatprep.subr.bf16.mxu0 0
    %3878 = vmatpush1.bf16.msra.mxu0 %v2319
    %3879 = vmatprep.subr.bf16.mxu0 0
    %3880 = vmatpush1.bf16.msra.mxu0 %v2320
    %3881 = vmatprep.subr.bf16.mxu0 0
    %3882 = vmatpush1.bf16.msra.mxu0 %v2321
    %3883 = vmatprep.subr.bf16.mxu0 0
    %3884 = vmatpush1.bf16.msra.mxu0 %v2322
    %3885 = vmatprep.subr.bf16.mxu0 0
    %3886 = vmatpush1.bf16.msra.mxu0 %v2323
    %3887 = vmatprep.subr.bf16.mxu0 0
    %3888 = vmatpush1.bf16.msra.mxu0 0
    %3889 = vmatprep.subr.bf16.mxu0 0
    %3890 = vmatpush1.bf16.msra.mxu0 0
    %3891 = vmatprep.subr.bf16.mxu0 0
    %3892 = vmatpush1.bf16.msra.mxu0 0
    %3893 = vmatprep.subr.bf16.mxu0 0
    %3894 = vmatpush1.bf16.msra.mxu0 0
    %3895 = vmatprep.subr.bf16.mxu0 0
    %3896 = vmatpush1.bf16.msra.mxu0 0
    %3897 = vmatprep.subr.bf16.mxu0 0
    %3898 = vmatpush1.bf16.msra.mxu0 0
    %3899 = vmatprep.subr.bf16.mxu0 0
    %3900 = vmatpush1.bf16.msra.mxu0 0
    %3901 = vmatprep.subr.bf16.mxu0 0
    %3902 = vmatpush1.bf16.msra.mxu0 0
    %3903 = vmatprep.mubr.bf16.mxu0 0
    %3904 = vmatmul.mubr.bf16.gmra.mrb[0].mxu0 %v3870
    %v3905 = vpop.f32.mrb[0].mxu0
    %v3906 = vadd.f32 %v1627, %v3905
    %v3907 = vpop.f32.mrb[0].mxu0
    %v3908 = vpop.f32.mrb[0].mxu0
    %v3909 = vpop.f32.mrb[0].mxu0
    %3910 = vdwg.mxu0
    %3911 = vmax.xlane.f32.xlu0 %v3906
    %v3912 = vpop.xlane.xlu0 %3911
    %v3913 = vsub.f32 %v3906, %v3912
    %v3914 = vmul.f32 %v3913, 1.442695
    %v3915 = vpow.pop %v3914
    %3916 = vadd.xlane.f32.xlu0 %v3915
    %v3917 = vpop.xlane.xlu0 %3916
    %v3918 = vlog2.pop %v3917
    %v3919 = vmul.f32 %v3918, 0.6931472
    %v3920 = vsub.f32 %v3913, %v3919
    %s3921 = scalar_lea.vmem %s11, 40
    %3922 = vst [vmem:[%s3921] sm:$0xff] %v3920
    %3923 = vmax.xlane.f32.xlu0 %v3920
    %v3924 = vpop.xlane.xlu0 %3923
    %vm3925 = vcmp.ge.f32.partialorder %v3920, %v3924
    %v3926 = vsel %vm3925, %v1389, 128
    %v3927 = vand.u32 %v3926, 65535
    %v3928 = vshra.s32 %v3926, 16
    %v3929 = vcvt.s32.f32 %v3927
    %v3930 = vcvt.s32.f32 %v3928
    %3931 = vmin.xlane.f32.xlu0 %v3930
    %v3932 = vpop.xlane.xlu0 %3931
    %vm3933 = vcmp.eq.f32.partialorder %v3930, %v3932
    %v3934 = vsel %vm3933, %v3929, inf
    %3935 = vmin.xlane.f32.xlu0 %v3934
    %v3936 = vpop.xlane.xlu0 %3935
    %v3937 = vcvt.f32.s32 %v3936
    %v3938 = vcvt.f32.s32 %v3932
    %v3939 = vshll.u32 %v3938, 16
    %v3940 = vadd.s32 %v3939, %v3937
    %vm3941 = vcmp.eq.s32.totalorder %v1389, %v3940
    %v3942 = vsel %vm3941, 1.0, 0.0
    %v3943 = vpack.c.bf16 %v3942, %v3942
    %3944 = vmatprep.subr.bf16.mxu0 %v1826
    %3945 = vmatpush1.bf16.msra.mxu0 %v1825
    %3946 = vmatprep.subr.bf16.mxu0 %v1830
    %3947 = vmatpush1.bf16.msra.mxu0 %v1829
    %3948 = vmatprep.subr.bf16.mxu0 %v1834
    %3949 = vmatpush1.bf16.msra.mxu0 %v1833
    %3950 = vmatprep.subr.bf16.mxu0 %v1838
    %3951 = vmatpush1.bf16.msra.mxu0 %v1837
    %3952 = vmatprep.subr.bf16.mxu0 %v1842
    %3953 = vmatpush1.bf16.msra.mxu0 %v1841
    %3954 = vmatprep.subr.bf16.mxu0 %v1846
    %3955 = vmatpush1.bf16.msra.mxu0 %v1845
    %3956 = vmatprep.subr.bf16.mxu0 %v1850
    %3957 = vmatpush1.bf16.msra.mxu0 %v1849
    %3958 = vmatprep.subr.bf16.mxu0 %v1854
    %3959 = vmatpush1.bf16.msra.mxu0 %v1853
    %3960 = vmatprep.subr.bf16.mxu0 %v1858
    %3961 = vmatpush1.bf16.msra.mxu0 %v1857
    %3962 = vmatprep.subr.bf16.mxu0 %v1862
    %3963 = vmatpush1.bf16.msra.mxu0 %v1861
    %3964 = vmatprep.subr.bf16.mxu0 %v1866
    %3965 = vmatpush1.bf16.msra.mxu0 %v1865
    %3966 = vmatprep.subr.bf16.mxu0 %v1870
    %3967 = vmatpush1.bf16.msra.mxu0 %v1869
    %3968 = vmatprep.subr.bf16.mxu0 %v1874
    %3969 = vmatpush1.bf16.msra.mxu0 %v1873
    %3970 = vmatprep.subr.bf16.mxu0 %v1878
    %3971 = vmatpush1.bf16.msra.mxu0 %v1877
    %3972 = vmatprep.subr.bf16.mxu0 %v1882
    %3973 = vmatpush1.bf16.msra.mxu0 %v1881
    %3974 = vmatprep.subr.bf16.mxu0 %v1886
    %3975 = vmatpush1.bf16.msra.mxu0 %v1885
    %3976 = vmatprep.mubr.bf16.mxu0 %v3737
    %3977 = vmatmul.mubr.bf16.gmra.mrb[0].mxu0 %v3943
    %v3978 = vpop.f32.mrb[0].mxu0
    %v3979 = vadd.f32 %v1550, %v3978
    %v3980 = vpop.f32.mrb[0].mxu0
    %v3981 = vadd.f32 %v1554, %v3980
    %v3982 = vpop.f32.mrb[0].mxu0
    %v3983 = vpop.f32.mrb[0].mxu0
    %3984 = vdwg.mxu0
    %3985 = vmatprep.subr.bf16.mxu0 %v1828
    %3986 = vmatpush1.bf16.msra.mxu0 %v1827
    %3987 = vmatprep.subr.bf16.mxu0 %v1832
    %3988 = vmatpush1.bf16.msra.mxu0 %v1831
    %3989 = vmatprep.subr.bf16.mxu0 %v1836
    %3990 = vmatpush1.bf16.msra.mxu0 %v1835
    %3991 = vmatprep.subr.bf16.mxu0 %v1840
    %3992 = vmatpush1.bf16.msra.mxu0 %v1839
    %3993 = vmatprep.subr.bf16.mxu0 %v1844
    %3994 = vmatpush1.bf16.msra.mxu0 %v1843
    %3995 = vmatprep.subr.bf16.mxu0 %v1848
    %3996 = vmatpush1.bf16.msra.mxu0 %v1847
    %3997 = vmatprep.subr.bf16.mxu0 %v1852
    %3998 = vmatpush1.bf16.msra.mxu0 %v1851
    %3999 = vmatprep.subr.bf16.mxu0 %v1856
    %4000 = vmatpush1.bf16.msra.mxu0 %v1855
    %4001 = vmatprep.subr.bf16.mxu0 %v1860
    %4002 = vmatpush1.bf16.msra.mxu0 %v1859
    %4003 = vmatprep.subr.bf16.mxu0 %v1864
    %4004 = vmatpush1.bf16.msra.mxu0 %v1863
    %4005 = vmatprep.subr.bf16.mxu0 %v1868
    %4006 = vmatpush1.bf16.msra.mxu0 %v1867
    %4007 = vmatprep.subr.bf16.mxu0 %v1872
    %4008 = vmatpush1.bf16.msra.mxu0 %v1871
    %4009 = vmatprep.subr.bf16.mxu0 %v1876
    %4010 = vmatpush1.bf16.msra.mxu0 %v1875
    %4011 = vmatprep.subr.bf16.mxu0 %v1880
    %4012 = vmatpush1.bf16.msra.mxu0 %v1879
    %4013 = vmatprep.subr.bf16.mxu0 %v1884
    %4014 = vmatpush1.bf16.msra.mxu0 %v1883
    %4015 = vmatprep.subr.bf16.mxu0 %v1888
    %4016 = vmatpush1.bf16.msra.mxu0 %v1887
    %4017 = vmatprep.mubr.bf16.mxu0 %v3737
    %4018 = vmatmul.mubr.bf16.gmra.mrb[0].mxu0 %v3943
    %v4019 = vpop.f32.mrb[0].mxu0
    %v4020 = vadd.f32 %v1558, %v4019
    %v4021 = vpop.f32.mrb[0].mxu0
    %v4022 = vadd.f32 %v1562, %v4021
    %v4023 = vpop.f32.mrb[0].mxu0
    %v4024 = vpop.f32.mrb[0].mxu0
    %4025 = vdwg.mxu0
    %v4026 = vxor.u32 %v3979, 2147483648
    %v4027 = vmul.f32 %v4026, 1.442695
    %v4028 = vpow.pop %v4027
    %v4029 = vadd.f32 %v4028, 1.0
    %v4030 = vrcp.pop %v4029
    %v4031 = vmul.f32 1.0, %v4030
    %v4032 = vxor.u32 %v3981, 2147483648
    %v4033 = vmul.f32 %v4032, 1.442695
    %v4034 = vpow.pop %v4033
    %v4035 = vadd.f32 %v4034, 1.0
    %v4036 = vrcp.pop %v4035
    %v4037 = vmul.f32 1.0, %v4036
    %v4038 = vmul.f32 %v4031, %v4022
    %v4039 = vadd.f32 %v4020, %v4038
    %v4040 = vtanh.pop %v4039
    %v4041 = vsub.f32 1.0, %v4037
    %v4042 = vmul.f32 %v4041, %v4040
    %v4043 = vmul.f32 %v4037, %v3736
    %v4044 = vadd.f32 %v4042, %v4043
    %v4045 = vpack.c.bf16 %v4044, %v4044
    %4046 = vmatprep.subr.bf16.mxu0 0
    %4047 = vmatpush1.bf16.xpose.msra.mxu0 %v1455
    %4048 = vmatprep.subr.bf16.mxu0 0
    %4049 = vmatpush1.bf16.xpose.msra.mxu0 %v1456
    %4050 = vmatprep.subr.bf16.mxu0 0
    %4051 = vmatpush1.bf16.xpose.msra.mxu0 %v1457
    %4052 = vmatprep.subr.bf16.mxu0 0
    %4053 = vmatpush1.bf16.xpose.msra.mxu0 %v1458
    %4054 = vmatprep.subr.bf16.mxu0 0
    %4055 = vmatpush1.bf16.xpose.msra.mxu0 %v1459
    %4056 = vmatprep.subr.bf16.mxu0 0
    %4057 = vmatpush1.bf16.xpose.msra.mxu0 %v1460
    %4058 = vmatprep.subr.bf16.mxu0 0
    %4059 = vmatpush1.bf16.xpose.msra.mxu0 %v1461
    %4060 = vmatprep.subr.bf16.mxu0 0
    %4061 = vmatpush1.bf16.xpose.msra.mxu0 %v1462
    %4062 = vmatprep.subr.bf16.mxu0 0
    %4063 = vmatpush1.bf16.xpose.msra.mxu0 0
    %4064 = vmatprep.subr.bf16.mxu0 0
    %4065 = vmatpush1.bf16.xpose.msra.mxu0 0
    %4066 = vmatprep.subr.bf16.mxu0 0
    %4067 = vmatpush1.bf16.xpose.msra.mxu0 0
    %4068 = vmatprep.subr.bf16.mxu0 0
    %4069 = vmatpush1.bf16.xpose.msra.mxu0 0
    %4070 = vmatprep.subr.bf16.mxu0 0
    %4071 = vmatpush1.bf16.xpose.msra.mxu0 0
    %4072 = vmatprep.subr.bf16.mxu0 0
    %4073 = vmatpush1.bf16.xpose.msra.mxu0 0
    %4074 = vmatprep.subr.bf16.mxu0 0
    %4075 = vmatpush1.bf16.xpose.msra.mxu0 0
    %4076 = vmatprep.subr.bf16.mxu0 0
    %4077 = vmatpush1.bf16.xpose.msra.mxu0 0
    %4078 = vmatprep.mubr.bf16.mxu0 0
    %4079 = vmatmul.mubr.bf16.gmra.mrb[0].mxu0 %v4045
    %v4080 = vpop.f32.mrb[0].mxu0
    %v4081 = vadd.f32 %v1480, %v4080
    %v4082 = vpop.f32.mrb[0].mxu0
    %v4083 = vpop.f32.mrb[0].mxu0
    %v4084 = vpop.f32.mrb[0].mxu0
    %4085 = vdwg.mxu0
    %4086 = vmax.xlane.f32.xlu0 %v4081
    %v4087 = vpop.xlane.xlu0 %4086
    %v4088 = vsub.f32 %v4081, %v4087
    %v4089 = vmul.f32 %v4088, 1.442695
    %v4090 = vpow.pop %v4089
    %4091 = vadd.xlane.f32.xlu0 %v4090
    %v4092 = vpop.xlane.xlu0 %4091
    %v4093 = vrcp.pop %v4092
    %v4094 = vmul.f32 %v4090, %v4093
    %v4095 = vpack.c.bf16 %v4094, %v4094
    %4096 = vmatprep.subr.bf16.mxu0 0
    %4097 = vmatpush1.bf16.msra.mxu0 %v1455
    %4098 = vmatprep.subr.bf16.mxu0 0
    %4099 = vmatpush1.bf16.msra.mxu0 %v1456
    %4100 = vmatprep.subr.bf16.mxu0 0
    %4101 = vmatpush1.bf16.msra.mxu0 %v1457
    %4102 = vmatprep.subr.bf16.mxu0 0
    %4103 = vmatpush1.bf16.msra.mxu0 %v1458
    %4104 = vmatprep.subr.bf16.mxu0 0
    %4105 = vmatpush1.bf16.msra.mxu0 %v1459
    %4106 = vmatprep.subr.bf16.mxu0 0
    %4107 = vmatpush1.bf16.msra.mxu0 %v1460
    %4108 = vmatprep.subr.bf16.mxu0 0
    %4109 = vmatpush1.bf16.msra.mxu0 %v1461
    %4110 = vmatprep.subr.bf16.mxu0 0
    %4111 = vmatpush1.bf16.msra.mxu0 %v1462
    %4112 = vmatprep.subr.bf16.mxu0 0
    %4113 = vmatpush1.bf16.msra.mxu0 0
    %4114 = vmatprep.subr.bf16.mxu0 0
    %4115 = vmatpush1.bf16.msra.mxu0 0
    %4116 = vmatprep.subr.bf16.mxu0 0
    %4117 = vmatpush1.bf16.msra.mxu0 0
    %4118 = vmatprep.subr.bf16.mxu0 0
    %4119 = vmatpush1.bf16.msra.mxu0 0
    %4120 = vmatprep.subr.bf16.mxu0 0
    %4121 = vmatpush1.bf16.msra.mxu0 0
    %4122 = vmatprep.subr.bf16.mxu0 0
    %4123 = vmatpush1.bf16.msra.mxu0 0
    %4124 = vmatprep.subr.bf16.mxu0 0
    %4125 = vmatpush1.bf16.msra.mxu0 0
    %4126 = vmatprep.subr.bf16.mxu0 0
    %4127 = vmatpush1.bf16.msra.mxu0 0
    %4128 = vmatprep.mubr.bf16.mxu0 0
    %4129 = vmatmul.mubr.bf16.gmra.mrb[0].mxu0 %v4095
    %v4130 = vpop.f32.mrb[0].mxu0
    %v4131 = vadd.f32 0.0, %v4130
    %v4132 = vpop.f32.mrb[0].mxu0
    %v4133 = vpop.f32.mrb[0].mxu0
    %v4134 = vpop.f32.mrb[0].mxu0
    %4135 = vdwg.mxu0
    %v4136 = vpack.c.bf16 %v4131, %v4131
    %4137 = vmatprep.subr.bf16.mxu0 0
    %4138 = vmatpush1.bf16.msra.mxu0 %v2210
    %4139 = vmatprep.subr.bf16.mxu0 0
    %4140 = vmatpush1.bf16.msra.mxu0 %v2211
    %4141 = vmatprep.subr.bf16.mxu0 0
    %4142 = vmatpush1.bf16.msra.mxu0 %v2212
    %4143 = vmatprep.subr.bf16.mxu0 0
    %4144 = vmatpush1.bf16.msra.mxu0 %v2213
    %4145 = vmatprep.subr.bf16.mxu0 0
    %4146 = vmatpush1.bf16.msra.mxu0 %v2214
    %4147 = vmatprep.subr.bf16.mxu0 0
    %4148 = vmatpush1.bf16.msra.mxu0 %v2215
    %4149 = vmatprep.subr.bf16.mxu0 0
    %4150 = vmatpush1.bf16.msra.mxu0 %v2216
    %4151 = vmatprep.subr.bf16.mxu0 0
    %4152 = vmatpush1.bf16.msra.mxu0 %v2217
    %4153 = vmatprep.subr.bf16.mxu0 0
    %4154 = vmatpush1.bf16.msra.mxu0 %v2218
    %4155 = vmatprep.subr.bf16.mxu0 0
    %4156 = vmatpush1.bf16.msra.mxu0 %v2219
    %4157 = vmatprep.subr.bf16.mxu0 0
    %4158 = vmatpush1.bf16.msra.mxu0 %v2220
    %4159 = vmatprep.subr.bf16.mxu0 0
    %4160 = vmatpush1.bf16.msra.mxu0 %v2221
    %4161 = vmatprep.subr.bf16.mxu0 0
    %4162 = vmatpush1.bf16.msra.mxu0 %v2222
    %4163 = vmatprep.subr.bf16.mxu0 0
    %4164 = vmatpush1.bf16.msra.mxu0 %v2223
    %4165 = vmatprep.subr.bf16.mxu0 0
    %4166 = vmatpush1.bf16.msra.mxu0 %v2224
    %4167 = vmatprep.subr.bf16.mxu0 0
    %4168 = vmatpush1.bf16.msra.mxu0 %v2225
    %4169 = vmatprep.mubr.bf16.mxu0 %v4136
    %4170 = vmatmul.mubr.bf16.gmra.mrb[0].mxu0 %v4045
    %v4171 = vpop.f32.mrb[0].mxu0
    %v4172 = vadd.f32 %v1604, %v4171
    %v4173 = vpop.f32.mrb[0].mxu0
    %v4174 = vpop.f32.mrb[0].mxu0
    %v4175 = vpop.f32.mrb[0].mxu0
    %4176 = vdwg.mxu0
    %v4177 = vtanh.pop %v4172
    %v4178 = vpack.c.bf16 %v4177, %v4177
    %4179 = vmatprep.subr.bf16.mxu0 0
    %4180 = vmatpush1.bf16.msra.mxu0 %v2316
    %4181 = vmatprep.subr.bf16.mxu0 0
    %4182 = vmatpush1.bf16.msra.mxu0 %v2317
    %4183 = vmatprep.subr.bf16.mxu0 0
    %4184 = vmatpush1.bf16.msra.mxu0 %v2318
    %4185 = vmatprep.subr.bf16.mxu0 0
    %4186 = vmatpush1.bf16.msra.mxu0 %v2319
    %4187 = vmatprep.subr.bf16.mxu0 0
    %4188 = vmatpush1.bf16.msra.mxu0 %v2320
    %4189 = vmatprep.subr.bf16.mxu0 0
    %4190 = vmatpush1.bf16.msra.mxu0 %v2321
    %4191 = vmatprep.subr.bf16.mxu0 0
    %4192 = vmatpush1.bf16.msra.mxu0 %v2322
    %4193 = vmatprep.subr.bf16.mxu0 0
    %4194 = vmatpush1.bf16.msra.mxu0 %v2323
    %4195 = vmatprep.subr.bf16.mxu0 0
    %4196 = vmatpush1.bf16.msra.mxu0 0
    %4197 = vmatprep.subr.bf16.mxu0 0
    %4198 = vmatpush1.bf16.msra.mxu0 0
    %4199 = vmatprep.subr.bf16.mxu0 0
    %4200 = vmatpush1.bf16.msra.mxu0 0
    %4201 = vmatprep.subr.bf16.mxu0 0
    %4202 = vmatpush1.bf16.msra.mxu0 0
    %4203 = vmatprep.subr.bf16.mxu0 0
    %4204 = vmatpush1.bf16.msra.mxu0 0
    %4205 = vmatprep.subr.bf16.mxu0 0
    %4206 = vmatpush1.bf16.msra.mxu0 0
    %4207 = vmatprep.subr.bf16.mxu0 0
    %4208 = vmatpush1.bf16.msra.mxu0 0
    %4209 = vmatprep.subr.bf16.mxu0 0
    %4210 = vmatpush1.bf16.msra.mxu0 0
    %4211 = vmatprep.mubr.bf16.mxu0 0
    %4212 = vmatmul.mubr.bf16.gmra.mrb[0].mxu0 %v4178
    %v4213 = vpop.f32.mrb[0].mxu0
    %v4214 = vadd.f32 %v1627, %v4213
    %v4215 = vpop.f32.mrb[0].mxu0
    %v4216 = vpop.f32.mrb[0].mxu0
    %v4217 = vpop.f32.mrb[0].mxu0
    %4218 = vdwg.mxu0
    %4219 = vmax.xlane.f32.xlu0 %v4214
    %v4220 = vpop.xlane.xlu0 %4219
    %v4221 = vsub.f32 %v4214, %v4220
    %v4222 = vmul.f32 %v4221, 1.442695
    %v4223 = vpow.pop %v4222
    %4224 = vadd.xlane.f32.xlu0 %v4223
    %v4225 = vpop.xlane.xlu0 %4224
    %v4226 = vlog2.pop %v4225
    %v4227 = vmul.f32 %v4226, 0.6931472
    %v4228 = vsub.f32 %v4221, %v4227
    %s4229 = scalar_lea.vmem %s11, 48
    %4230 = vst [vmem:[%s4229] sm:$0xff] %v4228
    %4231 = vmax.xlane.f32.xlu0 %v4228
    %v4232 = vpop.xlane.xlu0 %4231
    %vm4233 = vcmp.ge.f32.partialorder %v4228, %v4232
    %v4234 = vsel %vm4233, %v1389, 128
    %v4235 = vand.u32 %v4234, 65535
    %v4236 = vshra.s32 %v4234, 16
    %v4237 = vcvt.s32.f32 %v4235
    %v4238 = vcvt.s32.f32 %v4236
    %4239 = vmin.xlane.f32.xlu0 %v4238
    %v4240 = vpop.xlane.xlu0 %4239
    %vm4241 = vcmp.eq.f32.partialorder %v4238, %v4240
    %v4242 = vsel %vm4241, %v4237, inf
    %4243 = vmin.xlane.f32.xlu0 %v4242
    %v4244 = vpop.xlane.xlu0 %4243
    %v4245 = vcvt.f32.s32 %v4244
    %v4246 = vcvt.f32.s32 %v4240
    %v4247 = vshll.u32 %v4246, 16
    %v4248 = vadd.s32 %v4247, %v4245
    %vm4249 = vcmp.eq.s32.totalorder %v1389, %v4248
    %v4250 = vsel %vm4249, 1.0, 0.0
    %v4251 = vpack.c.bf16 %v4250, %v4250
    %4252 = vmatprep.subr.bf16.mxu0 %v1826
    %4253 = vmatpush1.bf16.msra.mxu0 %v1825
    %4254 = vmatprep.subr.bf16.mxu0 %v1830
    %4255 = vmatpush1.bf16.msra.mxu0 %v1829
    %4256 = vmatprep.subr.bf16.mxu0 %v1834
    %4257 = vmatpush1.bf16.msra.mxu0 %v1833
    %4258 = vmatprep.subr.bf16.mxu0 %v1838
    %4259 = vmatpush1.bf16.msra.mxu0 %v1837
    %4260 = vmatprep.subr.bf16.mxu0 %v1842
    %4261 = vmatpush1.bf16.msra.mxu0 %v1841
    %4262 = vmatprep.subr.bf16.mxu0 %v1846
    %4263 = vmatpush1.bf16.msra.mxu0 %v1845
    %4264 = vmatprep.subr.bf16.mxu0 %v1850
    %4265 = vmatpush1.bf16.msra.mxu0 %v1849
    %4266 = vmatprep.subr.bf16.mxu0 %v1854
    %4267 = vmatpush1.bf16.msra.mxu0 %v1853
    %4268 = vmatprep.subr.bf16.mxu0 %v1858
    %4269 = vmatpush1.bf16.msra.mxu0 %v1857
    %4270 = vmatprep.subr.bf16.mxu0 %v1862
    %4271 = vmatpush1.bf16.msra.mxu0 %v1861
    %4272 = vmatprep.subr.bf16.mxu0 %v1866
    %4273 = vmatpush1.bf16.msra.mxu0 %v1865
    %4274 = vmatprep.subr.bf16.mxu0 %v1870
    %4275 = vmatpush1.bf16.msra.mxu0 %v1869
    %4276 = vmatprep.subr.bf16.mxu0 %v1874
    %4277 = vmatpush1.bf16.msra.mxu0 %v1873
    %4278 = vmatprep.subr.bf16.mxu0 %v1878
    %4279 = vmatpush1.bf16.msra.mxu0 %v1877
    %4280 = vmatprep.subr.bf16.mxu0 %v1882
    %4281 = vmatpush1.bf16.msra.mxu0 %v1881
    %4282 = vmatprep.subr.bf16.mxu0 %v1886
    %4283 = vmatpush1.bf16.msra.mxu0 %v1885
    %4284 = vmatprep.mubr.bf16.mxu0 %v4045
    %4285 = vmatmul.mubr.bf16.gmra.mrb[0].mxu0 %v4251
    %v4286 = vpop.f32.mrb[0].mxu0
    %v4287 = vadd.f32 %v1550, %v4286
    %v4288 = vpop.f32.mrb[0].mxu0
    %v4289 = vadd.f32 %v1554, %v4288
    %v4290 = vpop.f32.mrb[0].mxu0
    %v4291 = vpop.f32.mrb[0].mxu0
    %4292 = vdwg.mxu0
    %4293 = vmatprep.subr.bf16.mxu0 %v1828
    %4294 = vmatpush1.bf16.msra.mxu0 %v1827
    %4295 = vmatprep.subr.bf16.mxu0 %v1832
    %4296 = vmatpush1.bf16.msra.mxu0 %v1831
    %4297 = vmatprep.subr.bf16.mxu0 %v1836
    %4298 = vmatpush1.bf16.msra.mxu0 %v1835
    %4299 = vmatprep.subr.bf16.mxu0 %v1840
    %4300 = vmatpush1.bf16.msra.mxu0 %v1839
    %4301 = vmatprep.subr.bf16.mxu0 %v1844
    %4302 = vmatpush1.bf16.msra.mxu0 %v1843
    %4303 = vmatprep.subr.bf16.mxu0 %v1848
    %4304 = vmatpush1.bf16.msra.mxu0 %v1847
    %4305 = vmatprep.subr.bf16.mxu0 %v1852
    %4306 = vmatpush1.bf16.msra.mxu0 %v1851
    %4307 = vmatprep.subr.bf16.mxu0 %v1856
    %4308 = vmatpush1.bf16.msra.mxu0 %v1855
    %4309 = vmatprep.subr.bf16.mxu0 %v1860
    %4310 = vmatpush1.bf16.msra.mxu0 %v1859
    %4311 = vmatprep.subr.bf16.mxu0 %v1864
    %4312 = vmatpush1.bf16.msra.mxu0 %v1863
    %4313 = vmatprep.subr.bf16.mxu0 %v1868
    %4314 = vmatpush1.bf16.msra.mxu0 %v1867
    %4315 = vmatprep.subr.bf16.mxu0 %v1872
    %4316 = vmatpush1.bf16.msra.mxu0 %v1871
    %4317 = vmatprep.subr.bf16.mxu0 %v1876
    %4318 = vmatpush1.bf16.msra.mxu0 %v1875
    %4319 = vmatprep.subr.bf16.mxu0 %v1880
    %4320 = vmatpush1.bf16.msra.mxu0 %v1879
    %4321 = vmatprep.subr.bf16.mxu0 %v1884
    %4322 = vmatpush1.bf16.msra.mxu0 %v1883
    %4323 = vmatprep.subr.bf16.mxu0 %v1888
    %4324 = vmatpush1.bf16.msra.mxu0 %v1887
    %4325 = vmatprep.mubr.bf16.mxu0 %v4045
    %4326 = vmatmul.mubr.bf16.gmra.mrb[0].mxu0 %v4251
    %v4327 = vpop.f32.mrb[0].mxu0
    %v4328 = vadd.f32 %v1558, %v4327
    %v4329 = vpop.f32.mrb[0].mxu0
    %v4330 = vadd.f32 %v1562, %v4329
    %v4331 = vpop.f32.mrb[0].mxu0
    %v4332 = vpop.f32.mrb[0].mxu0
    %4333 = vdwg.mxu0
    %v4334 = vxor.u32 %v4287, 2147483648
    %v4335 = vmul.f32 %v4334, 1.442695
    %v4336 = vpow.pop %v4335
    %v4337 = vadd.f32 %v4336, 1.0
    %v4338 = vrcp.pop %v4337
    %v4339 = vmul.f32 1.0, %v4338
    %v4340 = vxor.u32 %v4289, 2147483648
    %v4341 = vmul.f32 %v4340, 1.442695
    %v4342 = vpow.pop %v4341
    %v4343 = vadd.f32 %v4342, 1.0
    %v4344 = vrcp.pop %v4343
    %v4345 = vmul.f32 1.0, %v4344
    %v4346 = vmul.f32 %v4339, %v4330
    %v4347 = vadd.f32 %v4328, %v4346
    %v4348 = vtanh.pop %v4347
    %v4349 = vsub.f32 1.0, %v4345
    %v4350 = vmul.f32 %v4349, %v4348
    %v4351 = vmul.f32 %v4345, %v4044
    %v4352 = vadd.f32 %v4350, %v4351
    %v4353 = vpack.c.bf16 %v4352, %v4352
    %4354 = vmatprep.subr.bf16.mxu0 0
    %4355 = vmatpush1.bf16.xpose.msra.mxu0 %v1455
    %4356 = vmatprep.subr.bf16.mxu0 0
    %4357 = vmatpush1.bf16.xpose.msra.mxu0 %v1456
    %4358 = vmatprep.subr.bf16.mxu0 0
    %4359 = vmatpush1.bf16.xpose.msra.mxu0 %v1457
    %4360 = vmatprep.subr.bf16.mxu0 0
    %4361 = vmatpush1.bf16.xpose.msra.mxu0 %v1458
    %4362 = vmatprep.subr.bf16.mxu0 0
    %4363 = vmatpush1.bf16.xpose.msra.mxu0 %v1459
    %4364 = vmatprep.subr.bf16.mxu0 0
    %4365 = vmatpush1.bf16.xpose.msra.mxu0 %v1460
    %4366 = vmatprep.subr.bf16.mxu0 0
    %4367 = vmatpush1.bf16.xpose.msra.mxu0 %v1461
    %4368 = vmatprep.subr.bf16.mxu0 0
    %4369 = vmatpush1.bf16.xpose.msra.mxu0 %v1462
    %4370 = vmatprep.subr.bf16.mxu0 0
    %4371 = vmatpush1.bf16.xpose.msra.mxu0 0
    %4372 = vmatprep.subr.bf16.mxu0 0
    %4373 = vmatpush1.bf16.xpose.msra.mxu0 0
    %4374 = vmatprep.subr.bf16.mxu0 0
    %4375 = vmatpush1.bf16.xpose.msra.mxu0 0
    %4376 = vmatprep.subr.bf16.mxu0 0
    %4377 = vmatpush1.bf16.xpose.msra.mxu0 0
    %4378 = vmatprep.subr.bf16.mxu0 0
    %4379 = vmatpush1.bf16.xpose.msra.mxu0 0
    %4380 = vmatprep.subr.bf16.mxu0 0
    %4381 = vmatpush1.bf16.xpose.msra.mxu0 0
    %4382 = vmatprep.subr.bf16.mxu0 0
    %4383 = vmatpush1.bf16.xpose.msra.mxu0 0
    %4384 = vmatprep.subr.bf16.mxu0 0
    %4385 = vmatpush1.bf16.xpose.msra.mxu0 0
    %4386 = vmatprep.mubr.bf16.mxu0 0
    %4387 = vmatmul.mubr.bf16.gmra.mrb[0].mxu0 %v4353
    %v4388 = vpop.f32.mrb[0].mxu0
    %v4389 = vadd.f32 %v1480, %v4388
    %v4390 = vpop.f32.mrb[0].mxu0
    %v4391 = vpop.f32.mrb[0].mxu0
    %v4392 = vpop.f32.mrb[0].mxu0
    %4393 = vdwg.mxu0
    %4394 = vmax.xlane.f32.xlu0 %v4389
    %v4395 = vpop.xlane.xlu0 %4394
    %v4396 = vsub.f32 %v4389, %v4395
    %v4397 = vmul.f32 %v4396, 1.442695
    %v4398 = vpow.pop %v4397
    %4399 = vadd.xlane.f32.xlu0 %v4398
    %v4400 = vpop.xlane.xlu0 %4399
    %v4401 = vrcp.pop %v4400
    %v4402 = vmul.f32 %v4398, %v4401
    %v4403 = vpack.c.bf16 %v4402, %v4402
    %4404 = vmatprep.subr.bf16.mxu0 0
    %4405 = vmatpush1.bf16.msra.mxu0 %v1455
    %4406 = vmatprep.subr.bf16.mxu0 0
    %4407 = vmatpush1.bf16.msra.mxu0 %v1456
    %4408 = vmatprep.subr.bf16.mxu0 0
    %4409 = vmatpush1.bf16.msra.mxu0 %v1457
    %4410 = vmatprep.subr.bf16.mxu0 0
    %4411 = vmatpush1.bf16.msra.mxu0 %v1458
    %4412 = vmatprep.subr.bf16.mxu0 0
    %4413 = vmatpush1.bf16.msra.mxu0 %v1459
    %4414 = vmatprep.subr.bf16.mxu0 0
    %4415 = vmatpush1.bf16.msra.mxu0 %v1460
    %4416 = vmatprep.subr.bf16.mxu0 0
    %4417 = vmatpush1.bf16.msra.mxu0 %v1461
    %4418 = vmatprep.subr.bf16.mxu0 0
    %4419 = vmatpush1.bf16.msra.mxu0 %v1462
    %4420 = vmatprep.subr.bf16.mxu0 0
    %4421 = vmatpush1.bf16.msra.mxu0 0
    %4422 = vmatprep.subr.bf16.mxu0 0
    %4423 = vmatpush1.bf16.msra.mxu0 0
    %4424 = vmatprep.subr.bf16.mxu0 0
    %4425 = vmatpush1.bf16.msra.mxu0 0
    %4426 = vmatprep.subr.bf16.mxu0 0
    %4427 = vmatpush1.bf16.msra.mxu0 0
    %4428 = vmatprep.subr.bf16.mxu0 0
    %4429 = vmatpush1.bf16.msra.mxu0 0
    %4430 = vmatprep.subr.bf16.mxu0 0
    %4431 = vmatpush1.bf16.msra.mxu0 0
    %4432 = vmatprep.subr.bf16.mxu0 0
    %4433 = vmatpush1.bf16.msra.mxu0 0
    %4434 = vmatprep.subr.bf16.mxu0 0
    %4435 = vmatpush1.bf16.msra.mxu0 0
    %4436 = vmatprep.mubr.bf16.mxu0 0
    %4437 = vmatmul.mubr.bf16.gmra.mrb[0].mxu0 %v4403
    %v4438 = vpop.f32.mrb[0].mxu0
    %v4439 = vadd.f32 0.0, %v4438
    %v4440 = vpop.f32.mrb[0].mxu0
    %v4441 = vpop.f32.mrb[0].mxu0
    %v4442 = vpop.f32.mrb[0].mxu0
    %4443 = vdwg.mxu0
    %v4444 = vpack.c.bf16 %v4439, %v4439
    %4445 = vmatprep.subr.bf16.mxu0 0
    %4446 = vmatpush1.bf16.msra.mxu0 %v2210
    %4447 = vmatprep.subr.bf16.mxu0 0
    %4448 = vmatpush1.bf16.msra.mxu0 %v2211
    %4449 = vmatprep.subr.bf16.mxu0 0
    %4450 = vmatpush1.bf16.msra.mxu0 %v2212
    %4451 = vmatprep.subr.bf16.mxu0 0
    %4452 = vmatpush1.bf16.msra.mxu0 %v2213
    %4453 = vmatprep.subr.bf16.mxu0 0
    %4454 = vmatpush1.bf16.msra.mxu0 %v2214
    %4455 = vmatprep.subr.bf16.mxu0 0
    %4456 = vmatpush1.bf16.msra.mxu0 %v2215
    %4457 = vmatprep.subr.bf16.mxu0 0
    %4458 = vmatpush1.bf16.msra.mxu0 %v2216
    %4459 = vmatprep.subr.bf16.mxu0 0
    %4460 = vmatpush1.bf16.msra.mxu0 %v2217
    %4461 = vmatprep.subr.bf16.mxu0 0
    %4462 = vmatpush1.bf16.msra.mxu0 %v2218
    %4463 = vmatprep.subr.bf16.mxu0 0
    %4464 = vmatpush1.bf16.msra.mxu0 %v2219
    %4465 = vmatprep.subr.bf16.mxu0 0
    %4466 = vmatpush1.bf16.msra.mxu0 %v2220
    %4467 = vmatprep.subr.bf16.mxu0 0
    %4468 = vmatpush1.bf16.msra.mxu0 %v2221
    %4469 = vmatprep.subr.bf16.mxu0 0
    %4470 = vmatpush1.bf16.msra.mxu0 %v2222
    %4471 = vmatprep.subr.bf16.mxu0 0
    %4472 = vmatpush1.bf16.msra.mxu0 %v2223
    %4473 = vmatprep.subr.bf16.mxu0 0
    %4474 = vmatpush1.bf16.msra.mxu0 %v2224
    %4475 = vmatprep.subr.bf16.mxu0 0
    %4476 = vmatpush1.bf16.msra.mxu0 %v2225
    %4477 = vmatprep.mubr.bf16.mxu0 %v4444
    %4478 = vmatmul.mubr.bf16.gmra.mrb[0].mxu0 %v4353
    %v4479 = vpop.f32.mrb[0].mxu0
    %v4480 = vadd.f32 %v1604, %v4479
    %v4481 = vpop.f32.mrb[0].mxu0
    %v4482 = vpop.f32.mrb[0].mxu0
    %v4483 = vpop.f32.mrb[0].mxu0
    %4484 = vdwg.mxu0
    %v4485 = vtanh.pop %v4480
    %v4486 = vpack.c.bf16 %v4485, %v4485
    %4487 = vmatprep.subr.bf16.mxu0 0
    %4488 = vmatpush1.bf16.msra.mxu0 %v2316
    %4489 = vmatprep.subr.bf16.mxu0 0
    %4490 = vmatpush1.bf16.msra.mxu0 %v2317
    %4491 = vmatprep.subr.bf16.mxu0 0
    %4492 = vmatpush1.bf16.msra.mxu0 %v2318
    %4493 = vmatprep.subr.bf16.mxu0 0
    %4494 = vmatpush1.bf16.msra.mxu0 %v2319
    %4495 = vmatprep.subr.bf16.mxu0 0
    %4496 = vmatpush1.bf16.msra.mxu0 %v2320
    %4497 = vmatprep.subr.bf16.mxu0 0
    %4498 = vmatpush1.bf16.msra.mxu0 %v2321
    %4499 = vmatprep.subr.bf16.mxu0 0
    %4500 = vmatpush1.bf16.msra.mxu0 %v2322
    %4501 = vmatprep.subr.bf16.mxu0 0
    %4502 = vmatpush1.bf16.msra.mxu0 %v2323
    %4503 = vmatprep.subr.bf16.mxu0 0
    %4504 = vmatpush1.bf16.msra.mxu0 0
    %4505 = vmatprep.subr.bf16.mxu0 0
    %4506 = vmatpush1.bf16.msra.mxu0 0
    %4507 = vmatprep.subr.bf16.mxu0 0
    %4508 = vmatpush1.bf16.msra.mxu0 0
    %4509 = vmatprep.subr.bf16.mxu0 0
    %4510 = vmatpush1.bf16.msra.mxu0 0
    %4511 = vmatprep.subr.bf16.mxu0 0
    %4512 = vmatpush1.bf16.msra.mxu0 0
    %4513 = vmatprep.subr.bf16.mxu0 0
    %4514 = vmatpush1.bf16.msra.mxu0 0
    %4515 = vmatprep.subr.bf16.mxu0 0
    %4516 = vmatpush1.bf16.msra.mxu0 0
    %4517 = vmatprep.subr.bf16.mxu0 0
    %4518 = vmatpush1.bf16.msra.mxu0 0
    %4519 = vmatprep.mubr.bf16.mxu0 0
    %4520 = vmatmul.mubr.bf16.gmra.mrb[0].mxu0 %v4486
    %v4521 = vpop.f32.mrb[0].mxu0
    %v4522 = vadd.f32 %v1627, %v4521
    %v4523 = vpop.f32.mrb[0].mxu0
    %v4524 = vpop.f32.mrb[0].mxu0
    %v4525 = vpop.f32.mrb[0].mxu0
    %4526 = vdwg.mxu0
    %4527 = vmax.xlane.f32.xlu0 %v4522
    %v4528 = vpop.xlane.xlu0 %4527
    %v4529 = vsub.f32 %v4522, %v4528
    %v4530 = vmul.f32 %v4529, 1.442695
    %v4531 = vpow.pop %v4530
    %4532 = vadd.xlane.f32.xlu0 %v4531
    %v4533 = vpop.xlane.xlu0 %4532
    %v4534 = vlog2.pop %v4533
    %v4535 = vmul.f32 %v4534, 0.6931472
    %v4536 = vsub.f32 %v4529, %v4535
    %s4537 = scalar_lea.vmem %s11, 56
    %4538 = vst [vmem:[%s4537] sm:$0xff] %v4536
    %4539 = vst [vmem:[#allocation5] sm:$0xff] %v4352
    // Predicated region
    $region46: #{seq2seq_forward.1} parent=1 // pred_check
      _
    $region47: #{seq2seq_forward.1} parent=1 // pred_check_branch
      %4541 = sbr.rel (0) target = $region49
    $region48: #{seq2seq_forward.1} parent=1 // pred_region
      _
    $region49: #{seq2seq_forward.1} parent=1 // pred_fallthru
      _
    // Predicated region
    $region50: #{seq2seq_forward.1} parent=1 // pred_check
      _
    $region51: #{seq2seq_forward.1} parent=1 // pred_check_branch
      %4543 = sbr.rel (0) target = $region53
    $region52: #{seq2seq_forward.1} parent=1 // pred_region
      %s4545 = ssub.s32 128, 128
      %4546 = vsyncadd [#allocation6], %s4545
      %s4548 = sshll.u32 [#allocation5], 4
      %s4549 = int_to_ptr.vmem [resolvable:$true] %s4548
      %4551 = dma.vmem_to_hbm [thread:$0]  %s4549, 128, %s12, [#allocation6]
    $region53: #{seq2seq_forward.1} parent=1 // pred_fallthru
      _
    // Predicated region
    $region54: #{seq2seq_forward.1} parent=1 // pred_check
      _
    $region55: #{seq2seq_forward.1} parent=1 // pred_check_branch
      %4553 = sbr.rel (0) target = $region57
    $region56: #{seq2seq_forward.1} parent=1 // pred_region
      _
    $region57: #{seq2seq_forward.1} parent=1 // pred_fallthru
      _
    // Predicated region
    $region58: #{seq2seq_forward.1} parent=1 // pred_check
      _
    $region59: #{seq2seq_forward.1} parent=1 // pred_check_branch
      %4555 = sbr.rel (0) target = $region61
    $region60: #{seq2seq_forward.1} parent=1 // pred_region
      %4556 = dma.done [#allocation6], 128
    $region61: #{seq2seq_forward.1} parent=1 // pred_fallthru
      _
    %4557 = vsyncpa [#allocation6], 1

</llo_original>
